<compile_context>
chip_gen: v7x
topology: tpu7x:2x2x1
jax: 0.10.0
libtpu: 0.0.40
codegen_flags: <defaults>
</compile_context>

<pallas_src>
import math
from functools import partial

import jax
import jax.numpy as jnp
from jax import lax
from jax.experimental import pallas as pl
from jax.experimental.pallas import tpu as pltpu


_SCR_OFF = 64   # column offset of the second region in the shared scratch


# ----------------------------- in-kernel helpers ----------------------------

def _bdot(a, b):
    """MXU matmul: bf16 operands, f32 accumulation."""
    return jnp.dot(a.astype(jnp.bfloat16), b.astype(jnp.bfloat16),
                   preferred_element_type=jnp.float32)


def _bdot_t(a, b):
    """a @ b.T (contract last dims) without materializing a transpose."""
    return lax.dot_general(a.astype(jnp.bfloat16), b.astype(jnp.bfloat16),
                           (((1,), (1,)), ((), ())),
                           preferred_element_type=jnp.float32)


def _ln(x, g, b, eps=1e-5):
    mean = jnp.mean(x, axis=-1, keepdims=True)
    c = x - mean
    var = jnp.mean(c * c, axis=-1, keepdims=True)
    return c * lax.rsqrt(var + eps) * g + b


def _gelu(x):
    # exact (erf) GELU, matching torch.nn.GELU default
    return 0.5 * x * (1.0 + lax.erf(x * (1.0 / math.sqrt(2.0))))


def _softmax_rows(s):
    s = s - jnp.max(s, axis=-1, keepdims=True)
    p = jnp.exp(s)
    return p * pl.reciprocal(jnp.sum(p, axis=-1, keepdims=True), approx=True)


# -------------------------- fused-kernel sub-stages --------------------------
# Token buffer layout per branch (f32 VMEM scratch, shape (B*stride, dim)):
#   rows [b*stride, b*stride + n)  : patch tokens of batch b
#   row   b*stride + n             : cls token of batch b
#   rows (b*stride + n, (b+1)*stride): zero padding (never read into outputs)

def _embed(patch_ref, tok_ref, p, B, n, stride):
    """LayerNorm -> Linear -> LayerNorm, + cls token + positional embedding."""
    x = patch_ref[...]                                        # (B*n, patch_dim)
    xn = _ln(x, p["ln1_g"][...], p["ln1_b"][...])
    y = _ln(_bdot(xn, p["w"][...]) + p["b"][...],
            p["ln2_g"][...], p["ln2_b"][...])                 # (B*n, dim)
    pos = p["pos"][...]                                       # (n+1, dim)
    cls_row = p["cls"][...] + pos[0:1, :]                     # (1, dim)
    for b in range(B):
        r0 = b * stride
        tok_ref[r0:r0 + n, :] = y[b * n:(b + 1) * n, :] + pos[1:n + 1, :]
        tok_ref[r0 + n:r0 + n + 1, :] = cls_row


def _transformer(tok_ref, scr_ref, p, B, N, stride, heads, dim_head):
    """Stack of (PreNorm + self-attention + res, PreNorm + FF + res) layers."""
    inner = heads * dim_head
    rows = B * stride
    for layer in p["layers"]:
        ap, fp = layer["attn"], layer["ff"]
        # ---- PreNorm + multi-head self-attention + residual
        x = tok_ref[...]                                      # (rows, D) f32
        xn = _ln(x, ap["ln_g"][...], ap["ln_b"][...])
        qkv = _bdot(xn, ap["wqkv"][...]) + ap["bqkv"][...]    # (rows, 3*inner)
        for b in range(B):
            r0 = b * stride
            for h in range(heads):
                c = h * dim_head
                q = qkv[r0:r0 + N, c:c + dim_head]            # pre-scaled Q
                k = qkv[r0:r0 + N, inner + c:inner + c + dim_head]
                v = qkv[r0:r0 + N, 2 * inner + c:2 * inner + c + dim_head]
                attn = _softmax_rows(_bdot_t(q, k))           # (N, N) f32
                scr_ref[r0:r0 + N, c:c + dim_head] = _bdot(attn, v)
        o = scr_ref[0:rows, 0:inner]                          # merged heads
        x = x + _bdot(o, ap["wout"][...]) + ap["bout"][...]
        # ---- PreNorm + FeedForward (GELU) + residual
        xn = _ln(x, fp["ln_g"][...], fp["ln_b"][...])
        hdn = _gelu(_bdot(xn, fp["w1"][...]) + fp["b1"][...])
        tok_ref[...] = x + _bdot(hdn, fp["w2"][...]) + fp["b2"][...]


def _cross_direction(cls_ref, ctx_ref, scr_ref, p, B, cls_row, cls_stride,
                     ctx_stride, n_ctx, d_cls, d_ctx, heads, dim_head):
    """ProjectInOut(cross attention, kv_include_self=True) + residual, batched."""
    inner = heads * dim_head
    # gather the B cls rows into a (B, d_cls) matrix (scratch rows 0..B)
    for b in range(B):
        r = b * cls_stride + cls_row
        scr_ref[b:b + 1, 0:d_cls] = cls_ref[r:r + 1, :]
    cls = scr_ref[0:B, 0:d_cls]                               # (B, d_cls) f32
    h_in = _bdot(cls, p["w_pi"][...]) + p["b_pi"][...]        # project_in
    q = _bdot(h_in, p["wq"][...]) + p["bq"][...]              # (B, inner), pre-scaled
    kv_self = _bdot(h_in, p["wkv"][...]) + p["bkv"][...]      # (B, 2*inner)
    kv_ctx = _bdot(ctx_ref[...], p["wkv"][...]) + p["bkv"][...]   # all ctx rows
    for b in range(B):
        r0 = b * ctx_stride                                   # patch rows start
        for h in range(heads):
            ck, cv = h * dim_head, inner + h * dim_head
            q_bh = q[b:b + 1, ck:ck + dim_head]
            k_self = kv_self[b:b + 1, ck:ck + dim_head]
            v_self = kv_self[b:b + 1, cv:cv + dim_head]
            k_pat = kv_ctx[r0:r0 + n_ctx, ck:ck + dim_head]
            v_pat = kv_ctx[r0:r0 + n_ctx, cv:cv + dim_head]
            # softmax over [projected cls token, patch tokens]  (kv_include_self)
            s_self = jnp.sum(q_bh * k_self, axis=-1, keepdims=True)   # (1, 1)
            s_pat = _bdot_t(q_bh, k_pat)                              # (1, n_ctx)
            m = jnp.maximum(s_self, jnp.max(s_pat, axis=-1, keepdims=True))
            e_self = jnp.exp(s_self - m)
            e_pat = jnp.exp(s_pat - m)
            r = pl.reciprocal(e_self + jnp.sum(e_pat, axis=-1, keepdims=True),
                              approx=True)
            o_h = (e_self * v_self + _bdot(e_pat, v_pat)) * r         # (1, Dh)
            scr_ref[b:b + 1, _SCR_OFF + ck:_SCR_OFF + ck + dim_head] = o_h
    o = scr_ref[0:B, _SCR_OFF:_SCR_OFF + inner]               # merged heads
    attn_out = _bdot(o, p["wout"][...]) + p["bout"][...]      # out1
    new_cls = cls + _bdot(attn_out, p["w_po"][...]) + p["b_po"][...]  # proj_out + res
    for b in range(B):
        r = b * cls_stride + cls_row
        cls_ref[r:r + 1, :] = new_cls[b:b + 1, :]


# ------------------------------ fused mega-kernel ----------------------------

def _crossvit_kernel(*refs, treedef, n_leaves, kcfg):
    sm_patch_ref = refs[0]
    lg_patch_ref = refs[1]
    params = jax.tree_util.tree_unflatten(treedef, refs[2:2 + n_leaves])
    out_ref = refs[2 + n_leaves]
    sm_tok = refs[3 + n_leaves]
    lg_tok = refs[4 + n_leaves]
    scr = refs[5 + n_leaves]

    B = kcfg["B"]
    n_sm, n_lg = kcfg["n_sm"], kcfg["n_lg"]
    sm_dim, lg_dim = kcfg["sm_dim"], kcfg["lg_dim"]
    sm_stride, lg_stride = kcfg["sm_stride"], kcfg["lg_stride"]

    # zero-init scratch so padding rows stay finite (they are never read back
    # into any valid row / output anyway).
    sm_tok[...] = jnp.zeros(sm_tok.shape, jnp.float32)
    lg_tok[...] = jnp.zeros(lg_tok.shape, jnp.float32)
    scr[...] = jnp.zeros(scr.shape, jnp.float32)

    # ---- patch embedding (+ cls token + positional embedding), both branches
    _embed(sm_patch_ref, sm_tok, params["sm_emb"], B, n_sm, sm_stride)
    _embed(lg_patch_ref, lg_tok, params["lg_emb"], B, n_lg, lg_stride)

    # ---- multi-scale encoder
    # TODO(synk): on v7x the independent sm/lg transformer branches could be
    # sharded across the two TensorCores (pl.core_map + core barrier before the
    # cross-attention stage); kept single-core here (no-op on v5e/v6e).
    for enc_layer in params["encoder"]["layers"]:
        _transformer(sm_tok, scr, enc_layer["sm_T"], B, n_sm + 1, sm_stride,
                     kcfg["sm_heads"], kcfg["sm_dim_head"])
        _transformer(lg_tok, scr, enc_layer["lg_T"], B, n_lg + 1, lg_stride,
                     kcfg["lg_heads"], kcfg["lg_dim_head"])
        for cross_layer in enc_layer["cross_T"]["layers"]:
            _cross_direction(sm_tok, lg_tok, scr, cross_layer["sm_to_lg"], B,
                             cls_row=n_sm, cls_stride=sm_stride,
                             ctx_stride=lg_stride, n_ctx=n_lg,
                             d_cls=sm_dim, d_ctx=lg_dim,
                             heads=kcfg["cross_heads"],
                             dim_head=kcfg["cross_dim_head"])
            _cross_direction(lg_tok, sm_tok, scr, cross_layer["lg_to_sm"], B,
                             cls_row=n_lg, cls_stride=lg_stride,
                             ctx_stride=sm_stride, n_ctx=n_sm,
                             d_cls=lg_dim, d_ctx=sm_dim,
                             heads=kcfg["cross_heads"],
                             dim_head=kcfg["cross_dim_head"])

    # ---- classifier heads (both) + logit sum, padded to 128 lanes
    for b in range(B):
        scr[b:b + 1, 0:sm_dim] = sm_tok[b * sm_stride + n_sm:
                                        b * sm_stride + n_sm + 1, :]
        scr[b:b + 1, _SCR_OFF:_SCR_OFF + lg_dim] = lg_tok[b * lg_stride + n_lg:
                                                          b * lg_stride + n_lg + 1, :]
    sm_cls = scr[0:B, 0:sm_dim]
    lg_cls = scr[0:B, _SCR_OFF:_SCR_OFF + lg_dim]
    shp, lhp = params["sm_head"], params["lg_head"]
    sm_n = _ln(sm_cls, shp["ln_g"][...], shp["ln_b"][...])
    lg_n = _ln(lg_cls, lhp["ln_g"][...], lhp["ln_b"][...])
    out_ref[...] = (_bdot(sm_n, shp["w"][...]) + shp["b"][...]
                    + _bdot(lg_n, lhp["w"][...]) + lhp["b"][...])


# ------------------------------ host-side wrapper ----------------------------

def patchify(img, patch):
    # 'b c (h p1) (w p2) -> b (h w) (p1 p2 c)'
    B, C, H, W = img.shape
    h, w = H // patch, W // patch
    x = img.reshape(B, C, h, patch, w, patch)
    x = x.transpose(0, 2, 4, 3, 5, 1)          # b h w p1 p2 c
    return x.reshape(B, h * w, patch * patch * C)


def _round_up(x, m):
    return ((x + m - 1) // m) * m


def crossvit_fwd(params, img, cfg):
    B = img.shape[0]
    sm_p = patchify(img, cfg["sm_patch"])                    # (B, n_sm, pd_sm)
    lg_p = patchify(img, cfg["lg_patch"])                    # (B, n_lg, pd_lg)
    n_sm, pd_sm = sm_p.shape[1], sm_p.shape[2]
    n_lg, pd_lg = lg_p.shape[1], lg_p.shape[2]
    sm_p = sm_p.reshape(B * n_sm, pd_sm)
    lg_p = lg_p.reshape(B * n_lg, pd_lg)

    sm_stride = _round_up(n_sm + 1, 8)
    lg_stride = _round_up(n_lg + 1, 8)

    # shared-scratch layout assumptions
    assert max(cfg["sm_dim"], cfg["lg_dim"],
               cfg["sm_heads"] * cfg["sm_dim_head"],
               cfg["lg_heads"] * cfg["lg_dim_head"],
               cfg["cross_heads"] * cfg["cross_dim_head"]) <= _SCR_OFF
    assert cfg["num_classes"] <= 128

    leaves, treedef = jax.tree_util.tree_flatten(params)
    kcfg = dict(B=B, n_sm=n_sm, n_lg=n_lg,
                sm_stride=sm_stride, lg_stride=lg_stride,
                sm_dim=cfg["sm_dim"], lg_dim=cfg["lg_dim"],
                sm_heads=cfg["sm_heads"], sm_dim_head=cfg["sm_dim_head"],
                lg_heads=cfg["lg_heads"], lg_dim_head=cfg["lg_dim_head"],
                cross_heads=cfg["cross_heads"],
                cross_dim_head=cfg["cross_dim_head"])

    scr_rows = max(B * sm_stride, B * lg_stride, 8)
    logits_pad = pl.pallas_call(
        partial(_crossvit_kernel, treedef=treedef, n_leaves=len(leaves),
                kcfg=kcfg),
        out_shape=jax.ShapeDtypeStruct((B, 128), jnp.float32),
        scratch_shapes=[
            pltpu.VMEM((B * sm_stride, cfg["sm_dim"]), jnp.float32),  # sm tokens
            pltpu.VMEM((B * lg_stride, cfg["lg_dim"]), jnp.float32),  # lg tokens
            pltpu.VMEM((scr_rows, 128), jnp.float32),                 # shared scratch
        ],
    )(sm_p, lg_p, *leaves)
    return logits_pad[:, :cfg["num_classes"]]


# ------------------------------- parameter init ------------------------------
# Matmul weights are created directly in bf16 with 1/sqrt(dim_head) folded into
# the Q projection; LayerNorm params, biases, pos/cls embeddings stay f32.

def init_params(key, cfg):
    keys = iter(jax.random.split(key, 512))
    f32, bf16 = jnp.float32, jnp.bfloat16

    def nk():
        return next(keys)

    def wmat(i, o):
        return jax.random.normal(nk(), (i, o), f32) * 0.02

    def zeros(o):
        return jnp.zeros((1, o), f32)

    def ones(o):
        return jnp.ones((1, o), f32)

    def self_attn(dim, heads, dim_head):
        inner = heads * dim_head
        inv = 1.0 / (dim_head ** 0.5)            # fold attention scale into Q
        wqkv = jnp.concatenate(
            [wmat(dim, inner) * inv, wmat(dim, inner), wmat(dim, inner)], axis=1)
        return {"ln_g": ones(dim), "ln_b": zeros(dim),
                "wqkv": wqkv.astype(bf16), "bqkv": zeros(3 * inner),
                "wout": wmat(inner, dim).astype(bf16), "bout": zeros(dim)}

    def ff(dim, hidden):
        return {"ln_g": ones(dim), "ln_b": zeros(dim),
                "w1": wmat(dim, hidden).astype(bf16), "b1": zeros(hidden),
                "w2": wmat(hidden, dim).astype(bf16), "b2": zeros(dim)}

    def transformer(dim, depth, heads, dim_head, mlp_dim):
        return {"layers": [{"attn": self_attn(dim, heads, dim_head),
                            "ff": ff(dim, mlp_dim)} for _ in range(depth)]}

    def cross_attn(d_cls, d_ctx, heads, dim_head):
        inner = heads * dim_head
        inv = 1.0 / (dim_head ** 0.5)
        return {"w_pi": wmat(d_cls, d_ctx).astype(bf16), "b_pi": zeros(d_ctx),
                "wq": (wmat(d_ctx, inner) * inv).astype(bf16), "bq": zeros(inner),
                "wkv": wmat(d_ctx, 2 * inner).astype(bf16), "bkv": zeros(2 * inner),
                "wout": wmat(inner, d_ctx).astype(bf16), "bout": zeros(d_ctx),
                "w_po": wmat(d_ctx, d_cls).astype(bf16), "b_po": zeros(d_cls)}

    def cross_transformer(sm_dim, lg_dim, depth, heads, dim_head):
        return {"layers": [{"sm_to_lg": cross_attn(sm_dim, lg_dim, heads, dim_head),
                            "lg_to_sm": cross_attn(lg_dim, sm_dim, heads, dim_head)}
                           for _ in range(depth)]}

    def embedder(dim, image_size, patch):
        n = (image_size // patch) ** 2
        pd = 3 * patch * patch
        return {"ln1_g": ones(pd), "ln1_b": zeros(pd),
                "w": wmat(pd, dim).astype(bf16), "b": zeros(dim),
                "ln2_g": ones(dim), "ln2_b": zeros(dim),
                "pos": jax.random.normal(nk(), (n + 1, dim), f32),
                "cls": jax.random.normal(nk(), (1, dim), f32)}

    def head(dim, num_classes, pad_to=128):
        # zero-pad to 128 lanes -> unmasked logit stores; wrapper slices back
        w = jnp.zeros((dim, pad_to), f32).at[:, :num_classes].set(
            wmat(dim, num_classes))
        return {"ln_g": ones(dim), "ln_b": zeros(dim),
                "w": w.astype(bf16), "b": jnp.zeros((1, pad_to), f32)}

    enc_layers = []
    for _ in range(cfg["depth"]):
        enc_layers.append({
            "sm_T": transformer(cfg["sm_dim"], cfg["sm_enc_depth"], cfg["sm_heads"],
                                cfg["sm_dim_head"], cfg["sm_mlp_dim"]),
            "lg_T": transformer(cfg["lg_dim"], cfg["lg_enc_depth"], cfg["lg_heads"],
                                cfg["lg_dim_head"], cfg["lg_mlp_dim"]),
            "cross_T": cross_transformer(cfg["sm_dim"], cfg["lg_dim"],
                                         cfg["cross_depth"], cfg["cross_heads"],
                                         cfg["cross_dim_head"]),
        })

    return {"sm_emb": embedder(cfg["sm_dim"], cfg["image_size"], cfg["sm_patch"]),
            "lg_emb": embedder(cfg["lg_dim"], cfg["image_size"], cfg["lg_patch"]),
            "encoder": {"layers": enc_layers},
            "sm_head": head(cfg["sm_dim"], cfg["num_classes"]),
            "lg_head": head(cfg["lg_dim"], cfg["num_classes"])}


# ---------------------------------- main -------------------------------------

if __name__ == "__main__":
    cfg = dict(
        image_size=16, num_classes=10,
        sm_dim=32, lg_dim=48,
        sm_patch=4, lg_patch=8,
        sm_enc_depth=1, sm_heads=2, sm_mlp_dim=64, sm_dim_head=16,
        lg_enc_depth=1, lg_heads=2, lg_mlp_dim=64, lg_dim_head=16,
        cross_depth=1, cross_heads=2, cross_dim_head=16,
        depth=1,
    )
    key = jax.random.PRNGKey(0)
    pkey, ikey = jax.random.split(key)
    params = init_params(pkey, cfg)
    img = jax.random.normal(ikey, (2, 3, cfg["image_size"], cfg["image_size"]),
                            jnp.float32)
    fwd = jax.jit(lambda p, im: crossvit_fwd(p, im, cfg))
    logits = jax.block_until_ready(fwd(params, img))
    assert logits.shape == (2, cfg["num_classes"])
    assert bool(jnp.all(jnp.isfinite(logits)))
    print("KERNEL_OK")
</pallas_src>

<mosaic_0001>
module attributes {stable_mosaic.version = 11 : i64} {
  func.func @_crossvit_kernel(%arg0: memref<32x48xf32, #tpu.memory_space<vmem>>, %arg1: memref<8x192xf32, #tpu.memory_space<vmem>>, %arg2: memref<1x32xf32, #tpu.memory_space<vmem>>, %arg3: memref<1x48xf32, #tpu.memory_space<vmem>>, %arg4: memref<1x64xf32, #tpu.memory_space<vmem>>, %arg5: memref<1x32xf32, #tpu.memory_space<vmem>>, %arg6: memref<1x32xf32, #tpu.memory_space<vmem>>, %arg7: memref<48x32xbf16, #tpu.memory_space<vmem>>, %arg8: memref<32x48xbf16, #tpu.memory_space<vmem>>, %arg9: memref<32x64xbf16, #tpu.memory_space<vmem>>, %arg10: memref<32x32xbf16, #tpu.memory_space<vmem>>, %arg11: memref<32x32xbf16, #tpu.memory_space<vmem>>, %arg12: memref<1x48xf32, #tpu.memory_space<vmem>>, %arg13: memref<1x32xf32, #tpu.memory_space<vmem>>, %arg14: memref<1x64xf32, #tpu.memory_space<vmem>>, %arg15: memref<1x48xf32, #tpu.memory_space<vmem>>, %arg16: memref<1x32xf32, #tpu.memory_space<vmem>>, %arg17: memref<32x48xbf16, #tpu.memory_space<vmem>>, %arg18: memref<48x32xbf16, #tpu.memory_space<vmem>>, %arg19: memref<48x64xbf16, #tpu.memory_space<vmem>>, %arg20: memref<32x48xbf16, #tpu.memory_space<vmem>>, %arg21: memref<48x32xbf16, #tpu.memory_space<vmem>>, %arg22: memref<1x48xf32, #tpu.memory_space<vmem>>, %arg23: memref<1x96xf32, #tpu.memory_space<vmem>>, %arg24: memref<1x48xf32, #tpu.memory_space<vmem>>, %arg25: memref<1x48xf32, #tpu.memory_space<vmem>>, %arg26: memref<32x48xbf16, #tpu.memory_space<vmem>>, %arg27: memref<48x96xbf16, #tpu.memory_space<vmem>>, %arg28: memref<1x64xf32, #tpu.memory_space<vmem>>, %arg29: memref<1x48xf32, #tpu.memory_space<vmem>>, %arg30: memref<1x48xf32, #tpu.memory_space<vmem>>, %arg31: memref<1x48xf32, #tpu.memory_space<vmem>>, %arg32: memref<48x64xbf16, #tpu.memory_space<vmem>>, %arg33: memref<64x48xbf16, #tpu.memory_space<vmem>>, %arg34: memref<1x32xf32, #tpu.memory_space<vmem>>, %arg35: memref<1x96xf32, #tpu.memory_space<vmem>>, %arg36: memref<1x32xf32, #tpu.memory_space<vmem>>, %arg37: memref<1x32xf32, #tpu.memory_space<vmem>>, %arg38: memref<32x32xbf16, #tpu.memory_space<vmem>>, %arg39: memref<32x96xbf16, #tpu.memory_space<vmem>>, %arg40: memref<1x64xf32, #tpu.memory_space<vmem>>, %arg41: memref<1x32xf32, #tpu.memory_space<vmem>>, %arg42: memref<1x32xf32, #tpu.memory_space<vmem>>, %arg43: memref<1x32xf32, #tpu.memory_space<vmem>>, %arg44: memref<32x64xbf16, #tpu.memory_space<vmem>>, %arg45: memref<64x32xbf16, #tpu.memory_space<vmem>>, %arg46: memref<1x48xf32, #tpu.memory_space<vmem>>, %arg47: memref<1x48xf32, #tpu.memory_space<vmem>>, %arg48: memref<1x192xf32, #tpu.memory_space<vmem>>, %arg49: memref<1x192xf32, #tpu.memory_space<vmem>>, %arg50: memref<1x48xf32, #tpu.memory_space<vmem>>, %arg51: memref<1x48xf32, #tpu.memory_space<vmem>>, %arg52: memref<5x48xf32, #tpu.memory_space<vmem>>, %arg53: memref<192x48xbf16, #tpu.memory_space<vmem>>, %arg54: memref<1x128xf32, #tpu.memory_space<vmem>>, %arg55: memref<1x48xf32, #tpu.memory_space<vmem>>, %arg56: memref<1x48xf32, #tpu.memory_space<vmem>>, %arg57: memref<48x128xbf16, #tpu.memory_space<vmem>>, %arg58: memref<1x32xf32, #tpu.memory_space<vmem>>, %arg59: memref<1x32xf32, #tpu.memory_space<vmem>>, %arg60: memref<1x48xf32, #tpu.memory_space<vmem>>, %arg61: memref<1x48xf32, #tpu.memory_space<vmem>>, %arg62: memref<1x32xf32, #tpu.memory_space<vmem>>, %arg63: memref<1x32xf32, #tpu.memory_space<vmem>>, %arg64: memref<17x32xf32, #tpu.memory_space<vmem>>, %arg65: memref<48x32xbf16, #tpu.memory_space<vmem>>, %arg66: memref<1x128xf32, #tpu.memory_space<vmem>>, %arg67: memref<1x32xf32, #tpu.memory_space<vmem>>, %arg68: memref<1x32xf32, #tpu.memory_space<vmem>>, %arg69: memref<32x128xbf16, #tpu.memory_space<vmem>>, %arg70: memref<2x128xf32, #tpu.memory_space<vmem>>, %arg71: memref<48x32xf32, #tpu.memory_space<vmem>>, %arg72: memref<16x48xf32, #tpu.memory_space<vmem>>, %arg73: memref<48x128xf32, #tpu.memory_space<vmem>>) attributes {dimension_semantics = [], scalar_prefetch = 0 : i64, scratch_operands = 3 : i64, tpu.core_type = #tpu.core_type<tc>} {
    %cst = arith.constant 0.000000e+00 : f32
    %0 = vector.broadcast %cst : f32 to vector<48x32xf32>
    %c0 = arith.constant 0 : index
    %c0_0 = arith.constant 0 : index
    %1 = vector.load %arg71[%c0, %c0_0] : memref<48x32xf32, #tpu.memory_space<vmem>>, vector<48x32xf32>
    tpu.vector_store %arg71[%c0, %c0_0], %0 {strides = array<i32>} : memref<48x32xf32, #tpu.memory_space<vmem>>, vector<48x32xf32>,
    %cst_1 = arith.constant 0.000000e+00 : f32
    %2 = vector.broadcast %cst_1 : f32 to vector<16x48xf32>
    %c0_2 = arith.constant 0 : index
    %c0_3 = arith.constant 0 : index
    %3 = vector.load %arg72[%c0_2, %c0_3] : memref<16x48xf32, #tpu.memory_space<vmem>>, vector<16x48xf32>
    tpu.vector_store %arg72[%c0_2, %c0_3], %2 {strides = array<i32>} : memref<16x48xf32, #tpu.memory_space<vmem>>, vector<16x48xf32>,
    %cst_4 = arith.constant 0.000000e+00 : f32
    %4 = vector.broadcast %cst_4 : f32 to vector<48x128xf32>
    %c0_5 = arith.constant 0 : index
    %c0_6 = arith.constant 0 : index
    %5 = vector.load %arg73[%c0_5, %c0_6] : memref<48x128xf32, #tpu.memory_space<vmem>>, vector<48x128xf32>
    tpu.vector_store %arg73[%c0_5, %c0_6], %4 {strides = array<i32>} : memref<48x128xf32, #tpu.memory_space<vmem>>, vector<48x128xf32>,
    %c0_7 = arith.constant 0 : index
    %c0_8 = arith.constant 0 : index
    %6 = vector.load %arg0[%c0_7, %c0_8] : memref<32x48xf32, #tpu.memory_space<vmem>>, vector<32x48xf32>
    %c0_9 = arith.constant 0 : index
    %c0_10 = arith.constant 0 : index
    %7 = vector.load %arg61[%c0_9, %c0_10] : memref<1x48xf32, #tpu.memory_space<vmem>>, vector<1x48xf32>
    %c0_11 = arith.constant 0 : index
    %c0_12 = arith.constant 0 : index
    %8 = vector.load %arg60[%c0_11, %c0_12] : memref<1x48xf32, #tpu.memory_space<vmem>>, vector<1x48xf32>
    %cst_13 = arith.constant dense<0.000000e+00> : vector<32xf32>
    %9 = vector.multi_reduction <add>, %6, %cst_13 [1] : vector<32x48xf32> to vector<32xf32>
    %10 = vector.shape_cast %9 : vector<32xf32> to vector<32x1xf32>
    %cst_14 = arith.constant 4.800000e+01 : f32
    %11 = vector.broadcast %cst_14 : f32 to vector<32x1xf32>
    %12 = arith.divf %10, %11 : vector<32x1xf32>
    %13 = vector.broadcast %12 : vector<32x1xf32> to vector<32x48xf32>
    %14 = arith.subf %6, %13 : vector<32x48xf32>
    %15 = arith.mulf %14, %14 : vector<32x48xf32>
    %cst_15 = arith.constant dense<0.000000e+00> : vector<32xf32>
    %16 = vector.multi_reduction <add>, %15, %cst_15 [1] : vector<32x48xf32> to vector<32xf32>
    %17 = vector.shape_cast %16 : vector<32xf32> to vector<32x1xf32>
    %cst_16 = arith.constant 4.800000e+01 : f32
    %18 = vector.broadcast %cst_16 : f32 to vector<32x1xf32>
    %19 = arith.divf %17, %18 : vector<32x1xf32>
    %cst_17 = arith.constant 9.99999974E-6 : f32
    %20 = vector.broadcast %cst_17 : f32 to vector<32x1xf32>
    %21 = arith.addf %19, %20 : vector<32x1xf32>
    %22 = math.rsqrt %21 : vector<32x1xf32>
    %23 = vector.broadcast %22 : vector<32x1xf32> to vector<32x48xf32>
    %24 = arith.mulf %14, %23 : vector<32x48xf32>
    %25 = vector.broadcast %7 : vector<1x48xf32> to vector<32x48xf32>
    %26 = arith.mulf %24, %25 : vector<32x48xf32>
    %27 = vector.broadcast %8 : vector<1x48xf32> to vector<32x48xf32>
    %28 = arith.addf %26, %27 : vector<32x48xf32>
    %c0_18 = arith.constant 0 : index
    %c0_19 = arith.constant 0 : index
    %29 = vector.load %arg65[%c0_18, %c0_19] : memref<48x32xbf16, #tpu.memory_space<vmem>>, vector<48x32xbf16>
    %30 = arith.truncf %28 : vector<32x48xf32> to vector<32x48xbf16>
    %cst_20 = arith.constant dense<0.000000e+00> : vector<32x32xf32>
    %31 = tpu.matmul %30, %29, %cst_20 {dimension_numbers = #tpu.dot_dimension_numbers<[1], [0], [0], [1], [0, 0, 1, 1], [], []>} : vector<32x48xbf16>, vector<48x32xbf16>, vector<32x32xf32> -> vector<32x32xf32>
    %c0_21 = arith.constant 0 : index
    %c0_22 = arith.constant 0 : index
    %32 = vector.load %arg58[%c0_21, %c0_22] : memref<1x32xf32, #tpu.memory_space<vmem>>, vector<1x32xf32>
    %33 = vector.broadcast %32 : vector<1x32xf32> to vector<32x32xf32>
    %34 = arith.addf %31, %33 : vector<32x32xf32>
    %c0_23 = arith.constant 0 : index
    %c0_24 = arith.constant 0 : index
    %35 = vector.load %arg63[%c0_23, %c0_24] : memref<1x32xf32, #tpu.memory_space<vmem>>, vector<1x32xf32>
    %c0_25 = arith.constant 0 : index
    %c0_26 = arith.constant 0 : index
    %36 = vector.load %arg62[%c0_25, %c0_26] : memref<1x32xf32, #tpu.memory_space<vmem>>, vector<1x32xf32>
    %cst_27 = arith.constant dense<0.000000e+00> : vector<32xf32>
    %37 = vector.multi_reduction <add>, %34, %cst_27 [1] : vector<32x32xf32> to vector<32xf32>
    %38 = vector.shape_cast %37 : vector<32xf32> to vector<32x1xf32>
    %cst_28 = arith.constant 3.200000e+01 : f32
    %39 = vector.broadcast %cst_28 : f32 to vector<32x1xf32>
    %40 = arith.divf %38, %39 : vector<32x1xf32>
    %41 = vector.broadcast %40 : vector<32x1xf32> to vector<32x32xf32>
    %42 = arith.subf %34, %41 : vector<32x32xf32>
    %43 = arith.mulf %42, %42 : vector<32x32xf32>
    %cst_29 = arith.constant dense<0.000000e+00> : vector<32xf32>
    %44 = vector.multi_reduction <add>, %43, %cst_29 [1] : vector<32x32xf32> to vector<32xf32>
    %45 = vector.shape_cast %44 : vector<32xf32> to vector<32x1xf32>
    %cst_30 = arith.constant 3.200000e+01 : f32
    %46 = vector.broadcast %cst_30 : f32 to vector<32x1xf32>
    %47 = arith.divf %45, %46 : vector<32x1xf32>
    %cst_31 = arith.constant 9.99999974E-6 : f32
    %48 = vector.broadcast %cst_31 : f32 to vector<32x1xf32>
    %49 = arith.addf %47, %48 : vector<32x1xf32>
    %50 = math.rsqrt %49 : vector<32x1xf32>
    %51 = vector.broadcast %50 : vector<32x1xf32> to vector<32x32xf32>
    %52 = arith.mulf %42, %51 : vector<32x32xf32>
    %53 = vector.broadcast %35 : vector<1x32xf32> to vector<32x32xf32>
    %54 = arith.mulf %52, %53 : vector<32x32xf32>
    %55 = vector.broadcast %36 : vector<1x32xf32> to vector<32x32xf32>
    %56 = arith.addf %54, %55 : vector<32x32xf32>
    %c0_32 = arith.constant 0 : index
    %c0_33 = arith.constant 0 : index
    %57 = vector.load %arg64[%c0_32, %c0_33] : memref<17x32xf32, #tpu.memory_space<vmem>>, vector<17x32xf32>
    %c0_34 = arith.constant 0 : index
    %c0_35 = arith.constant 0 : index
    %58 = vector.load %arg59[%c0_34, %c0_35] : memref<1x32xf32, #tpu.memory_space<vmem>>, vector<1x32xf32>
    %59 = vector.extract_strided_slice %57 {offsets = [0, 0], sizes = [1, 32], strides = [1, 1]} : vector<17x32xf32> to vector<1x32xf32>
    %60 = arith.addf %58, %59 : vector<1x32xf32>
    %61 = vector.extract_strided_slice %56 {offsets = [0, 0], sizes = [16, 32], strides = [1, 1]} : vector<32x32xf32> to vector<16x32xf32>
    %62 = vector.extract_strided_slice %57 {offsets = [1, 0], sizes = [16, 32], strides = [1, 1]} : vector<17x32xf32> to vector<16x32xf32>
    %63 = arith.addf %61, %62 : vector<16x32xf32>
    %c0_36 = arith.constant 0 : index
    %c0_37 = arith.constant 0 : index
    %64 = vector.load %arg71[%c0_36, %c0_37] : memref<48x32xf32, #tpu.memory_space<vmem>>, vector<16x32xf32>
    tpu.vector_store %arg71[%c0_36, %c0_37], %63 {strides = array<i32>} : memref<48x32xf32, #tpu.memory_space<vmem>>, vector<16x32xf32>,
    %c16 = arith.constant 16 : index
    %c0_38 = arith.constant 0 : index
    %65 = vector.load %arg71[%c16, %c0_38] : memref<48x32xf32, #tpu.memory_space<vmem>>, vector<1x32xf32>
    tpu.vector_store %arg71[%c16, %c0_38], %60 {strides = array<i32>} : memref<48x32xf32, #tpu.memory_space<vmem>>, vector<1x32xf32>,
    %66 = vector.extract_strided_slice %56 {offsets = [16, 0], sizes = [16, 32], strides = [1, 1]} : vector<32x32xf32> to vector<16x32xf32>
    %67 = vector.extract_strided_slice %57 {offsets = [1, 0], sizes = [16, 32], strides = [1, 1]} : vector<17x32xf32> to vector<16x32xf32>
    %68 = arith.addf %66, %67 : vector<16x32xf32>
    %c24 = arith.constant 24 : index
    %c0_39 = arith.constant 0 : index
    %69 = vector.load %arg71[%c24, %c0_39] : memref<48x32xf32, #tpu.memory_space<vmem>>, vector<16x32xf32>
    tpu.vector_store %arg71[%c24, %c0_39], %68 {strides = array<i32>} : memref<48x32xf32, #tpu.memory_space<vmem>>, vector<16x32xf32>,
    %c40 = arith.constant 40 : index
    %c0_40 = arith.constant 0 : index
    %70 = vector.load %arg71[%c40, %c0_40] : memref<48x32xf32, #tpu.memory_space<vmem>>, vector<1x32xf32>
    tpu.vector_store %arg71[%c40, %c0_40], %60 {strides = array<i32>} : memref<48x32xf32, #tpu.memory_space<vmem>>, vector<1x32xf32>,
    %c0_41 = arith.constant 0 : index
    %c0_42 = arith.constant 0 : index
    %71 = vector.load %arg1[%c0_41, %c0_42] : memref<8x192xf32, #tpu.memory_space<vmem>>, vector<8x192xf32>
    %c0_43 = arith.constant 0 : index
    %c0_44 = arith.constant 0 : index
    %72 = vector.load %arg49[%c0_43, %c0_44] : memref<1x192xf32, #tpu.memory_space<vmem>>, vector<1x192xf32>
    %c0_45 = arith.constant 0 : index
    %c0_46 = arith.constant 0 : index
    %73 = vector.load %arg48[%c0_45, %c0_46] : memref<1x192xf32, #tpu.memory_space<vmem>>, vector<1x192xf32>
    %cst_47 = arith.constant dense<0.000000e+00> : vector<8xf32>
    %74 = vector.multi_reduction <add>, %71, %cst_47 [1] : vector<8x192xf32> to vector<8xf32>
    %75 = vector.shape_cast %74 : vector<8xf32> to vector<8x1xf32>
    %cst_48 = arith.constant 1.920000e+02 : f32
    %76 = vector.broadcast %cst_48 : f32 to vector<8x1xf32>
    %77 = arith.divf %75, %76 : vector<8x1xf32>
    %78 = vector.broadcast %77 : vector<8x1xf32> to vector<8x192xf32>
    %79 = arith.subf %71, %78 : vector<8x192xf32>
    %80 = arith.mulf %79, %79 : vector<8x192xf32>
    %cst_49 = arith.constant dense<0.000000e+00> : vector<8xf32>
    %81 = vector.multi_reduction <add>, %80, %cst_49 [1] : vector<8x192xf32> to vector<8xf32>
    %82 = vector.shape_cast %81 : vector<8xf32> to vector<8x1xf32>
    %cst_50 = arith.constant 1.920000e+02 : f32
    %83 = vector.broadcast %cst_50 : f32 to vector<8x1xf32>
    %84 = arith.divf %82, %83 : vector<8x1xf32>
    %cst_51 = arith.constant 9.99999974E-6 : f32
    %85 = vector.broadcast %cst_51 : f32 to vector<8x1xf32>
    %86 = arith.addf %84, %85 : vector<8x1xf32>
    %87 = math.rsqrt %86 : vector<8x1xf32>
    %88 = vector.broadcast %87 : vector<8x1xf32> to vector<8x192xf32>
    %89 = arith.mulf %79, %88 : vector<8x192xf32>
    %90 = vector.broadcast %72 : vector<1x192xf32> to vector<8x192xf32>
    %91 = arith.mulf %89, %90 : vector<8x192xf32>
    %92 = vector.broadcast %73 : vector<1x192xf32> to vector<8x192xf32>
    %93 = arith.addf %91, %92 : vector<8x192xf32>
    %c0_52 = arith.constant 0 : index
    %c0_53 = arith.constant 0 : index
    %94 = vector.load %arg53[%c0_52, %c0_53] : memref<192x48xbf16, #tpu.memory_space<vmem>>, vector<192x48xbf16>
    %95 = arith.truncf %93 : vector<8x192xf32> to vector<8x192xbf16>
    %cst_54 = arith.constant dense<0.000000e+00> : vector<8x48xf32>
    %96 = tpu.matmul %95, %94, %cst_54 {dimension_numbers = #tpu.dot_dimension_numbers<[1], [0], [0], [1], [0, 0, 1, 1], [], []>} : vector<8x192xbf16>, vector<192x48xbf16>, vector<8x48xf32> -> vector<8x48xf32>
    %c0_55 = arith.constant 0 : index
    %c0_56 = arith.constant 0 : index
    %97 = vector.load %arg46[%c0_55, %c0_56] : memref<1x48xf32, #tpu.memory_space<vmem>>, vector<1x48xf32>
    %98 = vector.broadcast %97 : vector<1x48xf32> to vector<8x48xf32>
    %99 = arith.addf %96, %98 : vector<8x48xf32>
    %c0_57 = arith.constant 0 : index
    %c0_58 = arith.constant 0 : index
    %100 = vector.load %arg51[%c0_57, %c0_58] : memref<1x48xf32, #tpu.memory_space<vmem>>, vector<1x48xf32>
    %c0_59 = arith.constant 0 : index
    %c0_60 = arith.constant 0 : index
    %101 = vector.load %arg50[%c0_59, %c0_60] : memref<1x48xf32, #tpu.memory_space<vmem>>, vector<1x48xf32>
    %cst_61 = arith.constant dense<0.000000e+00> : vector<8xf32>
    %102 = vector.multi_reduction <add>, %99, %cst_61 [1] : vector<8x48xf32> to vector<8xf32>
    %103 = vector.shape_cast %102 : vector<8xf32> to vector<8x1xf32>
    %cst_62 = arith.constant 4.800000e+01 : f32
    %104 = vector.broadcast %cst_62 : f32 to vector<8x1xf32>
    %105 = arith.divf %103, %104 : vector<8x1xf32>
    %106 = vector.broadcast %105 : vector<8x1xf32> to vector<8x48xf32>
    %107 = arith.subf %99, %106 : vector<8x48xf32>
    %108 = arith.mulf %107, %107 : vector<8x48xf32>
    %cst_63 = arith.constant dense<0.000000e+00> : vector<8xf32>
    %109 = vector.multi_reduction <add>, %108, %cst_63 [1] : vector<8x48xf32> to vector<8xf32>
    %110 = vector.shape_cast %109 : vector<8xf32> to vector<8x1xf32>
    %cst_64 = arith.constant 4.800000e+01 : f32
    %111 = vector.broadcast %cst_64 : f32 to vector<8x1xf32>
    %112 = arith.divf %110, %111 : vector<8x1xf32>
    %cst_65 = arith.constant 9.99999974E-6 : f32
    %113 = vector.broadcast %cst_65 : f32 to vector<8x1xf32>
    %114 = arith.addf %112, %113 : vector<8x1xf32>
    %115 = math.rsqrt %114 : vector<8x1xf32>
    %116 = vector.broadcast %115 : vector<8x1xf32> to vector<8x48xf32>
    %117 = arith.mulf %107, %116 : vector<8x48xf32>
    %118 = vector.broadcast %100 : vector<1x48xf32> to vector<8x48xf32>
    %119 = arith.mulf %117, %118 : vector<8x48xf32>
    %120 = vector.broadcast %101 : vector<1x48xf32> to vector<8x48xf32>
    %121 = arith.addf %119, %120 : vector<8x48xf32>
    %c0_66 = arith.constant 0 : index
    %c0_67 = arith.constant 0 : index
    %122 = vector.load %arg52[%c0_66, %c0_67] : memref<5x48xf32, #tpu.memory_space<vmem>>, vector<5x48xf32>
    %c0_68 = arith.constant 0 : index
    %c0_69 = arith.constant 0 : index
    %123 = vector.load %arg47[%c0_68, %c0_69] : memref<1x48xf32, #tpu.memory_space<vmem>>, vector<1x48xf32>
    %124 = vector.extract_strided_slice %122 {offsets = [0, 0], sizes = [1, 48], strides = [1, 1]} : vector<5x48xf32> to vector<1x48xf32>
    %125 = arith.addf %123, %124 : vector<1x48xf32>
    %126 = vector.extract_strided_slice %121 {offsets = [0, 0], sizes = [4, 48], strides = [1, 1]} : vector<8x48xf32> to vector<4x48xf32>
    %127 = vector.extract_strided_slice %122 {offsets = [1, 0], sizes = [4, 48], strides = [1, 1]} : vector<5x48xf32> to vector<4x48xf32>
    %128 = arith.addf %126, %127 : vector<4x48xf32>
    %c0_70 = arith.constant 0 : index
    %c0_71 = arith.constant 0 : index
    %129 = vector.load %arg72[%c0_70, %c0_71] : memref<16x48xf32, #tpu.memory_space<vmem>>, vector<4x48xf32>
    tpu.vector_store %arg72[%c0_70, %c0_71], %128 {strides = array<i32>} : memref<16x48xf32, #tpu.memory_space<vmem>>, vector<4x48xf32>,
    %c4 = arith.constant 4 : index
    %c0_72 = arith.constant 0 : index
    %130 = vector.load %arg72[%c4, %c0_72] : memref<16x48xf32, #tpu.memory_space<vmem>>, vector<1x48xf32>
    tpu.vector_store %arg72[%c4, %c0_72], %125 {strides = array<i32>} : memref<16x48xf32, #tpu.memory_space<vmem>>, vector<1x48xf32>,
    %131 = vector.extract_strided_slice %121 {offsets = [4, 0], sizes = [4, 48], strides = [1, 1]} : vector<8x48xf32> to vector<4x48xf32>
    %132 = vector.extract_strided_slice %122 {offsets = [1, 0], sizes = [4, 48], strides = [1, 1]} : vector<5x48xf32> to vector<4x48xf32>
    %133 = arith.addf %131, %132 : vector<4x48xf32>
    %c8 = arith.constant 8 : index
    %c0_73 = arith.constant 0 : index
    %134 = vector.load %arg72[%c8, %c0_73] : memref<16x48xf32, #tpu.memory_space<vmem>>, vector<4x48xf32>
    tpu.vector_store %arg72[%c8, %c0_73], %133 {strides = array<i32>} : memref<16x48xf32, #tpu.memory_space<vmem>>, vector<4x48xf32>,
    %c12 = arith.constant 12 : index
    %c0_74 = arith.constant 0 : index
    %135 = vector.load %arg72[%c12, %c0_74] : memref<16x48xf32, #tpu.memory_space<vmem>>, vector<1x48xf32>
    tpu.vector_store %arg72[%c12, %c0_74], %125 {strides = array<i32>} : memref<16x48xf32, #tpu.memory_space<vmem>>, vector<1x48xf32>,
    %c0_75 = arith.constant 0 : index
    %c0_76 = arith.constant 0 : index
    %136 = vector.load %arg71[%c0_75, %c0_76] : memref<48x32xf32, #tpu.memory_space<vmem>>, vector<48x32xf32>
    %c0_77 = arith.constant 0 : index
    %c0_78 = arith.constant 0 : index
    %137 = vector.load %arg37[%c0_77, %c0_78] : memref<1x32xf32, #tpu.memory_space<vmem>>, vector<1x32xf32>
    %c0_79 = arith.constant 0 : index
    %c0_80 = arith.constant 0 : index
    %138 = vector.load %arg36[%c0_79, %c0_80] : memref<1x32xf32, #tpu.memory_space<vmem>>, vector<1x32xf32>
    %cst_81 = arith.constant dense<0.000000e+00> : vector<48xf32>
    %139 = vector.multi_reduction <add>, %136, %cst_81 [1] : vector<48x32xf32> to vector<48xf32>
    %140 = vector.shape_cast %139 : vector<48xf32> to vector<48x1xf32>
    %cst_82 = arith.constant 3.200000e+01 : f32
    %141 = vector.broadcast %cst_82 : f32 to vector<48x1xf32>
    %142 = arith.divf %140, %141 : vector<48x1xf32>
    %143 = vector.broadcast %142 : vector<48x1xf32> to vector<48x32xf32>
    %144 = arith.subf %136, %143 : vector<48x32xf32>
    %145 = arith.mulf %144, %144 : vector<48x32xf32>
    %cst_83 = arith.constant dense<0.000000e+00> : vector<48xf32>
    %146 = vector.multi_reduction <add>, %145, %cst_83 [1] : vector<48x32xf32> to vector<48xf32>
    %147 = vector.shape_cast %146 : vector<48xf32> to vector<48x1xf32>
    %cst_84 = arith.constant 3.200000e+01 : f32
    %148 = vector.broadcast %cst_84 : f32 to vector<48x1xf32>
    %149 = arith.divf %147, %148 : vector<48x1xf32>
    %cst_85 = arith.constant 9.99999974E-6 : f32
    %150 = vector.broadcast %cst_85 : f32 to vector<48x1xf32>
    %151 = arith.addf %149, %150 : vector<48x1xf32>
    %152 = math.rsqrt %151 : vector<48x1xf32>
    %153 = vector.broadcast %152 : vector<48x1xf32> to vector<48x32xf32>
    %154 = arith.mulf %144, %153 : vector<48x32xf32>
    %155 = vector.broadcast %137 : vector<1x32xf32> to vector<48x32xf32>
    %156 = arith.mulf %154, %155 : vector<48x32xf32>
    %157 = vector.broadcast %138 : vector<1x32xf32> to vector<48x32xf32>
    %158 = arith.addf %156, %157 : vector<48x32xf32>
    %c0_86 = arith.constant 0 : index
    %c0_87 = arith.constant 0 : index
    %159 = vector.load %arg39[%c0_86, %c0_87] : memref<32x96xbf16, #tpu.memory_space<vmem>>, vector<32x96xbf16>
    %160 = arith.truncf %158 : vector<48x32xf32> to vector<48x32xbf16>
    %cst_88 = arith.constant dense<0.000000e+00> : vector<48x96xf32>
    %161 = tpu.matmul %160, %159, %cst_88 {dimension_numbers = #tpu.dot_dimension_numbers<[1], [0], [0], [1], [0, 0, 1, 1], [], []>} : vector<48x32xbf16>, vector<32x96xbf16>, vector<48x96xf32> -> vector<48x96xf32>
    %c0_89 = arith.constant 0 : index
    %c0_90 = arith.constant 0 : index
    %162 = vector.load %arg35[%c0_89, %c0_90] : memref<1x96xf32, #tpu.memory_space<vmem>>, vector<1x96xf32>
    %163 = vector.broadcast %162 : vector<1x96xf32> to vector<48x96xf32>
    %164 = arith.addf %161, %163 : vector<48x96xf32>
    %165 = vector.extract_strided_slice %164 {offsets = [0, 0], sizes = [17, 16], strides = [1, 1]} : vector<48x96xf32> to vector<17x16xf32>
    %166 = vector.extract_strided_slice %164 {offsets = [0, 32], sizes = [17, 16], strides = [1, 1]} : vector<48x96xf32> to vector<17x16xf32>
    %167 = vector.extract_strided_slice %164 {offsets = [0, 64], sizes = [17, 16], strides = [1, 1]} : vector<48x96xf32> to vector<17x16xf32>
    %168 = arith.truncf %165 : vector<17x16xf32> to vector<17x16xbf16>
    %169 = arith.truncf %166 : vector<17x16xf32> to vector<17x16xbf16>
    %cst_91 = arith.constant dense<0.000000e+00> : vector<17x17xf32>
    %170 = tpu.matmul %168, %169, %cst_91 {dimension_numbers = #tpu.dot_dimension_numbers<[1], [1], [0], [0], [0, 0, 1, 0], [], []>} : vector<17x16xbf16>, vector<17x16xbf16>, vector<17x17xf32> -> vector<17x17xf32>
    %cst_92 = arith.constant dense<0xFF800000> : vector<17xf32>
    %171 = vector.multi_reduction <maximumf>, %170, %cst_92 [1] : vector<17x17xf32> to vector<17xf32>
    %172 = vector.shape_cast %171 : vector<17xf32> to vector<17x1xf32>
    %173 = vector.broadcast %172 : vector<17x1xf32> to vector<17x17xf32>
    %174 = arith.subf %170, %173 : vector<17x17xf32>
    %175 = math.exp %174 : vector<17x17xf32>
    %cst_93 = arith.constant dense<0.000000e+00> : vector<17xf32>
    %176 = vector.multi_reduction <add>, %175, %cst_93 [1] : vector<17x17xf32> to vector<17xf32>
    %177 = vector.shape_cast %176 : vector<17xf32> to vector<17x1xf32>
    %178 = tpu.reciprocal %177 {approx = true} : vector<17x1xf32> -> vector<17x1xf32>
    %179 = vector.broadcast %178 : vector<17x1xf32> to vector<17x17xf32>
    %180 = arith.mulf %175, %179 : vector<17x17xf32>
    %181 = arith.truncf %180 : vector<17x17xf32> to vector<17x17xbf16>
    %182 = arith.truncf %167 : vector<17x16xf32> to vector<17x16xbf16>
    %cst_94 = arith.constant dense<0.000000e+00> : vector<17x16xf32>
    %183 = tpu.matmul %181, %182, %cst_94 {dimension_numbers = #tpu.dot_dimension_numbers<[1], [0], [0], [1], [0, 0, 1, 1], [], []>} : vector<17x17xbf16>, vector<17x16xbf16>, vector<17x16xf32> -> vector<17x16xf32>
    %c0_95 = arith.constant 0 : index
    %c0_96 = arith.constant 0 : index
    %184 = vector.load %arg73[%c0_95, %c0_96] : memref<48x128xf32, #tpu.memory_space<vmem>>, vector<17x16xf32>
    tpu.vector_store %arg73[%c0_95, %c0_96], %183 {strides = array<i32>} : memref<48x128xf32, #tpu.memory_space<vmem>>, vector<17x16xf32>,
    %185 = vector.extract_strided_slice %164 {offsets = [0, 16], sizes = [17, 16], strides = [1, 1]} : vector<48x96xf32> to vector<17x16xf32>
    %186 = vector.extract_strided_slice %164 {offsets = [0, 48], sizes = [17, 16], strides = [1, 1]} : vector<48x96xf32> to vector<17x16xf32>
    %187 = vector.extract_strided_slice %164 {offsets = [0, 80], sizes = [17, 16], strides = [1, 1]} : vector<48x96xf32> to vector<17x16xf32>
    %188 = arith.truncf %185 : vector<17x16xf32> to vector<17x16xbf16>
    %189 = arith.truncf %186 : vector<17x16xf32> to vector<17x16xbf16>
    %cst_97 = arith.constant dense<0.000000e+00> : vector<17x17xf32>
    %190 = tpu.matmul %188, %189, %cst_97 {dimension_numbers = #tpu.dot_dimension_numbers<[1], [1], [0], [0], [0, 0, 1, 0], [], []>} : vector<17x16xbf16>, vector<17x16xbf16>, vector<17x17xf32> -> vector<17x17xf32>
    %cst_98 = arith.constant dense<0xFF800000> : vector<17xf32>
    %191 = vector.multi_reduction <maximumf>, %190, %cst_98 [1] : vector<17x17xf32> to vector<17xf32>
    %192 = vector.shape_cast %191 : vector<17xf32> to vector<17x1xf32>
    %193 = vector.broadcast %192 : vector<17x1xf32> to vector<17x17xf32>
    %194 = arith.subf %190, %193 : vector<17x17xf32>
    %195 = math.exp %194 : vector<17x17xf32>
    %cst_99 = arith.constant dense<0.000000e+00> : vector<17xf32>
    %196 = vector.multi_reduction <add>, %195, %cst_99 [1] : vector<17x17xf32> to vector<17xf32>
    %197 = vector.shape_cast %196 : vector<17xf32> to vector<17x1xf32>
    %198 = tpu.reciprocal %197 {approx = true} : vector<17x1xf32> -> vector<17x1xf32>
    %199 = vector.broadcast %198 : vector<17x1xf32> to vector<17x17xf32>
    %200 = arith.mulf %195, %199 : vector<17x17xf32>
    %201 = arith.truncf %200 : vector<17x17xf32> to vector<17x17xbf16>
    %202 = arith.truncf %187 : vector<17x16xf32> to vector<17x16xbf16>
    %cst_100 = arith.constant dense<0.000000e+00> : vector<17x16xf32>
    %203 = tpu.matmul %201, %202, %cst_100 {dimension_numbers = #tpu.dot_dimension_numbers<[1], [0], [0], [1], [0, 0, 1, 1], [], []>} : vector<17x17xbf16>, vector<17x16xbf16>, vector<17x16xf32> -> vector<17x16xf32>
    %c0_101 = arith.constant 0 : index
    %c16_102 = arith.constant 16 : index
    %204 = vector.load %arg73[%c0_101, %c16_102] : memref<48x128xf32, #tpu.memory_space<vmem>>, vector<17x16xf32>
    tpu.vector_store %arg73[%c0_101, %c16_102], %203 {strides = array<i32>} : memref<48x128xf32, #tpu.memory_space<vmem>>, vector<17x16xf32>,
    %205 = vector.extract_strided_slice %164 {offsets = [24, 0], sizes = [17, 16], strides = [1, 1]} : vector<48x96xf32> to vector<17x16xf32>
    %206 = vector.extract_strided_slice %164 {offsets = [24, 32], sizes = [17, 16], strides = [1, 1]} : vector<48x96xf32> to vector<17x16xf32>
    %207 = vector.extract_strided_slice %164 {offsets = [24, 64], sizes = [17, 16], strides = [1, 1]} : vector<48x96xf32> to vector<17x16xf32>
    %208 = arith.truncf %205 : vector<17x16xf32> to vector<17x16xbf16>
    %209 = arith.truncf %206 : vector<17x16xf32> to vector<17x16xbf16>
    %cst_103 = arith.constant dense<0.000000e+00> : vector<17x17xf32>
    %210 = tpu.matmul %208, %209, %cst_103 {dimension_numbers = #tpu.dot_dimension_numbers<[1], [1], [0], [0], [0, 0, 1, 0], [], []>} : vector<17x16xbf16>, vector<17x16xbf16>, vector<17x17xf32> -> vector<17x17xf32>
    %cst_104 = arith.constant dense<0xFF800000> : vector<17xf32>
    %211 = vector.multi_reduction <maximumf>, %210, %cst_104 [1] : vector<17x17xf32> to vector<17xf32>
    %212 = vector.shape_cast %211 : vector<17xf32> to vector<17x1xf32>
    %213 = vector.broadcast %212 : vector<17x1xf32> to vector<17x17xf32>
    %214 = arith.subf %210, %213 : vector<17x17xf32>
    %215 = math.exp %214 : vector<17x17xf32>
    %cst_105 = arith.constant dense<0.000000e+00> : vector<17xf32>
    %216 = vector.multi_reduction <add>, %215, %cst_105 [1] : vector<17x17xf32> to vector<17xf32>
    %217 = vector.shape_cast %216 : vector<17xf32> to vector<17x1xf32>
    %218 = tpu.reciprocal %217 {approx = true} : vector<17x1xf32> -> vector<17x1xf32>
    %219 = vector.broadcast %218 : vector<17x1xf32> to vector<17x17xf32>
    %220 = arith.mulf %215, %219 : vector<17x17xf32>
    %221 = arith.truncf %220 : vector<17x17xf32> to vector<17x17xbf16>
    %222 = arith.truncf %207 : vector<17x16xf32> to vector<17x16xbf16>
    %cst_106 = arith.constant dense<0.000000e+00> : vector<17x16xf32>
    %223 = tpu.matmul %221, %222, %cst_106 {dimension_numbers = #tpu.dot_dimension_numbers<[1], [0], [0], [1], [0, 0, 1, 1], [], []>} : vector<17x17xbf16>, vector<17x16xbf16>, vector<17x16xf32> -> vector<17x16xf32>
    %c24_107 = arith.constant 24 : index
    %c0_108 = arith.constant 0 : index
    %224 = vector.load %arg73[%c24_107, %c0_108] : memref<48x128xf32, #tpu.memory_space<vmem>>, vector<17x16xf32>
    tpu.vector_store %arg73[%c24_107, %c0_108], %223 {strides = array<i32>} : memref<48x128xf32, #tpu.memory_space<vmem>>, vector<17x16xf32>,
    %225 = vector.extract_strided_slice %164 {offsets = [24, 16], sizes = [17, 16], strides = [1, 1]} : vector<48x96xf32> to vector<17x16xf32>
    %226 = vector.extract_strided_slice %164 {offsets = [24, 48], sizes = [17, 16], strides = [1, 1]} : vector<48x96xf32> to vector<17x16xf32>
    %227 = vector.extract_strided_slice %164 {offsets = [24, 80], sizes = [17, 16], strides = [1, 1]} : vector<48x96xf32> to vector<17x16xf32>
    %228 = arith.truncf %225 : vector<17x16xf32> to vector<17x16xbf16>
    %229 = arith.truncf %226 : vector<17x16xf32> to vector<17x16xbf16>
    %cst_109 = arith.constant dense<0.000000e+00> : vector<17x17xf32>
    %230 = tpu.matmul %228, %229, %cst_109 {dimension_numbers = #tpu.dot_dimension_numbers<[1], [1], [0], [0], [0, 0, 1, 0], [], []>} : vector<17x16xbf16>, vector<17x16xbf16>, vector<17x17xf32> -> vector<17x17xf32>
    %cst_110 = arith.constant dense<0xFF800000> : vector<17xf32>
    %231 = vector.multi_reduction <maximumf>, %230, %cst_110 [1] : vector<17x17xf32> to vector<17xf32>
    %232 = vector.shape_cast %231 : vector<17xf32> to vector<17x1xf32>
    %233 = vector.broadcast %232 : vector<17x1xf32> to vector<17x17xf32>
    %234 = arith.subf %230, %233 : vector<17x17xf32>
    %235 = math.exp %234 : vector<17x17xf32>
    %cst_111 = arith.constant dense<0.000000e+00> : vector<17xf32>
    %236 = vector.multi_reduction <add>, %235, %cst_111 [1] : vector<17x17xf32> to vector<17xf32>
    %237 = vector.shape_cast %236 : vector<17xf32> to vector<17x1xf32>
    %238 = tpu.reciprocal %237 {approx = true} : vector<17x1xf32> -> vector<17x1xf32>
    %239 = vector.broadcast %238 : vector<17x1xf32> to vector<17x17xf32>
    %240 = arith.mulf %235, %239 : vector<17x17xf32>
    %241 = arith.truncf %240 : vector<17x17xf32> to vector<17x17xbf16>
    %242 = arith.truncf %227 : vector<17x16xf32> to vector<17x16xbf16>
    %cst_112 = arith.constant dense<0.000000e+00> : vector<17x16xf32>
    %243 = tpu.matmul %241, %242, %cst_112 {dimension_numbers = #tpu.dot_dimension_numbers<[1], [0], [0], [1], [0, 0, 1, 1], [], []>} : vector<17x17xbf16>, vector<17x16xbf16>, vector<17x16xf32> -> vector<17x16xf32>
    %c24_113 = arith.constant 24 : index
    %c16_114 = arith.constant 16 : index
    %244 = vector.load %arg73[%c24_113, %c16_114] : memref<48x128xf32, #tpu.memory_space<vmem>>, vector<17x16xf32>
    tpu.vector_store %arg73[%c24_113, %c16_114], %243 {strides = array<i32>} : memref<48x128xf32, #tpu.memory_space<vmem>>, vector<17x16xf32>,
    %c0_115 = arith.constant 0 : index
    %c0_116 = arith.constant 0 : index
    %245 = vector.load %arg73[%c0_115, %c0_116] : memref<48x128xf32, #tpu.memory_space<vmem>>, vector<48x32xf32>
    %c0_117 = arith.constant 0 : index
    %c0_118 = arith.constant 0 : index
    %246 = vector.load %arg38[%c0_117, %c0_118] : memref<32x32xbf16, #tpu.memory_space<vmem>>, vector<32x32xbf16>
    %247 = arith.truncf %245 : vector<48x32xf32> to vector<48x32xbf16>
    %cst_119 = arith.constant dense<0.000000e+00> : vector<48x32xf32>
    %248 = tpu.matmul %247, %246, %cst_119 {dimension_numbers = #tpu.dot_dimension_numbers<[1], [0], [0], [1], [0, 0, 1, 1], [], []>} : vector<48x32xbf16>, vector<32x32xbf16>, vector<48x32xf32> -> vector<48x32xf32>
    %249 = arith.addf %136, %248 : vector<48x32xf32>
    %c0_120 = arith.constant 0 : index
    %c0_121 = arith.constant 0 : index
    %250 = vector.load %arg34[%c0_120, %c0_121] : memref<1x32xf32, #tpu.memory_space<vmem>>, vector<1x32xf32>
    %251 = vector.broadcast %250 : vector<1x32xf32> to vector<48x32xf32>
    %252 = arith.addf %249, %251 : vector<48x32xf32>
    %c0_122 = arith.constant 0 : index
    %c0_123 = arith.constant 0 : index
    %253 = vector.load %arg43[%c0_122, %c0_123] : memref<1x32xf32, #tpu.memory_space<vmem>>, vector<1x32xf32>
    %c0_124 = arith.constant 0 : index
    %c0_125 = arith.constant 0 : index
    %254 = vector.load %arg42[%c0_124, %c0_125] : memref<1x32xf32, #tpu.memory_space<vmem>>, vector<1x32xf32>
    %cst_126 = arith.constant dense<0.000000e+00> : vector<48xf32>
    %255 = vector.multi_reduction <add>, %252, %cst_126 [1] : vector<48x32xf32> to vector<48xf32>
    %256 = vector.shape_cast %255 : vector<48xf32> to vector<48x1xf32>
    %cst_127 = arith.constant 3.200000e+01 : f32
    %257 = vector.broadcast %cst_127 : f32 to vector<48x1xf32>
    %258 = arith.divf %256, %257 : vector<48x1xf32>
    %259 = vector.broadcast %258 : vector<48x1xf32> to vector<48x32xf32>
    %260 = arith.subf %252, %259 : vector<48x32xf32>
    %261 = arith.mulf %260, %260 : vector<48x32xf32>
    %cst_128 = arith.constant dense<0.000000e+00> : vector<48xf32>
    %262 = vector.multi_reduction <add>, %261, %cst_128 [1] : vector<48x32xf32> to vector<48xf32>
    %263 = vector.shape_cast %262 : vector<48xf32> to vector<48x1xf32>
    %cst_129 = arith.constant 3.200000e+01 : f32
    %264 = vector.broadcast %cst_129 : f32 to vector<48x1xf32>
    %265 = arith.divf %263, %264 : vector<48x1xf32>
    %cst_130 = arith.constant 9.99999974E-6 : f32
    %266 = vector.broadcast %cst_130 : f32 to vector<48x1xf32>
    %267 = arith.addf %265, %266 : vector<48x1xf32>
    %268 = math.rsqrt %267 : vector<48x1xf32>
    %269 = vector.broadcast %268 : vector<48x1xf32> to vector<48x32xf32>
    %270 = arith.mulf %260, %269 : vector<48x32xf32>
    %271 = vector.broadcast %253 : vector<1x32xf32> to vector<48x32xf32>
    %272 = arith.mulf %270, %271 : vector<48x32xf32>
    %273 = vector.broadcast %254 : vector<1x32xf32> to vector<48x32xf32>
    %274 = arith.addf %272, %273 : vector<48x32xf32>
    %c0_131 = arith.constant 0 : index
    %c0_132 = arith.constant 0 : index
    %275 = vector.load %arg44[%c0_131, %c0_132] : memref<32x64xbf16, #tpu.memory_space<vmem>>, vector<32x64xbf16>
    %276 = arith.truncf %274 : vector<48x32xf32> to vector<48x32xbf16>
    %cst_133 = arith.constant dense<0.000000e+00> : vector<48x64xf32>
    %277 = tpu.matmul %276, %275, %cst_133 {dimension_numbers = #tpu.dot_dimension_numbers<[1], [0], [0], [1], [0, 0, 1, 1], [], []>} : vector<48x32xbf16>, vector<32x64xbf16>, vector<48x64xf32> -> vector<48x64xf32>
    %c0_134 = arith.constant 0 : index
    %c0_135 = arith.constant 0 : index
    %278 = vector.load %arg40[%c0_134, %c0_135] : memref<1x64xf32, #tpu.memory_space<vmem>>, vector<1x64xf32>
    %279 = vector.broadcast %278 : vector<1x64xf32> to vector<48x64xf32>
    %280 = arith.addf %277, %279 : vector<48x64xf32>
    %cst_136 = arith.constant 5.000000e-01 : f32
    %281 = vector.broadcast %cst_136 : f32 to vector<48x64xf32>
    %282 = arith.mulf %281, %280 : vector<48x64xf32>
    %cst_137 = arith.constant 0.707106769 : f32
    %283 = vector.broadcast %cst_137 : f32 to vector<48x64xf32>
    %284 = arith.mulf %280, %283 : vector<48x64xf32>
    %285 = math.erf %284 : vector<48x64xf32>
    %cst_138 = arith.constant 1.000000e+00 : f32
    %286 = vector.broadcast %cst_138 : f32 to vector<48x64xf32>
    %287 = arith.addf %286, %285 : vector<48x64xf32>
    %288 = arith.mulf %282, %287 : vector<48x64xf32>
    %c0_139 = arith.constant 0 : index
    %c0_140 = arith.constant 0 : index
    %289 = vector.load %arg45[%c0_139, %c0_140] : memref<64x32xbf16, #tpu.memory_space<vmem>>, vector<64x32xbf16>
    %290 = arith.truncf %288 : vector<48x64xf32> to vector<48x64xbf16>
    %cst_141 = arith.constant dense<0.000000e+00> : vector<48x32xf32>
    %291 = tpu.matmul %290, %289, %cst_141 {dimension_numbers = #tpu.dot_dimension_numbers<[1], [0], [0], [1], [0, 0, 1, 1], [], []>} : vector<48x64xbf16>, vector<64x32xbf16>, vector<48x32xf32> -> vector<48x32xf32>
    %292 = arith.addf %252, %291 : vector<48x32xf32>
    %c0_142 = arith.constant 0 : index
    %c0_143 = arith.constant 0 : index
    %293 = vector.load %arg41[%c0_142, %c0_143] : memref<1x32xf32, #tpu.memory_space<vmem>>, vector<1x32xf32>
    %294 = vector.broadcast %293 : vector<1x32xf32> to vector<48x32xf32>
    %295 = arith.addf %292, %294 : vector<48x32xf32>
    %c0_144 = arith.constant 0 : index
    %c0_145 = arith.constant 0 : index
    %296 = vector.load %arg71[%c0_144, %c0_145] : memref<48x32xf32, #tpu.memory_space<vmem>>, vector<48x32xf32>
    tpu.vector_store %arg71[%c0_144, %c0_145], %295 {strides = array<i32>} : memref<48x32xf32, #tpu.memory_space<vmem>>, vector<48x32xf32>,
    %c0_146 = arith.constant 0 : index
    %c0_147 = arith.constant 0 : index
    %297 = vector.load %arg72[%c0_146, %c0_147] : memref<16x48xf32, #tpu.memory_space<vmem>>, vector<16x48xf32>
    %c0_148 = arith.constant 0 : index
    %c0_149 = arith.constant 0 : index
    %298 = vector.load %arg25[%c0_148, %c0_149] : memref<1x48xf32, #tpu.memory_space<vmem>>, vector<1x48xf32>
    %c0_150 = arith.constant 0 : index
    %c0_151 = arith.constant 0 : index
    %299 = vector.load %arg24[%c0_150, %c0_151] : memref<1x48xf32, #tpu.memory_space<vmem>>, vector<1x48xf32>
    %cst_152 = arith.constant dense<0.000000e+00> : vector<16xf32>
    %300 = vector.multi_reduction <add>, %297, %cst_152 [1] : vector<16x48xf32> to vector<16xf32>
    %301 = vector.shape_cast %300 : vector<16xf32> to vector<16x1xf32>
    %cst_153 = arith.constant 4.800000e+01 : f32
    %302 = vector.broadcast %cst_153 : f32 to vector<16x1xf32>
    %303 = arith.divf %301, %302 : vector<16x1xf32>
    %304 = vector.broadcast %303 : vector<16x1xf32> to vector<16x48xf32>
    %305 = arith.subf %297, %304 : vector<16x48xf32>
    %306 = arith.mulf %305, %305 : vector<16x48xf32>
    %cst_154 = arith.constant dense<0.000000e+00> : vector<16xf32>
    %307 = vector.multi_reduction <add>, %306, %cst_154 [1] : vector<16x48xf32> to vector<16xf32>
    %308 = vector.shape_cast %307 : vector<16xf32> to vector<16x1xf32>
    %cst_155 = arith.constant 4.800000e+01 : f32
    %309 = vector.broadcast %cst_155 : f32 to vector<16x1xf32>
    %310 = arith.divf %308, %309 : vector<16x1xf32>
    %cst_156 = arith.constant 9.99999974E-6 : f32
    %311 = vector.broadcast %cst_156 : f32 to vector<16x1xf32>
    %312 = arith.addf %310, %311 : vector<16x1xf32>
    %313 = math.rsqrt %312 : vector<16x1xf32>
    %314 = vector.broadcast %313 : vector<16x1xf32> to vector<16x48xf32>
    %315 = arith.mulf %305, %314 : vector<16x48xf32>
    %316 = vector.broadcast %298 : vector<1x48xf32> to vector<16x48xf32>
    %317 = arith.mulf %315, %316 : vector<16x48xf32>
    %318 = vector.broadcast %299 : vector<1x48xf32> to vector<16x48xf32>
    %319 = arith.addf %317, %318 : vector<16x48xf32>
    %c0_157 = arith.constant 0 : index
    %c0_158 = arith.constant 0 : index
    %320 = vector.load %arg27[%c0_157, %c0_158] : memref<48x96xbf16, #tpu.memory_space<vmem>>, vector<48x96xbf16>
    %321 = arith.truncf %319 : vector<16x48xf32> to vector<16x48xbf16>
    %cst_159 = arith.constant dense<0.000000e+00> : vector<16x96xf32>
    %322 = tpu.matmul %321, %320, %cst_159 {dimension_numbers = #tpu.dot_dimension_numbers<[1], [0], [0], [1], [0, 0, 1, 1], [], []>} : vector<16x48xbf16>, vector<48x96xbf16>, vector<16x96xf32> -> vector<16x96xf32>
    %c0_160 = arith.constant 0 : index
    %c0_161 = arith.constant 0 : index
    %323 = vector.load %arg23[%c0_160, %c0_161] : memref<1x96xf32, #tpu.memory_space<vmem>>, vector<1x96xf32>
    %324 = vector.broadcast %323 : vector<1x96xf32> to vector<16x96xf32>
    %325 = arith.addf %322, %324 : vector<16x96xf32>
    %326 = vector.extract_strided_slice %325 {offsets = [0, 0], sizes = [5, 16], strides = [1, 1]} : vector<16x96xf32> to vector<5x16xf32>
    %327 = vector.extract_strided_slice %325 {offsets = [0, 32], sizes = [5, 16], strides = [1, 1]} : vector<16x96xf32> to vector<5x16xf32>
    %328 = vector.extract_strided_slice %325 {offsets = [0, 64], sizes = [5, 16], strides = [1, 1]} : vector<16x96xf32> to vector<5x16xf32>
    %329 = arith.truncf %326 : vector<5x16xf32> to vector<5x16xbf16>
    %330 = arith.truncf %327 : vector<5x16xf32> to vector<5x16xbf16>
    %cst_162 = arith.constant dense<0.000000e+00> : vector<5x5xf32>
    %331 = tpu.matmul %329, %330, %cst_162 {dimension_numbers = #tpu.dot_dimension_numbers<[1], [1], [0], [0], [0, 0, 1, 0], [], []>} : vector<5x16xbf16>, vector<5x16xbf16>, vector<5x5xf32> -> vector<5x5xf32>
    %cst_163 = arith.constant dense<0xFF800000> : vector<5xf32>
    %332 = vector.multi_reduction <maximumf>, %331, %cst_163 [1] : vector<5x5xf32> to vector<5xf32>
    %333 = vector.shape_cast %332 : vector<5xf32> to vector<5x1xf32>
    %334 = vector.broadcast %333 : vector<5x1xf32> to vector<5x5xf32>
    %335 = arith.subf %331, %334 : vector<5x5xf32>
    %336 = math.exp %335 : vector<5x5xf32>
    %cst_164 = arith.constant dense<0.000000e+00> : vector<5xf32>
    %337 = vector.multi_reduction <add>, %336, %cst_164 [1] : vector<5x5xf32> to vector<5xf32>
    %338 = vector.shape_cast %337 : vector<5xf32> to vector<5x1xf32>
    %339 = tpu.reciprocal %338 {approx = true} : vector<5x1xf32> -> vector<5x1xf32>
    %340 = vector.broadcast %339 : vector<5x1xf32> to vector<5x5xf32>
    %341 = arith.mulf %336, %340 : vector<5x5xf32>
    %342 = arith.truncf %341 : vector<5x5xf32> to vector<5x5xbf16>
    %343 = arith.truncf %328 : vector<5x16xf32> to vector<5x16xbf16>
    %cst_165 = arith.constant dense<0.000000e+00> : vector<5x16xf32>
    %344 = tpu.matmul %342, %343, %cst_165 {dimension_numbers = #tpu.dot_dimension_numbers<[1], [0], [0], [1], [0, 0, 1, 1], [], []>} : vector<5x5xbf16>, vector<5x16xbf16>, vector<5x16xf32> -> vector<5x16xf32>
    %c0_166 = arith.constant 0 : index
    %c0_167 = arith.constant 0 : index
    %345 = vector.load %arg73[%c0_166, %c0_167] : memref<48x128xf32, #tpu.memory_space<vmem>>, vector<5x16xf32>
    tpu.vector_store %arg73[%c0_166, %c0_167], %344 {strides = array<i32>} : memref<48x128xf32, #tpu.memory_space<vmem>>, vector<5x16xf32>,
    %346 = vector.extract_strided_slice %325 {offsets = [0, 16], sizes = [5, 16], strides = [1, 1]} : vector<16x96xf32> to vector<5x16xf32>
    %347 = vector.extract_strided_slice %325 {offsets = [0, 48], sizes = [5, 16], strides = [1, 1]} : vector<16x96xf32> to vector<5x16xf32>
    %348 = vector.extract_strided_slice %325 {offsets = [0, 80], sizes = [5, 16], strides = [1, 1]} : vector<16x96xf32> to vector<5x16xf32>
    %349 = arith.truncf %346 : vector<5x16xf32> to vector<5x16xbf16>
    %350 = arith.truncf %347 : vector<5x16xf32> to vector<5x16xbf16>
    %cst_168 = arith.constant dense<0.000000e+00> : vector<5x5xf32>
    %351 = tpu.matmul %349, %350, %cst_168 {dimension_numbers = #tpu.dot_dimension_numbers<[1], [1], [0], [0], [0, 0, 1, 0], [], []>} : vector<5x16xbf16>, vector<5x16xbf16>, vector<5x5xf32> -> vector<5x5xf32>
    %cst_169 = arith.constant dense<0xFF800000> : vector<5xf32>
    %352 = vector.multi_reduction <maximumf>, %351, %cst_169 [1] : vector<5x5xf32> to vector<5xf32>
    %353 = vector.shape_cast %352 : vector<5xf32> to vector<5x1xf32>
    %354 = vector.broadcast %353 : vector<5x1xf32> to vector<5x5xf32>
    %355 = arith.subf %351, %354 : vector<5x5xf32>
    %356 = math.exp %355 : vector<5x5xf32>
    %cst_170 = arith.constant dense<0.000000e+00> : vector<5xf32>
    %357 = vector.multi_reduction <add>, %356, %cst_170 [1] : vector<5x5xf32> to vector<5xf32>
    %358 = vector.shape_cast %357 : vector<5xf32> to vector<5x1xf32>
    %359 = tpu.reciprocal %358 {approx = true} : vector<5x1xf32> -> vector<5x1xf32>
    %360 = vector.broadcast %359 : vector<5x1xf32> to vector<5x5xf32>
    %361 = arith.mulf %356, %360 : vector<5x5xf32>
    %362 = arith.truncf %361 : vector<5x5xf32> to vector<5x5xbf16>
    %363 = arith.truncf %348 : vector<5x16xf32> to vector<5x16xbf16>
    %cst_171 = arith.constant dense<0.000000e+00> : vector<5x16xf32>
    %364 = tpu.matmul %362, %363, %cst_171 {dimension_numbers = #tpu.dot_dimension_numbers<[1], [0], [0], [1], [0, 0, 1, 1], [], []>} : vector<5x5xbf16>, vector<5x16xbf16>, vector<5x16xf32> -> vector<5x16xf32>
    %c0_172 = arith.constant 0 : index
    %c16_173 = arith.constant 16 : index
    %365 = vector.load %arg73[%c0_172, %c16_173] : memref<48x128xf32, #tpu.memory_space<vmem>>, vector<5x16xf32>
    tpu.vector_store %arg73[%c0_172, %c16_173], %364 {strides = array<i32>} : memref<48x128xf32, #tpu.memory_space<vmem>>, vector<5x16xf32>,
    %366 = vector.extract_strided_slice %325 {offsets = [8, 0], sizes = [5, 16], strides = [1, 1]} : vector<16x96xf32> to vector<5x16xf32>
    %367 = vector.extract_strided_slice %325 {offsets = [8, 32], sizes = [5, 16], strides = [1, 1]} : vector<16x96xf32> to vector<5x16xf32>
    %368 = vector.extract_strided_slice %325 {offsets = [8, 64], sizes = [5, 16], strides = [1, 1]} : vector<16x96xf32> to vector<5x16xf32>
    %369 = arith.truncf %366 : vector<5x16xf32> to vector<5x16xbf16>
    %370 = arith.truncf %367 : vector<5x16xf32> to vector<5x16xbf16>
    %cst_174 = arith.constant dense<0.000000e+00> : vector<5x5xf32>
    %371 = tpu.matmul %369, %370, %cst_174 {dimension_numbers = #tpu.dot_dimension_numbers<[1], [1], [0], [0], [0, 0, 1, 0], [], []>} : vector<5x16xbf16>, vector<5x16xbf16>, vector<5x5xf32> -> vector<5x5xf32>
    %cst_175 = arith.constant dense<0xFF800000> : vector<5xf32>
    %372 = vector.multi_reduction <maximumf>, %371, %cst_175 [1] : vector<5x5xf32> to vector<5xf32>
    %373 = vector.shape_cast %372 : vector<5xf32> to vector<5x1xf32>
    %374 = vector.broadcast %373 : vector<5x1xf32> to vector<5x5xf32>
    %375 = arith.subf %371, %374 : vector<5x5xf32>
    %376 = math.exp %375 : vector<5x5xf32>
    %cst_176 = arith.constant dense<0.000000e+00> : vector<5xf32>
    %377 = vector.multi_reduction <add>, %376, %cst_176 [1] : vector<5x5xf32> to vector<5xf32>
    %378 = vector.shape_cast %377 : vector<5xf32> to vector<5x1xf32>
    %379 = tpu.reciprocal %378 {approx = true} : vector<5x1xf32> -> vector<5x1xf32>
    %380 = vector.broadcast %379 : vector<5x1xf32> to vector<5x5xf32>
    %381 = arith.mulf %376, %380 : vector<5x5xf32>
    %382 = arith.truncf %381 : vector<5x5xf32> to vector<5x5xbf16>
    %383 = arith.truncf %368 : vector<5x16xf32> to vector<5x16xbf16>
    %cst_177 = arith.constant dense<0.000000e+00> : vector<5x16xf32>
    %384 = tpu.matmul %382, %383, %cst_177 {dimension_numbers = #tpu.dot_dimension_numbers<[1], [0], [0], [1], [0, 0, 1, 1], [], []>} : vector<5x5xbf16>, vector<5x16xbf16>, vector<5x16xf32> -> vector<5x16xf32>
    %c8_178 = arith.constant 8 : index
    %c0_179 = arith.constant 0 : index
    %385 = vector.load %arg73[%c8_178, %c0_179] : memref<48x128xf32, #tpu.memory_space<vmem>>, vector<5x16xf32>
    tpu.vector_store %arg73[%c8_178, %c0_179], %384 {strides = array<i32>} : memref<48x128xf32, #tpu.memory_space<vmem>>, vector<5x16xf32>,
    %386 = vector.extract_strided_slice %325 {offsets = [8, 16], sizes = [5, 16], strides = [1, 1]} : vector<16x96xf32> to vector<5x16xf32>
    %387 = vector.extract_strided_slice %325 {offsets = [8, 48], sizes = [5, 16], strides = [1, 1]} : vector<16x96xf32> to vector<5x16xf32>
    %388 = vector.extract_strided_slice %325 {offsets = [8, 80], sizes = [5, 16], strides = [1, 1]} : vector<16x96xf32> to vector<5x16xf32>
    %389 = arith.truncf %386 : vector<5x16xf32> to vector<5x16xbf16>
    %390 = arith.truncf %387 : vector<5x16xf32> to vector<5x16xbf16>
    %cst_180 = arith.constant dense<0.000000e+00> : vector<5x5xf32>
    %391 = tpu.matmul %389, %390, %cst_180 {dimension_numbers = #tpu.dot_dimension_numbers<[1], [1], [0], [0], [0, 0, 1, 0], [], []>} : vector<5x16xbf16>, vector<5x16xbf16>, vector<5x5xf32> -> vector<5x5xf32>
    %cst_181 = arith.constant dense<0xFF800000> : vector<5xf32>
    %392 = vector.multi_reduction <maximumf>, %391, %cst_181 [1] : vector<5x5xf32> to vector<5xf32>
    %393 = vector.shape_cast %392 : vector<5xf32> to vector<5x1xf32>
    %394 = vector.broadcast %393 : vector<5x1xf32> to vector<5x5xf32>
    %395 = arith.subf %391, %394 : vector<5x5xf32>
    %396 = math.exp %395 : vector<5x5xf32>
    %cst_182 = arith.constant dense<0.000000e+00> : vector<5xf32>
    %397 = vector.multi_reduction <add>, %396, %cst_182 [1] : vector<5x5xf32> to vector<5xf32>
    %398 = vector.shape_cast %397 : vector<5xf32> to vector<5x1xf32>
    %399 = tpu.reciprocal %398 {approx = true} : vector<5x1xf32> -> vector<5x1xf32>
    %400 = vector.broadcast %399 : vector<5x1xf32> to vector<5x5xf32>
    %401 = arith.mulf %396, %400 : vector<5x5xf32>
    %402 = arith.truncf %401 : vector<5x5xf32> to vector<5x5xbf16>
    %403 = arith.truncf %388 : vector<5x16xf32> to vector<5x16xbf16>
    %cst_183 = arith.constant dense<0.000000e+00> : vector<5x16xf32>
    %404 = tpu.matmul %402, %403, %cst_183 {dimension_numbers = #tpu.dot_dimension_numbers<[1], [0], [0], [1], [0, 0, 1, 1], [], []>} : vector<5x5xbf16>, vector<5x16xbf16>, vector<5x16xf32> -> vector<5x16xf32>
    %c8_184 = arith.constant 8 : index
    %c16_185 = arith.constant 16 : index
    %405 = vector.load %arg73[%c8_184, %c16_185] : memref<48x128xf32, #tpu.memory_space<vmem>>, vector<5x16xf32>
    tpu.vector_store %arg73[%c8_184, %c16_185], %404 {strides = array<i32>} : memref<48x128xf32, #tpu.memory_space<vmem>>, vector<5x16xf32>,
    %c0_186 = arith.constant 0 : index
    %c0_187 = arith.constant 0 : index
    %406 = vector.load %arg73[%c0_186, %c0_187] : memref<48x128xf32, #tpu.memory_space<vmem>>, vector<16x32xf32>
    %c0_188 = arith.constant 0 : index
    %c0_189 = arith.constant 0 : index
    %407 = vector.load %arg26[%c0_188, %c0_189] : memref<32x48xbf16, #tpu.memory_space<vmem>>, vector<32x48xbf16>
    %408 = arith.truncf %406 : vector<16x32xf32> to vector<16x32xbf16>
    %cst_190 = arith.constant dense<0.000000e+00> : vector<16x48xf32>
    %409 = tpu.matmul %408, %407, %cst_190 {dimension_numbers = #tpu.dot_dimension_numbers<[1], [0], [0], [1], [0, 0, 1, 1], [], []>} : vector<16x32xbf16>, vector<32x48xbf16>, vector<16x48xf32> -> vector<16x48xf32>
    %410 = arith.addf %297, %409 : vector<16x48xf32>
    %c0_191 = arith.constant 0 : index
    %c0_192 = arith.constant 0 : index
    %411 = vector.load %arg22[%c0_191, %c0_192] : memref<1x48xf32, #tpu.memory_space<vmem>>, vector<1x48xf32>
    %412 = vector.broadcast %411 : vector<1x48xf32> to vector<16x48xf32>
    %413 = arith.addf %410, %412 : vector<16x48xf32>
    %c0_193 = arith.constant 0 : index
    %c0_194 = arith.constant 0 : index
    %414 = vector.load %arg31[%c0_193, %c0_194] : memref<1x48xf32, #tpu.memory_space<vmem>>, vector<1x48xf32>
    %c0_195 = arith.constant 0 : index
    %c0_196 = arith.constant 0 : index
    %415 = vector.load %arg30[%c0_195, %c0_196] : memref<1x48xf32, #tpu.memory_space<vmem>>, vector<1x48xf32>
    %cst_197 = arith.constant dense<0.000000e+00> : vector<16xf32>
    %416 = vector.multi_reduction <add>, %413, %cst_197 [1] : vector<16x48xf32> to vector<16xf32>
    %417 = vector.shape_cast %416 : vector<16xf32> to vector<16x1xf32>
    %cst_198 = arith.constant 4.800000e+01 : f32
    %418 = vector.broadcast %cst_198 : f32 to vector<16x1xf32>
    %419 = arith.divf %417, %418 : vector<16x1xf32>
    %420 = vector.broadcast %419 : vector<16x1xf32> to vector<16x48xf32>
    %421 = arith.subf %413, %420 : vector<16x48xf32>
    %422 = arith.mulf %421, %421 : vector<16x48xf32>
    %cst_199 = arith.constant dense<0.000000e+00> : vector<16xf32>
    %423 = vector.multi_reduction <add>, %422, %cst_199 [1] : vector<16x48xf32> to vector<16xf32>
    %424 = vector.shape_cast %423 : vector<16xf32> to vector<16x1xf32>
    %cst_200 = arith.constant 4.800000e+01 : f32
    %425 = vector.broadcast %cst_200 : f32 to vector<16x1xf32>
    %426 = arith.divf %424, %425 : vector<16x1xf32>
    %cst_201 = arith.constant 9.99999974E-6 : f32
    %427 = vector.broadcast %cst_201 : f32 to vector<16x1xf32>
    %428 = arith.addf %426, %427 : vector<16x1xf32>
    %429 = math.rsqrt %428 : vector<16x1xf32>
    %430 = vector.broadcast %429 : vector<16x1xf32> to vector<16x48xf32>
    %431 = arith.mulf %421, %430 : vector<16x48xf32>
    %432 = vector.broadcast %414 : vector<1x48xf32> to vector<16x48xf32>
    %433 = arith.mulf %431, %432 : vector<16x48xf32>
    %434 = vector.broadcast %415 : vector<1x48xf32> to vector<16x48xf32>
    %435 = arith.addf %433, %434 : vector<16x48xf32>
    %c0_202 = arith.constant 0 : index
    %c0_203 = arith.constant 0 : index
    %436 = vector.load %arg32[%c0_202, %c0_203] : memref<48x64xbf16, #tpu.memory_space<vmem>>, vector<48x64xbf16>
    %437 = arith.truncf %435 : vector<16x48xf32> to vector<16x48xbf16>
    %cst_204 = arith.constant dense<0.000000e+00> : vector<16x64xf32>
    %438 = tpu.matmul %437, %436, %cst_204 {dimension_numbers = #tpu.dot_dimension_numbers<[1], [0], [0], [1], [0, 0, 1, 1], [], []>} : vector<16x48xbf16>, vector<48x64xbf16>, vector<16x64xf32> -> vector<16x64xf32>
    %c0_205 = arith.constant 0 : index
    %c0_206 = arith.constant 0 : index
    %439 = vector.load %arg28[%c0_205, %c0_206] : memref<1x64xf32, #tpu.memory_space<vmem>>, vector<1x64xf32>
    %440 = vector.broadcast %439 : vector<1x64xf32> to vector<16x64xf32>
    %441 = arith.addf %438, %440 : vector<16x64xf32>
    %cst_207 = arith.constant 5.000000e-01 : f32
    %442 = vector.broadcast %cst_207 : f32 to vector<16x64xf32>
    %443 = arith.mulf %442, %441 : vector<16x64xf32>
    %cst_208 = arith.constant 0.707106769 : f32
    %444 = vector.broadcast %cst_208 : f32 to vector<16x64xf32>
    %445 = arith.mulf %441, %444 : vector<16x64xf32>
    %446 = math.erf %445 : vector<16x64xf32>
    %cst_209 = arith.constant 1.000000e+00 : f32
    %447 = vector.broadcast %cst_209 : f32 to vector<16x64xf32>
    %448 = arith.addf %447, %446 : vector<16x64xf32>
    %449 = arith.mulf %443, %448 : vector<16x64xf32>
    %c0_210 = arith.constant 0 : index
    %c0_211 = arith.constant 0 : index
    %450 = vector.load %arg33[%c0_210, %c0_211] : memref<64x48xbf16, #tpu.memory_space<vmem>>, vector<64x48xbf16>
    %451 = arith.truncf %449 : vector<16x64xf32> to vector<16x64xbf16>
    %cst_212 = arith.constant dense<0.000000e+00> : vector<16x48xf32>
    %452 = tpu.matmul %451, %450, %cst_212 {dimension_numbers = #tpu.dot_dimension_numbers<[1], [0], [0], [1], [0, 0, 1, 1], [], []>} : vector<16x64xbf16>, vector<64x48xbf16>, vector<16x48xf32> -> vector<16x48xf32>
    %453 = arith.addf %413, %452 : vector<16x48xf32>
    %c0_213 = arith.constant 0 : index
    %c0_214 = arith.constant 0 : index
    %454 = vector.load %arg29[%c0_213, %c0_214] : memref<1x48xf32, #tpu.memory_space<vmem>>, vector<1x48xf32>
    %455 = vector.broadcast %454 : vector<1x48xf32> to vector<16x48xf32>
    %456 = arith.addf %453, %455 : vector<16x48xf32>
    %c0_215 = arith.constant 0 : index
    %c0_216 = arith.constant 0 : index
    %457 = vector.load %arg72[%c0_215, %c0_216] : memref<16x48xf32, #tpu.memory_space<vmem>>, vector<16x48xf32>
    tpu.vector_store %arg72[%c0_215, %c0_216], %456 {strides = array<i32>} : memref<16x48xf32, #tpu.memory_space<vmem>>, vector<16x48xf32>,
    %c16_217 = arith.constant 16 : index
    %c0_218 = arith.constant 0 : index
    %458 = vector.load %arg71[%c16_217, %c0_218] : memref<48x32xf32, #tpu.memory_space<vmem>>, vector<1x32xf32>
    %c0_219 = arith.constant 0 : index
    %c0_220 = arith.constant 0 : index
    %459 = vector.load %arg73[%c0_219, %c0_220] : memref<48x128xf32, #tpu.memory_space<vmem>>, vector<1x32xf32>
    tpu.vector_store %arg73[%c0_219, %c0_220], %458 {strides = array<i32>} : memref<48x128xf32, #tpu.memory_space<vmem>>, vector<1x32xf32>,
    %c40_221 = arith.constant 40 : index
    %c0_222 = arith.constant 0 : index
    %460 = vector.load %arg71[%c40_221, %c0_222] : memref<48x32xf32, #tpu.memory_space<vmem>>, vector<1x32xf32>
    %c1 = arith.constant 1 : index
    %c0_223 = arith.constant 0 : index
    %461 = vector.load %arg73[%c1, %c0_223] : memref<48x128xf32, #tpu.memory_space<vmem>>, vector<1x32xf32>
    tpu.vector_store %arg73[%c1, %c0_223], %460 {strides = array<i32>} : memref<48x128xf32, #tpu.memory_space<vmem>>, vector<1x32xf32>,
    %c0_224 = arith.constant 0 : index
    %c0_225 = arith.constant 0 : index
    %462 = vector.load %arg73[%c0_224, %c0_225] : memref<48x128xf32, #tpu.memory_space<vmem>>, vector<2x32xf32>
    %c0_226 = arith.constant 0 : index
    %c0_227 = arith.constant 0 : index
    %463 = vector.load %arg17[%c0_226, %c0_227] : memref<32x48xbf16, #tpu.memory_space<vmem>>, vector<32x48xbf16>
    %464 = arith.truncf %462 : vector<2x32xf32> to vector<2x32xbf16>
    %cst_228 = arith.constant dense<0.000000e+00> : vector<2x48xf32>
    %465 = tpu.matmul %464, %463, %cst_228 {dimension_numbers = #tpu.dot_dimension_numbers<[1], [0], [0], [1], [0, 0, 1, 1], [], []>} : vector<2x32xbf16>, vector<32x48xbf16>, vector<2x48xf32> -> vector<2x48xf32>
    %c0_229 = arith.constant 0 : index
    %c0_230 = arith.constant 0 : index
    %466 = vector.load %arg12[%c0_229, %c0_230] : memref<1x48xf32, #tpu.memory_space<vmem>>, vector<1x48xf32>
    %467 = vector.broadcast %466 : vector<1x48xf32> to vector<2x48xf32>
    %468 = arith.addf %465, %467 : vector<2x48xf32>
    %c0_231 = arith.constant 0 : index
    %c0_232 = arith.constant 0 : index
    %469 = vector.load %arg21[%c0_231, %c0_232] : memref<48x32xbf16, #tpu.memory_space<vmem>>, vector<48x32xbf16>
    %470 = arith.truncf %468 : vector<2x48xf32> to vector<2x48xbf16>
    %cst_233 = arith.constant dense<0.000000e+00> : vector<2x32xf32>
    %471 = tpu.matmul %470, %469, %cst_233 {dimension_numbers = #tpu.dot_dimension_numbers<[1], [0], [0], [1], [0, 0, 1, 1], [], []>} : vector<2x48xbf16>, vector<48x32xbf16>, vector<2x32xf32> -> vector<2x32xf32>
    %c0_234 = arith.constant 0 : index
    %c0_235 = arith.constant 0 : index
    %472 = vector.load %arg16[%c0_234, %c0_235] : memref<1x32xf32, #tpu.memory_space<vmem>>, vector<1x32xf32>
    %473 = vector.broadcast %472 : vector<1x32xf32> to vector<2x32xf32>
    %474 = arith.addf %471, %473 : vector<2x32xf32>
    %c0_236 = arith.constant 0 : index
    %c0_237 = arith.constant 0 : index
    %475 = vector.load %arg19[%c0_236, %c0_237] : memref<48x64xbf16, #tpu.memory_space<vmem>>, vector<48x64xbf16>
    %476 = arith.truncf %468 : vector<2x48xf32> to vector<2x48xbf16>
    %cst_238 = arith.constant dense<0.000000e+00> : vector<2x64xf32>
    %477 = tpu.matmul %476, %475, %cst_238 {dimension_numbers = #tpu.dot_dimension_numbers<[1], [0], [0], [1], [0, 0, 1, 1], [], []>} : vector<2x48xbf16>, vector<48x64xbf16>, vector<2x64xf32> -> vector<2x64xf32>
    %c0_239 = arith.constant 0 : index
    %c0_240 = arith.constant 0 : index
    %478 = vector.load %arg14[%c0_239, %c0_240] : memref<1x64xf32, #tpu.memory_space<vmem>>, vector<1x64xf32>
    %479 = vector.broadcast %478 : vector<1x64xf32> to vector<2x64xf32>
    %480 = arith.addf %477, %479 : vector<2x64xf32>
    %c0_241 = arith.constant 0 : index
    %c0_242 = arith.constant 0 : index
    %481 = vector.load %arg72[%c0_241, %c0_242] : memref<16x48xf32, #tpu.memory_space<vmem>>, vector<16x48xf32>
    %c0_243 = arith.constant 0 : index
    %c0_244 = arith.constant 0 : index
    %482 = vector.load %arg19[%c0_243, %c0_244] : memref<48x64xbf16, #tpu.memory_space<vmem>>, vector<48x64xbf16>
    %483 = arith.truncf %481 : vector<16x48xf32> to vector<16x48xbf16>
    %cst_245 = arith.constant dense<0.000000e+00> : vector<16x64xf32>
    %484 = tpu.matmul %483, %482, %cst_245 {dimension_numbers = #tpu.dot_dimension_numbers<[1], [0], [0], [1], [0, 0, 1, 1], [], []>} : vector<16x48xbf16>, vector<48x64xbf16>, vector<16x64xf32> -> vector<16x64xf32>
    %c0_246 = arith.constant 0 : index
    %c0_247 = arith.constant 0 : index
    %485 = vector.load %arg14[%c0_246, %c0_247] : memref<1x64xf32, #tpu.memory_space<vmem>>, vector<1x64xf32>
    %486 = vector.broadcast %485 : vector<1x64xf32> to vector<16x64xf32>
    %487 = arith.addf %484, %486 : vector<16x64xf32>
    %488 = vector.extract_strided_slice %474 {offsets = [0, 0], sizes = [1, 16], strides = [1, 1]} : vector<2x32xf32> to vector<1x16xf32>
    %489 = vector.extract_strided_slice %480 {offsets = [0, 0], sizes = [1, 16], strides = [1, 1]} : vector<2x64xf32> to vector<1x16xf32>
    %490 = vector.extract_strided_slice %480 {offsets = [0, 32], sizes = [1, 16], strides = [1, 1]} : vector<2x64xf32> to vector<1x16xf32>
    %491 = vector.extract_strided_slice %487 {offsets = [0, 0], sizes = [4, 16], strides = [1, 1]} : vector<16x64xf32> to vector<4x16xf32>
    %492 = vector.extract_strided_slice %487 {offsets = [0, 32], sizes = [4, 16], strides = [1, 1]} : vector<16x64xf32> to vector<4x16xf32>
    %493 = arith.mulf %488, %489 : vector<1x16xf32>
    %cst_248 = arith.constant dense<0.000000e+00> : vector<1xf32>
    %494 = vector.multi_reduction <add>, %493, %cst_248 [1] : vector<1x16xf32> to vector<1xf32>
    %495 = vector.shape_cast %494 : vector<1xf32> to vector<1x1xf32>
    %496 = arith.truncf %488 : vector<1x16xf32> to vector<1x16xbf16>
    %497 = arith.truncf %491 : vector<4x16xf32> to vector<4x16xbf16>
    %cst_249 = arith.constant dense<0.000000e+00> : vector<1x4xf32>
    %498 = tpu.matmul %496, %497, %cst_249 {dimension_numbers = #tpu.dot_dimension_numbers<[1], [1], [0], [0], [0, 0, 1, 0], [], []>} : vector<1x16xbf16>, vector<4x16xbf16>, vector<1x4xf32> -> vector<1x4xf32>
    %cst_250 = arith.constant dense<0xFF800000> : vector<1xf32>
    %499 = vector.multi_reduction <maximumf>, %498, %cst_250 [1] : vector<1x4xf32> to vector<1xf32>
    %500 = vector.shape_cast %499 : vector<1xf32> to vector<1x1xf32>
    %501 = arith.maximumf %495, %500 : vector<1x1xf32>
    %502 = arith.subf %495, %501 : vector<1x1xf32>
    %503 = math.exp %502 : vector<1x1xf32>
    %504 = vector.broadcast %501 : vector<1x1xf32> to vector<1x4xf32>
    %505 = arith.subf %498, %504 : vector<1x4xf32>
    %506 = math.exp %505 : vector<1x4xf32>
    %cst_251 = arith.constant dense<0.000000e+00> : vector<1xf32>
    %507 = vector.multi_reduction <add>, %506, %cst_251 [1] : vector<1x4xf32> to vector<1xf32>
    %508 = vector.shape_cast %507 : vector<1xf32> to vector<1x1xf32>
    %509 = arith.addf %503, %508 : vector<1x1xf32>
    %510 = tpu.reciprocal %509 {approx = true} : vector<1x1xf32> -> vector<1x1xf32>
    %511 = vector.broadcast %503 : vector<1x1xf32> to vector<1x16xf32>
    %512 = arith.mulf %511, %490 : vector<1x16xf32>
    %513 = arith.truncf %506 : vector<1x4xf32> to vector<1x4xbf16>
    %514 = arith.truncf %492 : vector<4x16xf32> to vector<4x16xbf16>
    %cst_252 = arith.constant dense<0.000000e+00> : vector<1x16xf32>
    %515 = tpu.matmul %513, %514, %cst_252 {dimension_numbers = #tpu.dot_dimension_numbers<[1], [0], [0], [1], [0, 0, 1, 1], [], []>} : vector<1x4xbf16>, vector<4x16xbf16>, vector<1x16xf32> -> vector<1x16xf32>
    %516 = arith.addf %512, %515 : vector<1x16xf32>
    %517 = vector.broadcast %510 : vector<1x1xf32> to vector<1x16xf32>
    %518 = arith.mulf %516, %517 : vector<1x16xf32>
    %c0_253 = arith.constant 0 : index
    %c64 = arith.constant 64 : index
    %519 = vector.load %arg73[%c0_253, %c64] : memref<48x128xf32, #tpu.memory_space<vmem>>, vector<1x16xf32>
    tpu.vector_store %arg73[%c0_253, %c64], %518 {strides = array<i32>} : memref<48x128xf32, #tpu.memory_space<vmem>>, vector<1x16xf32>,
    %520 = vector.extract_strided_slice %474 {offsets = [0, 16], sizes = [1, 16], strides = [1, 1]} : vector<2x32xf32> to vector<1x16xf32>
    %521 = vector.extract_strided_slice %480 {offsets = [0, 16], sizes = [1, 16], strides = [1, 1]} : vector<2x64xf32> to vector<1x16xf32>
    %522 = vector.extract_strided_slice %480 {offsets = [0, 48], sizes = [1, 16], strides = [1, 1]} : vector<2x64xf32> to vector<1x16xf32>
    %523 = vector.extract_strided_slice %487 {offsets = [0, 16], sizes = [4, 16], strides = [1, 1]} : vector<16x64xf32> to vector<4x16xf32>
    %524 = vector.extract_strided_slice %487 {offsets = [0, 48], sizes = [4, 16], strides = [1, 1]} : vector<16x64xf32> to vector<4x16xf32>
    %525 = arith.mulf %520, %521 : vector<1x16xf32>
    %cst_254 = arith.constant dense<0.000000e+00> : vector<1xf32>
    %526 = vector.multi_reduction <add>, %525, %cst_254 [1] : vector<1x16xf32> to vector<1xf32>
    %527 = vector.shape_cast %526 : vector<1xf32> to vector<1x1xf32>
    %528 = arith.truncf %520 : vector<1x16xf32> to vector<1x16xbf16>
    %529 = arith.truncf %523 : vector<4x16xf32> to vector<4x16xbf16>
    %cst_255 = arith.constant dense<0.000000e+00> : vector<1x4xf32>
    %530 = tpu.matmul %528, %529, %cst_255 {dimension_numbers = #tpu.dot_dimension_numbers<[1], [1], [0], [0], [0, 0, 1, 0], [], []>} : vector<1x16xbf16>, vector<4x16xbf16>, vector<1x4xf32> -> vector<1x4xf32>
    %cst_256 = arith.constant dense<0xFF800000> : vector<1xf32>
    %531 = vector.multi_reduction <maximumf>, %530, %cst_256 [1] : vector<1x4xf32> to vector<1xf32>
    %532 = vector.shape_cast %531 : vector<1xf32> to vector<1x1xf32>
    %533 = arith.maximumf %527, %532 : vector<1x1xf32>
    %534 = arith.subf %527, %533 : vector<1x1xf32>
    %535 = math.exp %534 : vector<1x1xf32>
    %536 = vector.broadcast %533 : vector<1x1xf32> to vector<1x4xf32>
    %537 = arith.subf %530, %536 : vector<1x4xf32>
    %538 = math.exp %537 : vector<1x4xf32>
    %cst_257 = arith.constant dense<0.000000e+00> : vector<1xf32>
    %539 = vector.multi_reduction <add>, %538, %cst_257 [1] : vector<1x4xf32> to vector<1xf32>
    %540 = vector.shape_cast %539 : vector<1xf32> to vector<1x1xf32>
    %541 = arith.addf %535, %540 : vector<1x1xf32>
    %542 = tpu.reciprocal %541 {approx = true} : vector<1x1xf32> -> vector<1x1xf32>
    %543 = vector.broadcast %535 : vector<1x1xf32> to vector<1x16xf32>
    %544 = arith.mulf %543, %522 : vector<1x16xf32>
    %545 = arith.truncf %538 : vector<1x4xf32> to vector<1x4xbf16>
    %546 = arith.truncf %524 : vector<4x16xf32> to vector<4x16xbf16>
    %cst_258 = arith.constant dense<0.000000e+00> : vector<1x16xf32>
    %547 = tpu.matmul %545, %546, %cst_258 {dimension_numbers = #tpu.dot_dimension_numbers<[1], [0], [0], [1], [0, 0, 1, 1], [], []>} : vector<1x4xbf16>, vector<4x16xbf16>, vector<1x16xf32> -> vector<1x16xf32>
    %548 = arith.addf %544, %547 : vector<1x16xf32>
    %549 = vector.broadcast %542 : vector<1x1xf32> to vector<1x16xf32>
    %550 = arith.mulf %548, %549 : vector<1x16xf32>
    %c0_259 = arith.constant 0 : index
    %c80 = arith.constant 80 : index
    %551 = vector.load %arg73[%c0_259, %c80] : memref<48x128xf32, #tpu.memory_space<vmem>>, vector<1x16xf32>
    tpu.vector_store %arg73[%c0_259, %c80], %550 {strides = array<i32>} : memref<48x128xf32, #tpu.memory_space<vmem>>, vector<1x16xf32>,
    %552 = vector.extract_strided_slice %474 {offsets = [1, 0], sizes = [1, 16], strides = [1, 1]} : vector<2x32xf32> to vector<1x16xf32>
    %553 = vector.extract_strided_slice %480 {offsets = [1, 0], sizes = [1, 16], strides = [1, 1]} : vector<2x64xf32> to vector<1x16xf32>
    %554 = vector.extract_strided_slice %480 {offsets = [1, 32], sizes = [1, 16], strides = [1, 1]} : vector<2x64xf32> to vector<1x16xf32>
    %555 = vector.extract_strided_slice %487 {offsets = [8, 0], sizes = [4, 16], strides = [1, 1]} : vector<16x64xf32> to vector<4x16xf32>
    %556 = vector.extract_strided_slice %487 {offsets = [8, 32], sizes = [4, 16], strides = [1, 1]} : vector<16x64xf32> to vector<4x16xf32>
    %557 = arith.mulf %552, %553 : vector<1x16xf32>
    %cst_260 = arith.constant dense<0.000000e+00> : vector<1xf32>
    %558 = vector.multi_reduction <add>, %557, %cst_260 [1] : vector<1x16xf32> to vector<1xf32>
    %559 = vector.shape_cast %558 : vector<1xf32> to vector<1x1xf32>
    %560 = arith.truncf %552 : vector<1x16xf32> to vector<1x16xbf16>
    %561 = arith.truncf %555 : vector<4x16xf32> to vector<4x16xbf16>
    %cst_261 = arith.constant dense<0.000000e+00> : vector<1x4xf32>
    %562 = tpu.matmul %560, %561, %cst_261 {dimension_numbers = #tpu.dot_dimension_numbers<[1], [1], [0], [0], [0, 0, 1, 0], [], []>} : vector<1x16xbf16>, vector<4x16xbf16>, vector<1x4xf32> -> vector<1x4xf32>
    %cst_262 = arith.constant dense<0xFF800000> : vector<1xf32>
    %563 = vector.multi_reduction <maximumf>, %562, %cst_262 [1] : vector<1x4xf32> to vector<1xf32>
    %564 = vector.shape_cast %563 : vector<1xf32> to vector<1x1xf32>
    %565 = arith.maximumf %559, %564 : vector<1x1xf32>
    %566 = arith.subf %559, %565 : vector<1x1xf32>
    %567 = math.exp %566 : vector<1x1xf32>
    %568 = vector.broadcast %565 : vector<1x1xf32> to vector<1x4xf32>
    %569 = arith.subf %562, %568 : vector<1x4xf32>
    %570 = math.exp %569 : vector<1x4xf32>
    %cst_263 = arith.constant dense<0.000000e+00> : vector<1xf32>
    %571 = vector.multi_reduction <add>, %570, %cst_263 [1] : vector<1x4xf32> to vector<1xf32>
    %572 = vector.shape_cast %571 : vector<1xf32> to vector<1x1xf32>
    %573 = arith.addf %567, %572 : vector<1x1xf32>
    %574 = tpu.reciprocal %573 {approx = true} : vector<1x1xf32> -> vector<1x1xf32>
    %575 = vector.broadcast %567 : vector<1x1xf32> to vector<1x16xf32>
    %576 = arith.mulf %575, %554 : vector<1x16xf32>
    %577 = arith.truncf %570 : vector<1x4xf32> to vector<1x4xbf16>
    %578 = arith.truncf %556 : vector<4x16xf32> to vector<4x16xbf16>
    %cst_264 = arith.constant dense<0.000000e+00> : vector<1x16xf32>
    %579 = tpu.matmul %577, %578, %cst_264 {dimension_numbers = #tpu.dot_dimension_numbers<[1], [0], [0], [1], [0, 0, 1, 1], [], []>} : vector<1x4xbf16>, vector<4x16xbf16>, vector<1x16xf32> -> vector<1x16xf32>
    %580 = arith.addf %576, %579 : vector<1x16xf32>
    %581 = vector.broadcast %574 : vector<1x1xf32> to vector<1x16xf32>
    %582 = arith.mulf %580, %581 : vector<1x16xf32>
    %c1_265 = arith.constant 1 : index
    %c64_266 = arith.constant 64 : index
    %583 = vector.load %arg73[%c1_265, %c64_266] : memref<48x128xf32, #tpu.memory_space<vmem>>, vector<1x16xf32>
    tpu.vector_store %arg73[%c1_265, %c64_266], %582 {strides = array<i32>} : memref<48x128xf32, #tpu.memory_space<vmem>>, vector<1x16xf32>,
    %584 = vector.extract_strided_slice %474 {offsets = [1, 16], sizes = [1, 16], strides = [1, 1]} : vector<2x32xf32> to vector<1x16xf32>
    %585 = vector.extract_strided_slice %480 {offsets = [1, 16], sizes = [1, 16], strides = [1, 1]} : vector<2x64xf32> to vector<1x16xf32>
    %586 = vector.extract_strided_slice %480 {offsets = [1, 48], sizes = [1, 16], strides = [1, 1]} : vector<2x64xf32> to vector<1x16xf32>
    %587 = vector.extract_strided_slice %487 {offsets = [8, 16], sizes = [4, 16], strides = [1, 1]} : vector<16x64xf32> to vector<4x16xf32>
    %588 = vector.extract_strided_slice %487 {offsets = [8, 48], sizes = [4, 16], strides = [1, 1]} : vector<16x64xf32> to vector<4x16xf32>
    %589 = arith.mulf %584, %585 : vector<1x16xf32>
    %cst_267 = arith.constant dense<0.000000e+00> : vector<1xf32>
    %590 = vector.multi_reduction <add>, %589, %cst_267 [1] : vector<1x16xf32> to vector<1xf32>
    %591 = vector.shape_cast %590 : vector<1xf32> to vector<1x1xf32>
    %592 = arith.truncf %584 : vector<1x16xf32> to vector<1x16xbf16>
    %593 = arith.truncf %587 : vector<4x16xf32> to vector<4x16xbf16>
    %cst_268 = arith.constant dense<0.000000e+00> : vector<1x4xf32>
    %594 = tpu.matmul %592, %593, %cst_268 {dimension_numbers = #tpu.dot_dimension_numbers<[1], [1], [0], [0], [0, 0, 1, 0], [], []>} : vector<1x16xbf16>, vector<4x16xbf16>, vector<1x4xf32> -> vector<1x4xf32>
    %cst_269 = arith.constant dense<0xFF800000> : vector<1xf32>
    %595 = vector.multi_reduction <maximumf>, %594, %cst_269 [1] : vector<1x4xf32> to vector<1xf32>
    %596 = vector.shape_cast %595 : vector<1xf32> to vector<1x1xf32>
    %597 = arith.maximumf %591, %596 : vector<1x1xf32>
    %598 = arith.subf %591, %597 : vector<1x1xf32>
    %599 = math.exp %598 : vector<1x1xf32>
    %600 = vector.broadcast %597 : vector<1x1xf32> to vector<1x4xf32>
    %601 = arith.subf %594, %600 : vector<1x4xf32>
    %602 = math.exp %601 : vector<1x4xf32>
    %cst_270 = arith.constant dense<0.000000e+00> : vector<1xf32>
    %603 = vector.multi_reduction <add>, %602, %cst_270 [1] : vector<1x4xf32> to vector<1xf32>
    %604 = vector.shape_cast %603 : vector<1xf32> to vector<1x1xf32>
    %605 = arith.addf %599, %604 : vector<1x1xf32>
    %606 = tpu.reciprocal %605 {approx = true} : vector<1x1xf32> -> vector<1x1xf32>
    %607 = vector.broadcast %599 : vector<1x1xf32> to vector<1x16xf32>
    %608 = arith.mulf %607, %586 : vector<1x16xf32>
    %609 = arith.truncf %602 : vector<1x4xf32> to vector<1x4xbf16>
    %610 = arith.truncf %588 : vector<4x16xf32> to vector<4x16xbf16>
    %cst_271 = arith.constant dense<0.000000e+00> : vector<1x16xf32>
    %611 = tpu.matmul %609, %610, %cst_271 {dimension_numbers = #tpu.dot_dimension_numbers<[1], [0], [0], [1], [0, 0, 1, 1], [], []>} : vector<1x4xbf16>, vector<4x16xbf16>, vector<1x16xf32> -> vector<1x16xf32>
    %612 = arith.addf %608, %611 : vector<1x16xf32>
    %613 = vector.broadcast %606 : vector<1x1xf32> to vector<1x16xf32>
    %614 = arith.mulf %612, %613 : vector<1x16xf32>
    %c1_272 = arith.constant 1 : index
    %c80_273 = arith.constant 80 : index
    %615 = vector.load %arg73[%c1_272, %c80_273] : memref<48x128xf32, #tpu.memory_space<vmem>>, vector<1x16xf32>
    tpu.vector_store %arg73[%c1_272, %c80_273], %614 {strides = array<i32>} : memref<48x128xf32, #tpu.memory_space<vmem>>, vector<1x16xf32>,
    %c0_274 = arith.constant 0 : index
    %c64_275 = arith.constant 64 : index
    %616 = vector.load %arg73[%c0_274, %c64_275] : memref<48x128xf32, #tpu.memory_space<vmem>>, vector<2x32xf32>
    %c0_276 = arith.constant 0 : index
    %c0_277 = arith.constant 0 : index
    %617 = vector.load %arg20[%c0_276, %c0_277] : memref<32x48xbf16, #tpu.memory_space<vmem>>, vector<32x48xbf16>
    %618 = arith.truncf %616 : vector<2x32xf32> to vector<2x32xbf16>
    %cst_278 = arith.constant dense<0.000000e+00> : vector<2x48xf32>
    %619 = tpu.matmul %618, %617, %cst_278 {dimension_numbers = #tpu.dot_dimension_numbers<[1], [0], [0], [1], [0, 0, 1, 1], [], []>} : vector<2x32xbf16>, vector<32x48xbf16>, vector<2x48xf32> -> vector<2x48xf32>
    %c0_279 = arith.constant 0 : index
    %c0_280 = arith.constant 0 : index
    %620 = vector.load %arg15[%c0_279, %c0_280] : memref<1x48xf32, #tpu.memory_space<vmem>>, vector<1x48xf32>
    %621 = vector.broadcast %620 : vector<1x48xf32> to vector<2x48xf32>
    %622 = arith.addf %619, %621 : vector<2x48xf32>
    %c0_281 = arith.constant 0 : index
    %c0_282 = arith.constant 0 : index
    %623 = vector.load %arg18[%c0_281, %c0_282] : memref<48x32xbf16, #tpu.memory_space<vmem>>, vector<48x32xbf16>
    %624 = arith.truncf %622 : vector<2x48xf32> to vector<2x48xbf16>
    %cst_283 = arith.constant dense<0.000000e+00> : vector<2x32xf32>
    %625 = tpu.matmul %624, %623, %cst_283 {dimension_numbers = #tpu.dot_dimension_numbers<[1], [0], [0], [1], [0, 0, 1, 1], [], []>} : vector<2x48xbf16>, vector<48x32xbf16>, vector<2x32xf32> -> vector<2x32xf32>
    %626 = arith.addf %462, %625 : vector<2x32xf32>
    %c0_284 = arith.constant 0 : index
    %c0_285 = arith.constant 0 : index
    %627 = vector.load %arg13[%c0_284, %c0_285] : memref<1x32xf32, #tpu.memory_space<vmem>>, vector<1x32xf32>
    %628 = vector.broadcast %627 : vector<1x32xf32> to vector<2x32xf32>
    %629 = arith.addf %626, %628 : vector<2x32xf32>
    %630 = vector.extract_strided_slice %629 {offsets = [0, 0], sizes = [1, 32], strides = [1, 1]} : vector<2x32xf32> to vector<1x32xf32>
    %c16_286 = arith.constant 16 : index
    %c0_287 = arith.constant 0 : index
    %631 = vector.load %arg71[%c16_286, %c0_287] : memref<48x32xf32, #tpu.memory_space<vmem>>, vector<1x32xf32>
    tpu.vector_store %arg71[%c16_286, %c0_287], %630 {strides = array<i32>} : memref<48x32xf32, #tpu.memory_space<vmem>>, vector<1x32xf32>,
    %632 = vector.extract_strided_slice %629 {offsets = [1, 0], sizes = [1, 32], strides = [1, 1]} : vector<2x32xf32> to vector<1x32xf32>
    %c40_288 = arith.constant 40 : index
    %c0_289 = arith.constant 0 : index
    %633 = vector.load %arg71[%c40_288, %c0_289] : memref<48x32xf32, #tpu.memory_space<vmem>>, vector<1x32xf32>
    tpu.vector_store %arg71[%c40_288, %c0_289], %632 {strides = array<i32>} : memref<48x32xf32, #tpu.memory_space<vmem>>, vector<1x32xf32>,
    %c4_290 = arith.constant 4 : index
    %c0_291 = arith.constant 0 : index
    %634 = vector.load %arg72[%c4_290, %c0_291] : memref<16x48xf32, #tpu.memory_space<vmem>>, vector<1x48xf32>
    %c0_292 = arith.constant 0 : index
    %c0_293 = arith.constant 0 : index
    %635 = vector.load %arg73[%c0_292, %c0_293] : memref<48x128xf32, #tpu.memory_space<vmem>>, vector<1x48xf32>
    tpu.vector_store %arg73[%c0_292, %c0_293], %634 {strides = array<i32>} : memref<48x128xf32, #tpu.memory_space<vmem>>, vector<1x48xf32>,
    %c12_294 = arith.constant 12 : index
    %c0_295 = arith.constant 0 : index
    %636 = vector.load %arg72[%c12_294, %c0_295] : memref<16x48xf32, #tpu.memory_space<vmem>>, vector<1x48xf32>
    %c1_296 = arith.constant 1 : index
    %c0_297 = arith.constant 0 : index
    %637 = vector.load %arg73[%c1_296, %c0_297] : memref<48x128xf32, #tpu.memory_space<vmem>>, vector<1x48xf32>
    tpu.vector_store %arg73[%c1_296, %c0_297], %636 {strides = array<i32>} : memref<48x128xf32, #tpu.memory_space<vmem>>, vector<1x48xf32>,
    %c0_298 = arith.constant 0 : index
    %c0_299 = arith.constant 0 : index
    %638 = vector.load %arg73[%c0_298, %c0_299] : memref<48x128xf32, #tpu.memory_space<vmem>>, vector<2x48xf32>
    %c0_300 = arith.constant 0 : index
    %c0_301 = arith.constant 0 : index
    %639 = vector.load %arg7[%c0_300, %c0_301] : memref<48x32xbf16, #tpu.memory_space<vmem>>, vector<48x32xbf16>
    %640 = arith.truncf %638 : vector<2x48xf32> to vector<2x48xbf16>
    %cst_302 = arith.constant dense<0.000000e+00> : vector<2x32xf32>
    %641 = tpu.matmul %640, %639, %cst_302 {dimension_numbers = #tpu.dot_dimension_numbers<[1], [0], [0], [1], [0, 0, 1, 1], [], []>} : vector<2x48xbf16>, vector<48x32xbf16>, vector<2x32xf32> -> vector<2x32xf32>
    %c0_303 = arith.constant 0 : index
    %c0_304 = arith.constant 0 : index
    %642 = vector.load %arg2[%c0_303, %c0_304] : memref<1x32xf32, #tpu.memory_space<vmem>>, vector<1x32xf32>
    %643 = vector.broadcast %642 : vector<1x32xf32> to vector<2x32xf32>
    %644 = arith.addf %641, %643 : vector<2x32xf32>
    %c0_305 = arith.constant 0 : index
    %c0_306 = arith.constant 0 : index
    %645 = vector.load %arg11[%c0_305, %c0_306] : memref<32x32xbf16, #tpu.memory_space<vmem>>, vector<32x32xbf16>
    %646 = arith.truncf %644 : vector<2x32xf32> to vector<2x32xbf16>
    %cst_307 = arith.constant dense<0.000000e+00> : vector<2x32xf32>
    %647 = tpu.matmul %646, %645, %cst_307 {dimension_numbers = #tpu.dot_dimension_numbers<[1], [0], [0], [1], [0, 0, 1, 1], [], []>} : vector<2x32xbf16>, vector<32x32xbf16>, vector<2x32xf32> -> vector<2x32xf32>
    %c0_308 = arith.constant 0 : index
    %c0_309 = arith.constant 0 : index
    %648 = vector.load %arg6[%c0_308, %c0_309] : memref<1x32xf32, #tpu.memory_space<vmem>>, vector<1x32xf32>
    %649 = vector.broadcast %648 : vector<1x32xf32> to vector<2x32xf32>
    %650 = arith.addf %647, %649 : vector<2x32xf32>
    %c0_310 = arith.constant 0 : index
    %c0_311 = arith.constant 0 : index
    %651 = vector.load %arg9[%c0_310, %c0_311] : memref<32x64xbf16, #tpu.memory_space<vmem>>, vector<32x64xbf16>
    %652 = arith.truncf %644 : vector<2x32xf32> to vector<2x32xbf16>
    %cst_312 = arith.constant dense<0.000000e+00> : vector<2x64xf32>
    %653 = tpu.matmul %652, %651, %cst_312 {dimension_numbers = #tpu.dot_dimension_numbers<[1], [0], [0], [1], [0, 0, 1, 1], [], []>} : vector<2x32xbf16>, vector<32x64xbf16>, vector<2x64xf32> -> vector<2x64xf32>
    %c0_313 = arith.constant 0 : index
    %c0_314 = arith.constant 0 : index
    %654 = vector.load %arg4[%c0_313, %c0_314] : memref<1x64xf32, #tpu.memory_space<vmem>>, vector<1x64xf32>
    %655 = vector.broadcast %654 : vector<1x64xf32> to vector<2x64xf32>
    %656 = arith.addf %653, %655 : vector<2x64xf32>
    %c0_315 = arith.constant 0 : index
    %c0_316 = arith.constant 0 : index
    %657 = vector.load %arg71[%c0_315, %c0_316] : memref<48x32xf32, #tpu.memory_space<vmem>>, vector<48x32xf32>
    %c0_317 = arith.constant 0 : index
    %c0_318 = arith.constant 0 : index
    %658 = vector.load %arg9[%c0_317, %c0_318] : memref<32x64xbf16, #tpu.memory_space<vmem>>, vector<32x64xbf16>
    %659 = arith.truncf %657 : vector<48x32xf32> to vector<48x32xbf16>
    %cst_319 = arith.constant dense<0.000000e+00> : vector<48x64xf32>
    %660 = tpu.matmul %659, %658, %cst_319 {dimension_numbers = #tpu.dot_dimension_numbers<[1], [0], [0], [1], [0, 0, 1, 1], [], []>} : vector<48x32xbf16>, vector<32x64xbf16>, vector<48x64xf32> -> vector<48x64xf32>
    %c0_320 = arith.constant 0 : index
    %c0_321 = arith.constant 0 : index
    %661 = vector.load %arg4[%c0_320, %c0_321] : memref<1x64xf32, #tpu.memory_space<vmem>>, vector<1x64xf32>
    %662 = vector.broadcast %661 : vector<1x64xf32> to vector<48x64xf32>
    %663 = arith.addf %660, %662 : vector<48x64xf32>
    %664 = vector.extract_strided_slice %650 {offsets = [0, 0], sizes = [1, 16], strides = [1, 1]} : vector<2x32xf32> to vector<1x16xf32>
    %665 = vector.extract_strided_slice %656 {offsets = [0, 0], sizes = [1, 16], strides = [1, 1]} : vector<2x64xf32> to vector<1x16xf32>
    %666 = vector.extract_strided_slice %656 {offsets = [0, 32], sizes = [1, 16], strides = [1, 1]} : vector<2x64xf32> to vector<1x16xf32>
    %667 = vector.extract_strided_slice %663 {offsets = [0, 0], sizes = [16, 16], strides = [1, 1]} : vector<48x64xf32> to vector<16x16xf32>
    %668 = vector.extract_strided_slice %663 {offsets = [0, 32], sizes = [16, 16], strides = [1, 1]} : vector<48x64xf32> to vector<16x16xf32>
    %669 = arith.mulf %664, %665 : vector<1x16xf32>
    %cst_322 = arith.constant dense<0.000000e+00> : vector<1xf32>
    %670 = vector.multi_reduction <add>, %669, %cst_322 [1] : vector<1x16xf32> to vector<1xf32>
    %671 = vector.shape_cast %670 : vector<1xf32> to vector<1x1xf32>
    %672 = arith.truncf %664 : vector<1x16xf32> to vector<1x16xbf16>
    %673 = arith.truncf %667 : vector<16x16xf32> to vector<16x16xbf16>
    %cst_323 = arith.constant dense<0.000000e+00> : vector<1x16xf32>
    %674 = tpu.matmul %672, %673, %cst_323 {dimension_numbers = #tpu.dot_dimension_numbers<[1], [1], [0], [0], [0, 0, 1, 0], [], []>} : vector<1x16xbf16>, vector<16x16xbf16>, vector<1x16xf32> -> vector<1x16xf32>
    %cst_324 = arith.constant dense<0xFF800000> : vector<1xf32>
    %675 = vector.multi_reduction <maximumf>, %674, %cst_324 [1] : vector<1x16xf32> to vector<1xf32>
    %676 = vector.shape_cast %675 : vector<1xf32> to vector<1x1xf32>
    %677 = arith.maximumf %671, %676 : vector<1x1xf32>
    %678 = arith.subf %671, %677 : vector<1x1xf32>
    %679 = math.exp %678 : vector<1x1xf32>
    %680 = vector.broadcast %677 : vector<1x1xf32> to vector<1x16xf32>
    %681 = arith.subf %674, %680 : vector<1x16xf32>
    %682 = math.exp %681 : vector<1x16xf32>
    %cst_325 = arith.constant dense<0.000000e+00> : vector<1xf32>
    %683 = vector.multi_reduction <add>, %682, %cst_325 [1] : vector<1x16xf32> to vector<1xf32>
    %684 = vector.shape_cast %683 : vector<1xf32> to vector<1x1xf32>
    %685 = arith.addf %679, %684 : vector<1x1xf32>
    %686 = tpu.reciprocal %685 {approx = true} : vector<1x1xf32> -> vector<1x1xf32>
    %687 = vector.broadcast %679 : vector<1x1xf32> to vector<1x16xf32>
    %688 = arith.mulf %687, %666 : vector<1x16xf32>
    %689 = arith.truncf %682 : vector<1x16xf32> to vector<1x16xbf16>
    %690 = arith.truncf %668 : vector<16x16xf32> to vector<16x16xbf16>
    %cst_326 = arith.constant dense<0.000000e+00> : vector<1x16xf32>
    %691 = tpu.matmul %689, %690, %cst_326 {dimension_numbers = #tpu.dot_dimension_numbers<[1], [0], [0], [1], [0, 0, 1, 1], [], []>} : vector<1x16xbf16>, vector<16x16xbf16>, vector<1x16xf32> -> vector<1x16xf32>
    %692 = arith.addf %688, %691 : vector<1x16xf32>
    %693 = vector.broadcast %686 : vector<1x1xf32> to vector<1x16xf32>
    %694 = arith.mulf %692, %693 : vector<1x16xf32>
    %c0_327 = arith.constant 0 : index
    %c64_328 = arith.constant 64 : index
    %695 = vector.load %arg73[%c0_327, %c64_328] : memref<48x128xf32, #tpu.memory_space<vmem>>, vector<1x16xf32>
    tpu.vector_store %arg73[%c0_327, %c64_328], %694 {strides = array<i32>} : memref<48x128xf32, #tpu.memory_space<vmem>>, vector<1x16xf32>,
    %696 = vector.extract_strided_slice %650 {offsets = [0, 16], sizes = [1, 16], strides = [1, 1]} : vector<2x32xf32> to vector<1x16xf32>
    %697 = vector.extract_strided_slice %656 {offsets = [0, 16], sizes = [1, 16], strides = [1, 1]} : vector<2x64xf32> to vector<1x16xf32>
    %698 = vector.extract_strided_slice %656 {offsets = [0, 48], sizes = [1, 16], strides = [1, 1]} : vector<2x64xf32> to vector<1x16xf32>
    %699 = vector.extract_strided_slice %663 {offsets = [0, 16], sizes = [16, 16], strides = [1, 1]} : vector<48x64xf32> to vector<16x16xf32>
    %700 = vector.extract_strided_slice %663 {offsets = [0, 48], sizes = [16, 16], strides = [1, 1]} : vector<48x64xf32> to vector<16x16xf32>
    %701 = arith.mulf %696, %697 : vector<1x16xf32>
    %cst_329 = arith.constant dense<0.000000e+00> : vector<1xf32>
    %702 = vector.multi_reduction <add>, %701, %cst_329 [1] : vector<1x16xf32> to vector<1xf32>
    %703 = vector.shape_cast %702 : vector<1xf32> to vector<1x1xf32>
    %704 = arith.truncf %696 : vector<1x16xf32> to vector<1x16xbf16>
    %705 = arith.truncf %699 : vector<16x16xf32> to vector<16x16xbf16>
    %cst_330 = arith.constant dense<0.000000e+00> : vector<1x16xf32>
    %706 = tpu.matmul %704, %705, %cst_330 {dimension_numbers = #tpu.dot_dimension_numbers<[1], [1], [0], [0], [0, 0, 1, 0], [], []>} : vector<1x16xbf16>, vector<16x16xbf16>, vector<1x16xf32> -> vector<1x16xf32>
    %cst_331 = arith.constant dense<0xFF800000> : vector<1xf32>
    %707 = vector.multi_reduction <maximumf>, %706, %cst_331 [1] : vector<1x16xf32> to vector<1xf32>
    %708 = vector.shape_cast %707 : vector<1xf32> to vector<1x1xf32>
    %709 = arith.maximumf %703, %708 : vector<1x1xf32>
    %710 = arith.subf %703, %709 : vector<1x1xf32>
    %711 = math.exp %710 : vector<1x1xf32>
    %712 = vector.broadcast %709 : vector<1x1xf32> to vector<1x16xf32>
    %713 = arith.subf %706, %712 : vector<1x16xf32>
    %714 = math.exp %713 : vector<1x16xf32>
    %cst_332 = arith.constant dense<0.000000e+00> : vector<1xf32>
    %715 = vector.multi_reduction <add>, %714, %cst_332 [1] : vector<1x16xf32> to vector<1xf32>
    %716 = vector.shape_cast %715 : vector<1xf32> to vector<1x1xf32>
    %717 = arith.addf %711, %716 : vector<1x1xf32>
    %718 = tpu.reciprocal %717 {approx = true} : vector<1x1xf32> -> vector<1x1xf32>
    %719 = vector.broadcast %711 : vector<1x1xf32> to vector<1x16xf32>
    %720 = arith.mulf %719, %698 : vector<1x16xf32>
    %721 = arith.truncf %714 : vector<1x16xf32> to vector<1x16xbf16>
    %722 = arith.truncf %700 : vector<16x16xf32> to vector<16x16xbf16>
    %cst_333 = arith.constant dense<0.000000e+00> : vector<1x16xf32>
    %723 = tpu.matmul %721, %722, %cst_333 {dimension_numbers = #tpu.dot_dimension_numbers<[1], [0], [0], [1], [0, 0, 1, 1], [], []>} : vector<1x16xbf16>, vector<16x16xbf16>, vector<1x16xf32> -> vector<1x16xf32>
    %724 = arith.addf %720, %723 : vector<1x16xf32>
    %725 = vector.broadcast %718 : vector<1x1xf32> to vector<1x16xf32>
    %726 = arith.mulf %724, %725 : vector<1x16xf32>
    %c0_334 = arith.constant 0 : index
    %c80_335 = arith.constant 80 : index
    %727 = vector.load %arg73[%c0_334, %c80_335] : memref<48x128xf32, #tpu.memory_space<vmem>>, vector<1x16xf32>
    tpu.vector_store %arg73[%c0_334, %c80_335], %726 {strides = array<i32>} : memref<48x128xf32, #tpu.memory_space<vmem>>, vector<1x16xf32>,
    %728 = vector.extract_strided_slice %650 {offsets = [1, 0], sizes = [1, 16], strides = [1, 1]} : vector<2x32xf32> to vector<1x16xf32>
    %729 = vector.extract_strided_slice %656 {offsets = [1, 0], sizes = [1, 16], strides = [1, 1]} : vector<2x64xf32> to vector<1x16xf32>
    %730 = vector.extract_strided_slice %656 {offsets = [1, 32], sizes = [1, 16], strides = [1, 1]} : vector<2x64xf32> to vector<1x16xf32>
    %731 = vector.extract_strided_slice %663 {offsets = [24, 0], sizes = [16, 16], strides = [1, 1]} : vector<48x64xf32> to vector<16x16xf32>
    %732 = vector.extract_strided_slice %663 {offsets = [24, 32], sizes = [16, 16], strides = [1, 1]} : vector<48x64xf32> to vector<16x16xf32>
    %733 = arith.mulf %728, %729 : vector<1x16xf32>
    %cst_336 = arith.constant dense<0.000000e+00> : vector<1xf32>
    %734 = vector.multi_reduction <add>, %733, %cst_336 [1] : vector<1x16xf32> to vector<1xf32>
    %735 = vector.shape_cast %734 : vector<1xf32> to vector<1x1xf32>
    %736 = arith.truncf %728 : vector<1x16xf32> to vector<1x16xbf16>
    %737 = arith.truncf %731 : vector<16x16xf32> to vector<16x16xbf16>
    %cst_337 = arith.constant dense<0.000000e+00> : vector<1x16xf32>
    %738 = tpu.matmul %736, %737, %cst_337 {dimension_numbers = #tpu.dot_dimension_numbers<[1], [1], [0], [0], [0, 0, 1, 0], [], []>} : vector<1x16xbf16>, vector<16x16xbf16>, vector<1x16xf32> -> vector<1x16xf32>
    %cst_338 = arith.constant dense<0xFF800000> : vector<1xf32>
    %739 = vector.multi_reduction <maximumf>, %738, %cst_338 [1] : vector<1x16xf32> to vector<1xf32>
    %740 = vector.shape_cast %739 : vector<1xf32> to vector<1x1xf32>
    %741 = arith.maximumf %735, %740 : vector<1x1xf32>
    %742 = arith.subf %735, %741 : vector<1x1xf32>
    %743 = math.exp %742 : vector<1x1xf32>
    %744 = vector.broadcast %741 : vector<1x1xf32> to vector<1x16xf32>
    %745 = arith.subf %738, %744 : vector<1x16xf32>
    %746 = math.exp %745 : vector<1x16xf32>
    %cst_339 = arith.constant dense<0.000000e+00> : vector<1xf32>
    %747 = vector.multi_reduction <add>, %746, %cst_339 [1] : vector<1x16xf32> to vector<1xf32>
    %748 = vector.shape_cast %747 : vector<1xf32> to vector<1x1xf32>
    %749 = arith.addf %743, %748 : vector<1x1xf32>
    %750 = tpu.reciprocal %749 {approx = true} : vector<1x1xf32> -> vector<1x1xf32>
    %751 = vector.broadcast %743 : vector<1x1xf32> to vector<1x16xf32>
    %752 = arith.mulf %751, %730 : vector<1x16xf32>
    %753 = arith.truncf %746 : vector<1x16xf32> to vector<1x16xbf16>
    %754 = arith.truncf %732 : vector<16x16xf32> to vector<16x16xbf16>
    %cst_340 = arith.constant dense<0.000000e+00> : vector<1x16xf32>
    %755 = tpu.matmul %753, %754, %cst_340 {dimension_numbers = #tpu.dot_dimension_numbers<[1], [0], [0], [1], [0, 0, 1, 1], [], []>} : vector<1x16xbf16>, vector<16x16xbf16>, vector<1x16xf32> -> vector<1x16xf32>
    %756 = arith.addf %752, %755 : vector<1x16xf32>
    %757 = vector.broadcast %750 : vector<1x1xf32> to vector<1x16xf32>
    %758 = arith.mulf %756, %757 : vector<1x16xf32>
    %c1_341 = arith.constant 1 : index
    %c64_342 = arith.constant 64 : index
    %759 = vector.load %arg73[%c1_341, %c64_342] : memref<48x128xf32, #tpu.memory_space<vmem>>, vector<1x16xf32>
    tpu.vector_store %arg73[%c1_341, %c64_342], %758 {strides = array<i32>} : memref<48x128xf32, #tpu.memory_space<vmem>>, vector<1x16xf32>,
    %760 = vector.extract_strided_slice %650 {offsets = [1, 16], sizes = [1, 16], strides = [1, 1]} : vector<2x32xf32> to vector<1x16xf32>
    %761 = vector.extract_strided_slice %656 {offsets = [1, 16], sizes = [1, 16], strides = [1, 1]} : vector<2x64xf32> to vector<1x16xf32>
    %762 = vector.extract_strided_slice %656 {offsets = [1, 48], sizes = [1, 16], strides = [1, 1]} : vector<2x64xf32> to vector<1x16xf32>
    %763 = vector.extract_strided_slice %663 {offsets = [24, 16], sizes = [16, 16], strides = [1, 1]} : vector<48x64xf32> to vector<16x16xf32>
    %764 = vector.extract_strided_slice %663 {offsets = [24, 48], sizes = [16, 16], strides = [1, 1]} : vector<48x64xf32> to vector<16x16xf32>
    %765 = arith.mulf %760, %761 : vector<1x16xf32>
    %cst_343 = arith.constant dense<0.000000e+00> : vector<1xf32>
    %766 = vector.multi_reduction <add>, %765, %cst_343 [1] : vector<1x16xf32> to vector<1xf32>
    %767 = vector.shape_cast %766 : vector<1xf32> to vector<1x1xf32>
    %768 = arith.truncf %760 : vector<1x16xf32> to vector<1x16xbf16>
    %769 = arith.truncf %763 : vector<16x16xf32> to vector<16x16xbf16>
    %cst_344 = arith.constant dense<0.000000e+00> : vector<1x16xf32>
    %770 = tpu.matmul %768, %769, %cst_344 {dimension_numbers = #tpu.dot_dimension_numbers<[1], [1], [0], [0], [0, 0, 1, 0], [], []>} : vector<1x16xbf16>, vector<16x16xbf16>, vector<1x16xf32> -> vector<1x16xf32>
    %cst_345 = arith.constant dense<0xFF800000> : vector<1xf32>
    %771 = vector.multi_reduction <maximumf>, %770, %cst_345 [1] : vector<1x16xf32> to vector<1xf32>
    %772 = vector.shape_cast %771 : vector<1xf32> to vector<1x1xf32>
    %773 = arith.maximumf %767, %772 : vector<1x1xf32>
    %774 = arith.subf %767, %773 : vector<1x1xf32>
    %775 = math.exp %774 : vector<1x1xf32>
    %776 = vector.broadcast %773 : vector<1x1xf32> to vector<1x16xf32>
    %777 = arith.subf %770, %776 : vector<1x16xf32>
    %778 = math.exp %777 : vector<1x16xf32>
    %cst_346 = arith.constant dense<0.000000e+00> : vector<1xf32>
    %779 = vector.multi_reduction <add>, %778, %cst_346 [1] : vector<1x16xf32> to vector<1xf32>
    %780 = vector.shape_cast %779 : vector<1xf32> to vector<1x1xf32>
    %781 = arith.addf %775, %780 : vector<1x1xf32>
    %782 = tpu.reciprocal %781 {approx = true} : vector<1x1xf32> -> vector<1x1xf32>
    %783 = vector.broadcast %775 : vector<1x1xf32> to vector<1x16xf32>
    %784 = arith.mulf %783, %762 : vector<1x16xf32>
    %785 = arith.truncf %778 : vector<1x16xf32> to vector<1x16xbf16>
    %786 = arith.truncf %764 : vector<16x16xf32> to vector<16x16xbf16>
    %cst_347 = arith.constant dense<0.000000e+00> : vector<1x16xf32>
    %787 = tpu.matmul %785, %786, %cst_347 {dimension_numbers = #tpu.dot_dimension_numbers<[1], [0], [0], [1], [0, 0, 1, 1], [], []>} : vector<1x16xbf16>, vector<16x16xbf16>, vector<1x16xf32> -> vector<1x16xf32>
    %788 = arith.addf %784, %787 : vector<1x16xf32>
    %789 = vector.broadcast %782 : vector<1x1xf32> to vector<1x16xf32>
    %790 = arith.mulf %788, %789 : vector<1x16xf32>
    %c1_348 = arith.constant 1 : index
    %c80_349 = arith.constant 80 : index
    %791 = vector.load %arg73[%c1_348, %c80_349] : memref<48x128xf32, #tpu.memory_space<vmem>>, vector<1x16xf32>
    tpu.vector_store %arg73[%c1_348, %c80_349], %790 {strides = array<i32>} : memref<48x128xf32, #tpu.memory_space<vmem>>, vector<1x16xf32>,
    %c0_350 = arith.constant 0 : index
    %c64_351 = arith.constant 64 : index
    %792 = vector.load %arg73[%c0_350, %c64_351] : memref<48x128xf32, #tpu.memory_space<vmem>>, vector<2x32xf32>
    %c0_352 = arith.constant 0 : index
    %c0_353 = arith.constant 0 : index
    %793 = vector.load %arg10[%c0_352, %c0_353] : memref<32x32xbf16, #tpu.memory_space<vmem>>, vector<32x32xbf16>
    %794 = arith.truncf %792 : vector<2x32xf32> to vector<2x32xbf16>
    %cst_354 = arith.constant dense<0.000000e+00> : vector<2x32xf32>
    %795 = tpu.matmul %794, %793, %cst_354 {dimension_numbers = #tpu.dot_dimension_numbers<[1], [0], [0], [1], [0, 0, 1, 1], [], []>} : vector<2x32xbf16>, vector<32x32xbf16>, vector<2x32xf32> -> vector<2x32xf32>
    %c0_355 = arith.constant 0 : index
    %c0_356 = arith.constant 0 : index
    %796 = vector.load %arg5[%c0_355, %c0_356] : memref<1x32xf32, #tpu.memory_space<vmem>>, vector<1x32xf32>
    %797 = vector.broadcast %796 : vector<1x32xf32> to vector<2x32xf32>
    %798 = arith.addf %795, %797 : vector<2x32xf32>
    %c0_357 = arith.constant 0 : index
    %c0_358 = arith.constant 0 : index
    %799 = vector.load %arg8[%c0_357, %c0_358] : memref<32x48xbf16, #tpu.memory_space<vmem>>, vector<32x48xbf16>
    %800 = arith.truncf %798 : vector<2x32xf32> to vector<2x32xbf16>
    %cst_359 = arith.constant dense<0.000000e+00> : vector<2x48xf32>
    %801 = tpu.matmul %800, %799, %cst_359 {dimension_numbers = #tpu.dot_dimension_numbers<[1], [0], [0], [1], [0, 0, 1, 1], [], []>} : vector<2x32xbf16>, vector<32x48xbf16>, vector<2x48xf32> -> vector<2x48xf32>
    %802 = arith.addf %638, %801 : vector<2x48xf32>
    %c0_360 = arith.constant 0 : index
    %c0_361 = arith.constant 0 : index
    %803 = vector.load %arg3[%c0_360, %c0_361] : memref<1x48xf32, #tpu.memory_space<vmem>>, vector<1x48xf32>
    %804 = vector.broadcast %803 : vector<1x48xf32> to vector<2x48xf32>
    %805 = arith.addf %802, %804 : vector<2x48xf32>
    %806 = vector.extract_strided_slice %805 {offsets = [0, 0], sizes = [1, 48], strides = [1, 1]} : vector<2x48xf32> to vector<1x48xf32>
    %c4_362 = arith.constant 4 : index
    %c0_363 = arith.constant 0 : index
    %807 = vector.load %arg72[%c4_362, %c0_363] : memref<16x48xf32, #tpu.memory_space<vmem>>, vector<1x48xf32>
    tpu.vector_store %arg72[%c4_362, %c0_363], %806 {strides = array<i32>} : memref<16x48xf32, #tpu.memory_space<vmem>>, vector<1x48xf32>,
    %808 = vector.extract_strided_slice %805 {offsets = [1, 0], sizes = [1, 48], strides = [1, 1]} : vector<2x48xf32> to vector<1x48xf32>
    %c12_364 = arith.constant 12 : index
    %c0_365 = arith.constant 0 : index
    %809 = vector.load %arg72[%c12_364, %c0_365] : memref<16x48xf32, #tpu.memory_space<vmem>>, vector<1x48xf32>
    tpu.vector_store %arg72[%c12_364, %c0_365], %808 {strides = array<i32>} : memref<16x48xf32, #tpu.memory_space<vmem>>, vector<1x48xf32>,
    %c16_366 = arith.constant 16 : index
    %c0_367 = arith.constant 0 : index
    %810 = vector.load %arg71[%c16_366, %c0_367] : memref<48x32xf32, #tpu.memory_space<vmem>>, vector<1x32xf32>
    %c0_368 = arith.constant 0 : index
    %c0_369 = arith.constant 0 : index
    %811 = vector.load %arg73[%c0_368, %c0_369] : memref<48x128xf32, #tpu.memory_space<vmem>>, vector<1x32xf32>
    tpu.vector_store %arg73[%c0_368, %c0_369], %810 {strides = array<i32>} : memref<48x128xf32, #tpu.memory_space<vmem>>, vector<1x32xf32>,
    %c4_370 = arith.constant 4 : index
    %c0_371 = arith.constant 0 : index
    %812 = vector.load %arg72[%c4_370, %c0_371] : memref<16x48xf32, #tpu.memory_space<vmem>>, vector<1x48xf32>
    %c0_372 = arith.constant 0 : index
    %c64_373 = arith.constant 64 : index
    %813 = vector.load %arg73[%c0_372, %c64_373] : memref<48x128xf32, #tpu.memory_space<vmem>>, vector<1x48xf32>
    tpu.vector_store %arg73[%c0_372, %c64_373], %812 {strides = array<i32>} : memref<48x128xf32, #tpu.memory_space<vmem>>, vector<1x48xf32>,
    %c40_374 = arith.constant 40 : index
    %c0_375 = arith.constant 0 : index
    %814 = vector.load %arg71[%c40_374, %c0_375] : memref<48x32xf32, #tpu.memory_space<vmem>>, vector<1x32xf32>
    %c1_376 = arith.constant 1 : index
    %c0_377 = arith.constant 0 : index
    %815 = vector.load %arg73[%c1_376, %c0_377] : memref<48x128xf32, #tpu.memory_space<vmem>>, vector<1x32xf32>
    tpu.vector_store %arg73[%c1_376, %c0_377], %814 {strides = array<i32>} : memref<48x128xf32, #tpu.memory_space<vmem>>, vector<1x32xf32>,
    %c12_378 = arith.constant 12 : index
    %c0_379 = arith.constant 0 : index
    %816 = vector.load %arg72[%c12_378, %c0_379] : memref<16x48xf32, #tpu.memory_space<vmem>>, vector<1x48xf32>
    %c1_380 = arith.constant 1 : index
    %c64_381 = arith.constant 64 : index
    %817 = vector.load %arg73[%c1_380, %c64_381] : memref<48x128xf32, #tpu.memory_space<vmem>>, vector<1x48xf32>
    tpu.vector_store %arg73[%c1_380, %c64_381], %816 {strides = array<i32>} : memref<48x128xf32, #tpu.memory_space<vmem>>, vector<1x48xf32>,
    %c0_382 = arith.constant 0 : index
    %c0_383 = arith.constant 0 : index
    %818 = vector.load %arg73[%c0_382, %c0_383] : memref<48x128xf32, #tpu.memory_space<vmem>>, vector<2x32xf32>
    %c0_384 = arith.constant 0 : index
    %c64_385 = arith.constant 64 : index
    %819 = vector.load %arg73[%c0_384, %c64_385] : memref<48x128xf32, #tpu.memory_space<vmem>>, vector<2x48xf32>
    %c0_386 = arith.constant 0 : index
    %c0_387 = arith.constant 0 : index
    %820 = vector.load %arg68[%c0_386, %c0_387] : memref<1x32xf32, #tpu.memory_space<vmem>>, vector<1x32xf32>
    %c0_388 = arith.constant 0 : index
    %c0_389 = arith.constant 0 : index
    %821 = vector.load %arg67[%c0_388, %c0_389] : memref<1x32xf32, #tpu.memory_space<vmem>>, vector<1x32xf32>
    %cst_390 = arith.constant dense<0.000000e+00> : vector<2xf32>
    %822 = vector.multi_reduction <add>, %818, %cst_390 [1] : vector<2x32xf32> to vector<2xf32>
    %823 = vector.shape_cast %822 : vector<2xf32> to vector<2x1xf32>
    %cst_391 = arith.constant 3.200000e+01 : f32
    %824 = vector.broadcast %cst_391 : f32 to vector<2x1xf32>
    %825 = arith.divf %823, %824 : vector<2x1xf32>
    %826 = vector.broadcast %825 : vector<2x1xf32> to vector<2x32xf32>
    %827 = arith.subf %818, %826 : vector<2x32xf32>
    %828 = arith.mulf %827, %827 : vector<2x32xf32>
    %cst_392 = arith.constant dense<0.000000e+00> : vector<2xf32>
    %829 = vector.multi_reduction <add>, %828, %cst_392 [1] : vector<2x32xf32> to vector<2xf32>
    %830 = vector.shape_cast %829 : vector<2xf32> to vector<2x1xf32>
    %cst_393 = arith.constant 3.200000e+01 : f32
    %831 = vector.broadcast %cst_393 : f32 to vector<2x1xf32>
    %832 = arith.divf %830, %831 : vector<2x1xf32>
    %cst_394 = arith.constant 9.99999974E-6 : f32
    %833 = vector.broadcast %cst_394 : f32 to vector<2x1xf32>
    %834 = arith.addf %832, %833 : vector<2x1xf32>
    %835 = math.rsqrt %834 : vector<2x1xf32>
    %836 = vector.broadcast %835 : vector<2x1xf32> to vector<2x32xf32>
    %837 = arith.mulf %827, %836 : vector<2x32xf32>
    %838 = vector.broadcast %820 : vector<1x32xf32> to vector<2x32xf32>
    %839 = arith.mulf %837, %838 : vector<2x32xf32>
    %840 = vector.broadcast %821 : vector<1x32xf32> to vector<2x32xf32>
    %841 = arith.addf %839, %840 : vector<2x32xf32>
    %c0_395 = arith.constant 0 : index
    %c0_396 = arith.constant 0 : index
    %842 = vector.load %arg56[%c0_395, %c0_396] : memref<1x48xf32, #tpu.memory_space<vmem>>, vector<1x48xf32>
    %c0_397 = arith.constant 0 : index
    %c0_398 = arith.constant 0 : index
    %843 = vector.load %arg55[%c0_397, %c0_398] : memref<1x48xf32, #tpu.memory_space<vmem>>, vector<1x48xf32>
    %cst_399 = arith.constant dense<0.000000e+00> : vector<2xf32>
    %844 = vector.multi_reduction <add>, %819, %cst_399 [1] : vector<2x48xf32> to vector<2xf32>
    %845 = vector.shape_cast %844 : vector<2xf32> to vector<2x1xf32>
    %cst_400 = arith.constant 4.800000e+01 : f32
    %846 = vector.broadcast %cst_400 : f32 to vector<2x1xf32>
    %847 = arith.divf %845, %846 : vector<2x1xf32>
    %848 = vector.broadcast %847 : vector<2x1xf32> to vector<2x48xf32>
    %849 = arith.subf %819, %848 : vector<2x48xf32>
    %850 = arith.mulf %849, %849 : vector<2x48xf32>
    %cst_401 = arith.constant dense<0.000000e+00> : vector<2xf32>
    %851 = vector.multi_reduction <add>, %850, %cst_401 [1] : vector<2x48xf32> to vector<2xf32>
    %852 = vector.shape_cast %851 : vector<2xf32> to vector<2x1xf32>
    %cst_402 = arith.constant 4.800000e+01 : f32
    %853 = vector.broadcast %cst_402 : f32 to vector<2x1xf32>
    %854 = arith.divf %852, %853 : vector<2x1xf32>
    %cst_403 = arith.constant 9.99999974E-6 : f32
    %855 = vector.broadcast %cst_403 : f32 to vector<2x1xf32>
    %856 = arith.addf %854, %855 : vector<2x1xf32>
    %857 = math.rsqrt %856 : vector<2x1xf32>
    %858 = vector.broadcast %857 : vector<2x1xf32> to vector<2x48xf32>
    %859 = arith.mulf %849, %858 : vector<2x48xf32>
    %860 = vector.broadcast %842 : vector<1x48xf32> to vector<2x48xf32>
    %861 = arith.mulf %859, %860 : vector<2x48xf32>
    %862 = vector.broadcast %843 : vector<1x48xf32> to vector<2x48xf32>
    %863 = arith.addf %861, %862 : vector<2x48xf32>
    %c0_404 = arith.constant 0 : index
    %c0_405 = arith.constant 0 : index
    %864 = vector.load %arg69[%c0_404, %c0_405] : memref<32x128xbf16, #tpu.memory_space<vmem>>, vector<32x128xbf16>
    %865 = arith.truncf %841 : vector<2x32xf32> to vector<2x32xbf16>
    %cst_406 = arith.constant dense<0.000000e+00> : vector<2x128xf32>
    %866 = tpu.matmul %865, %864, %cst_406 {dimension_numbers = #tpu.dot_dimension_numbers<[1], [0], [0], [1], [0, 0, 1, 1], [], []>} : vector<2x32xbf16>, vector<32x128xbf16>, vector<2x128xf32> -> vector<2x128xf32>
    %c0_407 = arith.constant 0 : index
    %c0_408 = arith.constant 0 : index
    %867 = vector.load %arg66[%c0_407, %c0_408] : memref<1x128xf32, #tpu.memory_space<vmem>>, vector<1x128xf32>
    %868 = vector.broadcast %867 : vector<1x128xf32> to vector<2x128xf32>
    %869 = arith.addf %866, %868 : vector<2x128xf32>
    %c0_409 = arith.constant 0 : index
    %c0_410 = arith.constant 0 : index
    %870 = vector.load %arg57[%c0_409, %c0_410] : memref<48x128xbf16, #tpu.memory_space<vmem>>, vector<48x128xbf16>
    %871 = arith.truncf %863 : vector<2x48xf32> to vector<2x48xbf16>
    %cst_411 = arith.constant dense<0.000000e+00> : vector<2x128xf32>
    %872 = tpu.matmul %871, %870, %cst_411 {dimension_numbers = #tpu.dot_dimension_numbers<[1], [0], [0], [1], [0, 0, 1, 1], [], []>} : vector<2x48xbf16>, vector<48x128xbf16>, vector<2x128xf32> -> vector<2x128xf32>
    %873 = arith.addf %869, %872 : vector<2x128xf32>
    %c0_412 = arith.constant 0 : index
    %c0_413 = arith.constant 0 : index
    %874 = vector.load %arg54[%c0_412, %c0_413] : memref<1x128xf32, #tpu.memory_space<vmem>>, vector<1x128xf32>
    %875 = vector.broadcast %874 : vector<1x128xf32> to vector<2x128xf32>
    %876 = arith.addf %873, %875 : vector<2x128xf32>
    %c0_414 = arith.constant 0 : index
    %c0_415 = arith.constant 0 : index
    %877 = vector.load %arg70[%c0_414, %c0_415] : memref<2x128xf32, #tpu.memory_space<vmem>>, vector<2x128xf32>
    tpu.vector_store %arg70[%c0_414, %c0_415], %876 {strides = array<i32>} : memref<2x128xf32, #tpu.memory_space<vmem>>, vector<2x128xf32>,
    return
  }
}

</mosaic_0001>

<llo_original>
// kernel: _lambda_.1
$region0: #{_lambda_.1}
  #allocation0 [shape = 'u32[]', space=smem, size = 0x4, offset = 0x4, fixed_abs, tag = 'smem constant byte address 0x4 - core index']
  #allocation1 [shape = 'u32[144,128]{1,0:T(1,128)}', space=vmem, size = 0x12000, scoped, tag = 'internal scratch']
  #allocation2 [shape = 'f32[48,32]{1,0:T(8,128)}', space=vmem, size = 0x6000, scoped, tag = 'scratch operand']
  #allocation3 [shape = 'f32[16,48]{1,0:T(8,128)}', space=vmem, size = 0x2000, scoped, tag = 'scratch operand']
  #allocation4 [shape = 'f32[48,128]{1,0:T(8,128)}', space=vmem, size = 0x6000, scoped, tag = 'scratch operand']
  %s0 = inlined_call_operand.smem [shape: u32[71], index: -1, kind: input, shape index: {}]
  %s1 = sld [smem:[%s0]]
  %s2 = scalar_lea.smem %s0, 1
  %s3 = sld [smem:[%s2]]
  %s4 = scalar_lea.smem %s0, 2
  %s5 = sld [smem:[%s4]]
  %s6 = scalar_lea.smem %s0, 3
  %s7 = sld [smem:[%s6]]
  %s8 = scalar_lea.smem %s0, 4
  %s9 = sld [smem:[%s8]]
  %s10 = scalar_lea.smem %s0, 5
  %s11 = sld [smem:[%s10]]
  %s12 = scalar_lea.smem %s0, 6
  %s13 = sld [smem:[%s12]]
  %s14 = scalar_lea.smem %s0, 7
  %s15 = sld [smem:[%s14]]
  %s16 = scalar_lea.smem %s0, 8
  %s17 = sld [smem:[%s16]]
  %s18 = scalar_lea.smem %s0, 9
  %s19 = sld [smem:[%s18]]
  %s20 = scalar_lea.smem %s0, 10
  %s21 = sld [smem:[%s20]]
  %s22 = scalar_lea.smem %s0, 11
  %s23 = sld [smem:[%s22]]
  %s24 = scalar_lea.smem %s0, 12
  %s25 = sld [smem:[%s24]]
  %s26 = scalar_lea.smem %s0, 13
  %s27 = sld [smem:[%s26]]
  %s28 = scalar_lea.smem %s0, 14
  %s29 = sld [smem:[%s28]]
  %s30 = scalar_lea.smem %s0, 15
  %s31 = sld [smem:[%s30]]
  %s32 = scalar_lea.smem %s0, 16
  %s33 = sld [smem:[%s32]]
  %s34 = scalar_lea.smem %s0, 17
  %s35 = sld [smem:[%s34]]
  %s36 = scalar_lea.smem %s0, 18
  %s37 = sld [smem:[%s36]]
  %s38 = scalar_lea.smem %s0, 19
  %s39 = sld [smem:[%s38]]
  %s40 = scalar_lea.smem %s0, 20
  %s41 = sld [smem:[%s40]]
  %s42 = scalar_lea.smem %s0, 21
  %s43 = sld [smem:[%s42]]
  %s44 = scalar_lea.smem %s0, 22
  %s45 = sld [smem:[%s44]]
  %s46 = scalar_lea.smem %s0, 23
  %s47 = sld [smem:[%s46]]
  %s48 = scalar_lea.smem %s0, 24
  %s49 = sld [smem:[%s48]]
  %s50 = scalar_lea.smem %s0, 25
  %s51 = sld [smem:[%s50]]
  %s52 = scalar_lea.smem %s0, 26
  %s53 = sld [smem:[%s52]]
  %s54 = scalar_lea.smem %s0, 27
  %s55 = sld [smem:[%s54]]
  %s56 = scalar_lea.smem %s0, 28
  %s57 = sld [smem:[%s56]]
  %s58 = scalar_lea.smem %s0, 29
  %s59 = sld [smem:[%s58]]
  %s60 = scalar_lea.smem %s0, 30
  %s61 = sld [smem:[%s60]]
  %s62 = scalar_lea.smem %s0, 31
  %s63 = sld [smem:[%s62]]
  %s64 = scalar_lea.smem %s0, 32
  %s65 = sld [smem:[%s64]]
  %s66 = scalar_lea.smem %s0, 33
  %s67 = sld [smem:[%s66]]
  %s68 = scalar_lea.smem %s0, 34
  %s69 = sld [smem:[%s68]]
  %s70 = scalar_lea.smem %s0, 35
  %s71 = sld [smem:[%s70]]
  %s72 = scalar_lea.smem %s0, 36
  %s73 = sld [smem:[%s72]]
  %s74 = scalar_lea.smem %s0, 37
  %s75 = sld [smem:[%s74]]
  %s76 = scalar_lea.smem %s0, 38
  %s77 = sld [smem:[%s76]]
  %s78 = scalar_lea.smem %s0, 39
  %s79 = sld [smem:[%s78]]
  %s80 = scalar_lea.smem %s0, 40
  %s81 = sld [smem:[%s80]]
  %s82 = scalar_lea.smem %s0, 41
  %s83 = sld [smem:[%s82]]
  %s84 = scalar_lea.smem %s0, 42
  %s85 = sld [smem:[%s84]]
  %s86 = scalar_lea.smem %s0, 43
  %s87 = sld [smem:[%s86]]
  %s88 = scalar_lea.smem %s0, 44
  %s89 = sld [smem:[%s88]]
  %s90 = scalar_lea.smem %s0, 45
  %s91 = sld [smem:[%s90]]
  %s92 = scalar_lea.smem %s0, 46
  %s93 = sld [smem:[%s92]]
  %s94 = scalar_lea.smem %s0, 47
  %s95 = sld [smem:[%s94]]
  %s96 = scalar_lea.smem %s0, 48
  %s97 = sld [smem:[%s96]]
  %s98 = scalar_lea.smem %s0, 49
  %s99 = sld [smem:[%s98]]
  %s100 = scalar_lea.smem %s0, 50
  %s101 = sld [smem:[%s100]]
  %s102 = scalar_lea.smem %s0, 51
  %s103 = sld [smem:[%s102]]
  %s104 = scalar_lea.smem %s0, 52
  %s105 = sld [smem:[%s104]]
  %s106 = scalar_lea.smem %s0, 53
  %s107 = sld [smem:[%s106]]
  %s108 = scalar_lea.smem %s0, 54
  %s109 = sld [smem:[%s108]]
  %s110 = scalar_lea.smem %s0, 55
  %s111 = sld [smem:[%s110]]
  %s112 = scalar_lea.smem %s0, 56
  %s113 = sld [smem:[%s112]]
  %s114 = scalar_lea.smem %s0, 57
  %s115 = sld [smem:[%s114]]
  %s116 = scalar_lea.smem %s0, 58
  %s117 = sld [smem:[%s116]]
  %s118 = scalar_lea.smem %s0, 59
  %s119 = sld [smem:[%s118]]
  %s120 = scalar_lea.smem %s0, 60
  %s121 = sld [smem:[%s120]]
  %s122 = scalar_lea.smem %s0, 61
  %s123 = sld [smem:[%s122]]
  %s124 = scalar_lea.smem %s0, 62
  %s125 = sld [smem:[%s124]]
  %s126 = scalar_lea.smem %s0, 63
  %s127 = sld [smem:[%s126]]
  %s128 = scalar_lea.smem %s0, 64
  %s129 = sld [smem:[%s128]]
  %s130 = scalar_lea.smem %s0, 65
  %s131 = sld [smem:[%s130]]
  %s132 = scalar_lea.smem %s0, 66
  %s133 = sld [smem:[%s132]]
  %s134 = scalar_lea.smem %s0, 67
  %s135 = sld [smem:[%s134]]
  %s136 = scalar_lea.smem %s0, 68
  %s137 = sld [smem:[%s136]]
  %s138 = scalar_lea.smem %s0, 69
  %s139 = sld [smem:[%s138]]
  %s140 = scalar_lea.smem %s0, 70
  %s141 = sld [smem:[%s140]]
  %s142 = sld [smem:[#allocation0]]
  $region402: #{_lambda_.1} parent=0
    _
  %s144 = ssub.s32 1, %s142
  %s145 = scalar_select 0, %s144, %s142
  $region1: #{_lambda_.1} parent=0
    #allocation5 [shape = 'u8[512]{0}', space=vmem, size = 0x400, scoped, tag = 'input window, operand 28, single buffered']
    #allocation6 [shape = 's32[1]{0}', space=sflag, size = 0x4, scoped, tag = 'scoped memory for _lambda_.1']
    #allocation7 [shape = 's32[1]{0}', space=sflag, size = 0x4, scoped, tag = 'scoped memory for _lambda_.1']
    #allocation8 [shape = 'u8[512]{0}', space=vmem, size = 0x400, scoped, tag = 'input window, operand 29, single buffered']
    #allocation9 [shape = 's32[1]{0}', space=sflag, size = 0x4, scoped, tag = 'scoped memory for _lambda_.1']
    #allocation10 [shape = 'u8[512]{0}', space=vmem, size = 0x400, scoped, tag = 'input window, operand 30, single buffered']
    #allocation11 [shape = 'u8[512]{0}', space=vmem, size = 0x400, scoped, tag = 'input window, operand 31, single buffered']
    #allocation12 [shape = 's32[1]{0}', space=sflag, size = 0x4, scoped, tag = 'scoped memory for _lambda_.1']
    #allocation13 [shape = 'u8[512]{0}', space=vmem, size = 0x400, scoped, tag = 'input window, operand 34, single buffered']
    #allocation14 [shape = 'u8[512]{0}', space=vmem, size = 0x400, scoped, tag = 'input window, operand 35, single buffered']
    #allocation15 [shape = 's32[1]{0}', space=sflag, size = 0x4, scoped, tag = 'scoped memory for _lambda_.1']
    #allocation16 [shape = 'u8[512]{0}', space=vmem, size = 0x400, scoped, tag = 'input window, operand 36, single buffered']
    #allocation17 [shape = 'u8[512]{0}', space=vmem, size = 0x400, scoped, tag = 'input window, operand 37, single buffered']
    #allocation18 [shape = 's32[1]{0}', space=sflag, size = 0x4, scoped, tag = 'scoped memory for _lambda_.1']
    #allocation19 [shape = 'u8[512]{0}', space=vmem, size = 0x400, scoped, tag = 'input window, operand 40, single buffered']
    #allocation20 [shape = 'u8[512]{0}', space=vmem, size = 0x400, scoped, tag = 'input window, operand 41, single buffered']
    #allocation21 [shape = 's32[1]{0}', space=sflag, size = 0x4, scoped, tag = 'scoped memory for _lambda_.1']
    #allocation22 [shape = 'u8[512]{0}', space=vmem, size = 0x400, scoped, tag = 'input window, operand 42, single buffered']
    #allocation23 [shape = 'u8[512]{0}', space=vmem, size = 0x400, scoped, tag = 'input window, operand 43, single buffered']
    #allocation24 [shape = 's32[1]{0}', space=sflag, size = 0x4, scoped, tag = 'scoped memory for _lambda_.1']
    #allocation25 [shape = 'u8[512]{0}', space=vmem, size = 0x400, scoped, tag = 'input window, operand 46, single buffered']
    #allocation26 [shape = 'u8[512]{0}', space=vmem, size = 0x400, scoped, tag = 'input window, operand 47, single buffered']
    #allocation27 [shape = 's32[1]{0}', space=sflag, size = 0x4, scoped, tag = 'scoped memory for _lambda_.1']
    #allocation28 [shape = 'u8[512]{0}', space=vmem, size = 0x400, scoped, tag = 'input window, operand 50, single buffered']
    #allocation29 [shape = 'u8[512]{0}', space=vmem, size = 0x400, scoped, tag = 'input window, operand 51, single buffered']
    #allocation30 [shape = 's32[1]{0}', space=sflag, size = 0x4, scoped, tag = 'scoped memory for _lambda_.1']
    #allocation31 [shape = 'u8[512]{0}', space=vmem, size = 0x400, scoped, tag = 'input window, operand 54, single buffered']
    #allocation32 [shape = 'u8[512]{0}', space=vmem, size = 0x400, scoped, tag = 'input window, operand 55, single buffered']
    #allocation33 [shape = 's32[1]{0}', space=sflag, size = 0x4, scoped, tag = 'scoped memory for _lambda_.1']
    #allocation34 [shape = 'u8[512]{0}', space=vmem, size = 0x400, scoped, tag = 'input window, operand 56, single buffered']
    #allocation35 [shape = 'u8[512]{0}', space=vmem, size = 0x400, scoped, tag = 'input window, operand 58, single buffered']
    #allocation36 [shape = 's32[1]{0}', space=sflag, size = 0x4, scoped, tag = 'scoped memory for _lambda_.1']
    #allocation37 [shape = 'u8[512]{0}', space=vmem, size = 0x400, scoped, tag = 'input window, operand 59, single buffered']
    #allocation38 [shape = 'u8[512]{0}', space=vmem, size = 0x400, scoped, tag = 'input window, operand 60, single buffered']
    #allocation39 [shape = 's32[1]{0}', space=sflag, size = 0x4, scoped, tag = 'scoped memory for _lambda_.1']
    #allocation40 [shape = 'u8[512]{0}', space=vmem, size = 0x400, scoped, tag = 'input window, operand 61, single buffered']
    #allocation41 [shape = 'u8[512]{0}', space=vmem, size = 0x400, scoped, tag = 'input window, operand 62, single buffered']
    #allocation42 [shape = 's32[1]{0}', space=sflag, size = 0x4, scoped, tag = 'scoped memory for _lambda_.1']
    #allocation43 [shape = 'u8[512]{0}', space=vmem, size = 0x400, scoped, tag = 'input window, operand 63, single buffered']
    #allocation44 [shape = 'u8[512]{0}', space=vmem, size = 0x400, scoped, tag = 'input window, operand 66, single buffered']
    #allocation45 [shape = 's32[1]{0}', space=sflag, size = 0x4, scoped, tag = 'scoped memory for _lambda_.1']
    #allocation46 [shape = 'u8[512]{0}', space=vmem, size = 0x400, scoped, tag = 'input window, operand 67, single buffered']
    #allocation47 [shape = 'u8[512]{0}', space=vmem, size = 0x400, scoped, tag = 'input window, operand 68, single buffered']
    #allocation48 [shape = 's32[1]{0}', space=sflag, size = 0x4, scoped, tag = 'scoped memory for _lambda_.1']
    #allocation49 [shape = 'u8[1024]{0}', space=vmem, size = 0x400, scoped, tag = 'output window, operand 0, single buffered']
    %146 = vsyncpa [#allocation6], 0
    %147 = vsyncpa [#allocation9], 0
    %148 = vsyncpa [#allocation12], 0
    %149 = vsyncpa [#allocation15], 0
    %150 = vsyncpa [#allocation18], 0
    %151 = vsyncpa [#allocation21], 0
    %152 = vsyncpa [#allocation24], 0
    %153 = vsyncpa [#allocation27], 0
    %154 = vsyncpa [#allocation30], 0
    %155 = vsyncpa [#allocation33], 0
    %156 = vsyncpa [#allocation36], 0
    %157 = vsyncpa [#allocation39], 0
    %158 = vsyncpa [#allocation42], 0
    %159 = vsyncpa [#allocation45], 0
    %160 = vsyncpa [#allocation48], 0
    %161 = vsyncpa [#allocation7], 0
    // Predicated region
    $region2: #{_lambda_.1} parent=1 // pred_check
      _
    $region3: #{_lambda_.1} parent=1 // pred_check_branch
      %163 = sbr.rel (0) target = $region5
    $region4: #{_lambda_.1} parent=1 // pred_region
      _
    $region5: #{_lambda_.1} parent=1 // pred_fallthru
      _
    // Predicated region
    $region6: #{_lambda_.1} parent=1 // pred_check
      _
    $region7: #{_lambda_.1} parent=1 // pred_check_branch
      %165 = sbr.rel (0) target = $region9
    $region8: #{_lambda_.1} parent=1 // pred_region
      _
    $region9: #{_lambda_.1} parent=1 // pred_fallthru
      _
    // Predicated region
    $region10: #{_lambda_.1} parent=1 // pred_check
      _
    $region11: #{_lambda_.1} parent=1 // pred_check_branch
      %167 = sbr.rel (0) target = $region13
    $region12: #{_lambda_.1} parent=1 // pred_region
      _
    $region13: #{_lambda_.1} parent=1 // pred_fallthru
      _
    // Predicated region
    $region14: #{_lambda_.1} parent=1 // pred_check
      _
    $region15: #{_lambda_.1} parent=1 // pred_check_branch
      %169 = sbr.rel (0) target = $region17
    $region16: #{_lambda_.1} parent=1 // pred_region
      _
    $region17: #{_lambda_.1} parent=1 // pred_fallthru
      _
    // Predicated region
    $region18: #{_lambda_.1} parent=1 // pred_check
      _
    $region19: #{_lambda_.1} parent=1 // pred_check_branch
      %171 = sbr.rel (0) target = $region21
    $region20: #{_lambda_.1} parent=1 // pred_region
      _
    $region21: #{_lambda_.1} parent=1 // pred_fallthru
      _
    // Predicated region
    $region22: #{_lambda_.1} parent=1 // pred_check
      _
    $region23: #{_lambda_.1} parent=1 // pred_check_branch
      %173 = sbr.rel (0) target = $region25
    $region24: #{_lambda_.1} parent=1 // pred_region
      _
    $region25: #{_lambda_.1} parent=1 // pred_fallthru
      _
    // Predicated region
    $region26: #{_lambda_.1} parent=1 // pred_check
      _
    $region27: #{_lambda_.1} parent=1 // pred_check_branch
      %175 = sbr.rel (0) target = $region29
    $region28: #{_lambda_.1} parent=1 // pred_region
      _
    $region29: #{_lambda_.1} parent=1 // pred_fallthru
      _
    // Predicated region
    $region30: #{_lambda_.1} parent=1 // pred_check
      _
    $region31: #{_lambda_.1} parent=1 // pred_check_branch
      %177 = sbr.rel (0) target = $region33
    $region32: #{_lambda_.1} parent=1 // pred_region
      _
    $region33: #{_lambda_.1} parent=1 // pred_fallthru
      _
    // Predicated region
    $region34: #{_lambda_.1} parent=1 // pred_check
      _
    $region35: #{_lambda_.1} parent=1 // pred_check_branch
      %179 = sbr.rel (0) target = $region37
    $region36: #{_lambda_.1} parent=1 // pred_region
      _
    $region37: #{_lambda_.1} parent=1 // pred_fallthru
      _
    // Predicated region
    $region38: #{_lambda_.1} parent=1 // pred_check
      _
    $region39: #{_lambda_.1} parent=1 // pred_check_branch
      %181 = sbr.rel (0) target = $region41
    $region40: #{_lambda_.1} parent=1 // pred_region
      _
    $region41: #{_lambda_.1} parent=1 // pred_fallthru
      _
    // Predicated region
    $region42: #{_lambda_.1} parent=1 // pred_check
      _
    $region43: #{_lambda_.1} parent=1 // pred_check_branch
      %183 = sbr.rel (0) target = $region45
    $region44: #{_lambda_.1} parent=1 // pred_region
      _
    $region45: #{_lambda_.1} parent=1 // pred_fallthru
      _
    // Predicated region
    $region46: #{_lambda_.1} parent=1 // pred_check
      _
    $region47: #{_lambda_.1} parent=1 // pred_check_branch
      %185 = sbr.rel (0) target = $region49
    $region48: #{_lambda_.1} parent=1 // pred_region
      _
    $region49: #{_lambda_.1} parent=1 // pred_fallthru
      _
    // Predicated region
    $region50: #{_lambda_.1} parent=1 // pred_check
      _
    $region51: #{_lambda_.1} parent=1 // pred_check_branch
      %187 = sbr.rel (0) target = $region53
    $region52: #{_lambda_.1} parent=1 // pred_region
      _
    $region53: #{_lambda_.1} parent=1 // pred_fallthru
      _
    // Predicated region
    $region54: #{_lambda_.1} parent=1 // pred_check
      _
    $region55: #{_lambda_.1} parent=1 // pred_check_branch
      %189 = sbr.rel (0) target = $region57
    $region56: #{_lambda_.1} parent=1 // pred_region
      _
    $region57: #{_lambda_.1} parent=1 // pred_fallthru
      _
    // Predicated region
    $region58: #{_lambda_.1} parent=1 // pred_check
      _
    $region59: #{_lambda_.1} parent=1 // pred_check_branch
      %191 = sbr.rel (0) target = $region61
    $region60: #{_lambda_.1} parent=1 // pred_region
      _
    $region61: #{_lambda_.1} parent=1 // pred_fallthru
      _
    // Predicated region
    $region62: #{_lambda_.1} parent=1 // pred_check
      _
    $region63: #{_lambda_.1} parent=1 // pred_check_branch
      %193 = sbr.rel (0) target = $region65
    $region64: #{_lambda_.1} parent=1 // pred_region
      _
    $region65: #{_lambda_.1} parent=1 // pred_fallthru
      _
    // Predicated region
    $region66: #{_lambda_.1} parent=1 // pred_check
      _
    $region67: #{_lambda_.1} parent=1 // pred_check_branch
      %195 = sbr.rel (0) target = $region69
    $region68: #{_lambda_.1} parent=1 // pred_region
      _
    $region69: #{_lambda_.1} parent=1 // pred_fallthru
      _
    // Predicated region
    $region70: #{_lambda_.1} parent=1 // pred_check
      _
    $region71: #{_lambda_.1} parent=1 // pred_check_branch
      %197 = sbr.rel (0) target = $region73
    $region72: #{_lambda_.1} parent=1 // pred_region
      _
    $region73: #{_lambda_.1} parent=1 // pred_fallthru
      _
    // Predicated region
    $region74: #{_lambda_.1} parent=1 // pred_check
      _
    $region75: #{_lambda_.1} parent=1 // pred_check_branch
      %199 = sbr.rel (0) target = $region77
    $region76: #{_lambda_.1} parent=1 // pred_region
      _
    $region77: #{_lambda_.1} parent=1 // pred_fallthru
      _
    // Predicated region
    $region78: #{_lambda_.1} parent=1 // pred_check
      _
    $region79: #{_lambda_.1} parent=1 // pred_check_branch
      %201 = sbr.rel (0) target = $region81
    $region80: #{_lambda_.1} parent=1 // pred_region
      _
    $region81: #{_lambda_.1} parent=1 // pred_fallthru
      _
    // Predicated region
    $region82: #{_lambda_.1} parent=1 // pred_check
      _
    $region83: #{_lambda_.1} parent=1 // pred_check_branch
      %203 = sbr.rel (0) target = $region85
    $region84: #{_lambda_.1} parent=1 // pred_region
      _
    $region85: #{_lambda_.1} parent=1 // pred_fallthru
      _
    // Predicated region
    $region86: #{_lambda_.1} parent=1 // pred_check
      _
    $region87: #{_lambda_.1} parent=1 // pred_check_branch
      %205 = sbr.rel (0) target = $region89
    $region88: #{_lambda_.1} parent=1 // pred_region
      _
    $region89: #{_lambda_.1} parent=1 // pred_fallthru
      _
    // Predicated region
    $region90: #{_lambda_.1} parent=1 // pred_check
      _
    $region91: #{_lambda_.1} parent=1 // pred_check_branch
      %207 = sbr.rel (0) target = $region93
    $region92: #{_lambda_.1} parent=1 // pred_region
      _
    $region93: #{_lambda_.1} parent=1 // pred_fallthru
      _
    // Predicated region
    $region94: #{_lambda_.1} parent=1 // pred_check
      _
    $region95: #{_lambda_.1} parent=1 // pred_check_branch
      %209 = sbr.rel (0) target = $region97
    $region96: #{_lambda_.1} parent=1 // pred_region
      _
    $region97: #{_lambda_.1} parent=1 // pred_fallthru
      _
    // Predicated region
    $region98: #{_lambda_.1} parent=1 // pred_check
      _
    $region99: #{_lambda_.1} parent=1 // pred_check_branch
      %211 = sbr.rel (0) target = $region101
    $region100: #{_lambda_.1} parent=1 // pred_region
      _
    $region101: #{_lambda_.1} parent=1 // pred_fallthru
      _
    // Predicated region
    $region102: #{_lambda_.1} parent=1 // pred_check
      _
    $region103: #{_lambda_.1} parent=1 // pred_check_branch
      %213 = sbr.rel (0) target = $region105
    $region104: #{_lambda_.1} parent=1 // pred_region
      _
    $region105: #{_lambda_.1} parent=1 // pred_fallthru
      _
    // Predicated region
    $region106: #{_lambda_.1} parent=1 // pred_check
      _
    $region107: #{_lambda_.1} parent=1 // pred_check_branch
      %215 = sbr.rel (0) target = $region109
    $region108: #{_lambda_.1} parent=1 // pred_region
      _
    $region109: #{_lambda_.1} parent=1 // pred_fallthru
      _
    // Predicated region
    $region110: #{_lambda_.1} parent=1 // pred_check
      _
    $region111: #{_lambda_.1} parent=1 // pred_check_branch
      %217 = sbr.rel (0) target = $region113
    $region112: #{_lambda_.1} parent=1 // pred_region
      _
    $region113: #{_lambda_.1} parent=1 // pred_fallthru
      _
    // Predicated region
    $region114: #{_lambda_.1} parent=1 // pred_check
      _
    $region115: #{_lambda_.1} parent=1 // pred_check_branch
      %219 = sbr.rel (0) target = $region117
    $region116: #{_lambda_.1} parent=1 // pred_region
      %s221 = ssub.s32 16, 16
      %222 = vsyncadd [#allocation6], %s221
      %s224 = sshll.u32 [#allocation5], 4
      %s225 = int_to_ptr.vmem [resolvable:$true] %s224
      %227 = dma.hbm_to_vmem [thread:$0]  %s57, 16, %s225, [#allocation6]
    $region117: #{_lambda_.1} parent=1 // pred_fallthru
      _
    // Predicated region
    $region118: #{_lambda_.1} parent=1 // pred_check
      _
    $region119: #{_lambda_.1} parent=1 // pred_check_branch
      %229 = sbr.rel (0) target = $region121
    $region120: #{_lambda_.1} parent=1 // pred_region
      %s231 = ssub.s32 16, 16
      %232 = vsyncadd [#allocation9], %s231
      %s234 = sshll.u32 [#allocation8], 4
      %s235 = int_to_ptr.vmem [resolvable:$true] %s234
      %237 = dma.hbm_to_vmem [thread:$0]  %s59, 16, %s235, [#allocation9]
    $region121: #{_lambda_.1} parent=1 // pred_fallthru
      _
    // Predicated region
    $region122: #{_lambda_.1} parent=1 // pred_check
      _
    $region123: #{_lambda_.1} parent=1 // pred_check_branch
      %239 = sbr.rel (0) target = $region125
    $region124: #{_lambda_.1} parent=1 // pred_region
      %s241 = ssub.s32 16, 16
      %242 = vsyncadd [#allocation9], %s241
      %s244 = sshll.u32 [#allocation10], 4
      %s245 = int_to_ptr.vmem [resolvable:$true] %s244
      %247 = dma.hbm_to_vmem [thread:$0]  %s61, 16, %s245, [#allocation9]
    $region125: #{_lambda_.1} parent=1 // pred_fallthru
      _
    // Predicated region
    $region126: #{_lambda_.1} parent=1 // pred_check
      _
    $region127: #{_lambda_.1} parent=1 // pred_check_branch
      %249 = sbr.rel (0) target = $region129
    $region128: #{_lambda_.1} parent=1 // pred_region
      %s251 = ssub.s32 16, 16
      %252 = vsyncadd [#allocation12], %s251
      %s254 = sshll.u32 [#allocation11], 4
      %s255 = int_to_ptr.vmem [resolvable:$true] %s254
      %257 = dma.hbm_to_vmem [thread:$0]  %s63, 16, %s255, [#allocation12]
    $region129: #{_lambda_.1} parent=1 // pred_fallthru
      _
    // Predicated region
    $region130: #{_lambda_.1} parent=1 // pred_check
      _
    $region131: #{_lambda_.1} parent=1 // pred_check_branch
      %259 = sbr.rel (0) target = $region133
    $region132: #{_lambda_.1} parent=1 // pred_region
      _
    $region133: #{_lambda_.1} parent=1 // pred_fallthru
      _
    // Predicated region
    $region134: #{_lambda_.1} parent=1 // pred_check
      _
    $region135: #{_lambda_.1} parent=1 // pred_check_branch
      %261 = sbr.rel (0) target = $region137
    $region136: #{_lambda_.1} parent=1 // pred_region
      _
    $region137: #{_lambda_.1} parent=1 // pred_fallthru
      _
    // Predicated region
    $region138: #{_lambda_.1} parent=1 // pred_check
      _
    $region139: #{_lambda_.1} parent=1 // pred_check_branch
      %263 = sbr.rel (0) target = $region141
    $region140: #{_lambda_.1} parent=1 // pred_region
      %s265 = ssub.s32 16, 16
      %266 = vsyncadd [#allocation12], %s265
      %s268 = sshll.u32 [#allocation13], 4
      %s269 = int_to_ptr.vmem [resolvable:$true] %s268
      %271 = dma.hbm_to_vmem [thread:$0]  %s69, 16, %s269, [#allocation12]
    $region141: #{_lambda_.1} parent=1 // pred_fallthru
      _
    // Predicated region
    $region142: #{_lambda_.1} parent=1 // pred_check
      _
    $region143: #{_lambda_.1} parent=1 // pred_check_branch
      %273 = sbr.rel (0) target = $region145
    $region144: #{_lambda_.1} parent=1 // pred_region
      %s275 = ssub.s32 16, 16
      %276 = vsyncadd [#allocation15], %s275
      %s278 = sshll.u32 [#allocation14], 4
      %s279 = int_to_ptr.vmem [resolvable:$true] %s278
      %281 = dma.hbm_to_vmem [thread:$0]  %s71, 16, %s279, [#allocation15]
    $region145: #{_lambda_.1} parent=1 // pred_fallthru
      _
    // Predicated region
    $region146: #{_lambda_.1} parent=1 // pred_check
      _
    $region147: #{_lambda_.1} parent=1 // pred_check_branch
      %283 = sbr.rel (0) target = $region149
    $region148: #{_lambda_.1} parent=1 // pred_region
      %s285 = ssub.s32 16, 16
      %286 = vsyncadd [#allocation15], %s285
      %s288 = sshll.u32 [#allocation16], 4
      %s289 = int_to_ptr.vmem [resolvable:$true] %s288
      %291 = dma.hbm_to_vmem [thread:$0]  %s73, 16, %s289, [#allocation15]
    $region149: #{_lambda_.1} parent=1 // pred_fallthru
      _
    // Predicated region
    $region150: #{_lambda_.1} parent=1 // pred_check
      _
    $region151: #{_lambda_.1} parent=1 // pred_check_branch
      %293 = sbr.rel (0) target = $region153
    $region152: #{_lambda_.1} parent=1 // pred_region
      %s295 = ssub.s32 16, 16
      %296 = vsyncadd [#allocation18], %s295
      %s298 = sshll.u32 [#allocation17], 4
      %s299 = int_to_ptr.vmem [resolvable:$true] %s298
      %301 = dma.hbm_to_vmem [thread:$0]  %s75, 16, %s299, [#allocation18]
    $region153: #{_lambda_.1} parent=1 // pred_fallthru
      _
    // Predicated region
    $region154: #{_lambda_.1} parent=1 // pred_check
      _
    $region155: #{_lambda_.1} parent=1 // pred_check_branch
      %303 = sbr.rel (0) target = $region157
    $region156: #{_lambda_.1} parent=1 // pred_region
      _
    $region157: #{_lambda_.1} parent=1 // pred_fallthru
      _
    // Predicated region
    $region158: #{_lambda_.1} parent=1 // pred_check
      _
    $region159: #{_lambda_.1} parent=1 // pred_check_branch
      %305 = sbr.rel (0) target = $region161
    $region160: #{_lambda_.1} parent=1 // pred_region
      _
    $region161: #{_lambda_.1} parent=1 // pred_fallthru
      _
    // Predicated region
    $region162: #{_lambda_.1} parent=1 // pred_check
      _
    $region163: #{_lambda_.1} parent=1 // pred_check_branch
      %307 = sbr.rel (0) target = $region165
    $region164: #{_lambda_.1} parent=1 // pred_region
      %s309 = ssub.s32 16, 16
      %310 = vsyncadd [#allocation18], %s309
      %s312 = sshll.u32 [#allocation19], 4
      %s313 = int_to_ptr.vmem [resolvable:$true] %s312
      %315 = dma.hbm_to_vmem [thread:$0]  %s81, 16, %s313, [#allocation18]
    $region165: #{_lambda_.1} parent=1 // pred_fallthru
      _
    // Predicated region
    $region166: #{_lambda_.1} parent=1 // pred_check
      _
    $region167: #{_lambda_.1} parent=1 // pred_check_branch
      %317 = sbr.rel (0) target = $region169
    $region168: #{_lambda_.1} parent=1 // pred_region
      %s319 = ssub.s32 16, 16
      %320 = vsyncadd [#allocation21], %s319
      %s322 = sshll.u32 [#allocation20], 4
      %s323 = int_to_ptr.vmem [resolvable:$true] %s322
      %325 = dma.hbm_to_vmem [thread:$0]  %s83, 16, %s323, [#allocation21]
    $region169: #{_lambda_.1} parent=1 // pred_fallthru
      _
    // Predicated region
    $region170: #{_lambda_.1} parent=1 // pred_check
      _
    $region171: #{_lambda_.1} parent=1 // pred_check_branch
      %327 = sbr.rel (0) target = $region173
    $region172: #{_lambda_.1} parent=1 // pred_region
      %s329 = ssub.s32 16, 16
      %330 = vsyncadd [#allocation21], %s329
      %s332 = sshll.u32 [#allocation22], 4
      %s333 = int_to_ptr.vmem [resolvable:$true] %s332
      %335 = dma.hbm_to_vmem [thread:$0]  %s85, 16, %s333, [#allocation21]
    $region173: #{_lambda_.1} parent=1 // pred_fallthru
      _
    // Predicated region
    $region174: #{_lambda_.1} parent=1 // pred_check
      _
    $region175: #{_lambda_.1} parent=1 // pred_check_branch
      %337 = sbr.rel (0) target = $region177
    $region176: #{_lambda_.1} parent=1 // pred_region
      %s339 = ssub.s32 16, 16
      %340 = vsyncadd [#allocation24], %s339
      %s342 = sshll.u32 [#allocation23], 4
      %s343 = int_to_ptr.vmem [resolvable:$true] %s342
      %345 = dma.hbm_to_vmem [thread:$0]  %s87, 16, %s343, [#allocation24]
    $region177: #{_lambda_.1} parent=1 // pred_fallthru
      _
    // Predicated region
    $region178: #{_lambda_.1} parent=1 // pred_check
      _
    $region179: #{_lambda_.1} parent=1 // pred_check_branch
      %347 = sbr.rel (0) target = $region181
    $region180: #{_lambda_.1} parent=1 // pred_region
      _
    $region181: #{_lambda_.1} parent=1 // pred_fallthru
      _
    // Predicated region
    $region182: #{_lambda_.1} parent=1 // pred_check
      _
    $region183: #{_lambda_.1} parent=1 // pred_check_branch
      %349 = sbr.rel (0) target = $region185
    $region184: #{_lambda_.1} parent=1 // pred_region
      _
    $region185: #{_lambda_.1} parent=1 // pred_fallthru
      _
    // Predicated region
    $region186: #{_lambda_.1} parent=1 // pred_check
      _
    $region187: #{_lambda_.1} parent=1 // pred_check_branch
      %351 = sbr.rel (0) target = $region189
    $region188: #{_lambda_.1} parent=1 // pred_region
      %s353 = ssub.s32 16, 16
      %354 = vsyncadd [#allocation24], %s353
      %s356 = sshll.u32 [#allocation25], 4
      %s357 = int_to_ptr.vmem [resolvable:$true] %s356
      %359 = dma.hbm_to_vmem [thread:$0]  %s93, 16, %s357, [#allocation24]
    $region189: #{_lambda_.1} parent=1 // pred_fallthru
      _
    // Predicated region
    $region190: #{_lambda_.1} parent=1 // pred_check
      _
    $region191: #{_lambda_.1} parent=1 // pred_check_branch
      %361 = sbr.rel (0) target = $region193
    $region192: #{_lambda_.1} parent=1 // pred_region
      %s363 = ssub.s32 16, 16
      %364 = vsyncadd [#allocation27], %s363
      %s366 = sshll.u32 [#allocation26], 4
      %s367 = int_to_ptr.vmem [resolvable:$true] %s366
      %369 = dma.hbm_to_vmem [thread:$0]  %s95, 16, %s367, [#allocation27]
    $region193: #{_lambda_.1} parent=1 // pred_fallthru
      _
    // Predicated region
    $region194: #{_lambda_.1} parent=1 // pred_check
      _
    $region195: #{_lambda_.1} parent=1 // pred_check_branch
      %371 = sbr.rel (0) target = $region197
    $region196: #{_lambda_.1} parent=1 // pred_region
      _
    $region197: #{_lambda_.1} parent=1 // pred_fallthru
      _
    // Predicated region
    $region198: #{_lambda_.1} parent=1 // pred_check
      _
    $region199: #{_lambda_.1} parent=1 // pred_check_branch
      %373 = sbr.rel (0) target = $region201
    $region200: #{_lambda_.1} parent=1 // pred_region
      _
    $region201: #{_lambda_.1} parent=1 // pred_fallthru
      _
    // Predicated region
    $region202: #{_lambda_.1} parent=1 // pred_check
      _
    $region203: #{_lambda_.1} parent=1 // pred_check_branch
      %375 = sbr.rel (0) target = $region205
    $region204: #{_lambda_.1} parent=1 // pred_region
      %s377 = ssub.s32 16, 16
      %378 = vsyncadd [#allocation27], %s377
      %s380 = sshll.u32 [#allocation28], 4
      %s381 = int_to_ptr.vmem [resolvable:$true] %s380
      %383 = dma.hbm_to_vmem [thread:$0]  %s101, 16, %s381, [#allocation27]
    $region205: #{_lambda_.1} parent=1 // pred_fallthru
      _
    // Predicated region
    $region206: #{_lambda_.1} parent=1 // pred_check
      _
    $region207: #{_lambda_.1} parent=1 // pred_check_branch
      %385 = sbr.rel (0) target = $region209
    $region208: #{_lambda_.1} parent=1 // pred_region
      %s387 = ssub.s32 16, 16
      %388 = vsyncadd [#allocation30], %s387
      %s390 = sshll.u32 [#allocation29], 4
      %s391 = int_to_ptr.vmem [resolvable:$true] %s390
      %393 = dma.hbm_to_vmem [thread:$0]  %s103, 16, %s391, [#allocation30]
    $region209: #{_lambda_.1} parent=1 // pred_fallthru
      _
    // Predicated region
    $region210: #{_lambda_.1} parent=1 // pred_check
      _
    $region211: #{_lambda_.1} parent=1 // pred_check_branch
      %395 = sbr.rel (0) target = $region213
    $region212: #{_lambda_.1} parent=1 // pred_region
      _
    $region213: #{_lambda_.1} parent=1 // pred_fallthru
      _
    // Predicated region
    $region214: #{_lambda_.1} parent=1 // pred_check
      _
    $region215: #{_lambda_.1} parent=1 // pred_check_branch
      %397 = sbr.rel (0) target = $region217
    $region216: #{_lambda_.1} parent=1 // pred_region
      _
    $region217: #{_lambda_.1} parent=1 // pred_fallthru
      _
    // Predicated region
    $region218: #{_lambda_.1} parent=1 // pred_check
      _
    $region219: #{_lambda_.1} parent=1 // pred_check_branch
      %399 = sbr.rel (0) target = $region221
    $region220: #{_lambda_.1} parent=1 // pred_region
      %s401 = ssub.s32 16, 16
      %402 = vsyncadd [#allocation30], %s401
      %s404 = sshll.u32 [#allocation31], 4
      %s405 = int_to_ptr.vmem [resolvable:$true] %s404
      %407 = dma.hbm_to_vmem [thread:$0]  %s109, 16, %s405, [#allocation30]
    $region221: #{_lambda_.1} parent=1 // pred_fallthru
      _
    // Predicated region
    $region222: #{_lambda_.1} parent=1 // pred_check
      _
    $region223: #{_lambda_.1} parent=1 // pred_check_branch
      %409 = sbr.rel (0) target = $region225
    $region224: #{_lambda_.1} parent=1 // pred_region
      %s411 = ssub.s32 16, 16
      %412 = vsyncadd [#allocation33], %s411
      %s414 = sshll.u32 [#allocation32], 4
      %s415 = int_to_ptr.vmem [resolvable:$true] %s414
      %417 = dma.hbm_to_vmem [thread:$0]  %s111, 16, %s415, [#allocation33]
    $region225: #{_lambda_.1} parent=1 // pred_fallthru
      _
    // Predicated region
    $region226: #{_lambda_.1} parent=1 // pred_check
      _
    $region227: #{_lambda_.1} parent=1 // pred_check_branch
      %419 = sbr.rel (0) target = $region229
    $region228: #{_lambda_.1} parent=1 // pred_region
      %s421 = ssub.s32 16, 16
      %422 = vsyncadd [#allocation33], %s421
      %s424 = sshll.u32 [#allocation34], 4
      %s425 = int_to_ptr.vmem [resolvable:$true] %s424
      %427 = dma.hbm_to_vmem [thread:$0]  %s113, 16, %s425, [#allocation33]
    $region229: #{_lambda_.1} parent=1 // pred_fallthru
      _
    // Predicated region
    $region230: #{_lambda_.1} parent=1 // pred_check
      _
    $region231: #{_lambda_.1} parent=1 // pred_check_branch
      %429 = sbr.rel (0) target = $region233
    $region232: #{_lambda_.1} parent=1 // pred_region
      _
    $region233: #{_lambda_.1} parent=1 // pred_fallthru
      _
    // Predicated region
    $region234: #{_lambda_.1} parent=1 // pred_check
      _
    $region235: #{_lambda_.1} parent=1 // pred_check_branch
      %431 = sbr.rel (0) target = $region237
    $region236: #{_lambda_.1} parent=1 // pred_region
      %s433 = ssub.s32 16, 16
      %434 = vsyncadd [#allocation36], %s433
      %s436 = sshll.u32 [#allocation35], 4
      %s437 = int_to_ptr.vmem [resolvable:$true] %s436
      %439 = dma.hbm_to_vmem [thread:$0]  %s117, 16, %s437, [#allocation36]
    $region237: #{_lambda_.1} parent=1 // pred_fallthru
      _
    // Predicated region
    $region238: #{_lambda_.1} parent=1 // pred_check
      _
    $region239: #{_lambda_.1} parent=1 // pred_check_branch
      %441 = sbr.rel (0) target = $region241
    $region240: #{_lambda_.1} parent=1 // pred_region
      %s443 = ssub.s32 16, 16
      %444 = vsyncadd [#allocation36], %s443
      %s446 = sshll.u32 [#allocation37], 4
      %s447 = int_to_ptr.vmem [resolvable:$true] %s446
      %449 = dma.hbm_to_vmem [thread:$0]  %s119, 16, %s447, [#allocation36]
    $region241: #{_lambda_.1} parent=1 // pred_fallthru
      _
    // Predicated region
    $region242: #{_lambda_.1} parent=1 // pred_check
      _
    $region243: #{_lambda_.1} parent=1 // pred_check_branch
      %451 = sbr.rel (0) target = $region245
    $region244: #{_lambda_.1} parent=1 // pred_region
      %s453 = ssub.s32 16, 16
      %454 = vsyncadd [#allocation39], %s453
      %s456 = sshll.u32 [#allocation38], 4
      %s457 = int_to_ptr.vmem [resolvable:$true] %s456
      %459 = dma.hbm_to_vmem [thread:$0]  %s121, 16, %s457, [#allocation39]
    $region245: #{_lambda_.1} parent=1 // pred_fallthru
      _
    // Predicated region
    $region246: #{_lambda_.1} parent=1 // pred_check
      _
    $region247: #{_lambda_.1} parent=1 // pred_check_branch
      %461 = sbr.rel (0) target = $region249
    $region248: #{_lambda_.1} parent=1 // pred_region
      %s463 = ssub.s32 16, 16
      %464 = vsyncadd [#allocation39], %s463
      %s466 = sshll.u32 [#allocation40], 4
      %s467 = int_to_ptr.vmem [resolvable:$true] %s466
      %469 = dma.hbm_to_vmem [thread:$0]  %s123, 16, %s467, [#allocation39]
    $region249: #{_lambda_.1} parent=1 // pred_fallthru
      _
    // Predicated region
    $region250: #{_lambda_.1} parent=1 // pred_check
      _
    $region251: #{_lambda_.1} parent=1 // pred_check_branch
      %471 = sbr.rel (0) target = $region253
    $region252: #{_lambda_.1} parent=1 // pred_region
      %s473 = ssub.s32 16, 16
      %474 = vsyncadd [#allocation42], %s473
      %s476 = sshll.u32 [#allocation41], 4
      %s477 = int_to_ptr.vmem [resolvable:$true] %s476
      %479 = dma.hbm_to_vmem [thread:$0]  %s125, 16, %s477, [#allocation42]
    $region253: #{_lambda_.1} parent=1 // pred_fallthru
      _
    // Predicated region
    $region254: #{_lambda_.1} parent=1 // pred_check
      _
    $region255: #{_lambda_.1} parent=1 // pred_check_branch
      %481 = sbr.rel (0) target = $region257
    $region256: #{_lambda_.1} parent=1 // pred_region
      %s483 = ssub.s32 16, 16
      %484 = vsyncadd [#allocation42], %s483
      %s486 = sshll.u32 [#allocation43], 4
      %s487 = int_to_ptr.vmem [resolvable:$true] %s486
      %489 = dma.hbm_to_vmem [thread:$0]  %s127, 16, %s487, [#allocation42]
    $region257: #{_lambda_.1} parent=1 // pred_fallthru
      _
    // Predicated region
    $region258: #{_lambda_.1} parent=1 // pred_check
      _
    $region259: #{_lambda_.1} parent=1 // pred_check_branch
      %491 = sbr.rel (0) target = $region261
    $region260: #{_lambda_.1} parent=1 // pred_region
      _
    $region261: #{_lambda_.1} parent=1 // pred_fallthru
      _
    // Predicated region
    $region262: #{_lambda_.1} parent=1 // pred_check
      _
    $region263: #{_lambda_.1} parent=1 // pred_check_branch
      %493 = sbr.rel (0) target = $region265
    $region264: #{_lambda_.1} parent=1 // pred_region
      _
    $region265: #{_lambda_.1} parent=1 // pred_fallthru
      _
    // Predicated region
    $region266: #{_lambda_.1} parent=1 // pred_check
      _
    $region267: #{_lambda_.1} parent=1 // pred_check_branch
      %495 = sbr.rel (0) target = $region269
    $region268: #{_lambda_.1} parent=1 // pred_region
      %s497 = ssub.s32 16, 16
      %498 = vsyncadd [#allocation45], %s497
      %s500 = sshll.u32 [#allocation44], 4
      %s501 = int_to_ptr.vmem [resolvable:$true] %s500
      %503 = dma.hbm_to_vmem [thread:$0]  %s133, 16, %s501, [#allocation45]
    $region269: #{_lambda_.1} parent=1 // pred_fallthru
      _
    // Predicated region
    $region270: #{_lambda_.1} parent=1 // pred_check
      _
    $region271: #{_lambda_.1} parent=1 // pred_check_branch
      %505 = sbr.rel (0) target = $region273
    $region272: #{_lambda_.1} parent=1 // pred_region
      %s507 = ssub.s32 16, 16
      %508 = vsyncadd [#allocation45], %s507
      %s510 = sshll.u32 [#allocation46], 4
      %s511 = int_to_ptr.vmem [resolvable:$true] %s510
      %513 = dma.hbm_to_vmem [thread:$0]  %s135, 16, %s511, [#allocation45]
    $region273: #{_lambda_.1} parent=1 // pred_fallthru
      _
    // Predicated region
    $region274: #{_lambda_.1} parent=1 // pred_check
      _
    $region275: #{_lambda_.1} parent=1 // pred_check_branch
      %515 = sbr.rel (0) target = $region277
    $region276: #{_lambda_.1} parent=1 // pred_region
      %s517 = ssub.s32 16, 16
      %518 = vsyncadd [#allocation48], %s517
      %s520 = sshll.u32 [#allocation47], 4
      %s521 = int_to_ptr.vmem [resolvable:$true] %s520
      %523 = dma.hbm_to_vmem [thread:$0]  %s137, 16, %s521, [#allocation48]
    $region277: #{_lambda_.1} parent=1 // pred_fallthru
      _
    // Predicated region
    $region278: #{_lambda_.1} parent=1 // pred_check
      _
    $region279: #{_lambda_.1} parent=1 // pred_check_branch
      %525 = sbr.rel (0) target = $region281
    $region280: #{_lambda_.1} parent=1 // pred_region
      _
    $region281: #{_lambda_.1} parent=1 // pred_fallthru
      _
    // Predicated region
    $region282: #{_lambda_.1} parent=1 // pred_check
      _
    $region283: #{_lambda_.1} parent=1 // pred_check_branch
      %527 = sbr.rel (0) target = $region285
    $region284: #{_lambda_.1} parent=1 // pred_region
      %528 = dma.done [#allocation6], 16
    $region285: #{_lambda_.1} parent=1 // pred_fallthru
      _
    // Predicated region
    $region286: #{_lambda_.1} parent=1 // pred_check
      _
    $region287: #{_lambda_.1} parent=1 // pred_check_branch
      %530 = sbr.rel (0) target = $region289
    $region288: #{_lambda_.1} parent=1 // pred_region
      %531 = dma.done [#allocation9], 16
    $region289: #{_lambda_.1} parent=1 // pred_fallthru
      _
    // Predicated region
    $region290: #{_lambda_.1} parent=1 // pred_check
      _
    $region291: #{_lambda_.1} parent=1 // pred_check_branch
      %533 = sbr.rel (0) target = $region293
    $region292: #{_lambda_.1} parent=1 // pred_region
      %534 = dma.done [#allocation9], 16
    $region293: #{_lambda_.1} parent=1 // pred_fallthru
      _
    // Predicated region
    $region294: #{_lambda_.1} parent=1 // pred_check
      _
    $region295: #{_lambda_.1} parent=1 // pred_check_branch
      %536 = sbr.rel (0) target = $region297
    $region296: #{_lambda_.1} parent=1 // pred_region
      %537 = dma.done [#allocation12], 16
    $region297: #{_lambda_.1} parent=1 // pred_fallthru
      _
    // Predicated region
    $region298: #{_lambda_.1} parent=1 // pred_check
      _
    $region299: #{_lambda_.1} parent=1 // pred_check_branch
      %539 = sbr.rel (0) target = $region301
    $region300: #{_lambda_.1} parent=1 // pred_region
      %540 = dma.done [#allocation12], 16
    $region301: #{_lambda_.1} parent=1 // pred_fallthru
      _
    // Predicated region
    $region302: #{_lambda_.1} parent=1 // pred_check
      _
    $region303: #{_lambda_.1} parent=1 // pred_check_branch
      %542 = sbr.rel (0) target = $region305
    $region304: #{_lambda_.1} parent=1 // pred_region
      %543 = dma.done [#allocation15], 16
    $region305: #{_lambda_.1} parent=1 // pred_fallthru
      _
    // Predicated region
    $region306: #{_lambda_.1} parent=1 // pred_check
      _
    $region307: #{_lambda_.1} parent=1 // pred_check_branch
      %545 = sbr.rel (0) target = $region309
    $region308: #{_lambda_.1} parent=1 // pred_region
      %546 = dma.done [#allocation15], 16
    $region309: #{_lambda_.1} parent=1 // pred_fallthru
      _
    // Predicated region
    $region310: #{_lambda_.1} parent=1 // pred_check
      _
    $region311: #{_lambda_.1} parent=1 // pred_check_branch
      %548 = sbr.rel (0) target = $region313
    $region312: #{_lambda_.1} parent=1 // pred_region
      %549 = dma.done [#allocation18], 16
    $region313: #{_lambda_.1} parent=1 // pred_fallthru
      _
    // Predicated region
    $region314: #{_lambda_.1} parent=1 // pred_check
      _
    $region315: #{_lambda_.1} parent=1 // pred_check_branch
      %551 = sbr.rel (0) target = $region317
    $region316: #{_lambda_.1} parent=1 // pred_region
      %552 = dma.done [#allocation18], 16
    $region317: #{_lambda_.1} parent=1 // pred_fallthru
      _
    // Predicated region
    $region318: #{_lambda_.1} parent=1 // pred_check
      _
    $region319: #{_lambda_.1} parent=1 // pred_check_branch
      %554 = sbr.rel (0) target = $region321
    $region320: #{_lambda_.1} parent=1 // pred_region
      %555 = dma.done [#allocation21], 16
    $region321: #{_lambda_.1} parent=1 // pred_fallthru
      _
    // Predicated region
    $region322: #{_lambda_.1} parent=1 // pred_check
      _
    $region323: #{_lambda_.1} parent=1 // pred_check_branch
      %557 = sbr.rel (0) target = $region325
    $region324: #{_lambda_.1} parent=1 // pred_region
      %558 = dma.done [#allocation21], 16
    $region325: #{_lambda_.1} parent=1 // pred_fallthru
      _
    // Predicated region
    $region326: #{_lambda_.1} parent=1 // pred_check
      _
    $region327: #{_lambda_.1} parent=1 // pred_check_branch
      %560 = sbr.rel (0) target = $region329
    $region328: #{_lambda_.1} parent=1 // pred_region
      %561 = dma.done [#allocation24], 16
    $region329: #{_lambda_.1} parent=1 // pred_fallthru
      _
    // Predicated region
    $region330: #{_lambda_.1} parent=1 // pred_check
      _
    $region331: #{_lambda_.1} parent=1 // pred_check_branch
      %563 = sbr.rel (0) target = $region333
    $region332: #{_lambda_.1} parent=1 // pred_region
      %564 = dma.done [#allocation24], 16
    $region333: #{_lambda_.1} parent=1 // pred_fallthru
      _
    // Predicated region
    $region334: #{_lambda_.1} parent=1 // pred_check
      _
    $region335: #{_lambda_.1} parent=1 // pred_check_branch
      %566 = sbr.rel (0) target = $region337
    $region336: #{_lambda_.1} parent=1 // pred_region
      %567 = dma.done [#allocation27], 16
    $region337: #{_lambda_.1} parent=1 // pred_fallthru
      _
    // Predicated region
    $region338: #{_lambda_.1} parent=1 // pred_check
      _
    $region339: #{_lambda_.1} parent=1 // pred_check_branch
      %569 = sbr.rel (0) target = $region341
    $region340: #{_lambda_.1} parent=1 // pred_region
      %570 = dma.done [#allocation27], 16
    $region341: #{_lambda_.1} parent=1 // pred_fallthru
      _
    // Predicated region
    $region342: #{_lambda_.1} parent=1 // pred_check
      _
    $region343: #{_lambda_.1} parent=1 // pred_check_branch
      %572 = sbr.rel (0) target = $region345
    $region344: #{_lambda_.1} parent=1 // pred_region
      %573 = dma.done [#allocation30], 16
    $region345: #{_lambda_.1} parent=1 // pred_fallthru
      _
    // Predicated region
    $region346: #{_lambda_.1} parent=1 // pred_check
      _
    $region347: #{_lambda_.1} parent=1 // pred_check_branch
      %575 = sbr.rel (0) target = $region349
    $region348: #{_lambda_.1} parent=1 // pred_region
      %576 = dma.done [#allocation30], 16
    $region349: #{_lambda_.1} parent=1 // pred_fallthru
      _
    // Predicated region
    $region350: #{_lambda_.1} parent=1 // pred_check
      _
    $region351: #{_lambda_.1} parent=1 // pred_check_branch
      %578 = sbr.rel (0) target = $region353
    $region352: #{_lambda_.1} parent=1 // pred_region
      %579 = dma.done [#allocation33], 16
    $region353: #{_lambda_.1} parent=1 // pred_fallthru
      _
    // Predicated region
    $region354: #{_lambda_.1} parent=1 // pred_check
      _
    $region355: #{_lambda_.1} parent=1 // pred_check_branch
      %581 = sbr.rel (0) target = $region357
    $region356: #{_lambda_.1} parent=1 // pred_region
      %582 = dma.done [#allocation33], 16
    $region357: #{_lambda_.1} parent=1 // pred_fallthru
      _
    // Predicated region
    $region358: #{_lambda_.1} parent=1 // pred_check
      _
    $region359: #{_lambda_.1} parent=1 // pred_check_branch
      %584 = sbr.rel (0) target = $region361
    $region360: #{_lambda_.1} parent=1 // pred_region
      %585 = dma.done [#allocation36], 16
    $region361: #{_lambda_.1} parent=1 // pred_fallthru
      _
    // Predicated region
    $region362: #{_lambda_.1} parent=1 // pred_check
      _
    $region363: #{_lambda_.1} parent=1 // pred_check_branch
      %587 = sbr.rel (0) target = $region365
    $region364: #{_lambda_.1} parent=1 // pred_region
      %588 = dma.done [#allocation36], 16
    $region365: #{_lambda_.1} parent=1 // pred_fallthru
      _
    // Predicated region
    $region366: #{_lambda_.1} parent=1 // pred_check
      _
    $region367: #{_lambda_.1} parent=1 // pred_check_branch
      %590 = sbr.rel (0) target = $region369
    $region368: #{_lambda_.1} parent=1 // pred_region
      %591 = dma.done [#allocation39], 16
    $region369: #{_lambda_.1} parent=1 // pred_fallthru
      _
    // Predicated region
    $region370: #{_lambda_.1} parent=1 // pred_check
      _
    $region371: #{_lambda_.1} parent=1 // pred_check_branch
      %593 = sbr.rel (0) target = $region373
    $region372: #{_lambda_.1} parent=1 // pred_region
      %594 = dma.done [#allocation39], 16
    $region373: #{_lambda_.1} parent=1 // pred_fallthru
      _
    // Predicated region
    $region374: #{_lambda_.1} parent=1 // pred_check
      _
    $region375: #{_lambda_.1} parent=1 // pred_check_branch
      %596 = sbr.rel (0) target = $region377
    $region376: #{_lambda_.1} parent=1 // pred_region
      %597 = dma.done [#allocation42], 16
    $region377: #{_lambda_.1} parent=1 // pred_fallthru
      _
    // Predicated region
    $region378: #{_lambda_.1} parent=1 // pred_check
      _
    $region379: #{_lambda_.1} parent=1 // pred_check_branch
      %599 = sbr.rel (0) target = $region381
    $region380: #{_lambda_.1} parent=1 // pred_region
      %600 = dma.done [#allocation42], 16
    $region381: #{_lambda_.1} parent=1 // pred_fallthru
      _
    // Predicated region
    $region382: #{_lambda_.1} parent=1 // pred_check
      _
    $region383: #{_lambda_.1} parent=1 // pred_check_branch
      %602 = sbr.rel (0) target = $region385
    $region384: #{_lambda_.1} parent=1 // pred_region
      %603 = dma.done [#allocation45], 16
    $region385: #{_lambda_.1} parent=1 // pred_fallthru
      _
    // Predicated region
    $region386: #{_lambda_.1} parent=1 // pred_check
      _
    $region387: #{_lambda_.1} parent=1 // pred_check_branch
      %605 = sbr.rel (0) target = $region389
    $region388: #{_lambda_.1} parent=1 // pred_region
      %606 = dma.done [#allocation45], 16
    $region389: #{_lambda_.1} parent=1 // pred_fallthru
      _
    // Predicated region
    $region390: #{_lambda_.1} parent=1 // pred_check
      _
    $region391: #{_lambda_.1} parent=1 // pred_check_branch
      %608 = sbr.rel (0) target = $region393
    $region392: #{_lambda_.1} parent=1 // pred_region
      %609 = dma.done [#allocation48], 16
    $region393: #{_lambda_.1} parent=1 // pred_fallthru
      _
    %vm611 = vcmask 261120
    %612 = vst.msk [vmem:[#allocation2] sm:$0xff] %vm611, 0.0
    %613 = vst.msk [vmem:[#allocation2 + $0x8] sm:$0xff] %vm611, 0.0
    %614 = vst.msk [vmem:[#allocation2 + $0x10] sm:$0xff] %vm611, 0.0
    %615 = vst.msk [vmem:[#allocation2 + $0x18] sm:$0xff] %vm611, 0.0
    %616 = vst.msk [vmem:[#allocation2 + $0x20] sm:$0xff] %vm611, 0.0
    %617 = vst.msk [vmem:[#allocation2 + $0x28] sm:$0xff] %vm611, 0.0
    %vm618 = vcmask 392192
    %619 = vst.msk [vmem:[#allocation3] sm:$0xff] %vm618, 0.0
    %620 = vst.msk [vmem:[#allocation3 + $0x8] sm:$0xff] %vm618, 0.0
    %621 = vst [vmem:[#allocation4] sm:$0xff] 0.0
    %622 = vst [vmem:[#allocation4 + $0x8] sm:$0xff] 0.0
    %623 = vst [vmem:[#allocation4 + $0x10] sm:$0xff] 0.0
    %624 = vst [vmem:[#allocation4 + $0x18] sm:$0xff] 0.0
    %625 = vst [vmem:[#allocation4 + $0x20] sm:$0xff] 0.0
    %626 = vst [vmem:[#allocation4 + $0x28] sm:$0xff] 0.0
    %v627 = vld [vmem:[%s1] sm:$0xff]
    %v628 = vld [vmem:[%s1 + $0x8] sm:$0xff]
    %v629 = vld [vmem:[%s1 + $0x10] sm:$0xff]
    %v630 = vld [vmem:[%s1 + $0x18] sm:$0xff]
    %v631 = vld [vmem:[#allocation40] sm:$0x1]
    %v632 = vld [vmem:[#allocation38] sm:$0x1]
    %v633 = vsel %vm618, %v627, 0.0
    %634 = vadd.xlane.f32.xlu0 %v633
    %v635 = vpop.xlane.xlu0 %634
    %v636 = vsel %vm618, %v628, 0.0
    %637 = vadd.xlane.f32.xlu0 %v636
    %v638 = vpop.xlane.xlu0 %637
    %v639 = vsel %vm618, %v629, 0.0
    %640 = vadd.xlane.f32.xlu0 %v639
    %v641 = vpop.xlane.xlu0 %640
    %v642 = vsel %vm618, %v630, 0.0
    %643 = vadd.xlane.f32.xlu0 %v642
    %v644 = vpop.xlane.xlu0 %643
    %v645 = vrcp.pop 48.0
    %v646 = vmul.f32 %v635, %v645
    %v647 = vmul.f32 %v638, %v645
    %v648 = vmul.f32 %v641, %v645
    %v649 = vmul.f32 %v644, %v645
    %v650 = vsub.f32 %v627, %v646
    %v651 = vsub.f32 %v628, %v647
    %v652 = vsub.f32 %v629, %v648
    %v653 = vsub.f32 %v630, %v649
    %v654 = vmul.f32 %v650, %v650
    %v655 = vmul.f32 %v651, %v651
    %v656 = vmul.f32 %v652, %v652
    %v657 = vmul.f32 %v653, %v653
    %v658 = vsel %vm618, %v654, 0.0
    %659 = vadd.xlane.f32.xlu0 %v658
    %v660 = vpop.xlane.xlu0 %659
    %v661 = vsel %vm618, %v655, 0.0
    %662 = vadd.xlane.f32.xlu0 %v661
    %v663 = vpop.xlane.xlu0 %662
    %v664 = vsel %vm618, %v656, 0.0
    %665 = vadd.xlane.f32.xlu0 %v664
    %v666 = vpop.xlane.xlu0 %665
    %v667 = vsel %vm618, %v657, 0.0
    %668 = vadd.xlane.f32.xlu0 %v667
    %v669 = vpop.xlane.xlu0 %668
    %v670 = vmul.f32 %v660, %v645
    %v671 = vmul.f32 %v663, %v645
    %v672 = vmul.f32 %v666, %v645
    %v673 = vmul.f32 %v669, %v645
    %v674 = vadd.f32 %v670, 1e-05
    %v675 = vadd.f32 %v671, 1e-05
    %v676 = vadd.f32 %v672, 1e-05
    %v677 = vadd.f32 %v673, 1e-05
    %v678 = vrsqrt.pop %v674
    %v679 = vrsqrt.pop %v675
    %v680 = vrsqrt.pop %v676
    %v681 = vrsqrt.pop %v677
    %v682 = vmul.f32 %v650, %v678
    %v683 = vmul.f32 %v651, %v679
    %v684 = vmul.f32 %v652, %v680
    %v685 = vmul.f32 %v653, %v681
    %v687 = vlaneseq
    %v688 = vshrl.u32 %v687, 7
    %v689 = vsub.s32 0, %v688
    %v690 = vrot.slane %v631, %v689
    %v692 = vmul.f32 %v682, %v690
    %v693 = vmul.f32 %v683, %v690
    %v694 = vmul.f32 %v684, %v690
    %v695 = vmul.f32 %v685, %v690
    %v697 = vlaneseq
    %v698 = vshrl.u32 %v697, 7
    %v699 = vsub.s32 0, %v698
    %v700 = vrot.slane %v632, %v699
    %v702 = vadd.f32 %v692, %v700
    %v703 = vadd.f32 %v693, %v700
    %v704 = vadd.f32 %v694, %v700
    %v705 = vadd.f32 %v695, %v700
    %v706 = vld [vmem:[%s131] sm:$0xf]
    %v707 = vld [vmem:[%s131 + $0x4] sm:$0xf]
    %v708 = vld [vmem:[%s131 + $0x8] sm:$0xf]
    %v709 = vld [vmem:[%s131 + $0xc] sm:$0xf]
    %v710 = vld [vmem:[%s131 + $0x10] sm:$0xf]
    %v711 = vld [vmem:[%s131 + $0x14] sm:$0xf]
    %v712 = vpack.c.bf16 %v703, %v702
    %v713 = vpack.c.bf16 %v705, %v704
    %v714 = vld [vmem:[#allocation35] sm:$0x1]
    %v716 = vlaneseq
    %v717 = vshrl.u32 %v716, 7
    %v718 = vsub.s32 0, %v717
    %v719 = vrot.slane %v714, %v718
    %v727 = vunpack.c.l.b16 %v706
    %v728 = vunpack.c.l.b16 %v707
    %v729 = vunpack.c.l.b16 %v708
    %v730 = vunpack.c.l.b16 %v709
    %v731 = vunpack.c.l.b16 %v710
    %v732 = vunpack.c.l.b16 %v711
    %v733 = vpack.c.b16 %v728, %v727
    %v734 = vpack.c.b16 %v730, %v729
    %v735 = vpack.c.b16 %v732, %v731
    %v740 = vsel %vm618, %v712, 0
    %v743 = vsel %vm618, %v713, 0
    %745 = vmatprep.subr.bf16.mxu0 0
    %746 = vmatpush1.bf16.msra.mxu0 %v733
    %747 = vmatprep.subr.bf16.mxu0 0
    %748 = vmatpush1.bf16.msra.mxu0 %v734
    %749 = vmatprep.subr.bf16.mxu0 0
    %750 = vmatpush1.bf16.msra.mxu0 %v735
    %751 = vmatprep.subr.bf16.mxu0 0
    %752 = vmatpush1.bf16.msra.mxu0 0
    %753 = vmatprep.subr.bf16.mxu0 0
    %754 = vmatpush1.bf16.msra.mxu0 0
    %755 = vmatprep.subr.bf16.mxu0 0
    %756 = vmatpush1.bf16.msra.mxu0 0
    %757 = vmatprep.subr.bf16.mxu0 0
    %758 = vmatpush1.bf16.msra.mxu0 0
    %759 = vmatprep.subr.bf16.mxu0 0
    %760 = vmatpush1.bf16.msra.mxu0 0
    %761 = vmatprep.subr.bf16.mxu0 0
    %762 = vmatpush1.bf16.msra.mxu0 0
    %763 = vmatprep.subr.bf16.mxu0 0
    %764 = vmatpush1.bf16.msra.mxu0 0
    %765 = vmatprep.subr.bf16.mxu0 0
    %766 = vmatpush1.bf16.msra.mxu0 0
    %767 = vmatprep.subr.bf16.mxu0 0
    %768 = vmatpush1.bf16.msra.mxu0 0
    %769 = vmatprep.subr.bf16.mxu0 0
    %770 = vmatpush1.bf16.msra.mxu0 0
    %771 = vmatprep.subr.bf16.mxu0 0
    %772 = vmatpush1.bf16.msra.mxu0 0
    %773 = vmatprep.subr.bf16.mxu0 0
    %774 = vmatpush1.bf16.msra.mxu0 0
    %775 = vmatprep.subr.bf16.mxu0 0
    %776 = vmatpush1.bf16.msra.mxu0 0
    %777 = vmatprep.mubr.bf16.mxu0 0
    %778 = vmatmul.mubr.bf16.gmra.mrb[0].mxu0 %v740
    %v779 = vpop.f32.mrb[0].mxu0
    %v780 = vadd.f32 %v719, %v779
    %v781 = vpop.f32.mrb[0].mxu0
    %v782 = vpop.f32.mrb[0].mxu0
    %v783 = vadd.f32 %v719, %v782
    %v784 = vpop.f32.mrb[0].mxu0
    %785 = vmatprep.mubr.bf16.mxu0 0
    %786 = vmatmul.mubr.bf16.gmra.mrb[0].mxu0 %v743
    %v787 = vpop.f32.mrb[0].mxu0
    %v788 = vadd.f32 %v719, %v787
    %v789 = vpop.f32.mrb[0].mxu0
    %v790 = vpop.f32.mrb[0].mxu0
    %v791 = vadd.f32 %v719, %v790
    %v792 = vpop.f32.mrb[0].mxu0
    %793 = vdwg.mxu0
    %v794 = vld [vmem:[#allocation43] sm:$0x1]
    %v795 = vld [vmem:[#allocation41] sm:$0x1]
    %v796 = vsel %vm611, %v780, 0.0
    %797 = vadd.xlane.f32.xlu0 %v796
    %v798 = vpop.xlane.xlu0 %797
    %v799 = vsel %vm611, %v783, 0.0
    %800 = vadd.xlane.f32.xlu0 %v799
    %v801 = vpop.xlane.xlu0 %800
    %v802 = vsel %vm611, %v788, 0.0
    %803 = vadd.xlane.f32.xlu0 %v802
    %v804 = vpop.xlane.xlu0 %803
    %v805 = vsel %vm611, %v791, 0.0
    %806 = vadd.xlane.f32.xlu0 %v805
    %v807 = vpop.xlane.xlu0 %806
    %v808 = vrcp.pop 32.0
    %v809 = vmul.f32 %v798, %v808
    %v810 = vmul.f32 %v801, %v808
    %v811 = vmul.f32 %v804, %v808
    %v812 = vmul.f32 %v807, %v808
    %v813 = vsub.f32 %v780, %v809
    %v814 = vsub.f32 %v783, %v810
    %v815 = vsub.f32 %v788, %v811
    %v816 = vsub.f32 %v791, %v812
    %v817 = vmul.f32 %v813, %v813
    %v818 = vmul.f32 %v814, %v814
    %v819 = vmul.f32 %v815, %v815
    %v820 = vmul.f32 %v816, %v816
    %v821 = vsel %vm611, %v817, 0.0
    %822 = vadd.xlane.f32.xlu0 %v821
    %v823 = vpop.xlane.xlu0 %822
    %v824 = vsel %vm611, %v818, 0.0
    %825 = vadd.xlane.f32.xlu0 %v824
    %v826 = vpop.xlane.xlu0 %825
    %v827 = vsel %vm611, %v819, 0.0
    %828 = vadd.xlane.f32.xlu0 %v827
    %v829 = vpop.xlane.xlu0 %828
    %v830 = vsel %vm611, %v820, 0.0
    %831 = vadd.xlane.f32.xlu0 %v830
    %v832 = vpop.xlane.xlu0 %831
    %v833 = vmul.f32 %v823, %v808
    %v834 = vmul.f32 %v826, %v808
    %v835 = vmul.f32 %v829, %v808
    %v836 = vmul.f32 %v832, %v808
    %v837 = vadd.f32 %v833, 1e-05
    %v838 = vadd.f32 %v834, 1e-05
    %v839 = vadd.f32 %v835, 1e-05
    %v840 = vadd.f32 %v836, 1e-05
    %v841 = vrsqrt.pop %v837
    %v842 = vrsqrt.pop %v838
    %v843 = vrsqrt.pop %v839
    %v844 = vrsqrt.pop %v840
    %v845 = vmul.f32 %v813, %v841
    %v846 = vmul.f32 %v814, %v842
    %v847 = vmul.f32 %v815, %v843
    %v848 = vmul.f32 %v816, %v844
    %v850 = vlaneseq
    %v851 = vshrl.u32 %v850, 7
    %v852 = vsub.s32 0, %v851
    %v853 = vrot.slane %v794, %v852
    %v855 = vmul.f32 %v845, %v853
    %v856 = vmul.f32 %v846, %v853
    %v857 = vmul.f32 %v847, %v853
    %v858 = vmul.f32 %v848, %v853
    %v860 = vlaneseq
    %v861 = vshrl.u32 %v860, 7
    %v862 = vsub.s32 0, %v861
    %v863 = vrot.slane %v795, %v862
    %v865 = vadd.f32 %v855, %v863
    %v866 = vadd.f32 %v856, %v863
    %v867 = vadd.f32 %v857, %v863
    %v868 = vadd.f32 %v858, %v863
    %v869 = vld [vmem:[%s129] sm:$0xff]
    %v870 = vld [vmem:[%s129 + $0x8] sm:$0xff]
    %v871 = vld [vmem:[%s129 + $0x10] sm:$0x1]
    %v872 = vld [vmem:[#allocation37] sm:$0x1]
    %v873 = vadd.f32 %v872, %v869
    %vm877 = vcmask 1046528
    %v878 = vrot.slane %v869, 1
    %v879 = vrot.slane %v870, 1
    %v880 = vsel %vm877, %v878, %v879
    %v881 = vrot.slane %v871, 1
    %v882 = vsel %vm877, %v879, %v881
    %v885 = vadd.f32 %v865, %v880
    %v886 = vadd.f32 %v866, %v882
    %887 = vst.msk [vmem:[#allocation2] sm:$0xff] %vm611, %v885
    %888 = vst.msk [vmem:[#allocation2 + $0x8] sm:$0xff] %vm611, %v886
    %vm889 = vcmask 253952
    %890 = vst.msk [vmem:[#allocation2 + $0x10] sm:$0x1] %vm889, %v873
    %v891 = vadd.f32 %v867, %v880
    %v892 = vadd.f32 %v868, %v882
    %893 = vst.msk [vmem:[#allocation2 + $0x18] sm:$0xff] %vm611, %v891
    %894 = vst.msk [vmem:[#allocation2 + $0x20] sm:$0xff] %vm611, %v892
    %895 = vst.msk [vmem:[#allocation2 + $0x28] sm:$0x1] %vm889, %v873
    %v896 = vld [vmem:[%s3] sm:$0xff]
    %v897 = vld [vmem:[%s3 + $0x8] sm:$0xff]
    %v898 = vld [vmem:[%s99] sm:$0x3]
    %v899 = vld [vmem:[%s97] sm:$0x3]
    %vm900 = vcmask 523264
    %v901 = vsel %vm900, %v897, 0.0
    %v902 = vadd.f32 %v896, %v901
    %903 = vadd.xlane.f32.xlu0 %v902
    %v904 = vpop.xlane.xlu0 %903
    %v905 = vrcp.pop 192.0
    %v906 = vmul.f32 %v904, %v905
    %v907 = vsub.f32 %v896, %v906
    %v908 = vsub.f32 %v897, %v906
    %v909 = vmul.f32 %v907, %v907
    %v910 = vmul.f32 %v908, %v908
    %v911 = vsel %vm900, %v910, 0.0
    %v912 = vadd.f32 %v909, %v911
    %913 = vadd.xlane.f32.xlu0 %v912
    %v914 = vpop.xlane.xlu0 %913
    %v915 = vmul.f32 %v914, %v905
    %v916 = vadd.f32 %v915, 1e-05
    %v917 = vrsqrt.pop %v916
    %v918 = vmul.f32 %v907, %v917
    %v919 = vmul.f32 %v908, %v917
    %v921 = vlaneseq
    %v922 = vshrl.u32 %v921, 7
    %v923 = vsub.s32 0, %v922
    %v924 = vrot.slane %v898, %v923
    %v925 = vlaneseq
    %v926 = vshrl.u32 %v925, 7
    %v927 = vsub.s32 1, %v926
    %v928 = vrot.slane %v898, %v927
    %v931 = vmul.f32 %v918, %v924
    %v932 = vmul.f32 %v919, %v928
    %v934 = vlaneseq
    %v935 = vshrl.u32 %v934, 7
    %v936 = vsub.s32 0, %v935
    %v937 = vrot.slane %v899, %v936
    %v938 = vlaneseq
    %v939 = vshrl.u32 %v938, 7
    %v940 = vsub.s32 1, %v939
    %v941 = vrot.slane %v899, %v940
    %v944 = vadd.f32 %v931, %v937
    %v945 = vadd.f32 %v932, %v941
    %v946 = vld [vmem:[%s107] sm:$0xf]
    %v947 = vld [vmem:[%s107 + $0x4] sm:$0xf]
    %v948 = vld [vmem:[%s107 + $0x8] sm:$0xf]
    %v949 = vld [vmem:[%s107 + $0xc] sm:$0xf]
    %v950 = vld [vmem:[%s107 + $0x10] sm:$0xf]
    %v951 = vld [vmem:[%s107 + $0x14] sm:$0xf]
    %v952 = vld [vmem:[%s107 + $0x18] sm:$0xf]
    %v953 = vld [vmem:[%s107 + $0x1c] sm:$0xf]
    %v954 = vld [vmem:[%s107 + $0x20] sm:$0xf]
    %v955 = vld [vmem:[%s107 + $0x24] sm:$0xf]
    %v956 = vld [vmem:[%s107 + $0x28] sm:$0xf]
    %v957 = vld [vmem:[%s107 + $0x2c] sm:$0xf]
    %v958 = vld [vmem:[%s107 + $0x30] sm:$0xf]
    %v959 = vld [vmem:[%s107 + $0x34] sm:$0xf]
    %v960 = vld [vmem:[%s107 + $0x38] sm:$0xf]
    %v961 = vld [vmem:[%s107 + $0x3c] sm:$0xf]
    %v962 = vld [vmem:[%s107 + $0x40] sm:$0xf]
    %v963 = vld [vmem:[%s107 + $0x44] sm:$0xf]
    %v964 = vld [vmem:[%s107 + $0x48] sm:$0xf]
    %v965 = vld [vmem:[%s107 + $0x4c] sm:$0xf]
    %v966 = vld [vmem:[%s107 + $0x50] sm:$0xf]
    %v967 = vld [vmem:[%s107 + $0x54] sm:$0xf]
    %v968 = vld [vmem:[%s107 + $0x58] sm:$0xf]
    %v969 = vld [vmem:[%s107 + $0x5c] sm:$0xf]
    %v970 = vpack.c.bf16 %v944, %v944
    %v971 = vpack.c.bf16 %v945, %v945
    %v972 = vld [vmem:[#allocation25] sm:$0x1]
    %v974 = vlaneseq
    %v975 = vshrl.u32 %v974, 7
    %v976 = vsub.s32 0, %v975
    %v977 = vrot.slane %v972, %v976
    %v1003 = vunpack.c.l.b16 %v946
    %v1004 = vunpack.c.l.b16 %v947
    %v1005 = vunpack.c.l.b16 %v948
    %v1006 = vunpack.c.l.b16 %v949
    %v1007 = vunpack.c.l.b16 %v950
    %v1008 = vunpack.c.l.b16 %v951
    %v1009 = vunpack.c.l.b16 %v952
    %v1010 = vunpack.c.l.b16 %v953
    %v1011 = vunpack.c.l.b16 %v954
    %v1012 = vunpack.c.l.b16 %v955
    %v1013 = vunpack.c.l.b16 %v956
    %v1014 = vunpack.c.l.b16 %v957
    %v1015 = vunpack.c.l.b16 %v958
    %v1016 = vunpack.c.l.b16 %v959
    %v1017 = vunpack.c.l.b16 %v960
    %v1018 = vunpack.c.l.b16 %v961
    %v1019 = vunpack.c.l.b16 %v962
    %v1020 = vunpack.c.l.b16 %v963
    %v1021 = vunpack.c.l.b16 %v964
    %v1022 = vunpack.c.l.b16 %v965
    %v1023 = vunpack.c.l.b16 %v966
    %v1024 = vunpack.c.l.b16 %v967
    %v1025 = vunpack.c.l.b16 %v968
    %v1026 = vunpack.c.l.b16 %v969
    %v1027 = vpack.c.b16 %v1004, %v1003
    %v1028 = vpack.c.b16 %v1006, %v1005
    %v1029 = vpack.c.b16 %v1008, %v1007
    %v1030 = vpack.c.b16 %v1010, %v1009
    %v1031 = vpack.c.b16 %v1012, %v1011
    %v1032 = vpack.c.b16 %v1014, %v1013
    %v1033 = vpack.c.b16 %v1016, %v1015
    %v1034 = vpack.c.b16 %v1018, %v1017
    %v1035 = vpack.c.b16 %v1020, %v1019
    %v1036 = vpack.c.b16 %v1022, %v1021
    %v1037 = vpack.c.b16 %v1024, %v1023
    %v1038 = vpack.c.b16 %v1026, %v1025
    %v1052 = vsel %vm900, %v971, 0
    %1054 = vmatprep.subr.bf16.mxu0 0
    %1055 = vmatpush1.bf16.msra.mxu0 %v1027
    %1056 = vmatprep.subr.bf16.mxu0 0
    %1057 = vmatpush1.bf16.msra.mxu0 %v1028
    %1058 = vmatprep.subr.bf16.mxu0 0
    %1059 = vmatpush1.bf16.msra.mxu0 %v1029
    %1060 = vmatprep.subr.bf16.mxu0 0
    %1061 = vmatpush1.bf16.msra.mxu0 %v1030
    %1062 = vmatprep.subr.bf16.mxu0 0
    %1063 = vmatpush1.bf16.msra.mxu0 %v1031
    %1064 = vmatprep.subr.bf16.mxu0 0
    %1065 = vmatpush1.bf16.msra.mxu0 %v1032
    %1066 = vmatprep.subr.bf16.mxu0 0
    %1067 = vmatpush1.bf16.msra.mxu0 %v1033
    %1068 = vmatprep.subr.bf16.mxu0 0
    %1069 = vmatpush1.bf16.msra.mxu0 %v1034
    %1070 = vmatprep.subr.bf16.mxu0 0
    %1071 = vmatpush1.bf16.msra.mxu0 %v1035
    %1072 = vmatprep.subr.bf16.mxu0 0
    %1073 = vmatpush1.bf16.msra.mxu0 %v1036
    %1074 = vmatprep.subr.bf16.mxu0 0
    %1075 = vmatpush1.bf16.msra.mxu0 %v1037
    %1076 = vmatprep.subr.bf16.mxu0 0
    %1077 = vmatpush1.bf16.msra.mxu0 %v1038
    %1078 = vmatprep.subr.bf16.mxu0 0
    %1079 = vmatpush1.bf16.msra.mxu0 0
    %1080 = vmatprep.subr.bf16.mxu0 0
    %1081 = vmatpush1.bf16.msra.mxu0 0
    %1082 = vmatprep.subr.bf16.mxu0 0
    %1083 = vmatpush1.bf16.msra.mxu0 0
    %1084 = vmatprep.subr.bf16.mxu0 0
    %1085 = vmatpush1.bf16.msra.mxu0 0
    %1086 = vmatprep.mubr.bf16.mxu0 %v1052
    %1087 = vmatmul.mubr.bf16.gmra.mrb[0].mxu0 %v970
    %v1088 = vpop.f32.mrb[0].mxu0
    %v1089 = vadd.f32 %v977, %v1088
    %v1090 = vpop.f32.mrb[0].mxu0
    %v1091 = vpop.f32.mrb[0].mxu0
    %v1092 = vpop.f32.mrb[0].mxu0
    %1093 = vdwg.mxu0
    %v1094 = vld [vmem:[#allocation29] sm:$0x1]
    %v1095 = vld [vmem:[#allocation28] sm:$0x1]
    %v1096 = vsel %vm618, %v1089, 0.0
    %1097 = vadd.xlane.f32.xlu0 %v1096
    %v1098 = vpop.xlane.xlu0 %1097
    %v1099 = vmul.f32 %v1098, %v645
    %v1100 = vsub.f32 %v1089, %v1099
    %v1101 = vmul.f32 %v1100, %v1100
    %v1102 = vsel %vm618, %v1101, 0.0
    %1103 = vadd.xlane.f32.xlu0 %v1102
    %v1104 = vpop.xlane.xlu0 %1103
    %v1105 = vmul.f32 %v1104, %v645
    %v1106 = vadd.f32 %v1105, 1e-05
    %v1107 = vrsqrt.pop %v1106
    %v1108 = vmul.f32 %v1100, %v1107
    %v1110 = vlaneseq
    %v1111 = vshrl.u32 %v1110, 7
    %v1112 = vsub.s32 0, %v1111
    %v1113 = vrot.slane %v1094, %v1112
    %v1115 = vmul.f32 %v1108, %v1113
    %v1117 = vlaneseq
    %v1118 = vshrl.u32 %v1117, 7
    %v1119 = vsub.s32 0, %v1118
    %v1120 = vrot.slane %v1095, %v1119
    %v1122 = vadd.f32 %v1115, %v1120
    %v1123 = vld [vmem:[%s105] sm:$0x1f]
    %v1124 = vld [vmem:[#allocation26] sm:$0x1]
    %v1125 = vadd.f32 %v1124, %v1123
    %v1127 = vrot.slane %v1123, 1
    %v1129 = vadd.f32 %v1122, %v1127
    %vm1130 = vcmask 388096
    %1131 = vst.msk [vmem:[#allocation3] sm:$0xf] %vm1130, %v1129
    %vm1132 = vcmask 385024
    %1133 = vst.msk [vmem:[#allocation3 + $0x4] sm:$0x1] %vm1132, %v1125
    %v1134 = vrot.slane %v1123, 5
    %v1136 = vadd.f32 %v1122, %v1134
    %vm1137 = vcmask 392196
    %1138 = vst.msk [vmem:[#allocation3 + $0x4] sm:$0xf0] %vm1137, %v1136
    %1139 = vst.msk [vmem:[#allocation3 + $0xc] sm:$0x1] %vm1132, %v1125
    %v1140 = vld [vmem:[#allocation2] sm:$0xff]
    %v1141 = vld [vmem:[#allocation2 + $0x8] sm:$0xff]
    %v1142 = vld [vmem:[#allocation2 + $0x10] sm:$0xff]
    %v1143 = vld [vmem:[#allocation2 + $0x18] sm:$0xff]
    %v1144 = vld [vmem:[#allocation2 + $0x20] sm:$0xff]
    %v1145 = vld [vmem:[#allocation2 + $0x28] sm:$0xff]
    %v1146 = vld [vmem:[#allocation17] sm:$0x1]
    %v1147 = vld [vmem:[#allocation16] sm:$0x1]
    %v1148 = vsel %vm611, %v1140, 0.0
    %1149 = vadd.xlane.f32.xlu0 %v1148
    %v1150 = vpop.xlane.xlu0 %1149
    %v1151 = vsel %vm611, %v1141, 0.0
    %1152 = vadd.xlane.f32.xlu0 %v1151
    %v1153 = vpop.xlane.xlu0 %1152
    %v1154 = vsel %vm611, %v1142, 0.0
    %1155 = vadd.xlane.f32.xlu0 %v1154
    %v1156 = vpop.xlane.xlu0 %1155
    %v1157 = vsel %vm611, %v1143, 0.0
    %1158 = vadd.xlane.f32.xlu0 %v1157
    %v1159 = vpop.xlane.xlu0 %1158
    %v1160 = vsel %vm611, %v1144, 0.0
    %1161 = vadd.xlane.f32.xlu0 %v1160
    %v1162 = vpop.xlane.xlu0 %1161
    %v1163 = vsel %vm611, %v1145, 0.0
    %1164 = vadd.xlane.f32.xlu0 %v1163
    %v1165 = vpop.xlane.xlu0 %1164
    %v1166 = vmul.f32 %v1150, %v808
    %v1167 = vmul.f32 %v1153, %v808
    %v1168 = vmul.f32 %v1156, %v808
    %v1169 = vmul.f32 %v1159, %v808
    %v1170 = vmul.f32 %v1162, %v808
    %v1171 = vmul.f32 %v1165, %v808
    %v1172 = vsub.f32 %v1140, %v1166
    %v1173 = vsub.f32 %v1141, %v1167
    %v1174 = vsub.f32 %v1142, %v1168
    %v1175 = vsub.f32 %v1143, %v1169
    %v1176 = vsub.f32 %v1144, %v1170
    %v1177 = vsub.f32 %v1145, %v1171
    %v1178 = vmul.f32 %v1172, %v1172
    %v1179 = vmul.f32 %v1173, %v1173
    %v1180 = vmul.f32 %v1174, %v1174
    %v1181 = vmul.f32 %v1175, %v1175
    %v1182 = vmul.f32 %v1176, %v1176
    %v1183 = vmul.f32 %v1177, %v1177
    %v1184 = vsel %vm611, %v1178, 0.0
    %1185 = vadd.xlane.f32.xlu0 %v1184
    %v1186 = vpop.xlane.xlu0 %1185
    %v1187 = vsel %vm611, %v1179, 0.0
    %1188 = vadd.xlane.f32.xlu0 %v1187
    %v1189 = vpop.xlane.xlu0 %1188
    %v1190 = vsel %vm611, %v1180, 0.0
    %1191 = vadd.xlane.f32.xlu0 %v1190
    %v1192 = vpop.xlane.xlu0 %1191
    %v1193 = vsel %vm611, %v1181, 0.0
    %1194 = vadd.xlane.f32.xlu0 %v1193
    %v1195 = vpop.xlane.xlu0 %1194
    %v1196 = vsel %vm611, %v1182, 0.0
    %1197 = vadd.xlane.f32.xlu0 %v1196
    %v1198 = vpop.xlane.xlu0 %1197
    %v1199 = vsel %vm611, %v1183, 0.0
    %1200 = vadd.xlane.f32.xlu0 %v1199
    %v1201 = vpop.xlane.xlu0 %1200
    %v1202 = vmul.f32 %v1186, %v808
    %v1203 = vmul.f32 %v1189, %v808
    %v1204 = vmul.f32 %v1192, %v808
    %v1205 = vmul.f32 %v1195, %v808
    %v1206 = vmul.f32 %v1198, %v808
    %v1207 = vmul.f32 %v1201, %v808
    %v1208 = vadd.f32 %v1202, 1e-05
    %v1209 = vadd.f32 %v1203, 1e-05
    %v1210 = vadd.f32 %v1204, 1e-05
    %v1211 = vadd.f32 %v1205, 1e-05
    %v1212 = vadd.f32 %v1206, 1e-05
    %v1213 = vadd.f32 %v1207, 1e-05
    %v1214 = vrsqrt.pop %v1208
    %v1215 = vrsqrt.pop %v1209
    %v1216 = vrsqrt.pop %v1210
    %v1217 = vrsqrt.pop %v1211
    %v1218 = vrsqrt.pop %v1212
    %v1219 = vrsqrt.pop %v1213
    %v1220 = vmul.f32 %v1172, %v1214
    %v1221 = vmul.f32 %v1173, %v1215
    %v1222 = vmul.f32 %v1174, %v1216
    %v1223 = vmul.f32 %v1175, %v1217
    %v1224 = vmul.f32 %v1176, %v1218
    %v1225 = vmul.f32 %v1177, %v1219
    %v1227 = vlaneseq
    %v1228 = vshrl.u32 %v1227, 7
    %v1229 = vsub.s32 0, %v1228
    %v1230 = vrot.slane %v1146, %v1229
    %v1232 = vmul.f32 %v1220, %v1230
    %v1233 = vmul.f32 %v1221, %v1230
    %v1234 = vmul.f32 %v1222, %v1230
    %v1235 = vmul.f32 %v1223, %v1230
    %v1236 = vmul.f32 %v1224, %v1230
    %v1237 = vmul.f32 %v1225, %v1230
    %v1239 = vlaneseq
    %v1240 = vshrl.u32 %v1239, 7
    %v1241 = vsub.s32 0, %v1240
    %v1242 = vrot.slane %v1147, %v1241
    %v1244 = vadd.f32 %v1232, %v1242
    %v1245 = vadd.f32 %v1233, %v1242
    %v1246 = vadd.f32 %v1234, %v1242
    %v1247 = vadd.f32 %v1235, %v1242
    %v1248 = vadd.f32 %v1236, %v1242
    %v1249 = vadd.f32 %v1237, %v1242
    %v1250 = vld [vmem:[%s79] sm:$0xf]
    %v1251 = vld [vmem:[%s79 + $0x4] sm:$0xf]
    %v1252 = vld [vmem:[%s79 + $0x8] sm:$0xf]
    %v1253 = vld [vmem:[%s79 + $0xc] sm:$0xf]
    %v1254 = vpack.c.bf16 %v1245, %v1244
    %v1255 = vpack.c.bf16 %v1247, %v1246
    %v1256 = vpack.c.bf16 %v1249, %v1248
    %v1257 = vld [vmem:[#allocation14] sm:$0x1]
    %v1259 = vlaneseq
    %v1260 = vshrl.u32 %v1259, 7
    %v1261 = vsub.s32 0, %v1260
    %v1262 = vrot.slane %v1257, %v1261
    %v1268 = vunpack.c.l.b16 %v1250
    %v1269 = vunpack.c.l.b16 %v1251
    %v1270 = vunpack.c.l.b16 %v1252
    %v1271 = vunpack.c.l.b16 %v1253
    %v1272 = vpack.c.b16 %v1269, %v1268
    %v1273 = vpack.c.b16 %v1271, %v1270
    %v1277 = vsel %vm611, %v1254, 0
    %v1280 = vsel %vm611, %v1255, 0
    %v1283 = vsel %vm611, %v1256, 0
    %1285 = vmatprep.subr.bf16.mxu0 0
    %1286 = vmatpush1.bf16.msra.mxu0 %v1272
    %1287 = vmatprep.subr.bf16.mxu0 0
    %1288 = vmatpush1.bf16.msra.mxu0 %v1273
    %1289 = vmatprep.subr.bf16.mxu0 0
    %1290 = vmatpush1.bf16.msra.mxu0 0
    %1291 = vmatprep.subr.bf16.mxu0 0
    %1292 = vmatpush1.bf16.msra.mxu0 0
    %1293 = vmatprep.subr.bf16.mxu0 0
    %1294 = vmatpush1.bf16.msra.mxu0 0
    %1295 = vmatprep.subr.bf16.mxu0 0
    %1296 = vmatpush1.bf16.msra.mxu0 0
    %1297 = vmatprep.subr.bf16.mxu0 0
    %1298 = vmatpush1.bf16.msra.mxu0 0
    %1299 = vmatprep.subr.bf16.mxu0 0
    %1300 = vmatpush1.bf16.msra.mxu0 0
    %1301 = vmatprep.subr.bf16.mxu0 0
    %1302 = vmatpush1.bf16.msra.mxu0 0
    %1303 = vmatprep.subr.bf16.mxu0 0
    %1304 = vmatpush1.bf16.msra.mxu0 0
    %1305 = vmatprep.subr.bf16.mxu0 0
    %1306 = vmatpush1.bf16.msra.mxu0 0
    %1307 = vmatprep.subr.bf16.mxu0 0
    %1308 = vmatpush1.bf16.msra.mxu0 0
    %1309 = vmatprep.subr.bf16.mxu0 0
    %1310 = vmatpush1.bf16.msra.mxu0 0
    %1311 = vmatprep.subr.bf16.mxu0 0
    %1312 = vmatpush1.bf16.msra.mxu0 0
    %1313 = vmatprep.subr.bf16.mxu0 0
    %1314 = vmatpush1.bf16.msra.mxu0 0
    %1315 = vmatprep.subr.bf16.mxu0 0
    %1316 = vmatpush1.bf16.msra.mxu0 0
    %1317 = vmatprep.mubr.bf16.mxu0 0
    %1318 = vmatmul.mubr.bf16.gmra.mrb[0].mxu0 %v1277
    %v1319 = vpop.f32.mrb[0].mxu0
    %v1320 = vadd.f32 %v1262, %v1319
    %v1321 = vpop.f32.mrb[0].mxu0
    %v1322 = vpop.f32.mrb[0].mxu0
    %v1323 = vadd.f32 %v1262, %v1322
    %v1324 = vpop.f32.mrb[0].mxu0
    %1325 = vmatprep.mubr.bf16.mxu0 0
    %1326 = vmatmul.mubr.bf16.gmra.mrb[0].mxu0 %v1280
    %v1327 = vpop.f32.mrb[0].mxu0
    %v1328 = vadd.f32 %v1262, %v1327
    %v1329 = vpop.f32.mrb[0].mxu0
    %v1330 = vpop.f32.mrb[0].mxu0
    %v1331 = vadd.f32 %v1262, %v1330
    %v1332 = vpop.f32.mrb[0].mxu0
    %1333 = vmatprep.mubr.bf16.mxu0 0
    %1334 = vmatmul.mubr.bf16.gmra.mrb[0].mxu0 %v1283
    %v1335 = vpop.f32.mrb[0].mxu0
    %v1336 = vadd.f32 %v1262, %v1335
    %v1337 = vpop.f32.mrb[0].mxu0
    %v1338 = vpop.f32.mrb[0].mxu0
    %v1339 = vadd.f32 %v1262, %v1338
    %v1340 = vpop.f32.mrb[0].mxu0
    %1341 = vdwg.mxu0
    %v1342 = vpack.c.bf16 %v1323, %v1320
    %v1343 = vpack.c.bf16 %v1328, %v1328
    %1346 = vrot.lane.b32.xlu0 %v1342, 96
    %v1347 = vpop.permute.xlu0 %1346
    %1348 = vrot.lane.b32.xlu0 %v1343, 96
    %v1349 = vpop.permute.xlu0 %1348
    %vm1350 = vcmask 130048
    %v1352 = vsel %vm1350, %v1342, 0
    %v1355 = vsel %vm1350, %v1343, 0
    %v1358 = vsel %vm1350, %v1347, 0
    %v1361 = vsel %vm1350, %v1349, 0
    %1363 = vmatprep.subr.bf16.mxu0 0
    %1364 = vmatpush1.bf16.xpose.msra.mxu0 %v1358
    %1365 = vmatprep.subr.bf16.mxu0 0
    %1366 = vmatpush1.bf16.xpose.msra.mxu0 %v1361
    %1367 = vmatprep.subr.bf16.mxu0 0
    %1368 = vmatpush1.bf16.xpose.msra.mxu0 0
    %1369 = vmatprep.subr.bf16.mxu0 0
    %1370 = vmatpush1.bf16.xpose.msra.mxu0 0
    %1371 = vmatprep.subr.bf16.mxu0 0
    %1372 = vmatpush1.bf16.xpose.msra.mxu0 0
    %1373 = vmatprep.subr.bf16.mxu0 0
    %1374 = vmatpush1.bf16.xpose.msra.mxu0 0
    %1375 = vmatprep.subr.bf16.mxu0 0
    %1376 = vmatpush1.bf16.xpose.msra.mxu0 0
    %1377 = vmatprep.subr.bf16.mxu0 0
    %1378 = vmatpush1.bf16.xpose.msra.mxu0 0
    %1379 = vmatprep.subr.bf16.mxu0 0
    %1380 = vmatpush1.bf16.xpose.msra.mxu0 0
    %1381 = vmatprep.subr.bf16.mxu0 0
    %1382 = vmatpush1.bf16.xpose.msra.mxu0 0
    %1383 = vmatprep.subr.bf16.mxu0 0
    %1384 = vmatpush1.bf16.xpose.msra.mxu0 0
    %1385 = vmatprep.subr.bf16.mxu0 0
    %1386 = vmatpush1.bf16.xpose.msra.mxu0 0
    %1387 = vmatprep.subr.bf16.mxu0 0
    %1388 = vmatpush1.bf16.xpose.msra.mxu0 0
    %1389 = vmatprep.subr.bf16.mxu0 0
    %1390 = vmatpush1.bf16.xpose.msra.mxu0 0
    %1391 = vmatprep.subr.bf16.mxu0 0
    %1392 = vmatpush1.bf16.xpose.msra.mxu0 0
    %1393 = vmatprep.subr.bf16.mxu0 0
    %1394 = vmatpush1.bf16.xpose.msra.mxu0 0
    %1395 = vmatprep.mubr.bf16.mxu0 0
    %1396 = vmatmul.mubr.bf16.gmra.mrb[0].mxu0 %v1352
    %v1397 = vpop.f32.mrb[0].mxu0
    %v1398 = vadd.f32 0.0, %v1397
    %v1399 = vpop.f32.mrb[0].mxu0
    %v1400 = vpop.f32.mrb[0].mxu0
    %v1401 = vadd.f32 0.0, %v1400
    %v1402 = vpop.f32.mrb[0].mxu0
    %1403 = vmatprep.mubr.bf16.mxu0 0
    %1404 = vmatmul.mubr.bf16.gmra.mrb[0].mxu0 %v1355
    %v1405 = vpop.f32.mrb[0].mxu0
    %v1406 = vadd.f32 0.0, %v1405
    %v1407 = vpop.f32.mrb[0].mxu0
    %v1408 = vpop.f32.mrb[0].mxu0
    %v1409 = vpop.f32.mrb[0].mxu0
    %1410 = vdwg.mxu0
    %vm1411 = vcmask 138240
    %v1412 = vsel %vm1411, %v1398, -inf
    %1413 = vmax.xlane.f32.xlu0 %v1412
    %v1414 = vpop.xlane.xlu0 %1413
    %v1415 = vsel %vm1411, %v1401, -inf
    %1416 = vmax.xlane.f32.xlu0 %v1415
    %v1417 = vpop.xlane.xlu0 %1416
    %vm1418 = vcmask 131072
    %v1419 = vsel %vm1418, %v1406, -inf
    %1420 = vmax.xlane.f32.xlu0 %v1419
    %v1421 = vpop.xlane.xlu0 %1420
    %v1422 = vsub.f32 %v1398, %v1414
    %v1423 = vsub.f32 %v1401, %v1417
    %v1424 = vsub.f32 %v1406, %v1421
    %v1425 = vmul.f32 %v1422, 1.442695
    %v1426 = vpow.pop %v1425
    %v1427 = vmul.f32 %v1423, 1.442695
    %v1428 = vpow.pop %v1427
    %v1429 = vmul.f32 %v1424, 1.442695
    %v1430 = vpow.pop %v1429
    %v1431 = vsel %vm1411, %v1426, 0.0
    %1432 = vadd.xlane.f32.xlu0 %v1431
    %v1433 = vpop.xlane.xlu0 %1432
    %v1434 = vsel %vm1411, %v1428, 0.0
    %1435 = vadd.xlane.f32.xlu0 %v1434
    %v1436 = vpop.xlane.xlu0 %1435
    %v1437 = vsel %vm1418, %v1430, 0.0
    %1438 = vadd.xlane.f32.xlu0 %v1437
    %v1439 = vpop.xlane.xlu0 %1438
    %v1440 = vrcp.pop %v1433
    %v1441 = vrcp.pop %v1436
    %v1442 = vrcp.pop %v1439
    %v1443 = vmul.f32 %v1426, %v1440
    %v1444 = vmul.f32 %v1428, %v1441
    %v1445 = vmul.f32 %v1430, %v1442
    %v1446 = vpack.c.bf16 %v1444, %v1443
    %v1447 = vpack.c.bf16 %v1445, %v1445
    %1448 = vrot.lane.b32.xlu0 %v1342, 64
    %v1449 = vpop.permute.xlu0 %1448
    %1450 = vrot.lane.b32.xlu0 %v1343, 64
    %v1451 = vpop.permute.xlu0 %1450
    %v1454 = vsel %vm1411, %v1446, 0
    %v1457 = vsel %vm1411, %v1447, 0
    %vm1459 = vcmask 1040384
    %v1460 = vsel 0, 4294967295, 65535
    %v1461 = vsel %vm1459, %v1460, 0
    %v1463 = vand.u32 %v1451, %v1461
    %1465 = vmatprep.subr.bf16.mxu0 0
    %1466 = vmatpush1.bf16.msra.mxu0 %v1449
    %1467 = vmatprep.subr.bf16.mxu0 0
    %1468 = vmatpush1.bf16.msra.mxu0 %v1463
    %1469 = vmatprep.subr.bf16.mxu0 0
    %1470 = vmatpush1.bf16.msra.mxu0 0
    %1471 = vmatprep.subr.bf16.mxu0 0
    %1472 = vmatpush1.bf16.msra.mxu0 0
    %1473 = vmatprep.subr.bf16.mxu0 0
    %1474 = vmatpush1.bf16.msra.mxu0 0
    %1475 = vmatprep.subr.bf16.mxu0 0
    %1476 = vmatpush1.bf16.msra.mxu0 0
    %1477 = vmatprep.subr.bf16.mxu0 0
    %1478 = vmatpush1.bf16.msra.mxu0 0
    %1479 = vmatprep.subr.bf16.mxu0 0
    %1480 = vmatpush1.bf16.msra.mxu0 0
    %1481 = vmatprep.subr.bf16.mxu0 0
    %1482 = vmatpush1.bf16.msra.mxu0 0
    %1483 = vmatprep.subr.bf16.mxu0 0
    %1484 = vmatpush1.bf16.msra.mxu0 0
    %1485 = vmatprep.subr.bf16.mxu0 0
    %1486 = vmatpush1.bf16.msra.mxu0 0
    %1487 = vmatprep.subr.bf16.mxu0 0
    %1488 = vmatpush1.bf16.msra.mxu0 0
    %1489 = vmatprep.subr.bf16.mxu0 0
    %1490 = vmatpush1.bf16.msra.mxu0 0
    %1491 = vmatprep.subr.bf16.mxu0 0
    %1492 = vmatpush1.bf16.msra.mxu0 0
    %1493 = vmatprep.subr.bf16.mxu0 0
    %1494 = vmatpush1.bf16.msra.mxu0 0
    %1495 = vmatprep.subr.bf16.mxu0 0
    %1496 = vmatpush1.bf16.msra.mxu0 0
    %1497 = vmatprep.mubr.bf16.mxu0 0
    %1498 = vmatmul.mubr.bf16.gmra.mrb[0].mxu0 %v1454
    %v1499 = vpop.f32.mrb[0].mxu0
    %v1500 = vadd.f32 0.0, %v1499
    %v1501 = vpop.f32.mrb[0].mxu0
    %v1502 = vpop.f32.mrb[0].mxu0
    %v1503 = vadd.f32 0.0, %v1502
    %v1504 = vpop.f32.mrb[0].mxu0
    %1505 = vmatprep.mubr.bf16.mxu0 0
    %1506 = vmatmul.mubr.bf16.gmra.mrb[0].mxu0 %v1457
    %v1507 = vpop.f32.mrb[0].mxu0
    %v1508 = vadd.f32 0.0, %v1507
    %v1509 = vpop.f32.mrb[0].mxu0
    %v1510 = vpop.f32.mrb[0].mxu0
    %v1511 = vpop.f32.mrb[0].mxu0
    %1512 = vdwg.mxu0
    %1513 = vst.msk [vmem:[#allocation4] sm:$0xff] %vm1350, %v1500
    %1514 = vst.msk [vmem:[#allocation4 + $0x8] sm:$0xff] %vm1350, %v1503
    %vm1515 = vcmask 122880
    %1516 = vst.msk [vmem:[#allocation4 + $0x10] sm:$0x1] %vm1515, %v1508
    %1517 = vrot.lane.b32.xlu0 %v1342, 112
    %v1518 = vpop.permute.xlu0 %1517
    %1519 = vrot.lane.b32.xlu0 %v1343, 112
    %v1520 = vpop.permute.xlu0 %1519
    %1521 = vrot.lane.b32.xlu0 %v1342, 80
    %v1522 = vpop.permute.xlu0 %1521
    %1523 = vrot.lane.b32.xlu0 %v1343, 80
    %v1524 = vpop.permute.xlu0 %1523
    %v1526 = vsel %vm1350, %v1518, 0
    %v1529 = vsel %vm1350, %v1520, 0
    %v1532 = vsel %vm1350, %v1522, 0
    %v1535 = vsel %vm1350, %v1524, 0
    %1537 = vmatprep.subr.bf16.mxu0 0
    %1538 = vmatpush1.bf16.xpose.msra.mxu0 %v1532
    %1539 = vmatprep.subr.bf16.mxu0 0
    %1540 = vmatpush1.bf16.xpose.msra.mxu0 %v1535
    %1541 = vmatprep.subr.bf16.mxu0 0
    %1542 = vmatpush1.bf16.xpose.msra.mxu0 0
    %1543 = vmatprep.subr.bf16.mxu0 0
    %1544 = vmatpush1.bf16.xpose.msra.mxu0 0
    %1545 = vmatprep.subr.bf16.mxu0 0
    %1546 = vmatpush1.bf16.xpose.msra.mxu0 0
    %1547 = vmatprep.subr.bf16.mxu0 0
    %1548 = vmatpush1.bf16.xpose.msra.mxu0 0
    %1549 = vmatprep.subr.bf16.mxu0 0
    %1550 = vmatpush1.bf16.xpose.msra.mxu0 0
    %1551 = vmatprep.subr.bf16.mxu0 0
    %1552 = vmatpush1.bf16.xpose.msra.mxu0 0
    %1553 = vmatprep.subr.bf16.mxu0 0
    %1554 = vmatpush1.bf16.xpose.msra.mxu0 0
    %1555 = vmatprep.subr.bf16.mxu0 0
    %1556 = vmatpush1.bf16.xpose.msra.mxu0 0
    %1557 = vmatprep.subr.bf16.mxu0 0
    %1558 = vmatpush1.bf16.xpose.msra.mxu0 0
    %1559 = vmatprep.subr.bf16.mxu0 0
    %1560 = vmatpush1.bf16.xpose.msra.mxu0 0
    %1561 = vmatprep.subr.bf16.mxu0 0
    %1562 = vmatpush1.bf16.xpose.msra.mxu0 0
    %1563 = vmatprep.subr.bf16.mxu0 0
    %1564 = vmatpush1.bf16.xpose.msra.mxu0 0
    %1565 = vmatprep.subr.bf16.mxu0 0
    %1566 = vmatpush1.bf16.xpose.msra.mxu0 0
    %1567 = vmatprep.subr.bf16.mxu0 0
    %1568 = vmatpush1.bf16.xpose.msra.mxu0 0
    %1569 = vmatprep.mubr.bf16.mxu0 0
    %1570 = vmatmul.mubr.bf16.gmra.mrb[0].mxu0 %v1526
    %v1571 = vpop.f32.mrb[0].mxu0
    %v1572 = vadd.f32 0.0, %v1571
    %v1573 = vpop.f32.mrb[0].mxu0
    %v1574 = vpop.f32.mrb[0].mxu0
    %v1575 = vadd.f32 0.0, %v1574
    %v1576 = vpop.f32.mrb[0].mxu0
    %1577 = vmatprep.mubr.bf16.mxu0 0
    %1578 = vmatmul.mubr.bf16.gmra.mrb[0].mxu0 %v1529
    %v1579 = vpop.f32.mrb[0].mxu0
    %v1580 = vadd.f32 0.0, %v1579
    %v1581 = vpop.f32.mrb[0].mxu0
    %v1582 = vpop.f32.mrb[0].mxu0
    %v1583 = vpop.f32.mrb[0].mxu0
    %1584 = vdwg.mxu0
    %v1585 = vsel %vm1411, %v1572, -inf
    %1586 = vmax.xlane.f32.xlu0 %v1585
    %v1587 = vpop.xlane.xlu0 %1586
    %v1588 = vsel %vm1411, %v1575, -inf
    %1589 = vmax.xlane.f32.xlu0 %v1588
    %v1590 = vpop.xlane.xlu0 %1589
    %v1591 = vsel %vm1418, %v1580, -inf
    %1592 = vmax.xlane.f32.xlu0 %v1591
    %v1593 = vpop.xlane.xlu0 %1592
    %v1594 = vsub.f32 %v1572, %v1587
    %v1595 = vsub.f32 %v1575, %v1590
    %v1596 = vsub.f32 %v1580, %v1593
    %v1597 = vmul.f32 %v1594, 1.442695
    %v1598 = vpow.pop %v1597
    %v1599 = vmul.f32 %v1595, 1.442695
    %v1600 = vpow.pop %v1599
    %v1601 = vmul.f32 %v1596, 1.442695
    %v1602 = vpow.pop %v1601
    %v1603 = vsel %vm1411, %v1598, 0.0
    %1604 = vadd.xlane.f32.xlu0 %v1603
    %v1605 = vpop.xlane.xlu0 %1604
    %v1606 = vsel %vm1411, %v1600, 0.0
    %1607 = vadd.xlane.f32.xlu0 %v1606
    %v1608 = vpop.xlane.xlu0 %1607
    %v1609 = vsel %vm1418, %v1602, 0.0
    %1610 = vadd.xlane.f32.xlu0 %v1609
    %v1611 = vpop.xlane.xlu0 %1610
    %v1612 = vrcp.pop %v1605
    %v1613 = vrcp.pop %v1608
    %v1614 = vrcp.pop %v1611
    %v1615 = vmul.f32 %v1598, %v1612
    %v1616 = vmul.f32 %v1600, %v1613
    %v1617 = vmul.f32 %v1602, %v1614
    %v1618 = vpack.c.bf16 %v1616, %v1615
    %v1619 = vpack.c.bf16 %v1617, %v1617
    %1620 = vrot.lane.b32.xlu0 %v1342, 48
    %v1621 = vpop.permute.xlu0 %1620
    %1622 = vrot.lane.b32.xlu0 %v1343, 48
    %v1623 = vpop.permute.xlu0 %1622
    %v1626 = vsel %vm1411, %v1618, 0
    %v1629 = vsel %vm1411, %v1619, 0
    %v1632 = vand.u32 %v1623, %v1461
    %1634 = vmatprep.subr.bf16.mxu0 0
    %1635 = vmatpush1.bf16.msra.mxu0 %v1621
    %1636 = vmatprep.subr.bf16.mxu0 0
    %1637 = vmatpush1.bf16.msra.mxu0 %v1632
    %1638 = vmatprep.subr.bf16.mxu0 0
    %1639 = vmatpush1.bf16.msra.mxu0 0
    %1640 = vmatprep.subr.bf16.mxu0 0
    %1641 = vmatpush1.bf16.msra.mxu0 0
    %1642 = vmatprep.subr.bf16.mxu0 0
    %1643 = vmatpush1.bf16.msra.mxu0 0
    %1644 = vmatprep.subr.bf16.mxu0 0
    %1645 = vmatpush1.bf16.msra.mxu0 0
    %1646 = vmatprep.subr.bf16.mxu0 0
    %1647 = vmatpush1.bf16.msra.mxu0 0
    %1648 = vmatprep.subr.bf16.mxu0 0
    %1649 = vmatpush1.bf16.msra.mxu0 0
    %1650 = vmatprep.subr.bf16.mxu0 0
    %1651 = vmatpush1.bf16.msra.mxu0 0
    %1652 = vmatprep.subr.bf16.mxu0 0
    %1653 = vmatpush1.bf16.msra.mxu0 0
    %1654 = vmatprep.subr.bf16.mxu0 0
    %1655 = vmatpush1.bf16.msra.mxu0 0
    %1656 = vmatprep.subr.bf16.mxu0 0
    %1657 = vmatpush1.bf16.msra.mxu0 0
    %1658 = vmatprep.subr.bf16.mxu0 0
    %1659 = vmatpush1.bf16.msra.mxu0 0
    %1660 = vmatprep.subr.bf16.mxu0 0
    %1661 = vmatpush1.bf16.msra.mxu0 0
    %1662 = vmatprep.subr.bf16.mxu0 0
    %1663 = vmatpush1.bf16.msra.mxu0 0
    %1664 = vmatprep.subr.bf16.mxu0 0
    %1665 = vmatpush1.bf16.msra.mxu0 0
    %1666 = vmatprep.mubr.bf16.mxu0 0
    %1667 = vmatmul.mubr.bf16.gmra.mrb[0].mxu0 %v1626
    %v1668 = vpop.f32.mrb[0].mxu0
    %v1669 = vadd.f32 0.0, %v1668
    %v1670 = vpop.f32.mrb[0].mxu0
    %v1671 = vpop.f32.mrb[0].mxu0
    %v1672 = vadd.f32 0.0, %v1671
    %v1673 = vpop.f32.mrb[0].mxu0
    %1674 = vmatprep.mubr.bf16.mxu0 0
    %1675 = vmatmul.mubr.bf16.gmra.mrb[0].mxu0 %v1629
    %v1676 = vpop.f32.mrb[0].mxu0
    %v1677 = vadd.f32 0.0, %v1676
    %v1678 = vpop.f32.mrb[0].mxu0
    %v1679 = vpop.f32.mrb[0].mxu0
    %v1680 = vpop.f32.mrb[0].mxu0
    %1681 = vdwg.mxu0
    %1685 = vrot.lane.b32.xlu0 %v1669, 16
    %v1686 = vpop.permute.xlu0 %1685
    %1687 = vrot.lane.b32.xlu0 %v1672, 16
    %v1688 = vpop.permute.xlu0 %1687
    %1689 = vrot.lane.b32.xlu0 %v1677, 16
    %v1690 = vpop.permute.xlu0 %1689
    %vm1694 = vcmask 261248
    %1695 = vst.msk [vmem:[#allocation4] sm:$0xff] %vm1694, %v1686
    %1696 = vst.msk [vmem:[#allocation4 + $0x8] sm:$0xff] %vm1694, %v1688
    %vm1697 = vcmask 254080
    %1698 = vst.msk [vmem:[#allocation4 + $0x10] sm:$0x1] %vm1697, %v1690
    %v1699 = vpack.c.bf16 %v1336, %v1331
    %v1700 = vpack.c.bf16 %v1339, %v1339
    %1703 = vrot.lane.b32.xlu0 %v1699, 96
    %v1704 = vpop.permute.xlu0 %1703
    %1705 = vrot.lane.b32.xlu0 %v1700, 96
    %v1706 = vpop.permute.xlu0 %1705
    %v1708 = vsel %vm1350, %v1699, 0
    %v1711 = vsel %vm1350, %v1700, 0
    %v1714 = vsel %vm1350, %v1704, 0
    %v1717 = vsel %vm1350, %v1706, 0
    %1719 = vmatprep.subr.bf16.mxu0 0
    %1720 = vmatpush1.bf16.xpose.msra.mxu0 %v1714
    %1721 = vmatprep.subr.bf16.mxu0 0
    %1722 = vmatpush1.bf16.xpose.msra.mxu0 %v1717
    %1723 = vmatprep.subr.bf16.mxu0 0
    %1724 = vmatpush1.bf16.xpose.msra.mxu0 0
    %1725 = vmatprep.subr.bf16.mxu0 0
    %1726 = vmatpush1.bf16.xpose.msra.mxu0 0
    %1727 = vmatprep.subr.bf16.mxu0 0
    %1728 = vmatpush1.bf16.xpose.msra.mxu0 0
    %1729 = vmatprep.subr.bf16.mxu0 0
    %1730 = vmatpush1.bf16.xpose.msra.mxu0 0
    %1731 = vmatprep.subr.bf16.mxu0 0
    %1732 = vmatpush1.bf16.xpose.msra.mxu0 0
    %1733 = vmatprep.subr.bf16.mxu0 0
    %1734 = vmatpush1.bf16.xpose.msra.mxu0 0
    %1735 = vmatprep.subr.bf16.mxu0 0
    %1736 = vmatpush1.bf16.xpose.msra.mxu0 0
    %1737 = vmatprep.subr.bf16.mxu0 0
    %1738 = vmatpush1.bf16.xpose.msra.mxu0 0
    %1739 = vmatprep.subr.bf16.mxu0 0
    %1740 = vmatpush1.bf16.xpose.msra.mxu0 0
    %1741 = vmatprep.subr.bf16.mxu0 0
    %1742 = vmatpush1.bf16.xpose.msra.mxu0 0
    %1743 = vmatprep.subr.bf16.mxu0 0
    %1744 = vmatpush1.bf16.xpose.msra.mxu0 0
    %1745 = vmatprep.subr.bf16.mxu0 0
    %1746 = vmatpush1.bf16.xpose.msra.mxu0 0
    %1747 = vmatprep.subr.bf16.mxu0 0
    %1748 = vmatpush1.bf16.xpose.msra.mxu0 0
    %1749 = vmatprep.subr.bf16.mxu0 0
    %1750 = vmatpush1.bf16.xpose.msra.mxu0 0
    %1751 = vmatprep.mubr.bf16.mxu0 0
    %1752 = vmatmul.mubr.bf16.gmra.mrb[0].mxu0 %v1708
    %v1753 = vpop.f32.mrb[0].mxu0
    %v1754 = vadd.f32 0.0, %v1753
    %v1755 = vpop.f32.mrb[0].mxu0
    %v1756 = vpop.f32.mrb[0].mxu0
    %v1757 = vadd.f32 0.0, %v1756
    %v1758 = vpop.f32.mrb[0].mxu0
    %1759 = vmatprep.mubr.bf16.mxu0 0
    %1760 = vmatmul.mubr.bf16.gmra.mrb[0].mxu0 %v1711
    %v1761 = vpop.f32.mrb[0].mxu0
    %v1762 = vadd.f32 0.0, %v1761
    %v1763 = vpop.f32.mrb[0].mxu0
    %v1764 = vpop.f32.mrb[0].mxu0
    %v1765 = vpop.f32.mrb[0].mxu0
    %1766 = vdwg.mxu0
    %v1767 = vsel %vm1411, %v1754, -inf
    %1768 = vmax.xlane.f32.xlu0 %v1767
    %v1769 = vpop.xlane.xlu0 %1768
    %v1770 = vsel %vm1411, %v1757, -inf
    %1771 = vmax.xlane.f32.xlu0 %v1770
    %v1772 = vpop.xlane.xlu0 %1771
    %v1773 = vsel %vm1418, %v1762, -inf
    %1774 = vmax.xlane.f32.xlu0 %v1773
    %v1775 = vpop.xlane.xlu0 %1774
    %v1776 = vsub.f32 %v1754, %v1769
    %v1777 = vsub.f32 %v1757, %v1772
    %v1778 = vsub.f32 %v1762, %v1775
    %v1779 = vmul.f32 %v1776, 1.442695
    %v1780 = vpow.pop %v1779
    %v1781 = vmul.f32 %v1777, 1.442695
    %v1782 = vpow.pop %v1781
    %v1783 = vmul.f32 %v1778, 1.442695
    %v1784 = vpow.pop %v1783
    %v1785 = vsel %vm1411, %v1780, 0.0
    %1786 = vadd.xlane.f32.xlu0 %v1785
    %v1787 = vpop.xlane.xlu0 %1786
    %v1788 = vsel %vm1411, %v1782, 0.0
    %1789 = vadd.xlane.f32.xlu0 %v1788
    %v1790 = vpop.xlane.xlu0 %1789
    %v1791 = vsel %vm1418, %v1784, 0.0
    %1792 = vadd.xlane.f32.xlu0 %v1791
    %v1793 = vpop.xlane.xlu0 %1792
    %v1794 = vrcp.pop %v1787
    %v1795 = vrcp.pop %v1790
    %v1796 = vrcp.pop %v1793
    %v1797 = vmul.f32 %v1780, %v1794
    %v1798 = vmul.f32 %v1782, %v1795
    %v1799 = vmul.f32 %v1784, %v1796
    %v1800 = vpack.c.bf16 %v1798, %v1797
    %v1801 = vpack.c.bf16 %v1799, %v1799
    %1802 = vrot.lane.b32.xlu0 %v1699, 64
    %v1803 = vpop.permute.xlu0 %1802
    %1804 = vrot.lane.b32.xlu0 %v1700, 64
    %v1805 = vpop.permute.xlu0 %1804
    %v1808 = vsel %vm1411, %v1800, 0
    %v1811 = vsel %vm1411, %v1801, 0
    %v1814 = vand.u32 %v1805, %v1461
    %1816 = vmatprep.subr.bf16.mxu0 0
    %1817 = vmatpush1.bf16.msra.mxu0 %v1803
    %1818 = vmatprep.subr.bf16.mxu0 0
    %1819 = vmatpush1.bf16.msra.mxu0 %v1814
    %1820 = vmatprep.subr.bf16.mxu0 0
    %1821 = vmatpush1.bf16.msra.mxu0 0
    %1822 = vmatprep.subr.bf16.mxu0 0
    %1823 = vmatpush1.bf16.msra.mxu0 0
    %1824 = vmatprep.subr.bf16.mxu0 0
    %1825 = vmatpush1.bf16.msra.mxu0 0
    %1826 = vmatprep.subr.bf16.mxu0 0
    %1827 = vmatpush1.bf16.msra.mxu0 0
    %1828 = vmatprep.subr.bf16.mxu0 0
    %1829 = vmatpush1.bf16.msra.mxu0 0
    %1830 = vmatprep.subr.bf16.mxu0 0
    %1831 = vmatpush1.bf16.msra.mxu0 0
    %1832 = vmatprep.subr.bf16.mxu0 0
    %1833 = vmatpush1.bf16.msra.mxu0 0
    %1834 = vmatprep.subr.bf16.mxu0 0
    %1835 = vmatpush1.bf16.msra.mxu0 0
    %1836 = vmatprep.subr.bf16.mxu0 0
    %1837 = vmatpush1.bf16.msra.mxu0 0
    %1838 = vmatprep.subr.bf16.mxu0 0
    %1839 = vmatpush1.bf16.msra.mxu0 0
    %1840 = vmatprep.subr.bf16.mxu0 0
    %1841 = vmatpush1.bf16.msra.mxu0 0
    %1842 = vmatprep.subr.bf16.mxu0 0
    %1843 = vmatpush1.bf16.msra.mxu0 0
    %1844 = vmatprep.subr.bf16.mxu0 0
    %1845 = vmatpush1.bf16.msra.mxu0 0
    %1846 = vmatprep.subr.bf16.mxu0 0
    %1847 = vmatpush1.bf16.msra.mxu0 0
    %1848 = vmatprep.mubr.bf16.mxu0 0
    %1849 = vmatmul.mubr.bf16.gmra.mrb[0].mxu0 %v1808
    %v1850 = vpop.f32.mrb[0].mxu0
    %v1851 = vadd.f32 0.0, %v1850
    %v1852 = vpop.f32.mrb[0].mxu0
    %v1853 = vpop.f32.mrb[0].mxu0
    %v1854 = vadd.f32 0.0, %v1853
    %v1855 = vpop.f32.mrb[0].mxu0
    %1856 = vmatprep.mubr.bf16.mxu0 0
    %1857 = vmatmul.mubr.bf16.gmra.mrb[0].mxu0 %v1811
    %v1858 = vpop.f32.mrb[0].mxu0
    %v1859 = vadd.f32 0.0, %v1858
    %v1860 = vpop.f32.mrb[0].mxu0
    %v1861 = vpop.f32.mrb[0].mxu0
    %v1862 = vpop.f32.mrb[0].mxu0
    %1863 = vdwg.mxu0
    %1864 = vst.msk [vmem:[#allocation4 + $0x18] sm:$0xff] %vm1350, %v1851
    %1865 = vst.msk [vmem:[#allocation4 + $0x20] sm:$0xff] %vm1350, %v1854
    %1866 = vst.msk [vmem:[#allocation4 + $0x28] sm:$0x1] %vm1515, %v1859
    %1867 = vrot.lane.b32.xlu0 %v1699, 112
    %v1868 = vpop.permute.xlu0 %1867
    %1869 = vrot.lane.b32.xlu0 %v1700, 112
    %v1870 = vpop.permute.xlu0 %1869
    %1871 = vrot.lane.b32.xlu0 %v1699, 80
    %v1872 = vpop.permute.xlu0 %1871
    %1873 = vrot.lane.b32.xlu0 %v1700, 80
    %v1874 = vpop.permute.xlu0 %1873
    %v1876 = vsel %vm1350, %v1868, 0
    %v1879 = vsel %vm1350, %v1870, 0
    %v1882 = vsel %vm1350, %v1872, 0
    %v1885 = vsel %vm1350, %v1874, 0
    %1887 = vmatprep.subr.bf16.mxu0 0
    %1888 = vmatpush1.bf16.xpose.msra.mxu0 %v1882
    %1889 = vmatprep.subr.bf16.mxu0 0
    %1890 = vmatpush1.bf16.xpose.msra.mxu0 %v1885
    %1891 = vmatprep.subr.bf16.mxu0 0
    %1892 = vmatpush1.bf16.xpose.msra.mxu0 0
    %1893 = vmatprep.subr.bf16.mxu0 0
    %1894 = vmatpush1.bf16.xpose.msra.mxu0 0
    %1895 = vmatprep.subr.bf16.mxu0 0
    %1896 = vmatpush1.bf16.xpose.msra.mxu0 0
    %1897 = vmatprep.subr.bf16.mxu0 0
    %1898 = vmatpush1.bf16.xpose.msra.mxu0 0
    %1899 = vmatprep.subr.bf16.mxu0 0
    %1900 = vmatpush1.bf16.xpose.msra.mxu0 0
    %1901 = vmatprep.subr.bf16.mxu0 0
    %1902 = vmatpush1.bf16.xpose.msra.mxu0 0
    %1903 = vmatprep.subr.bf16.mxu0 0
    %1904 = vmatpush1.bf16.xpose.msra.mxu0 0
    %1905 = vmatprep.subr.bf16.mxu0 0
    %1906 = vmatpush1.bf16.xpose.msra.mxu0 0
    %1907 = vmatprep.subr.bf16.mxu0 0
    %1908 = vmatpush1.bf16.xpose.msra.mxu0 0
    %1909 = vmatprep.subr.bf16.mxu0 0
    %1910 = vmatpush1.bf16.xpose.msra.mxu0 0
    %1911 = vmatprep.subr.bf16.mxu0 0
    %1912 = vmatpush1.bf16.xpose.msra.mxu0 0
    %1913 = vmatprep.subr.bf16.mxu0 0
    %1914 = vmatpush1.bf16.xpose.msra.mxu0 0
    %1915 = vmatprep.subr.bf16.mxu0 0
    %1916 = vmatpush1.bf16.xpose.msra.mxu0 0
    %1917 = vmatprep.subr.bf16.mxu0 0
    %1918 = vmatpush1.bf16.xpose.msra.mxu0 0
    %1919 = vmatprep.mubr.bf16.mxu0 0
    %1920 = vmatmul.mubr.bf16.gmra.mrb[0].mxu0 %v1876
    %v1921 = vpop.f32.mrb[0].mxu0
    %v1922 = vadd.f32 0.0, %v1921
    %v1923 = vpop.f32.mrb[0].mxu0
    %v1924 = vpop.f32.mrb[0].mxu0
    %v1925 = vadd.f32 0.0, %v1924
    %v1926 = vpop.f32.mrb[0].mxu0
    %1927 = vmatprep.mubr.bf16.mxu0 0
    %1928 = vmatmul.mubr.bf16.gmra.mrb[0].mxu0 %v1879
    %v1929 = vpop.f32.mrb[0].mxu0
    %v1930 = vadd.f32 0.0, %v1929
    %v1931 = vpop.f32.mrb[0].mxu0
    %v1932 = vpop.f32.mrb[0].mxu0
    %v1933 = vpop.f32.mrb[0].mxu0
    %1934 = vdwg.mxu0
    %v1935 = vsel %vm1411, %v1922, -inf
    %1936 = vmax.xlane.f32.xlu0 %v1935
    %v1937 = vpop.xlane.xlu0 %1936
    %v1938 = vsel %vm1411, %v1925, -inf
    %1939 = vmax.xlane.f32.xlu0 %v1938
    %v1940 = vpop.xlane.xlu0 %1939
    %v1941 = vsel %vm1418, %v1930, -inf
    %1942 = vmax.xlane.f32.xlu0 %v1941
    %v1943 = vpop.xlane.xlu0 %1942
    %v1944 = vsub.f32 %v1922, %v1937
    %v1945 = vsub.f32 %v1925, %v1940
    %v1946 = vsub.f32 %v1930, %v1943
    %v1947 = vmul.f32 %v1944, 1.442695
    %v1948 = vpow.pop %v1947
    %v1949 = vmul.f32 %v1945, 1.442695
    %v1950 = vpow.pop %v1949
    %v1951 = vmul.f32 %v1946, 1.442695
    %v1952 = vpow.pop %v1951
    %v1953 = vsel %vm1411, %v1948, 0.0
    %1954 = vadd.xlane.f32.xlu0 %v1953
    %v1955 = vpop.xlane.xlu0 %1954
    %v1956 = vsel %vm1411, %v1950, 0.0
    %1957 = vadd.xlane.f32.xlu0 %v1956
    %v1958 = vpop.xlane.xlu0 %1957
    %v1959 = vsel %vm1418, %v1952, 0.0
    %1960 = vadd.xlane.f32.xlu0 %v1959
    %v1961 = vpop.xlane.xlu0 %1960
    %v1962 = vrcp.pop %v1955
    %v1963 = vrcp.pop %v1958
    %v1964 = vrcp.pop %v1961
    %v1965 = vmul.f32 %v1948, %v1962
    %v1966 = vmul.f32 %v1950, %v1963
    %v1967 = vmul.f32 %v1952, %v1964
    %v1968 = vpack.c.bf16 %v1966, %v1965
    %v1969 = vpack.c.bf16 %v1967, %v1967
    %1970 = vrot.lane.b32.xlu0 %v1699, 48
    %v1971 = vpop.permute.xlu0 %1970
    %1972 = vrot.lane.b32.xlu0 %v1700, 48
    %v1973 = vpop.permute.xlu0 %1972
    %v1976 = vsel %vm1411, %v1968, 0
    %v1979 = vsel %vm1411, %v1969, 0
    %v1982 = vand.u32 %v1973, %v1461
    %1984 = vmatprep.subr.bf16.mxu0 0
    %1985 = vmatpush1.bf16.msra.mxu0 %v1971
    %1986 = vmatprep.subr.bf16.mxu0 0
    %1987 = vmatpush1.bf16.msra.mxu0 %v1982
    %1988 = vmatprep.subr.bf16.mxu0 0
    %1989 = vmatpush1.bf16.msra.mxu0 0
    %1990 = vmatprep.subr.bf16.mxu0 0
    %1991 = vmatpush1.bf16.msra.mxu0 0
    %1992 = vmatprep.subr.bf16.mxu0 0
    %1993 = vmatpush1.bf16.msra.mxu0 0
    %1994 = vmatprep.subr.bf16.mxu0 0
    %1995 = vmatpush1.bf16.msra.mxu0 0
    %1996 = vmatprep.subr.bf16.mxu0 0
    %1997 = vmatpush1.bf16.msra.mxu0 0
    %1998 = vmatprep.subr.bf16.mxu0 0
    %1999 = vmatpush1.bf16.msra.mxu0 0
    %2000 = vmatprep.subr.bf16.mxu0 0
    %2001 = vmatpush1.bf16.msra.mxu0 0
    %2002 = vmatprep.subr.bf16.mxu0 0
    %2003 = vmatpush1.bf16.msra.mxu0 0
    %2004 = vmatprep.subr.bf16.mxu0 0
    %2005 = vmatpush1.bf16.msra.mxu0 0
    %2006 = vmatprep.subr.bf16.mxu0 0
    %2007 = vmatpush1.bf16.msra.mxu0 0
    %2008 = vmatprep.subr.bf16.mxu0 0
    %2009 = vmatpush1.bf16.msra.mxu0 0
    %2010 = vmatprep.subr.bf16.mxu0 0
    %2011 = vmatpush1.bf16.msra.mxu0 0
    %2012 = vmatprep.subr.bf16.mxu0 0
    %2013 = vmatpush1.bf16.msra.mxu0 0
    %2014 = vmatprep.subr.bf16.mxu0 0
    %2015 = vmatpush1.bf16.msra.mxu0 0
    %2016 = vmatprep.mubr.bf16.mxu0 0
    %2017 = vmatmul.mubr.bf16.gmra.mrb[0].mxu0 %v1976
    %v2018 = vpop.f32.mrb[0].mxu0
    %v2019 = vadd.f32 0.0, %v2018
    %v2020 = vpop.f32.mrb[0].mxu0
    %v2021 = vpop.f32.mrb[0].mxu0
    %v2022 = vadd.f32 0.0, %v2021
    %v2023 = vpop.f32.mrb[0].mxu0
    %2024 = vmatprep.mubr.bf16.mxu0 0
    %2025 = vmatmul.mubr.bf16.gmra.mrb[0].mxu0 %v1979
    %v2026 = vpop.f32.mrb[0].mxu0
    %v2027 = vadd.f32 0.0, %v2026
    %v2028 = vpop.f32.mrb[0].mxu0
    %v2029 = vpop.f32.mrb[0].mxu0
    %v2030 = vpop.f32.mrb[0].mxu0
    %2031 = vdwg.mxu0
    %2035 = vrot.lane.b32.xlu0 %v2019, 16
    %v2036 = vpop.permute.xlu0 %2035
    %2037 = vrot.lane.b32.xlu0 %v2022, 16
    %v2038 = vpop.permute.xlu0 %2037
    %2039 = vrot.lane.b32.xlu0 %v2027, 16
    %v2040 = vpop.permute.xlu0 %2039
    %2044 = vst.msk [vmem:[#allocation4 + $0x18] sm:$0xff] %vm1694, %v2036
    %2045 = vst.msk [vmem:[#allocation4 + $0x20] sm:$0xff] %vm1694, %v2038
    %2046 = vst.msk [vmem:[#allocation4 + $0x28] sm:$0x1] %vm1697, %v2040
    %v2047 = vld [vmem:[#allocation4] sm:$0xff]
    %v2048 = vld [vmem:[#allocation4 + $0x8] sm:$0xff]
    %v2049 = vld [vmem:[#allocation4 + $0x10] sm:$0xff]
    %v2050 = vld [vmem:[#allocation4 + $0x18] sm:$0xff]
    %v2051 = vld [vmem:[#allocation4 + $0x20] sm:$0xff]
    %v2052 = vld [vmem:[#allocation4 + $0x28] sm:$0xff]
    %v2053 = vld [vmem:[%s77] sm:$0xf]
    %v2054 = vld [vmem:[%s77 + $0x4] sm:$0xf]
    %v2055 = vld [vmem:[%s77 + $0x8] sm:$0xf]
    %v2056 = vld [vmem:[%s77 + $0xc] sm:$0xf]
    %v2057 = vpack.c.bf16 %v2048, %v2047
    %v2058 = vpack.c.bf16 %v2050, %v2049
    %v2059 = vpack.c.bf16 %v2052, %v2051
    %v2064 = vunpack.c.l.b16 %v2053
    %v2065 = vunpack.c.l.b16 %v2054
    %v2066 = vunpack.c.l.b16 %v2055
    %v2067 = vunpack.c.l.b16 %v2056
    %v2068 = vpack.c.b16 %v2065, %v2064
    %v2069 = vpack.c.b16 %v2067, %v2066
    %v2073 = vsel %vm611, %v2057, 0
    %v2076 = vsel %vm611, %v2058, 0
    %v2079 = vsel %vm611, %v2059, 0
    %2081 = vmatprep.subr.bf16.mxu0 0
    %2082 = vmatpush1.bf16.msra.mxu0 %v2068
    %2083 = vmatprep.subr.bf16.mxu0 0
    %2084 = vmatpush1.bf16.msra.mxu0 %v2069
    %2085 = vmatprep.subr.bf16.mxu0 0
    %2086 = vmatpush1.bf16.msra.mxu0 0
    %2087 = vmatprep.subr.bf16.mxu0 0
    %2088 = vmatpush1.bf16.msra.mxu0 0
    %2089 = vmatprep.subr.bf16.mxu0 0
    %2090 = vmatpush1.bf16.msra.mxu0 0
    %2091 = vmatprep.subr.bf16.mxu0 0
    %2092 = vmatpush1.bf16.msra.mxu0 0
    %2093 = vmatprep.subr.bf16.mxu0 0
    %2094 = vmatpush1.bf16.msra.mxu0 0
    %2095 = vmatprep.subr.bf16.mxu0 0
    %2096 = vmatpush1.bf16.msra.mxu0 0
    %2097 = vmatprep.subr.bf16.mxu0 0
    %2098 = vmatpush1.bf16.msra.mxu0 0
    %2099 = vmatprep.subr.bf16.mxu0 0
    %2100 = vmatpush1.bf16.msra.mxu0 0
    %2101 = vmatprep.subr.bf16.mxu0 0
    %2102 = vmatpush1.bf16.msra.mxu0 0
    %2103 = vmatprep.subr.bf16.mxu0 0
    %2104 = vmatpush1.bf16.msra.mxu0 0
    %2105 = vmatprep.subr.bf16.mxu0 0
    %2106 = vmatpush1.bf16.msra.mxu0 0
    %2107 = vmatprep.subr.bf16.mxu0 0
    %2108 = vmatpush1.bf16.msra.mxu0 0
    %2109 = vmatprep.subr.bf16.mxu0 0
    %2110 = vmatpush1.bf16.msra.mxu0 0
    %2111 = vmatprep.subr.bf16.mxu0 0
    %2112 = vmatpush1.bf16.msra.mxu0 0
    %2113 = vmatprep.mubr.bf16.mxu0 0
    %2114 = vmatmul.mubr.bf16.gmra.mrb[0].mxu0 %v2073
    %v2115 = vpop.f32.mrb[0].mxu0
    %v2116 = vadd.f32 0.0, %v2115
    %v2117 = vpop.f32.mrb[0].mxu0
    %v2118 = vpop.f32.mrb[0].mxu0
    %v2119 = vadd.f32 0.0, %v2118
    %v2120 = vpop.f32.mrb[0].mxu0
    %2121 = vmatprep.mubr.bf16.mxu0 0
    %2122 = vmatmul.mubr.bf16.gmra.mrb[0].mxu0 %v2076
    %v2123 = vpop.f32.mrb[0].mxu0
    %v2124 = vadd.f32 0.0, %v2123
    %v2125 = vpop.f32.mrb[0].mxu0
    %v2126 = vpop.f32.mrb[0].mxu0
    %v2127 = vadd.f32 0.0, %v2126
    %v2128 = vpop.f32.mrb[0].mxu0
    %2129 = vmatprep.mubr.bf16.mxu0 0
    %2130 = vmatmul.mubr.bf16.gmra.mrb[0].mxu0 %v2079
    %v2131 = vpop.f32.mrb[0].mxu0
    %v2132 = vadd.f32 0.0, %v2131
    %v2133 = vpop.f32.mrb[0].mxu0
    %v2134 = vpop.f32.mrb[0].mxu0
    %v2135 = vadd.f32 0.0, %v2134
    %v2136 = vpop.f32.mrb[0].mxu0
    %2137 = vdwg.mxu0
    %v2138 = vadd.f32 %v1140, %v2116
    %v2139 = vadd.f32 %v1141, %v2119
    %v2140 = vadd.f32 %v1142, %v2124
    %v2141 = vadd.f32 %v1143, %v2127
    %v2142 = vadd.f32 %v1144, %v2132
    %v2143 = vadd.f32 %v1145, %v2135
    %v2144 = vld [vmem:[#allocation13] sm:$0x1]
    %v2146 = vlaneseq
    %v2147 = vshrl.u32 %v2146, 7
    %v2148 = vsub.s32 0, %v2147
    %v2149 = vrot.slane %v2144, %v2148
    %v2151 = vadd.f32 %v2138, %v2149
    %v2152 = vadd.f32 %v2139, %v2149
    %v2153 = vadd.f32 %v2140, %v2149
    %v2154 = vadd.f32 %v2141, %v2149
    %v2155 = vadd.f32 %v2142, %v2149
    %v2156 = vadd.f32 %v2143, %v2149
    %v2157 = vld [vmem:[#allocation23] sm:$0x1]
    %v2158 = vld [vmem:[#allocation22] sm:$0x1]
    %v2159 = vsel %vm611, %v2151, 0.0
    %2160 = vadd.xlane.f32.xlu0 %v2159
    %v2161 = vpop.xlane.xlu0 %2160
    %v2162 = vsel %vm611, %v2152, 0.0
    %2163 = vadd.xlane.f32.xlu0 %v2162
    %v2164 = vpop.xlane.xlu0 %2163
    %v2165 = vsel %vm611, %v2153, 0.0
    %2166 = vadd.xlane.f32.xlu0 %v2165
    %v2167 = vpop.xlane.xlu0 %2166
    %v2168 = vsel %vm611, %v2154, 0.0
    %2169 = vadd.xlane.f32.xlu0 %v2168
    %v2170 = vpop.xlane.xlu0 %2169
    %v2171 = vsel %vm611, %v2155, 0.0
    %2172 = vadd.xlane.f32.xlu0 %v2171
    %v2173 = vpop.xlane.xlu0 %2172
    %v2174 = vsel %vm611, %v2156, 0.0
    %2175 = vadd.xlane.f32.xlu0 %v2174
    %v2176 = vpop.xlane.xlu0 %2175
    %v2177 = vmul.f32 %v2161, %v808
    %v2178 = vmul.f32 %v2164, %v808
    %v2179 = vmul.f32 %v2167, %v808
    %v2180 = vmul.f32 %v2170, %v808
    %v2181 = vmul.f32 %v2173, %v808
    %v2182 = vmul.f32 %v2176, %v808
    %v2183 = vsub.f32 %v2151, %v2177
    %v2184 = vsub.f32 %v2152, %v2178
    %v2185 = vsub.f32 %v2153, %v2179
    %v2186 = vsub.f32 %v2154, %v2180
    %v2187 = vsub.f32 %v2155, %v2181
    %v2188 = vsub.f32 %v2156, %v2182
    %v2189 = vmul.f32 %v2183, %v2183
    %v2190 = vmul.f32 %v2184, %v2184
    %v2191 = vmul.f32 %v2185, %v2185
    %v2192 = vmul.f32 %v2186, %v2186
    %v2193 = vmul.f32 %v2187, %v2187
    %v2194 = vmul.f32 %v2188, %v2188
    %v2195 = vsel %vm611, %v2189, 0.0
    %2196 = vadd.xlane.f32.xlu0 %v2195
    %v2197 = vpop.xlane.xlu0 %2196
    %v2198 = vsel %vm611, %v2190, 0.0
    %2199 = vadd.xlane.f32.xlu0 %v2198
    %v2200 = vpop.xlane.xlu0 %2199
    %v2201 = vsel %vm611, %v2191, 0.0
    %2202 = vadd.xlane.f32.xlu0 %v2201
    %v2203 = vpop.xlane.xlu0 %2202
    %v2204 = vsel %vm611, %v2192, 0.0
    %2205 = vadd.xlane.f32.xlu0 %v2204
    %v2206 = vpop.xlane.xlu0 %2205
    %v2207 = vsel %vm611, %v2193, 0.0
    %2208 = vadd.xlane.f32.xlu0 %v2207
    %v2209 = vpop.xlane.xlu0 %2208
    %v2210 = vsel %vm611, %v2194, 0.0
    %2211 = vadd.xlane.f32.xlu0 %v2210
    %v2212 = vpop.xlane.xlu0 %2211
    %v2213 = vmul.f32 %v2197, %v808
    %v2214 = vmul.f32 %v2200, %v808
    %v2215 = vmul.f32 %v2203, %v808
    %v2216 = vmul.f32 %v2206, %v808
    %v2217 = vmul.f32 %v2209, %v808
    %v2218 = vmul.f32 %v2212, %v808
    %v2219 = vadd.f32 %v2213, 1e-05
    %v2220 = vadd.f32 %v2214, 1e-05
    %v2221 = vadd.f32 %v2215, 1e-05
    %v2222 = vadd.f32 %v2216, 1e-05
    %v2223 = vadd.f32 %v2217, 1e-05
    %v2224 = vadd.f32 %v2218, 1e-05
    %v2225 = vrsqrt.pop %v2219
    %v2226 = vrsqrt.pop %v2220
    %v2227 = vrsqrt.pop %v2221
    %v2228 = vrsqrt.pop %v2222
    %v2229 = vrsqrt.pop %v2223
    %v2230 = vrsqrt.pop %v2224
    %v2231 = vmul.f32 %v2183, %v2225
    %v2232 = vmul.f32 %v2184, %v2226
    %v2233 = vmul.f32 %v2185, %v2227
    %v2234 = vmul.f32 %v2186, %v2228
    %v2235 = vmul.f32 %v2187, %v2229
    %v2236 = vmul.f32 %v2188, %v2230
    %v2238 = vlaneseq
    %v2239 = vshrl.u32 %v2238, 7
    %v2240 = vsub.s32 0, %v2239
    %v2241 = vrot.slane %v2157, %v2240
    %v2243 = vmul.f32 %v2231, %v2241
    %v2244 = vmul.f32 %v2232, %v2241
    %v2245 = vmul.f32 %v2233, %v2241
    %v2246 = vmul.f32 %v2234, %v2241
    %v2247 = vmul.f32 %v2235, %v2241
    %v2248 = vmul.f32 %v2236, %v2241
    %v2250 = vlaneseq
    %v2251 = vshrl.u32 %v2250, 7
    %v2252 = vsub.s32 0, %v2251
    %v2253 = vrot.slane %v2158, %v2252
    %v2255 = vadd.f32 %v2243, %v2253
    %v2256 = vadd.f32 %v2244, %v2253
    %v2257 = vadd.f32 %v2245, %v2253
    %v2258 = vadd.f32 %v2246, %v2253
    %v2259 = vadd.f32 %v2247, %v2253
    %v2260 = vadd.f32 %v2248, %v2253
    %v2261 = vld [vmem:[%s89] sm:$0xf]
    %v2262 = vld [vmem:[%s89 + $0x4] sm:$0xf]
    %v2263 = vld [vmem:[%s89 + $0x8] sm:$0xf]
    %v2264 = vld [vmem:[%s89 + $0xc] sm:$0xf]
    %v2265 = vpack.c.bf16 %v2256, %v2255
    %v2266 = vpack.c.bf16 %v2258, %v2257
    %v2267 = vpack.c.bf16 %v2260, %v2259
    %v2268 = vld [vmem:[#allocation19] sm:$0x1]
    %v2270 = vlaneseq
    %v2271 = vshrl.u32 %v2270, 7
    %v2272 = vsub.s32 0, %v2271
    %v2273 = vrot.slane %v2268, %v2272
    %v2279 = vunpack.c.l.b16 %v2261
    %v2280 = vunpack.c.l.b16 %v2262
    %v2281 = vunpack.c.l.b16 %v2263
    %v2282 = vunpack.c.l.b16 %v2264
    %v2283 = vpack.c.b16 %v2280, %v2279
    %v2284 = vpack.c.b16 %v2282, %v2281
    %v2288 = vsel %vm611, %v2265, 0
    %v2291 = vsel %vm611, %v2266, 0
    %v2294 = vsel %vm611, %v2267, 0
    %2296 = vmatprep.subr.bf16.mxu0 0
    %2297 = vmatpush1.bf16.msra.mxu0 %v2283
    %2298 = vmatprep.subr.bf16.mxu0 0
    %2299 = vmatpush1.bf16.msra.mxu0 %v2284
    %2300 = vmatprep.subr.bf16.mxu0 0
    %2301 = vmatpush1.bf16.msra.mxu0 0
    %2302 = vmatprep.subr.bf16.mxu0 0
    %2303 = vmatpush1.bf16.msra.mxu0 0
    %2304 = vmatprep.subr.bf16.mxu0 0
    %2305 = vmatpush1.bf16.msra.mxu0 0
    %2306 = vmatprep.subr.bf16.mxu0 0
    %2307 = vmatpush1.bf16.msra.mxu0 0
    %2308 = vmatprep.subr.bf16.mxu0 0
    %2309 = vmatpush1.bf16.msra.mxu0 0
    %2310 = vmatprep.subr.bf16.mxu0 0
    %2311 = vmatpush1.bf16.msra.mxu0 0
    %2312 = vmatprep.subr.bf16.mxu0 0
    %2313 = vmatpush1.bf16.msra.mxu0 0
    %2314 = vmatprep.subr.bf16.mxu0 0
    %2315 = vmatpush1.bf16.msra.mxu0 0
    %2316 = vmatprep.subr.bf16.mxu0 0
    %2317 = vmatpush1.bf16.msra.mxu0 0
    %2318 = vmatprep.subr.bf16.mxu0 0
    %2319 = vmatpush1.bf16.msra.mxu0 0
    %2320 = vmatprep.subr.bf16.mxu0 0
    %2321 = vmatpush1.bf16.msra.mxu0 0
    %2322 = vmatprep.subr.bf16.mxu0 0
    %2323 = vmatpush1.bf16.msra.mxu0 0
    %2324 = vmatprep.subr.bf16.mxu0 0
    %2325 = vmatpush1.bf16.msra.mxu0 0
    %2326 = vmatprep.subr.bf16.mxu0 0
    %2327 = vmatpush1.bf16.msra.mxu0 0
    %2328 = vmatprep.mubr.bf16.mxu0 0
    %2329 = vmatmul.mubr.bf16.gmra.mrb[0].mxu0 %v2288
    %v2330 = vpop.f32.mrb[0].mxu0
    %v2331 = vadd.f32 %v2273, %v2330
    %v2332 = vpop.f32.mrb[0].mxu0
    %v2333 = vpop.f32.mrb[0].mxu0
    %v2334 = vadd.f32 %v2273, %v2333
    %v2335 = vpop.f32.mrb[0].mxu0
    %2336 = vmatprep.mubr.bf16.mxu0 0
    %2337 = vmatmul.mubr.bf16.gmra.mrb[0].mxu0 %v2291
    %v2338 = vpop.f32.mrb[0].mxu0
    %v2339 = vadd.f32 %v2273, %v2338
    %v2340 = vpop.f32.mrb[0].mxu0
    %v2341 = vpop.f32.mrb[0].mxu0
    %v2342 = vadd.f32 %v2273, %v2341
    %v2343 = vpop.f32.mrb[0].mxu0
    %2344 = vmatprep.mubr.bf16.mxu0 0
    %2345 = vmatmul.mubr.bf16.gmra.mrb[0].mxu0 %v2294
    %v2346 = vpop.f32.mrb[0].mxu0
    %v2347 = vadd.f32 %v2273, %v2346
    %v2348 = vpop.f32.mrb[0].mxu0
    %v2349 = vpop.f32.mrb[0].mxu0
    %v2350 = vadd.f32 %v2273, %v2349
    %v2351 = vpop.f32.mrb[0].mxu0
    %2352 = vdwg.mxu0
    %v2353 = vmul.f32 %v2331, 0.5
    %v2354 = vmul.f32 %v2334, 0.5
    %v2355 = vmul.f32 %v2339, 0.5
    %v2356 = vmul.f32 %v2342, 0.5
    %v2357 = vmul.f32 %v2347, 0.5
    %v2358 = vmul.f32 %v2350, 0.5
    %v2359 = vmul.f32 %v2331, 0.70710677
    %v2360 = vmul.f32 %v2334, 0.70710677
    %v2361 = vmul.f32 %v2339, 0.70710677
    %v2362 = vmul.f32 %v2342, 0.70710677
    %v2363 = vmul.f32 %v2347, 0.70710677
    %v2364 = vmul.f32 %v2350, 0.70710677
    %v2365 = verf.f32.pop %v2359
    %v2366 = verf.f32.pop %v2360
    %v2367 = verf.f32.pop %v2361
    %v2368 = verf.f32.pop %v2362
    %v2369 = verf.f32.pop %v2363
    %v2370 = verf.f32.pop %v2364
    %v2371 = vadd.f32 %v2365, 1.0
    %v2372 = vadd.f32 %v2366, 1.0
    %v2373 = vadd.f32 %v2367, 1.0
    %v2374 = vadd.f32 %v2368, 1.0
    %v2375 = vadd.f32 %v2369, 1.0
    %v2376 = vadd.f32 %v2370, 1.0
    %v2377 = vmul.f32 %v2353, %v2371
    %v2378 = vmul.f32 %v2354, %v2372
    %v2379 = vmul.f32 %v2355, %v2373
    %v2380 = vmul.f32 %v2356, %v2374
    %v2381 = vmul.f32 %v2357, %v2375
    %v2382 = vmul.f32 %v2358, %v2376
    %v2383 = vld [vmem:[%s91] sm:$0xf]
    %v2384 = vld [vmem:[%s91 + $0x4] sm:$0xf]
    %v2385 = vld [vmem:[%s91 + $0x8] sm:$0xf]
    %v2386 = vld [vmem:[%s91 + $0xc] sm:$0xf]
    %v2387 = vld [vmem:[%s91 + $0x10] sm:$0xf]
    %v2388 = vld [vmem:[%s91 + $0x14] sm:$0xf]
    %v2389 = vld [vmem:[%s91 + $0x18] sm:$0xf]
    %v2390 = vld [vmem:[%s91 + $0x1c] sm:$0xf]
    %v2391 = vpack.c.bf16 %v2378, %v2377
    %v2392 = vpack.c.bf16 %v2380, %v2379
    %v2393 = vpack.c.bf16 %v2382, %v2381
    %v2402 = vunpack.c.l.b16 %v2383
    %v2403 = vunpack.c.l.b16 %v2384
    %v2404 = vunpack.c.l.b16 %v2385
    %v2405 = vunpack.c.l.b16 %v2386
    %v2406 = vunpack.c.l.b16 %v2387
    %v2407 = vunpack.c.l.b16 %v2388
    %v2408 = vunpack.c.l.b16 %v2389
    %v2409 = vunpack.c.l.b16 %v2390
    %v2410 = vpack.c.b16 %v2403, %v2402
    %v2411 = vpack.c.b16 %v2405, %v2404
    %v2412 = vpack.c.b16 %v2407, %v2406
    %v2413 = vpack.c.b16 %v2409, %v2408
    %v2419 = vsel %vm900, %v2391, 0
    %v2422 = vsel %vm900, %v2392, 0
    %v2425 = vsel %vm900, %v2393, 0
    %2427 = vmatprep.subr.bf16.mxu0 0
    %2428 = vmatpush1.bf16.msra.mxu0 %v2410
    %2429 = vmatprep.subr.bf16.mxu0 0
    %2430 = vmatpush1.bf16.msra.mxu0 %v2411
    %2431 = vmatprep.subr.bf16.mxu0 0
    %2432 = vmatpush1.bf16.msra.mxu0 %v2412
    %2433 = vmatprep.subr.bf16.mxu0 0
    %2434 = vmatpush1.bf16.msra.mxu0 %v2413
    %2435 = vmatprep.subr.bf16.mxu0 0
    %2436 = vmatpush1.bf16.msra.mxu0 0
    %2437 = vmatprep.subr.bf16.mxu0 0
    %2438 = vmatpush1.bf16.msra.mxu0 0
    %2439 = vmatprep.subr.bf16.mxu0 0
    %2440 = vmatpush1.bf16.msra.mxu0 0
    %2441 = vmatprep.subr.bf16.mxu0 0
    %2442 = vmatpush1.bf16.msra.mxu0 0
    %2443 = vmatprep.subr.bf16.mxu0 0
    %2444 = vmatpush1.bf16.msra.mxu0 0
    %2445 = vmatprep.subr.bf16.mxu0 0
    %2446 = vmatpush1.bf16.msra.mxu0 0
    %2447 = vmatprep.subr.bf16.mxu0 0
    %2448 = vmatpush1.bf16.msra.mxu0 0
    %2449 = vmatprep.subr.bf16.mxu0 0
    %2450 = vmatpush1.bf16.msra.mxu0 0
    %2451 = vmatprep.subr.bf16.mxu0 0
    %2452 = vmatpush1.bf16.msra.mxu0 0
    %2453 = vmatprep.subr.bf16.mxu0 0
    %2454 = vmatpush1.bf16.msra.mxu0 0
    %2455 = vmatprep.subr.bf16.mxu0 0
    %2456 = vmatpush1.bf16.msra.mxu0 0
    %2457 = vmatprep.subr.bf16.mxu0 0
    %2458 = vmatpush1.bf16.msra.mxu0 0
    %2459 = vmatprep.mubr.bf16.mxu0 0
    %2460 = vmatmul.mubr.bf16.gmra.mrb[0].mxu0 %v2419
    %v2461 = vpop.f32.mrb[0].mxu0
    %v2462 = vadd.f32 0.0, %v2461
    %v2463 = vpop.f32.mrb[0].mxu0
    %v2464 = vpop.f32.mrb[0].mxu0
    %v2465 = vadd.f32 0.0, %v2464
    %v2466 = vpop.f32.mrb[0].mxu0
    %2467 = vmatprep.mubr.bf16.mxu0 0
    %2468 = vmatmul.mubr.bf16.gmra.mrb[0].mxu0 %v2422
    %v2469 = vpop.f32.mrb[0].mxu0
    %v2470 = vadd.f32 0.0, %v2469
    %v2471 = vpop.f32.mrb[0].mxu0
    %v2472 = vpop.f32.mrb[0].mxu0
    %v2473 = vadd.f32 0.0, %v2472
    %v2474 = vpop.f32.mrb[0].mxu0
    %2475 = vmatprep.mubr.bf16.mxu0 0
    %2476 = vmatmul.mubr.bf16.gmra.mrb[0].mxu0 %v2425
    %v2477 = vpop.f32.mrb[0].mxu0
    %v2478 = vadd.f32 0.0, %v2477
    %v2479 = vpop.f32.mrb[0].mxu0
    %v2480 = vpop.f32.mrb[0].mxu0
    %v2481 = vadd.f32 0.0, %v2480
    %v2482 = vpop.f32.mrb[0].mxu0
    %2483 = vdwg.mxu0
    %v2484 = vadd.f32 %v2151, %v2462
    %v2485 = vadd.f32 %v2152, %v2465
    %v2486 = vadd.f32 %v2153, %v2470
    %v2487 = vadd.f32 %v2154, %v2473
    %v2488 = vadd.f32 %v2155, %v2478
    %v2489 = vadd.f32 %v2156, %v2481
    %v2490 = vld [vmem:[#allocation20] sm:$0x1]
    %v2492 = vlaneseq
    %v2493 = vshrl.u32 %v2492, 7
    %v2494 = vsub.s32 0, %v2493
    %v2495 = vrot.slane %v2490, %v2494
    %v2497 = vadd.f32 %v2484, %v2495
    %v2498 = vadd.f32 %v2485, %v2495
    %v2499 = vadd.f32 %v2486, %v2495
    %v2500 = vadd.f32 %v2487, %v2495
    %v2501 = vadd.f32 %v2488, %v2495
    %v2502 = vadd.f32 %v2489, %v2495
    %2503 = vst.msk [vmem:[#allocation2] sm:$0xff] %vm611, %v2497
    %2504 = vst.msk [vmem:[#allocation2 + $0x8] sm:$0xff] %vm611, %v2498
    %2505 = vst.msk [vmem:[#allocation2 + $0x10] sm:$0xff] %vm611, %v2499
    %2506 = vst.msk [vmem:[#allocation2 + $0x18] sm:$0xff] %vm611, %v2500
    %2507 = vst.msk [vmem:[#allocation2 + $0x20] sm:$0xff] %vm611, %v2501
    %2508 = vst.msk [vmem:[#allocation2 + $0x28] sm:$0xff] %vm611, %v2502
    %v2509 = vld [vmem:[#allocation3] sm:$0xff]
    %v2510 = vld [vmem:[#allocation3 + $0x8] sm:$0xff]
    %v2511 = vld [vmem:[%s51] sm:$0x1]
    %v2512 = vld [vmem:[%s49] sm:$0x1]
    %v2513 = vsel %vm618, %v2509, 0.0
    %2514 = vadd.xlane.f32.xlu0 %v2513
    %v2515 = vpop.xlane.xlu0 %2514
    %v2516 = vsel %vm618, %v2510, 0.0
    %2517 = vadd.xlane.f32.xlu0 %v2516
    %v2518 = vpop.xlane.xlu0 %2517
    %v2519 = vmul.f32 %v2515, %v645
    %v2520 = vmul.f32 %v2518, %v645
    %v2521 = vsub.f32 %v2509, %v2519
    %v2522 = vsub.f32 %v2510, %v2520
    %v2523 = vmul.f32 %v2521, %v2521
    %v2524 = vmul.f32 %v2522, %v2522
    %v2525 = vsel %vm618, %v2523, 0.0
    %2526 = vadd.xlane.f32.xlu0 %v2525
    %v2527 = vpop.xlane.xlu0 %2526
    %v2528 = vsel %vm618, %v2524, 0.0
    %2529 = vadd.xlane.f32.xlu0 %v2528
    %v2530 = vpop.xlane.xlu0 %2529
    %v2531 = vmul.f32 %v2527, %v645
    %v2532 = vmul.f32 %v2530, %v645
    %v2533 = vadd.f32 %v2531, 1e-05
    %v2534 = vadd.f32 %v2532, 1e-05
    %v2535 = vrsqrt.pop %v2533
    %v2536 = vrsqrt.pop %v2534
    %v2537 = vmul.f32 %v2521, %v2535
    %v2538 = vmul.f32 %v2522, %v2536
    %v2540 = vlaneseq
    %v2541 = vshrl.u32 %v2540, 7
    %v2542 = vsub.s32 0, %v2541
    %v2543 = vrot.slane %v2511, %v2542
    %v2545 = vmul.f32 %v2537, %v2543
    %v2546 = vmul.f32 %v2538, %v2543
    %v2548 = vlaneseq
    %v2549 = vshrl.u32 %v2548, 7
    %v2550 = vsub.s32 0, %v2549
    %v2551 = vrot.slane %v2512, %v2550
    %v2553 = vadd.f32 %v2545, %v2551
    %v2554 = vadd.f32 %v2546, %v2551
    %v2555 = vld [vmem:[%s55] sm:$0xf]
    %v2556 = vld [vmem:[%s55 + $0x4] sm:$0xf]
    %v2557 = vld [vmem:[%s55 + $0x8] sm:$0xf]
    %v2558 = vld [vmem:[%s55 + $0xc] sm:$0xf]
    %v2559 = vld [vmem:[%s55 + $0x10] sm:$0xf]
    %v2560 = vld [vmem:[%s55 + $0x14] sm:$0xf]
    %v2561 = vpack.c.bf16 %v2554, %v2553
    %v2562 = vld [vmem:[%s47] sm:$0x1]
    %v2564 = vlaneseq
    %v2565 = vshrl.u32 %v2564, 7
    %v2566 = vsub.s32 0, %v2565
    %v2567 = vrot.slane %v2562, %v2566
    %v2575 = vunpack.c.l.b16 %v2555
    %v2576 = vunpack.c.l.b16 %v2556
    %v2577 = vunpack.c.l.b16 %v2557
    %v2578 = vunpack.c.l.b16 %v2558
    %v2579 = vunpack.c.l.b16 %v2559
    %v2580 = vunpack.c.l.b16 %v2560
    %v2581 = vpack.c.b16 %v2576, %v2575
    %v2582 = vpack.c.b16 %v2578, %v2577
    %v2583 = vpack.c.b16 %v2580, %v2579
    %v2588 = vsel %vm618, %v2561, 0
    %2590 = vmatprep.subr.bf16.mxu0 0
    %2591 = vmatpush1.bf16.msra.mxu0 %v2581
    %2592 = vmatprep.subr.bf16.mxu0 0
    %2593 = vmatpush1.bf16.msra.mxu0 %v2582
    %2594 = vmatprep.subr.bf16.mxu0 0
    %2595 = vmatpush1.bf16.msra.mxu0 %v2583
    %2596 = vmatprep.subr.bf16.mxu0 0
    %2597 = vmatpush1.bf16.msra.mxu0 0
    %2598 = vmatprep.subr.bf16.mxu0 0
    %2599 = vmatpush1.bf16.msra.mxu0 0
    %2600 = vmatprep.subr.bf16.mxu0 0
    %2601 = vmatpush1.bf16.msra.mxu0 0
    %2602 = vmatprep.subr.bf16.mxu0 0
    %2603 = vmatpush1.bf16.msra.mxu0 0
    %2604 = vmatprep.subr.bf16.mxu0 0
    %2605 = vmatpush1.bf16.msra.mxu0 0
    %2606 = vmatprep.subr.bf16.mxu0 0
    %2607 = vmatpush1.bf16.msra.mxu0 0
    %2608 = vmatprep.subr.bf16.mxu0 0
    %2609 = vmatpush1.bf16.msra.mxu0 0
    %2610 = vmatprep.subr.bf16.mxu0 0
    %2611 = vmatpush1.bf16.msra.mxu0 0
    %2612 = vmatprep.subr.bf16.mxu0 0
    %2613 = vmatpush1.bf16.msra.mxu0 0
    %2614 = vmatprep.subr.bf16.mxu0 0
    %2615 = vmatpush1.bf16.msra.mxu0 0
    %2616 = vmatprep.subr.bf16.mxu0 0
    %2617 = vmatpush1.bf16.msra.mxu0 0
    %2618 = vmatprep.subr.bf16.mxu0 0
    %2619 = vmatpush1.bf16.msra.mxu0 0
    %2620 = vmatprep.subr.bf16.mxu0 0
    %2621 = vmatpush1.bf16.msra.mxu0 0
    %2622 = vmatprep.mubr.bf16.mxu0 0
    %2623 = vmatmul.mubr.bf16.gmra.mrb[0].mxu0 %v2588
    %v2624 = vpop.f32.mrb[0].mxu0
    %v2625 = vadd.f32 %v2567, %v2624
    %v2626 = vpop.f32.mrb[0].mxu0
    %v2627 = vpop.f32.mrb[0].mxu0
    %v2628 = vadd.f32 %v2567, %v2627
    %v2629 = vpop.f32.mrb[0].mxu0
    %2630 = vdwg.mxu0
    %v2631 = vpack.c.bf16 %v2625, %v2625
    %2633 = vrot.lane.b32.xlu0 %v2631, 96
    %v2634 = vpop.permute.xlu0 %2633
    %v2636 = vsel %vm1350, %v2631, 0
    %v2639 = vsel %vm1350, %v2634, 0
    %2641 = vmatprep.subr.bf16.mxu0 0
    %2642 = vmatpush1.bf16.xpose.msra.mxu0 %v2639
    %2643 = vmatprep.subr.bf16.mxu0 0
    %2644 = vmatpush1.bf16.xpose.msra.mxu0 0
    %2645 = vmatprep.subr.bf16.mxu0 0
    %2646 = vmatpush1.bf16.xpose.msra.mxu0 0
    %2647 = vmatprep.subr.bf16.mxu0 0
    %2648 = vmatpush1.bf16.xpose.msra.mxu0 0
    %2649 = vmatprep.subr.bf16.mxu0 0
    %2650 = vmatpush1.bf16.xpose.msra.mxu0 0
    %2651 = vmatprep.subr.bf16.mxu0 0
    %2652 = vmatpush1.bf16.xpose.msra.mxu0 0
    %2653 = vmatprep.subr.bf16.mxu0 0
    %2654 = vmatpush1.bf16.xpose.msra.mxu0 0
    %2655 = vmatprep.subr.bf16.mxu0 0
    %2656 = vmatpush1.bf16.xpose.msra.mxu0 0
    %2657 = vmatprep.subr.bf16.mxu0 0
    %2658 = vmatpush1.bf16.xpose.msra.mxu0 0
    %2659 = vmatprep.subr.bf16.mxu0 0
    %2660 = vmatpush1.bf16.xpose.msra.mxu0 0
    %2661 = vmatprep.subr.bf16.mxu0 0
    %2662 = vmatpush1.bf16.xpose.msra.mxu0 0
    %2663 = vmatprep.subr.bf16.mxu0 0
    %2664 = vmatpush1.bf16.xpose.msra.mxu0 0
    %2665 = vmatprep.subr.bf16.mxu0 0
    %2666 = vmatpush1.bf16.xpose.msra.mxu0 0
    %2667 = vmatprep.subr.bf16.mxu0 0
    %2668 = vmatpush1.bf16.xpose.msra.mxu0 0
    %2669 = vmatprep.subr.bf16.mxu0 0
    %2670 = vmatpush1.bf16.xpose.msra.mxu0 0
    %2671 = vmatprep.subr.bf16.mxu0 0
    %2672 = vmatpush1.bf16.xpose.msra.mxu0 0
    %2673 = vmatprep.mubr.bf16.mxu0 0
    %2674 = vmatmul.mubr.bf16.gmra.mrb[0].mxu0 %v2636
    %v2675 = vpop.f32.mrb[0].mxu0
    %v2676 = vadd.f32 0.0, %v2675
    %v2677 = vpop.f32.mrb[0].mxu0
    %v2678 = vpop.f32.mrb[0].mxu0
    %v2679 = vpop.f32.mrb[0].mxu0
    %2680 = vdwg.mxu0
    %vm2681 = vcmask 36864
    %v2682 = vsel %vm2681, %v2676, -inf
    %2683 = vmax.xlane.f32.xlu0 %v2682
    %v2684 = vpop.xlane.xlu0 %2683
    %v2685 = vsub.f32 %v2676, %v2684
    %v2686 = vmul.f32 %v2685, 1.442695
    %v2687 = vpow.pop %v2686
    %v2688 = vsel %vm2681, %v2687, 0.0
    %2689 = vadd.xlane.f32.xlu0 %v2688
    %v2690 = vpop.xlane.xlu0 %2689
    %v2691 = vrcp.pop %v2690
    %v2692 = vmul.f32 %v2687, %v2691
    %v2693 = vpack.c.bf16 %v2692, %v2692
    %2694 = vrot.lane.b32.xlu0 %v2631, 64
    %v2695 = vpop.permute.xlu0 %2694
    %vm2696 = vcmask 39936
    %v2698 = vsel %vm2696, %v2693, 0
    %vm2700 = vcmask 1041408
    %vm2701 = vcmask 1042432
    %v2702 = vsel %vm2700, 4294967295, 65535
    %v2703 = vsel %vm2701, %v2702, 0
    %v2705 = vand.u32 %v2695, %v2703
    %2707 = vmatprep.subr.bf16.mxu0 0
    %2708 = vmatpush1.bf16.msra.mxu0 %v2705
    %2709 = vmatprep.subr.bf16.mxu0 0
    %2710 = vmatpush1.bf16.msra.mxu0 0
    %2711 = vmatprep.subr.bf16.mxu0 0
    %2712 = vmatpush1.bf16.msra.mxu0 0
    %2713 = vmatprep.subr.bf16.mxu0 0
    %2714 = vmatpush1.bf16.msra.mxu0 0
    %2715 = vmatprep.subr.bf16.mxu0 0
    %2716 = vmatpush1.bf16.msra.mxu0 0
    %2717 = vmatprep.subr.bf16.mxu0 0
    %2718 = vmatpush1.bf16.msra.mxu0 0
    %2719 = vmatprep.subr.bf16.mxu0 0
    %2720 = vmatpush1.bf16.msra.mxu0 0
    %2721 = vmatprep.subr.bf16.mxu0 0
    %2722 = vmatpush1.bf16.msra.mxu0 0
    %2723 = vmatprep.subr.bf16.mxu0 0
    %2724 = vmatpush1.bf16.msra.mxu0 0
    %2725 = vmatprep.subr.bf16.mxu0 0
    %2726 = vmatpush1.bf16.msra.mxu0 0
    %2727 = vmatprep.subr.bf16.mxu0 0
    %2728 = vmatpush1.bf16.msra.mxu0 0
    %2729 = vmatprep.subr.bf16.mxu0 0
    %2730 = vmatpush1.bf16.msra.mxu0 0
    %2731 = vmatprep.subr.bf16.mxu0 0
    %2732 = vmatpush1.bf16.msra.mxu0 0
    %2733 = vmatprep.subr.bf16.mxu0 0
    %2734 = vmatpush1.bf16.msra.mxu0 0
    %2735 = vmatprep.subr.bf16.mxu0 0
    %2736 = vmatpush1.bf16.msra.mxu0 0
    %2737 = vmatprep.subr.bf16.mxu0 0
    %2738 = vmatpush1.bf16.msra.mxu0 0
    %2739 = vmatprep.mubr.bf16.mxu0 0
    %2740 = vmatmul.mubr.bf16.gmra.mrb[0].mxu0 %v2698
    %v2741 = vpop.f32.mrb[0].mxu0
    %v2742 = vadd.f32 0.0, %v2741
    %v2743 = vpop.f32.mrb[0].mxu0
    %v2744 = vpop.f32.mrb[0].mxu0
    %v2745 = vpop.f32.mrb[0].mxu0
    %2746 = vdwg.mxu0
    %vm2747 = vcmask 126976
    %2748 = vst.msk [vmem:[#allocation4] sm:$0x1f] %vm2747, %v2742
    %2749 = vrot.lane.b32.xlu0 %v2631, 112
    %v2750 = vpop.permute.xlu0 %2749
    %2751 = vrot.lane.b32.xlu0 %v2631, 80
    %v2752 = vpop.permute.xlu0 %2751
    %v2754 = vsel %vm1350, %v2750, 0
    %v2757 = vsel %vm1350, %v2752, 0
    %2759 = vmatprep.subr.bf16.mxu0 0
    %2760 = vmatpush1.bf16.xpose.msra.mxu0 %v2757
    %2761 = vmatprep.subr.bf16.mxu0 0
    %2762 = vmatpush1.bf16.xpose.msra.mxu0 0
    %2763 = vmatprep.subr.bf16.mxu0 0
    %2764 = vmatpush1.bf16.xpose.msra.mxu0 0
    %2765 = vmatprep.subr.bf16.mxu0 0
    %2766 = vmatpush1.bf16.xpose.msra.mxu0 0
    %2767 = vmatprep.subr.bf16.mxu0 0
    %2768 = vmatpush1.bf16.xpose.msra.mxu0 0
    %2769 = vmatprep.subr.bf16.mxu0 0
    %2770 = vmatpush1.bf16.xpose.msra.mxu0 0
    %2771 = vmatprep.subr.bf16.mxu0 0
    %2772 = vmatpush1.bf16.xpose.msra.mxu0 0
    %2773 = vmatprep.subr.bf16.mxu0 0
    %2774 = vmatpush1.bf16.xpose.msra.mxu0 0
    %2775 = vmatprep.subr.bf16.mxu0 0
    %2776 = vmatpush1.bf16.xpose.msra.mxu0 0
    %2777 = vmatprep.subr.bf16.mxu0 0
    %2778 = vmatpush1.bf16.xpose.msra.mxu0 0
    %2779 = vmatprep.subr.bf16.mxu0 0
    %2780 = vmatpush1.bf16.xpose.msra.mxu0 0
    %2781 = vmatprep.subr.bf16.mxu0 0
    %2782 = vmatpush1.bf16.xpose.msra.mxu0 0
    %2783 = vmatprep.subr.bf16.mxu0 0
    %2784 = vmatpush1.bf16.xpose.msra.mxu0 0
    %2785 = vmatprep.subr.bf16.mxu0 0
    %2786 = vmatpush1.bf16.xpose.msra.mxu0 0
    %2787 = vmatprep.subr.bf16.mxu0 0
    %2788 = vmatpush1.bf16.xpose.msra.mxu0 0
    %2789 = vmatprep.subr.bf16.mxu0 0
    %2790 = vmatpush1.bf16.xpose.msra.mxu0 0
    %2791 = vmatprep.mubr.bf16.mxu0 0
    %2792 = vmatmul.mubr.bf16.gmra.mrb[0].mxu0 %v2754
    %v2793 = vpop.f32.mrb[0].mxu0
    %v2794 = vadd.f32 0.0, %v2793
    %v2795 = vpop.f32.mrb[0].mxu0
    %v2796 = vpop.f32.mrb[0].mxu0
    %v2797 = vpop.f32.mrb[0].mxu0
    %2798 = vdwg.mxu0
    %v2799 = vsel %vm2681, %v2794, -inf
    %2800 = vmax.xlane.f32.xlu0 %v2799
    %v2801 = vpop.xlane.xlu0 %2800
    %v2802 = vsub.f32 %v2794, %v2801
    %v2803 = vmul.f32 %v2802, 1.442695
    %v2804 = vpow.pop %v2803
    %v2805 = vsel %vm2681, %v2804, 0.0
    %2806 = vadd.xlane.f32.xlu0 %v2805
    %v2807 = vpop.xlane.xlu0 %2806
    %v2808 = vrcp.pop %v2807
    %v2809 = vmul.f32 %v2804, %v2808
    %v2810 = vpack.c.bf16 %v2809, %v2809
    %2811 = vrot.lane.b32.xlu0 %v2631, 48
    %v2812 = vpop.permute.xlu0 %2811
    %v2814 = vsel %vm2696, %v2810, 0
    %v2817 = vand.u32 %v2812, %v2703
    %2819 = vmatprep.subr.bf16.mxu0 0
    %2820 = vmatpush1.bf16.msra.mxu0 %v2817
    %2821 = vmatprep.subr.bf16.mxu0 0
    %2822 = vmatpush1.bf16.msra.mxu0 0
    %2823 = vmatprep.subr.bf16.mxu0 0
    %2824 = vmatpush1.bf16.msra.mxu0 0
    %2825 = vmatprep.subr.bf16.mxu0 0
    %2826 = vmatpush1.bf16.msra.mxu0 0
    %2827 = vmatprep.subr.bf16.mxu0 0
    %2828 = vmatpush1.bf16.msra.mxu0 0
    %2829 = vmatprep.subr.bf16.mxu0 0
    %2830 = vmatpush1.bf16.msra.mxu0 0
    %2831 = vmatprep.subr.bf16.mxu0 0
    %2832 = vmatpush1.bf16.msra.mxu0 0
    %2833 = vmatprep.subr.bf16.mxu0 0
    %2834 = vmatpush1.bf16.msra.mxu0 0
    %2835 = vmatprep.subr.bf16.mxu0 0
    %2836 = vmatpush1.bf16.msra.mxu0 0
    %2837 = vmatprep.subr.bf16.mxu0 0
    %2838 = vmatpush1.bf16.msra.mxu0 0
    %2839 = vmatprep.subr.bf16.mxu0 0
    %2840 = vmatpush1.bf16.msra.mxu0 0
    %2841 = vmatprep.subr.bf16.mxu0 0
    %2842 = vmatpush1.bf16.msra.mxu0 0
    %2843 = vmatprep.subr.bf16.mxu0 0
    %2844 = vmatpush1.bf16.msra.mxu0 0
    %2845 = vmatprep.subr.bf16.mxu0 0
    %2846 = vmatpush1.bf16.msra.mxu0 0
    %2847 = vmatprep.subr.bf16.mxu0 0
    %2848 = vmatpush1.bf16.msra.mxu0 0
    %2849 = vmatprep.subr.bf16.mxu0 0
    %2850 = vmatpush1.bf16.msra.mxu0 0
    %2851 = vmatprep.mubr.bf16.mxu0 0
    %2852 = vmatmul.mubr.bf16.gmra.mrb[0].mxu0 %v2814
    %v2853 = vpop.f32.mrb[0].mxu0
    %v2854 = vadd.f32 0.0, %v2853
    %v2855 = vpop.f32.mrb[0].mxu0
    %v2856 = vpop.f32.mrb[0].mxu0
    %v2857 = vpop.f32.mrb[0].mxu0
    %2858 = vdwg.mxu0
    %2860 = vrot.lane.b32.xlu0 %v2854, 16
    %v2861 = vpop.permute.xlu0 %2860
    %vm2863 = vcmask 258176
    %2864 = vst.msk [vmem:[#allocation4] sm:$0x1f] %vm2863, %v2861
    %v2865 = vpack.c.bf16 %v2628, %v2628
    %2867 = vrot.lane.b32.xlu0 %v2865, 96
    %v2868 = vpop.permute.xlu0 %2867
    %v2870 = vsel %vm1350, %v2865, 0
    %v2873 = vsel %vm1350, %v2868, 0
    %2875 = vmatprep.subr.bf16.mxu0 0
    %2876 = vmatpush1.bf16.xpose.msra.mxu0 %v2873
    %2877 = vmatprep.subr.bf16.mxu0 0
    %2878 = vmatpush1.bf16.xpose.msra.mxu0 0
    %2879 = vmatprep.subr.bf16.mxu0 0
    %2880 = vmatpush1.bf16.xpose.msra.mxu0 0
    %2881 = vmatprep.subr.bf16.mxu0 0
    %2882 = vmatpush1.bf16.xpose.msra.mxu0 0
    %2883 = vmatprep.subr.bf16.mxu0 0
    %2884 = vmatpush1.bf16.xpose.msra.mxu0 0
    %2885 = vmatprep.subr.bf16.mxu0 0
    %2886 = vmatpush1.bf16.xpose.msra.mxu0 0
    %2887 = vmatprep.subr.bf16.mxu0 0
    %2888 = vmatpush1.bf16.xpose.msra.mxu0 0
    %2889 = vmatprep.subr.bf16.mxu0 0
    %2890 = vmatpush1.bf16.xpose.msra.mxu0 0
    %2891 = vmatprep.subr.bf16.mxu0 0
    %2892 = vmatpush1.bf16.xpose.msra.mxu0 0
    %2893 = vmatprep.subr.bf16.mxu0 0
    %2894 = vmatpush1.bf16.xpose.msra.mxu0 0
    %2895 = vmatprep.subr.bf16.mxu0 0
    %2896 = vmatpush1.bf16.xpose.msra.mxu0 0
    %2897 = vmatprep.subr.bf16.mxu0 0
    %2898 = vmatpush1.bf16.xpose.msra.mxu0 0
    %2899 = vmatprep.subr.bf16.mxu0 0
    %2900 = vmatpush1.bf16.xpose.msra.mxu0 0
    %2901 = vmatprep.subr.bf16.mxu0 0
    %2902 = vmatpush1.bf16.xpose.msra.mxu0 0
    %2903 = vmatprep.subr.bf16.mxu0 0
    %2904 = vmatpush1.bf16.xpose.msra.mxu0 0
    %2905 = vmatprep.subr.bf16.mxu0 0
    %2906 = vmatpush1.bf16.xpose.msra.mxu0 0
    %2907 = vmatprep.mubr.bf16.mxu0 0
    %2908 = vmatmul.mubr.bf16.gmra.mrb[0].mxu0 %v2870
    %v2909 = vpop.f32.mrb[0].mxu0
    %v2910 = vadd.f32 0.0, %v2909
    %v2911 = vpop.f32.mrb[0].mxu0
    %v2912 = vpop.f32.mrb[0].mxu0
    %v2913 = vpop.f32.mrb[0].mxu0
    %2914 = vdwg.mxu0
    %v2915 = vsel %vm2681, %v2910, -inf
    %2916 = vmax.xlane.f32.xlu0 %v2915
    %v2917 = vpop.xlane.xlu0 %2916
    %v2918 = vsub.f32 %v2910, %v2917
    %v2919 = vmul.f32 %v2918, 1.442695
    %v2920 = vpow.pop %v2919
    %v2921 = vsel %vm2681, %v2920, 0.0
    %2922 = vadd.xlane.f32.xlu0 %v2921
    %v2923 = vpop.xlane.xlu0 %2922
    %v2924 = vrcp.pop %v2923
    %v2925 = vmul.f32 %v2920, %v2924
    %v2926 = vpack.c.bf16 %v2925, %v2925
    %2927 = vrot.lane.b32.xlu0 %v2865, 64
    %v2928 = vpop.permute.xlu0 %2927
    %v2930 = vsel %vm2696, %v2926, 0
    %v2933 = vand.u32 %v2928, %v2703
    %2935 = vmatprep.subr.bf16.mxu0 0
    %2936 = vmatpush1.bf16.msra.mxu0 %v2933
    %2937 = vmatprep.subr.bf16.mxu0 0
    %2938 = vmatpush1.bf16.msra.mxu0 0
    %2939 = vmatprep.subr.bf16.mxu0 0
    %2940 = vmatpush1.bf16.msra.mxu0 0
    %2941 = vmatprep.subr.bf16.mxu0 0
    %2942 = vmatpush1.bf16.msra.mxu0 0
    %2943 = vmatprep.subr.bf16.mxu0 0
    %2944 = vmatpush1.bf16.msra.mxu0 0
    %2945 = vmatprep.subr.bf16.mxu0 0
    %2946 = vmatpush1.bf16.msra.mxu0 0
    %2947 = vmatprep.subr.bf16.mxu0 0
    %2948 = vmatpush1.bf16.msra.mxu0 0
    %2949 = vmatprep.subr.bf16.mxu0 0
    %2950 = vmatpush1.bf16.msra.mxu0 0
    %2951 = vmatprep.subr.bf16.mxu0 0
    %2952 = vmatpush1.bf16.msra.mxu0 0
    %2953 = vmatprep.subr.bf16.mxu0 0
    %2954 = vmatpush1.bf16.msra.mxu0 0
    %2955 = vmatprep.subr.bf16.mxu0 0
    %2956 = vmatpush1.bf16.msra.mxu0 0
    %2957 = vmatprep.subr.bf16.mxu0 0
    %2958 = vmatpush1.bf16.msra.mxu0 0
    %2959 = vmatprep.subr.bf16.mxu0 0
    %2960 = vmatpush1.bf16.msra.mxu0 0
    %2961 = vmatprep.subr.bf16.mxu0 0
    %2962 = vmatpush1.bf16.msra.mxu0 0
    %2963 = vmatprep.subr.bf16.mxu0 0
    %2964 = vmatpush1.bf16.msra.mxu0 0
    %2965 = vmatprep.subr.bf16.mxu0 0
    %2966 = vmatpush1.bf16.msra.mxu0 0
    %2967 = vmatprep.mubr.bf16.mxu0 0
    %2968 = vmatmul.mubr.bf16.gmra.mrb[0].mxu0 %v2930
    %v2969 = vpop.f32.mrb[0].mxu0
    %v2970 = vadd.f32 0.0, %v2969
    %v2971 = vpop.f32.mrb[0].mxu0
    %v2972 = vpop.f32.mrb[0].mxu0
    %v2973 = vpop.f32.mrb[0].mxu0
    %2974 = vdwg.mxu0
    %2975 = vst.msk [vmem:[#allocation4 + $0x8] sm:$0x1f] %vm2747, %v2970
    %2976 = vrot.lane.b32.xlu0 %v2865, 112
    %v2977 = vpop.permute.xlu0 %2976
    %2978 = vrot.lane.b32.xlu0 %v2865, 80
    %v2979 = vpop.permute.xlu0 %2978
    %v2981 = vsel %vm1350, %v2977, 0
    %v2984 = vsel %vm1350, %v2979, 0
    %2986 = vmatprep.subr.bf16.mxu0 0
    %2987 = vmatpush1.bf16.xpose.msra.mxu0 %v2984
    %2988 = vmatprep.subr.bf16.mxu0 0
    %2989 = vmatpush1.bf16.xpose.msra.mxu0 0
    %2990 = vmatprep.subr.bf16.mxu0 0
    %2991 = vmatpush1.bf16.xpose.msra.mxu0 0
    %2992 = vmatprep.subr.bf16.mxu0 0
    %2993 = vmatpush1.bf16.xpose.msra.mxu0 0
    %2994 = vmatprep.subr.bf16.mxu0 0
    %2995 = vmatpush1.bf16.xpose.msra.mxu0 0
    %2996 = vmatprep.subr.bf16.mxu0 0
    %2997 = vmatpush1.bf16.xpose.msra.mxu0 0
    %2998 = vmatprep.subr.bf16.mxu0 0
    %2999 = vmatpush1.bf16.xpose.msra.mxu0 0
    %3000 = vmatprep.subr.bf16.mxu0 0
    %3001 = vmatpush1.bf16.xpose.msra.mxu0 0
    %3002 = vmatprep.subr.bf16.mxu0 0
    %3003 = vmatpush1.bf16.xpose.msra.mxu0 0
    %3004 = vmatprep.subr.bf16.mxu0 0
    %3005 = vmatpush1.bf16.xpose.msra.mxu0 0
    %3006 = vmatprep.subr.bf16.mxu0 0
    %3007 = vmatpush1.bf16.xpose.msra.mxu0 0
    %3008 = vmatprep.subr.bf16.mxu0 0
    %3009 = vmatpush1.bf16.xpose.msra.mxu0 0
    %3010 = vmatprep.subr.bf16.mxu0 0
    %3011 = vmatpush1.bf16.xpose.msra.mxu0 0
    %3012 = vmatprep.subr.bf16.mxu0 0
    %3013 = vmatpush1.bf16.xpose.msra.mxu0 0
    %3014 = vmatprep.subr.bf16.mxu0 0
    %3015 = vmatpush1.bf16.xpose.msra.mxu0 0
    %3016 = vmatprep.subr.bf16.mxu0 0
    %3017 = vmatpush1.bf16.xpose.msra.mxu0 0
    %3018 = vmatprep.mubr.bf16.mxu0 0
    %3019 = vmatmul.mubr.bf16.gmra.mrb[0].mxu0 %v2981
    %v3020 = vpop.f32.mrb[0].mxu0
    %v3021 = vadd.f32 0.0, %v3020
    %v3022 = vpop.f32.mrb[0].mxu0
    %v3023 = vpop.f32.mrb[0].mxu0
    %v3024 = vpop.f32.mrb[0].mxu0
    %3025 = vdwg.mxu0
    %v3026 = vsel %vm2681, %v3021, -inf
    %3027 = vmax.xlane.f32.xlu0 %v3026
    %v3028 = vpop.xlane.xlu0 %3027
    %v3029 = vsub.f32 %v3021, %v3028
    %v3030 = vmul.f32 %v3029, 1.442695
    %v3031 = vpow.pop %v3030
    %v3032 = vsel %vm2681, %v3031, 0.0
    %3033 = vadd.xlane.f32.xlu0 %v3032
    %v3034 = vpop.xlane.xlu0 %3033
    %v3035 = vrcp.pop %v3034
    %v3036 = vmul.f32 %v3031, %v3035
    %v3037 = vpack.c.bf16 %v3036, %v3036
    %3038 = vrot.lane.b32.xlu0 %v2865, 48
    %v3039 = vpop.permute.xlu0 %3038
    %v3041 = vsel %vm2696, %v3037, 0
    %v3044 = vand.u32 %v3039, %v2703
    %3046 = vmatprep.subr.bf16.mxu0 0
    %3047 = vmatpush1.bf16.msra.mxu0 %v3044
    %3048 = vmatprep.subr.bf16.mxu0 0
    %3049 = vmatpush1.bf16.msra.mxu0 0
    %3050 = vmatprep.subr.bf16.mxu0 0
    %3051 = vmatpush1.bf16.msra.mxu0 0
    %3052 = vmatprep.subr.bf16.mxu0 0
    %3053 = vmatpush1.bf16.msra.mxu0 0
    %3054 = vmatprep.subr.bf16.mxu0 0
    %3055 = vmatpush1.bf16.msra.mxu0 0
    %3056 = vmatprep.subr.bf16.mxu0 0
    %3057 = vmatpush1.bf16.msra.mxu0 0
    %3058 = vmatprep.subr.bf16.mxu0 0
    %3059 = vmatpush1.bf16.msra.mxu0 0
    %3060 = vmatprep.subr.bf16.mxu0 0
    %3061 = vmatpush1.bf16.msra.mxu0 0
    %3062 = vmatprep.subr.bf16.mxu0 0
    %3063 = vmatpush1.bf16.msra.mxu0 0
    %3064 = vmatprep.subr.bf16.mxu0 0
    %3065 = vmatpush1.bf16.msra.mxu0 0
    %3066 = vmatprep.subr.bf16.mxu0 0
    %3067 = vmatpush1.bf16.msra.mxu0 0
    %3068 = vmatprep.subr.bf16.mxu0 0
    %3069 = vmatpush1.bf16.msra.mxu0 0
    %3070 = vmatprep.subr.bf16.mxu0 0
    %3071 = vmatpush1.bf16.msra.mxu0 0
    %3072 = vmatprep.subr.bf16.mxu0 0
    %3073 = vmatpush1.bf16.msra.mxu0 0
    %3074 = vmatprep.subr.bf16.mxu0 0
    %3075 = vmatpush1.bf16.msra.mxu0 0
    %3076 = vmatprep.subr.bf16.mxu0 0
    %3077 = vmatpush1.bf16.msra.mxu0 0
    %3078 = vmatprep.mubr.bf16.mxu0 0
    %3079 = vmatmul.mubr.bf16.gmra.mrb[0].mxu0 %v3041
    %v3080 = vpop.f32.mrb[0].mxu0
    %v3081 = vadd.f32 0.0, %v3080
    %v3082 = vpop.f32.mrb[0].mxu0
    %v3083 = vpop.f32.mrb[0].mxu0
    %v3084 = vpop.f32.mrb[0].mxu0
    %3085 = vdwg.mxu0
    %3087 = vrot.lane.b32.xlu0 %v3081, 16
    %v3088 = vpop.permute.xlu0 %3087
    %3090 = vst.msk [vmem:[#allocation4 + $0x8] sm:$0x1f] %vm2863, %v3088
    %v3091 = vld [vmem:[#allocation4] sm:$0xff]
    %v3092 = vld [vmem:[#allocation4 + $0x8] sm:$0xff]
    %v3093 = vld [vmem:[%s53] sm:$0xf]
    %v3094 = vld [vmem:[%s53 + $0x4] sm:$0xf]
    %v3095 = vld [vmem:[%s53 + $0x8] sm:$0xf]
    %v3096 = vld [vmem:[%s53 + $0xc] sm:$0xf]
    %v3097 = vpack.c.bf16 %v3092, %v3091
    %v3102 = vunpack.c.l.b16 %v3093
    %v3103 = vunpack.c.l.b16 %v3094
    %v3104 = vunpack.c.l.b16 %v3095
    %v3105 = vunpack.c.l.b16 %v3096
    %v3106 = vpack.c.b16 %v3103, %v3102
    %v3107 = vpack.c.b16 %v3105, %v3104
    %v3111 = vsel %vm611, %v3097, 0
    %3113 = vmatprep.subr.bf16.mxu0 0
    %3114 = vmatpush1.bf16.msra.mxu0 %v3106
    %3115 = vmatprep.subr.bf16.mxu0 0
    %3116 = vmatpush1.bf16.msra.mxu0 %v3107
    %3117 = vmatprep.subr.bf16.mxu0 0
    %3118 = vmatpush1.bf16.msra.mxu0 0
    %3119 = vmatprep.subr.bf16.mxu0 0
    %3120 = vmatpush1.bf16.msra.mxu0 0
    %3121 = vmatprep.subr.bf16.mxu0 0
    %3122 = vmatpush1.bf16.msra.mxu0 0
    %3123 = vmatprep.subr.bf16.mxu0 0
    %3124 = vmatpush1.bf16.msra.mxu0 0
    %3125 = vmatprep.subr.bf16.mxu0 0
    %3126 = vmatpush1.bf16.msra.mxu0 0
    %3127 = vmatprep.subr.bf16.mxu0 0
    %3128 = vmatpush1.bf16.msra.mxu0 0
    %3129 = vmatprep.subr.bf16.mxu0 0
    %3130 = vmatpush1.bf16.msra.mxu0 0
    %3131 = vmatprep.subr.bf16.mxu0 0
    %3132 = vmatpush1.bf16.msra.mxu0 0
    %3133 = vmatprep.subr.bf16.mxu0 0
    %3134 = vmatpush1.bf16.msra.mxu0 0
    %3135 = vmatprep.subr.bf16.mxu0 0
    %3136 = vmatpush1.bf16.msra.mxu0 0
    %3137 = vmatprep.subr.bf16.mxu0 0
    %3138 = vmatpush1.bf16.msra.mxu0 0
    %3139 = vmatprep.subr.bf16.mxu0 0
    %3140 = vmatpush1.bf16.msra.mxu0 0
    %3141 = vmatprep.subr.bf16.mxu0 0
    %3142 = vmatpush1.bf16.msra.mxu0 0
    %3143 = vmatprep.subr.bf16.mxu0 0
    %3144 = vmatpush1.bf16.msra.mxu0 0
    %3145 = vmatprep.mubr.bf16.mxu0 0
    %3146 = vmatmul.mubr.bf16.gmra.mrb[0].mxu0 %v3111
    %v3147 = vpop.f32.mrb[0].mxu0
    %v3148 = vadd.f32 0.0, %v3147
    %v3149 = vpop.f32.mrb[0].mxu0
    %v3150 = vpop.f32.mrb[0].mxu0
    %v3151 = vadd.f32 0.0, %v3150
    %v3152 = vpop.f32.mrb[0].mxu0
    %3153 = vdwg.mxu0
    %v3154 = vadd.f32 %v2509, %v3148
    %v3155 = vadd.f32 %v2510, %v3151
    %v3156 = vld [vmem:[%s45] sm:$0x1]
    %v3158 = vlaneseq
    %v3159 = vshrl.u32 %v3158, 7
    %v3160 = vsub.s32 0, %v3159
    %v3161 = vrot.slane %v3156, %v3160
    %v3163 = vadd.f32 %v3154, %v3161
    %v3164 = vadd.f32 %v3155, %v3161
    %v3165 = vld [vmem:[#allocation11] sm:$0x1]
    %v3166 = vld [vmem:[#allocation10] sm:$0x1]
    %v3167 = vsel %vm618, %v3163, 0.0
    %3168 = vadd.xlane.f32.xlu0 %v3167
    %v3169 = vpop.xlane.xlu0 %3168
    %v3170 = vsel %vm618, %v3164, 0.0
    %3171 = vadd.xlane.f32.xlu0 %v3170
    %v3172 = vpop.xlane.xlu0 %3171
    %v3173 = vmul.f32 %v3169, %v645
    %v3174 = vmul.f32 %v3172, %v645
    %v3175 = vsub.f32 %v3163, %v3173
    %v3176 = vsub.f32 %v3164, %v3174
    %v3177 = vmul.f32 %v3175, %v3175
    %v3178 = vmul.f32 %v3176, %v3176
    %v3179 = vsel %vm618, %v3177, 0.0
    %3180 = vadd.xlane.f32.xlu0 %v3179
    %v3181 = vpop.xlane.xlu0 %3180
    %v3182 = vsel %vm618, %v3178, 0.0
    %3183 = vadd.xlane.f32.xlu0 %v3182
    %v3184 = vpop.xlane.xlu0 %3183
    %v3185 = vmul.f32 %v3181, %v645
    %v3186 = vmul.f32 %v3184, %v645
    %v3187 = vadd.f32 %v3185, 1e-05
    %v3188 = vadd.f32 %v3186, 1e-05
    %v3189 = vrsqrt.pop %v3187
    %v3190 = vrsqrt.pop %v3188
    %v3191 = vmul.f32 %v3175, %v3189
    %v3192 = vmul.f32 %v3176, %v3190
    %v3194 = vlaneseq
    %v3195 = vshrl.u32 %v3194, 7
    %v3196 = vsub.s32 0, %v3195
    %v3197 = vrot.slane %v3165, %v3196
    %v3199 = vmul.f32 %v3191, %v3197
    %v3200 = vmul.f32 %v3192, %v3197
    %v3202 = vlaneseq
    %v3203 = vshrl.u32 %v3202, 7
    %v3204 = vsub.s32 0, %v3203
    %v3205 = vrot.slane %v3166, %v3204
    %v3207 = vadd.f32 %v3199, %v3205
    %v3208 = vadd.f32 %v3200, %v3205
    %v3209 = vld [vmem:[%s65] sm:$0xf]
    %v3210 = vld [vmem:[%s65 + $0x4] sm:$0xf]
    %v3211 = vld [vmem:[%s65 + $0x8] sm:$0xf]
    %v3212 = vld [vmem:[%s65 + $0xc] sm:$0xf]
    %v3213 = vld [vmem:[%s65 + $0x10] sm:$0xf]
    %v3214 = vld [vmem:[%s65 + $0x14] sm:$0xf]
    %v3215 = vpack.c.bf16 %v3208, %v3207
    %v3216 = vld [vmem:[#allocation5] sm:$0x1]
    %v3218 = vlaneseq
    %v3219 = vshrl.u32 %v3218, 7
    %v3220 = vsub.s32 0, %v3219
    %v3221 = vrot.slane %v3216, %v3220
    %v3229 = vunpack.c.l.b16 %v3209
    %v3230 = vunpack.c.l.b16 %v3210
    %v3231 = vunpack.c.l.b16 %v3211
    %v3232 = vunpack.c.l.b16 %v3212
    %v3233 = vunpack.c.l.b16 %v3213
    %v3234 = vunpack.c.l.b16 %v3214
    %v3235 = vpack.c.b16 %v3230, %v3229
    %v3236 = vpack.c.b16 %v3232, %v3231
    %v3237 = vpack.c.b16 %v3234, %v3233
    %v3242 = vsel %vm618, %v3215, 0
    %3244 = vmatprep.subr.bf16.mxu0 0
    %3245 = vmatpush1.bf16.msra.mxu0 %v3235
    %3246 = vmatprep.subr.bf16.mxu0 0
    %3247 = vmatpush1.bf16.msra.mxu0 %v3236
    %3248 = vmatprep.subr.bf16.mxu0 0
    %3249 = vmatpush1.bf16.msra.mxu0 %v3237
    %3250 = vmatprep.subr.bf16.mxu0 0
    %3251 = vmatpush1.bf16.msra.mxu0 0
    %3252 = vmatprep.subr.bf16.mxu0 0
    %3253 = vmatpush1.bf16.msra.mxu0 0
    %3254 = vmatprep.subr.bf16.mxu0 0
    %3255 = vmatpush1.bf16.msra.mxu0 0
    %3256 = vmatprep.subr.bf16.mxu0 0
    %3257 = vmatpush1.bf16.msra.mxu0 0
    %3258 = vmatprep.subr.bf16.mxu0 0
    %3259 = vmatpush1.bf16.msra.mxu0 0
    %3260 = vmatprep.subr.bf16.mxu0 0
    %3261 = vmatpush1.bf16.msra.mxu0 0
    %3262 = vmatprep.subr.bf16.mxu0 0
    %3263 = vmatpush1.bf16.msra.mxu0 0
    %3264 = vmatprep.subr.bf16.mxu0 0
    %3265 = vmatpush1.bf16.msra.mxu0 0
    %3266 = vmatprep.subr.bf16.mxu0 0
    %3267 = vmatpush1.bf16.msra.mxu0 0
    %3268 = vmatprep.subr.bf16.mxu0 0
    %3269 = vmatpush1.bf16.msra.mxu0 0
    %3270 = vmatprep.subr.bf16.mxu0 0
    %3271 = vmatpush1.bf16.msra.mxu0 0
    %3272 = vmatprep.subr.bf16.mxu0 0
    %3273 = vmatpush1.bf16.msra.mxu0 0
    %3274 = vmatprep.subr.bf16.mxu0 0
    %3275 = vmatpush1.bf16.msra.mxu0 0
    %3276 = vmatprep.mubr.bf16.mxu0 0
    %3277 = vmatmul.mubr.bf16.gmra.mrb[0].mxu0 %v3242
    %v3278 = vpop.f32.mrb[0].mxu0
    %v3279 = vadd.f32 %v3221, %v3278
    %v3280 = vpop.f32.mrb[0].mxu0
    %v3281 = vpop.f32.mrb[0].mxu0
    %v3282 = vadd.f32 %v3221, %v3281
    %v3283 = vpop.f32.mrb[0].mxu0
    %3284 = vdwg.mxu0
    %v3285 = vmul.f32 %v3279, 0.5
    %v3286 = vmul.f32 %v3282, 0.5
    %v3287 = vmul.f32 %v3279, 0.70710677
    %v3288 = vmul.f32 %v3282, 0.70710677
    %v3289 = verf.f32.pop %v3287
    %v3290 = verf.f32.pop %v3288
    %v3291 = vadd.f32 %v3289, 1.0
    %v3292 = vadd.f32 %v3290, 1.0
    %v3293 = vmul.f32 %v3285, %v3291
    %v3294 = vmul.f32 %v3286, %v3292
    %v3295 = vld [vmem:[%s67] sm:$0xf]
    %v3296 = vld [vmem:[%s67 + $0x4] sm:$0xf]
    %v3297 = vld [vmem:[%s67 + $0x8] sm:$0xf]
    %v3298 = vld [vmem:[%s67 + $0xc] sm:$0xf]
    %v3299 = vld [vmem:[%s67 + $0x10] sm:$0xf]
    %v3300 = vld [vmem:[%s67 + $0x14] sm:$0xf]
    %v3301 = vld [vmem:[%s67 + $0x18] sm:$0xf]
    %v3302 = vld [vmem:[%s67 + $0x1c] sm:$0xf]
    %v3303 = vpack.c.bf16 %v3294, %v3293
    %v3312 = vunpack.c.l.b16 %v3295
    %v3313 = vunpack.c.l.b16 %v3296
    %v3314 = vunpack.c.l.b16 %v3297
    %v3315 = vunpack.c.l.b16 %v3298
    %v3316 = vunpack.c.l.b16 %v3299
    %v3317 = vunpack.c.l.b16 %v3300
    %v3318 = vunpack.c.l.b16 %v3301
    %v3319 = vunpack.c.l.b16 %v3302
    %v3320 = vpack.c.b16 %v3313, %v3312
    %v3321 = vpack.c.b16 %v3315, %v3314
    %v3322 = vpack.c.b16 %v3317, %v3316
    %v3323 = vpack.c.b16 %v3319, %v3318
    %v3329 = vsel %vm900, %v3303, 0
    %3331 = vmatprep.subr.bf16.mxu0 0
    %3332 = vmatpush1.bf16.msra.mxu0 %v3320
    %3333 = vmatprep.subr.bf16.mxu0 0
    %3334 = vmatpush1.bf16.msra.mxu0 %v3321
    %3335 = vmatprep.subr.bf16.mxu0 0
    %3336 = vmatpush1.bf16.msra.mxu0 %v3322
    %3337 = vmatprep.subr.bf16.mxu0 0
    %3338 = vmatpush1.bf16.msra.mxu0 %v3323
    %3339 = vmatprep.subr.bf16.mxu0 0
    %3340 = vmatpush1.bf16.msra.mxu0 0
    %3341 = vmatprep.subr.bf16.mxu0 0
    %3342 = vmatpush1.bf16.msra.mxu0 0
    %3343 = vmatprep.subr.bf16.mxu0 0
    %3344 = vmatpush1.bf16.msra.mxu0 0
    %3345 = vmatprep.subr.bf16.mxu0 0
    %3346 = vmatpush1.bf16.msra.mxu0 0
    %3347 = vmatprep.subr.bf16.mxu0 0
    %3348 = vmatpush1.bf16.msra.mxu0 0
    %3349 = vmatprep.subr.bf16.mxu0 0
    %3350 = vmatpush1.bf16.msra.mxu0 0
    %3351 = vmatprep.subr.bf16.mxu0 0
    %3352 = vmatpush1.bf16.msra.mxu0 0
    %3353 = vmatprep.subr.bf16.mxu0 0
    %3354 = vmatpush1.bf16.msra.mxu0 0
    %3355 = vmatprep.subr.bf16.mxu0 0
    %3356 = vmatpush1.bf16.msra.mxu0 0
    %3357 = vmatprep.subr.bf16.mxu0 0
    %3358 = vmatpush1.bf16.msra.mxu0 0
    %3359 = vmatprep.subr.bf16.mxu0 0
    %3360 = vmatpush1.bf16.msra.mxu0 0
    %3361 = vmatprep.subr.bf16.mxu0 0
    %3362 = vmatpush1.bf16.msra.mxu0 0
    %3363 = vmatprep.mubr.bf16.mxu0 0
    %3364 = vmatmul.mubr.bf16.gmra.mrb[0].mxu0 %v3329
    %v3365 = vpop.f32.mrb[0].mxu0
    %v3366 = vadd.f32 0.0, %v3365
    %v3367 = vpop.f32.mrb[0].mxu0
    %v3368 = vpop.f32.mrb[0].mxu0
    %v3369 = vadd.f32 0.0, %v3368
    %v3370 = vpop.f32.mrb[0].mxu0
    %3371 = vdwg.mxu0
    %v3372 = vadd.f32 %v3163, %v3366
    %v3373 = vadd.f32 %v3164, %v3369
    %v3374 = vld [vmem:[#allocation8] sm:$0x1]
    %v3376 = vlaneseq
    %v3377 = vshrl.u32 %v3376, 7
    %v3378 = vsub.s32 0, %v3377
    %v3379 = vrot.slane %v3374, %v3378
    %v3381 = vadd.f32 %v3372, %v3379
    %v3382 = vadd.f32 %v3373, %v3379
    %3383 = vst.msk [vmem:[#allocation3] sm:$0xff] %vm618, %v3381
    %3384 = vst.msk [vmem:[#allocation3 + $0x8] sm:$0xff] %vm618, %v3382
    %v3385 = vld [vmem:[#allocation2 + $0x10] sm:$0x1]
    %3386 = vst.msk [vmem:[#allocation4] sm:$0x1] %vm889, %v3385
    %v3387 = vld [vmem:[#allocation2 + $0x28] sm:$0x1]
    %3388 = vst.msk [vmem:[#allocation4 + $0x1] sm:$0x1] %vm889, %v3387
    %v3389 = vld [vmem:[#allocation4] sm:$0x3]
    %v3390 = vld [vmem:[%s35] sm:$0xf]
    %v3391 = vld [vmem:[%s35 + $0x4] sm:$0xf]
    %v3392 = vld [vmem:[%s35 + $0x8] sm:$0xf]
    %v3393 = vld [vmem:[%s35 + $0xc] sm:$0xf]
    %v3394 = vpack.c.bf16 %v3389, %v3389
    %v3395 = vld [vmem:[%s25] sm:$0x1]
    %v3397 = vlaneseq
    %v3398 = vshrl.u32 %v3397, 7
    %v3399 = vsub.s32 0, %v3398
    %v3400 = vrot.slane %v3395, %v3399
    %v3406 = vunpack.c.l.b16 %v3390
    %v3407 = vunpack.c.l.b16 %v3391
    %v3408 = vunpack.c.l.b16 %v3392
    %v3409 = vunpack.c.l.b16 %v3393
    %v3410 = vpack.c.b16 %v3407, %v3406
    %v3411 = vpack.c.b16 %v3409, %v3408
    %v3415 = vsel %vm611, %v3394, 0
    %3417 = vmatprep.subr.bf16.mxu0 0
    %3418 = vmatpush1.bf16.msra.mxu0 %v3410
    %3419 = vmatprep.subr.bf16.mxu0 0
    %3420 = vmatpush1.bf16.msra.mxu0 %v3411
    %3421 = vmatprep.subr.bf16.mxu0 0
    %3422 = vmatpush1.bf16.msra.mxu0 0
    %3423 = vmatprep.subr.bf16.mxu0 0
    %3424 = vmatpush1.bf16.msra.mxu0 0
    %3425 = vmatprep.subr.bf16.mxu0 0
    %3426 = vmatpush1.bf16.msra.mxu0 0
    %3427 = vmatprep.subr.bf16.mxu0 0
    %3428 = vmatpush1.bf16.msra.mxu0 0
    %3429 = vmatprep.subr.bf16.mxu0 0
    %3430 = vmatpush1.bf16.msra.mxu0 0
    %3431 = vmatprep.subr.bf16.mxu0 0
    %3432 = vmatpush1.bf16.msra.mxu0 0
    %3433 = vmatprep.subr.bf16.mxu0 0
    %3434 = vmatpush1.bf16.msra.mxu0 0
    %3435 = vmatprep.subr.bf16.mxu0 0
    %3436 = vmatpush1.bf16.msra.mxu0 0
    %3437 = vmatprep.subr.bf16.mxu0 0
    %3438 = vmatpush1.bf16.msra.mxu0 0
    %3439 = vmatprep.subr.bf16.mxu0 0
    %3440 = vmatpush1.bf16.msra.mxu0 0
    %3441 = vmatprep.subr.bf16.mxu0 0
    %3442 = vmatpush1.bf16.msra.mxu0 0
    %3443 = vmatprep.subr.bf16.mxu0 0
    %3444 = vmatpush1.bf16.msra.mxu0 0
    %3445 = vmatprep.subr.bf16.mxu0 0
    %3446 = vmatpush1.bf16.msra.mxu0 0
    %3447 = vmatprep.subr.bf16.mxu0 0
    %3448 = vmatpush1.bf16.msra.mxu0 0
    %3449 = vmatprep.mubr.bf16.mxu0 0
    %3450 = vmatmul.mubr.bf16.gmra.mrb[0].mxu0 %v3415
    %v3451 = vpop.f32.mrb[0].mxu0
    %v3452 = vadd.f32 %v3400, %v3451
    %v3453 = vpop.f32.mrb[0].mxu0
    %v3454 = vpop.f32.mrb[0].mxu0
    %v3455 = vpop.f32.mrb[0].mxu0
    %3456 = vdwg.mxu0
    %v3457 = vld [vmem:[%s43] sm:$0xf]
    %v3458 = vld [vmem:[%s43 + $0x4] sm:$0xf]
    %v3459 = vld [vmem:[%s43 + $0x8] sm:$0xf]
    %v3460 = vld [vmem:[%s43 + $0xc] sm:$0xf]
    %v3461 = vld [vmem:[%s43 + $0x10] sm:$0xf]
    %v3462 = vld [vmem:[%s43 + $0x14] sm:$0xf]
    %v3463 = vpack.c.bf16 %v3452, %v3452
    %v3464 = vld [vmem:[%s33] sm:$0x1]
    %v3466 = vlaneseq
    %v3467 = vshrl.u32 %v3466, 7
    %v3468 = vsub.s32 0, %v3467
    %v3469 = vrot.slane %v3464, %v3468
    %v3477 = vunpack.c.l.b16 %v3457
    %v3478 = vunpack.c.l.b16 %v3458
    %v3479 = vunpack.c.l.b16 %v3459
    %v3480 = vunpack.c.l.b16 %v3460
    %v3481 = vunpack.c.l.b16 %v3461
    %v3482 = vunpack.c.l.b16 %v3462
    %v3483 = vpack.c.b16 %v3478, %v3477
    %v3484 = vpack.c.b16 %v3480, %v3479
    %v3485 = vpack.c.b16 %v3482, %v3481
    %v3490 = vsel %vm618, %v3463, 0
    %3492 = vmatprep.subr.bf16.mxu0 0
    %3493 = vmatpush1.bf16.msra.mxu0 %v3483
    %3494 = vmatprep.subr.bf16.mxu0 0
    %3495 = vmatpush1.bf16.msra.mxu0 %v3484
    %3496 = vmatprep.subr.bf16.mxu0 0
    %3497 = vmatpush1.bf16.msra.mxu0 %v3485
    %3498 = vmatprep.subr.bf16.mxu0 0
    %3499 = vmatpush1.bf16.msra.mxu0 0
    %3500 = vmatprep.subr.bf16.mxu0 0
    %3501 = vmatpush1.bf16.msra.mxu0 0
    %3502 = vmatprep.subr.bf16.mxu0 0
    %3503 = vmatpush1.bf16.msra.mxu0 0
    %3504 = vmatprep.subr.bf16.mxu0 0
    %3505 = vmatpush1.bf16.msra.mxu0 0
    %3506 = vmatprep.subr.bf16.mxu0 0
    %3507 = vmatpush1.bf16.msra.mxu0 0
    %3508 = vmatprep.subr.bf16.mxu0 0
    %3509 = vmatpush1.bf16.msra.mxu0 0
    %3510 = vmatprep.subr.bf16.mxu0 0
    %3511 = vmatpush1.bf16.msra.mxu0 0
    %3512 = vmatprep.subr.bf16.mxu0 0
    %3513 = vmatpush1.bf16.msra.mxu0 0
    %3514 = vmatprep.subr.bf16.mxu0 0
    %3515 = vmatpush1.bf16.msra.mxu0 0
    %3516 = vmatprep.subr.bf16.mxu0 0
    %3517 = vmatpush1.bf16.msra.mxu0 0
    %3518 = vmatprep.subr.bf16.mxu0 0
    %3519 = vmatpush1.bf16.msra.mxu0 0
    %3520 = vmatprep.subr.bf16.mxu0 0
    %3521 = vmatpush1.bf16.msra.mxu0 0
    %3522 = vmatprep.subr.bf16.mxu0 0
    %3523 = vmatpush1.bf16.msra.mxu0 0
    %3524 = vmatprep.mubr.bf16.mxu0 0
    %3525 = vmatmul.mubr.bf16.gmra.mrb[0].mxu0 %v3490
    %v3526 = vpop.f32.mrb[0].mxu0
    %v3527 = vadd.f32 %v3469, %v3526
    %v3528 = vpop.f32.mrb[0].mxu0
    %v3529 = vpop.f32.mrb[0].mxu0
    %v3530 = vpop.f32.mrb[0].mxu0
    %3531 = vdwg.mxu0
    %v3532 = vld [vmem:[%s39] sm:$0xf]
    %v3533 = vld [vmem:[%s39 + $0x4] sm:$0xf]
    %v3534 = vld [vmem:[%s39 + $0x8] sm:$0xf]
    %v3535 = vld [vmem:[%s39 + $0xc] sm:$0xf]
    %v3536 = vld [vmem:[%s39 + $0x10] sm:$0xf]
    %v3537 = vld [vmem:[%s39 + $0x14] sm:$0xf]
    %v3538 = vld [vmem:[%s29] sm:$0x1]
    %v3540 = vlaneseq
    %v3541 = vshrl.u32 %v3540, 7
    %v3542 = vsub.s32 0, %v3541
    %v3543 = vrot.slane %v3538, %v3542
    %v3551 = vunpack.c.l.b16 %v3532
    %v3552 = vunpack.c.l.b16 %v3533
    %v3553 = vunpack.c.l.b16 %v3534
    %v3554 = vunpack.c.l.b16 %v3535
    %v3555 = vunpack.c.l.b16 %v3536
    %v3556 = vunpack.c.l.b16 %v3537
    %v3557 = vpack.c.b16 %v3552, %v3551
    %v3558 = vpack.c.b16 %v3554, %v3553
    %v3559 = vpack.c.b16 %v3556, %v3555
    %3563 = vmatprep.subr.bf16.mxu0 0
    %3564 = vmatpush1.bf16.msra.mxu0 %v3557
    %3565 = vmatprep.subr.bf16.mxu0 0
    %3566 = vmatpush1.bf16.msra.mxu0 %v3558
    %3567 = vmatprep.subr.bf16.mxu0 0
    %3568 = vmatpush1.bf16.msra.mxu0 %v3559
    %3569 = vmatprep.subr.bf16.mxu0 0
    %3570 = vmatpush1.bf16.msra.mxu0 0
    %3571 = vmatprep.subr.bf16.mxu0 0
    %3572 = vmatpush1.bf16.msra.mxu0 0
    %3573 = vmatprep.subr.bf16.mxu0 0
    %3574 = vmatpush1.bf16.msra.mxu0 0
    %3575 = vmatprep.subr.bf16.mxu0 0
    %3576 = vmatpush1.bf16.msra.mxu0 0
    %3577 = vmatprep.subr.bf16.mxu0 0
    %3578 = vmatpush1.bf16.msra.mxu0 0
    %3579 = vmatprep.subr.bf16.mxu0 0
    %3580 = vmatpush1.bf16.msra.mxu0 0
    %3581 = vmatprep.subr.bf16.mxu0 0
    %3582 = vmatpush1.bf16.msra.mxu0 0
    %3583 = vmatprep.subr.bf16.mxu0 0
    %3584 = vmatpush1.bf16.msra.mxu0 0
    %3585 = vmatprep.subr.bf16.mxu0 0
    %3586 = vmatpush1.bf16.msra.mxu0 0
    %3587 = vmatprep.subr.bf16.mxu0 0
    %3588 = vmatpush1.bf16.msra.mxu0 0
    %3589 = vmatprep.subr.bf16.mxu0 0
    %3590 = vmatpush1.bf16.msra.mxu0 0
    %3591 = vmatprep.subr.bf16.mxu0 0
    %3592 = vmatpush1.bf16.msra.mxu0 0
    %3593 = vmatprep.subr.bf16.mxu0 0
    %3594 = vmatpush1.bf16.msra.mxu0 0
    %3595 = vmatprep.mubr.bf16.mxu0 0
    %3596 = vmatmul.mubr.bf16.gmra.mrb[0].mxu0 %v3490
    %v3597 = vpop.f32.mrb[0].mxu0
    %v3598 = vadd.f32 %v3543, %v3597
    %v3599 = vpop.f32.mrb[0].mxu0
    %v3600 = vpop.f32.mrb[0].mxu0
    %v3601 = vpop.f32.mrb[0].mxu0
    %3602 = vdwg.mxu0
    %v3603 = vld [vmem:[#allocation3] sm:$0xff]
    %v3604 = vld [vmem:[#allocation3 + $0x8] sm:$0xff]
    %v3605 = vpack.c.bf16 %v3604, %v3603
    %v3607 = vsel %vm618, %v3605, 0
    %3609 = vmatprep.subr.bf16.mxu0 0
    %3610 = vmatpush1.bf16.msra.mxu0 %v3557
    %3611 = vmatprep.subr.bf16.mxu0 0
    %3612 = vmatpush1.bf16.msra.mxu0 %v3558
    %3613 = vmatprep.subr.bf16.mxu0 0
    %3614 = vmatpush1.bf16.msra.mxu0 %v3559
    %3615 = vmatprep.subr.bf16.mxu0 0
    %3616 = vmatpush1.bf16.msra.mxu0 0
    %3617 = vmatprep.subr.bf16.mxu0 0
    %3618 = vmatpush1.bf16.msra.mxu0 0
    %3619 = vmatprep.subr.bf16.mxu0 0
    %3620 = vmatpush1.bf16.msra.mxu0 0
    %3621 = vmatprep.subr.bf16.mxu0 0
    %3622 = vmatpush1.bf16.msra.mxu0 0
    %3623 = vmatprep.subr.bf16.mxu0 0
    %3624 = vmatpush1.bf16.msra.mxu0 0
    %3625 = vmatprep.subr.bf16.mxu0 0
    %3626 = vmatpush1.bf16.msra.mxu0 0
    %3627 = vmatprep.subr.bf16.mxu0 0
    %3628 = vmatpush1.bf16.msra.mxu0 0
    %3629 = vmatprep.subr.bf16.mxu0 0
    %3630 = vmatpush1.bf16.msra.mxu0 0
    %3631 = vmatprep.subr.bf16.mxu0 0
    %3632 = vmatpush1.bf16.msra.mxu0 0
    %3633 = vmatprep.subr.bf16.mxu0 0
    %3634 = vmatpush1.bf16.msra.mxu0 0
    %3635 = vmatprep.subr.bf16.mxu0 0
    %3636 = vmatpush1.bf16.msra.mxu0 0
    %3637 = vmatprep.subr.bf16.mxu0 0
    %3638 = vmatpush1.bf16.msra.mxu0 0
    %3639 = vmatprep.subr.bf16.mxu0 0
    %3640 = vmatpush1.bf16.msra.mxu0 0
    %3641 = vmatprep.mubr.bf16.mxu0 0
    %3642 = vmatmul.mubr.bf16.gmra.mrb[0].mxu0 %v3607
    %v3643 = vpop.f32.mrb[0].mxu0
    %v3644 = vadd.f32 %v3543, %v3643
    %v3645 = vpop.f32.mrb[0].mxu0
    %v3646 = vpop.f32.mrb[0].mxu0
    %v3647 = vadd.f32 %v3543, %v3646
    %v3648 = vpop.f32.mrb[0].mxu0
    %3649 = vdwg.mxu0
    %v3650 = vmul.f32 %v3527, %v3598
    %v3651 = vsel %vm1515, %v3650, 0.0
    %3652 = vadd.xlane.f32.xlu0 %v3651
    %v3653 = vpop.xlane.xlu0 %3652
    %v3654 = vpack.c.bf16 %v3527, %v3527
    %v3655 = vpack.c.bf16 %v3644, %v3644
    %v3657 = vsel %vm1350, %v3654, 0
    %v3660 = vsel %vm1350, %v3655, 0
    %3662 = vmatprep.subr.bf16.mxu0 0
    %3663 = vmatpush1.bf16.xpose.msra.mxu0 %v3660
    %3664 = vmatprep.subr.bf16.mxu0 0
    %3665 = vmatpush1.bf16.xpose.msra.mxu0 0
    %3666 = vmatprep.subr.bf16.mxu0 0
    %3667 = vmatpush1.bf16.xpose.msra.mxu0 0
    %3668 = vmatprep.subr.bf16.mxu0 0
    %3669 = vmatpush1.bf16.xpose.msra.mxu0 0
    %3670 = vmatprep.subr.bf16.mxu0 0
    %3671 = vmatpush1.bf16.xpose.msra.mxu0 0
    %3672 = vmatprep.subr.bf16.mxu0 0
    %3673 = vmatpush1.bf16.xpose.msra.mxu0 0
    %3674 = vmatprep.subr.bf16.mxu0 0
    %3675 = vmatpush1.bf16.xpose.msra.mxu0 0
    %3676 = vmatprep.subr.bf16.mxu0 0
    %3677 = vmatpush1.bf16.xpose.msra.mxu0 0
    %3678 = vmatprep.subr.bf16.mxu0 0
    %3679 = vmatpush1.bf16.xpose.msra.mxu0 0
    %3680 = vmatprep.subr.bf16.mxu0 0
    %3681 = vmatpush1.bf16.xpose.msra.mxu0 0
    %3682 = vmatprep.subr.bf16.mxu0 0
    %3683 = vmatpush1.bf16.xpose.msra.mxu0 0
    %3684 = vmatprep.subr.bf16.mxu0 0
    %3685 = vmatpush1.bf16.xpose.msra.mxu0 0
    %3686 = vmatprep.subr.bf16.mxu0 0
    %3687 = vmatpush1.bf16.xpose.msra.mxu0 0
    %3688 = vmatprep.subr.bf16.mxu0 0
    %3689 = vmatpush1.bf16.xpose.msra.mxu0 0
    %3690 = vmatprep.subr.bf16.mxu0 0
    %3691 = vmatpush1.bf16.xpose.msra.mxu0 0
    %3692 = vmatprep.subr.bf16.mxu0 0
    %3693 = vmatpush1.bf16.xpose.msra.mxu0 0
    %3694 = vmatprep.mubr.bf16.mxu0 0
    %3695 = vmatmul.mubr.bf16.gmra.mrb[0].mxu0 %v3657
    %v3696 = vpop.f32.mrb[0].mxu0
    %v3697 = vadd.f32 0.0, %v3696
    %v3698 = vpop.f32.mrb[0].mxu0
    %v3699 = vpop.f32.mrb[0].mxu0
    %v3700 = vpop.f32.mrb[0].mxu0
    %3701 = vdwg.mxu0
    %vm3702 = vcmask 24576
    %v3703 = vsel %vm3702, %v3697, -inf
    %3704 = vmax.xlane.f32.xlu0 %v3703
    %v3705 = vpop.xlane.xlu0 %3704
    %v3706 = vmax.f32 %v3653, %v3705
    %v3707 = vsub.f32 %v3653, %v3706
    %v3708 = vmul.f32 %v3707, 1.442695
    %v3709 = vpow.pop %v3708
    %v3710 = vsub.f32 %v3697, %v3706
    %v3711 = vmul.f32 %v3710, 1.442695
    %v3712 = vpow.pop %v3711
    %v3713 = vsel %vm3702, %v3712, 0.0
    %3714 = vadd.xlane.f32.xlu0 %v3713
    %v3715 = vpop.xlane.xlu0 %3714
    %v3716 = vadd.f32 %v3709, %v3715
    %v3717 = vrcp.pop %v3716
    %v3718 = vmul.f32 %v3709, %v3598
    %v3719 = vpack.c.bf16 %v3712, %v3712
    %3721 = vrot.lane.b32.xlu0 %v3655, 96
    %v3722 = vpop.permute.xlu0 %3721
    %vm3723 = vcmask 31744
    %v3725 = vsel %vm3723, %v3719, 0
    %v3728 = vsel %vm2700, %v3722, 0
    %3730 = vmatprep.subr.bf16.mxu0 0
    %3731 = vmatpush1.bf16.msra.mxu0 %v3728
    %3732 = vmatprep.subr.bf16.mxu0 0
    %3733 = vmatpush1.bf16.msra.mxu0 0
    %3734 = vmatprep.subr.bf16.mxu0 0
    %3735 = vmatpush1.bf16.msra.mxu0 0
    %3736 = vmatprep.subr.bf16.mxu0 0
    %3737 = vmatpush1.bf16.msra.mxu0 0
    %3738 = vmatprep.subr.bf16.mxu0 0
    %3739 = vmatpush1.bf16.msra.mxu0 0
    %3740 = vmatprep.subr.bf16.mxu0 0
    %3741 = vmatpush1.bf16.msra.mxu0 0
    %3742 = vmatprep.subr.bf16.mxu0 0
    %3743 = vmatpush1.bf16.msra.mxu0 0
    %3744 = vmatprep.subr.bf16.mxu0 0
    %3745 = vmatpush1.bf16.msra.mxu0 0
    %3746 = vmatprep.subr.bf16.mxu0 0
    %3747 = vmatpush1.bf16.msra.mxu0 0
    %3748 = vmatprep.subr.bf16.mxu0 0
    %3749 = vmatpush1.bf16.msra.mxu0 0
    %3750 = vmatprep.subr.bf16.mxu0 0
    %3751 = vmatpush1.bf16.msra.mxu0 0
    %3752 = vmatprep.subr.bf16.mxu0 0
    %3753 = vmatpush1.bf16.msra.mxu0 0
    %3754 = vmatprep.subr.bf16.mxu0 0
    %3755 = vmatpush1.bf16.msra.mxu0 0
    %3756 = vmatprep.subr.bf16.mxu0 0
    %3757 = vmatpush1.bf16.msra.mxu0 0
    %3758 = vmatprep.subr.bf16.mxu0 0
    %3759 = vmatpush1.bf16.msra.mxu0 0
    %3760 = vmatprep.subr.bf16.mxu0 0
    %3761 = vmatpush1.bf16.msra.mxu0 0
    %3762 = vmatprep.mubr.bf16.mxu0 0
    %3763 = vmatmul.mubr.bf16.gmra.mrb[0].mxu0 %v3725
    %v3764 = vpop.f32.mrb[0].mxu0
    %v3765 = vadd.f32 0.0, %v3764
    %v3766 = vpop.f32.mrb[0].mxu0
    %v3767 = vpop.f32.mrb[0].mxu0
    %v3768 = vpop.f32.mrb[0].mxu0
    %3769 = vdwg.mxu0
    %3771 = vrot.lane.b32.xlu0 %v3765, 32
    %v3772 = vpop.permute.xlu0 %3771
    %v3774 = vadd.f32 %v3718, %v3772
    %v3775 = vmul.f32 %v3774, %v3717
    %3777 = vrot.lane.b32.xlu0 %v3775, 32
    %v3778 = vpop.permute.xlu0 %3777
    %vm3780 = vcmask 647680
    %3781 = vst.msk [vmem:[#allocation4] sm:$0x1] %vm3780, %v3778
    %3783 = vrot.lane.b32.xlu0 %v3650, 112
    %v3784 = vpop.permute.xlu0 %3783
    %v3786 = vsel %vm1515, %v3784, 0.0
    %3787 = vadd.xlane.f32.xlu0 %v3786
    %v3788 = vpop.xlane.xlu0 %3787
    %3790 = vrot.lane.b32.xlu0 %v3654, 112
    %v3791 = vpop.permute.xlu0 %3790
    %3792 = vrot.lane.b32.xlu0 %v3655, 112
    %v3793 = vpop.permute.xlu0 %3792
    %v3795 = vsel %vm1350, %v3791, 0
    %v3798 = vsel %vm1350, %v3793, 0
    %3800 = vmatprep.subr.bf16.mxu0 0
    %3801 = vmatpush1.bf16.xpose.msra.mxu0 %v3798
    %3802 = vmatprep.subr.bf16.mxu0 0
    %3803 = vmatpush1.bf16.xpose.msra.mxu0 0
    %3804 = vmatprep.subr.bf16.mxu0 0
    %3805 = vmatpush1.bf16.xpose.msra.mxu0 0
    %3806 = vmatprep.subr.bf16.mxu0 0
    %3807 = vmatpush1.bf16.xpose.msra.mxu0 0
    %3808 = vmatprep.subr.bf16.mxu0 0
    %3809 = vmatpush1.bf16.xpose.msra.mxu0 0
    %3810 = vmatprep.subr.bf16.mxu0 0
    %3811 = vmatpush1.bf16.xpose.msra.mxu0 0
    %3812 = vmatprep.subr.bf16.mxu0 0
    %3813 = vmatpush1.bf16.xpose.msra.mxu0 0
    %3814 = vmatprep.subr.bf16.mxu0 0
    %3815 = vmatpush1.bf16.xpose.msra.mxu0 0
    %3816 = vmatprep.subr.bf16.mxu0 0
    %3817 = vmatpush1.bf16.xpose.msra.mxu0 0
    %3818 = vmatprep.subr.bf16.mxu0 0
    %3819 = vmatpush1.bf16.xpose.msra.mxu0 0
    %3820 = vmatprep.subr.bf16.mxu0 0
    %3821 = vmatpush1.bf16.xpose.msra.mxu0 0
    %3822 = vmatprep.subr.bf16.mxu0 0
    %3823 = vmatpush1.bf16.xpose.msra.mxu0 0
    %3824 = vmatprep.subr.bf16.mxu0 0
    %3825 = vmatpush1.bf16.xpose.msra.mxu0 0
    %3826 = vmatprep.subr.bf16.mxu0 0
    %3827 = vmatpush1.bf16.xpose.msra.mxu0 0
    %3828 = vmatprep.subr.bf16.mxu0 0
    %3829 = vmatpush1.bf16.xpose.msra.mxu0 0
    %3830 = vmatprep.subr.bf16.mxu0 0
    %3831 = vmatpush1.bf16.xpose.msra.mxu0 0
    %3832 = vmatprep.mubr.bf16.mxu0 0
    %3833 = vmatmul.mubr.bf16.gmra.mrb[0].mxu0 %v3795
    %v3834 = vpop.f32.mrb[0].mxu0
    %v3835 = vadd.f32 0.0, %v3834
    %v3836 = vpop.f32.mrb[0].mxu0
    %v3837 = vpop.f32.mrb[0].mxu0
    %v3838 = vpop.f32.mrb[0].mxu0
    %3839 = vdwg.mxu0
    %v3840 = vsel %vm3702, %v3835, -inf
    %3841 = vmax.xlane.f32.xlu0 %v3840
    %v3842 = vpop.xlane.xlu0 %3841
    %v3843 = vmax.f32 %v3788, %v3842
    %v3844 = vsub.f32 %v3788, %v3843
    %v3845 = vmul.f32 %v3844, 1.442695
    %v3846 = vpow.pop %v3845
    %v3847 = vsub.f32 %v3835, %v3843
    %v3848 = vmul.f32 %v3847, 1.442695
    %v3849 = vpow.pop %v3848
    %v3850 = vsel %vm3702, %v3849, 0.0
    %3851 = vadd.xlane.f32.xlu0 %v3850
    %v3852 = vpop.xlane.xlu0 %3851
    %v3853 = vadd.f32 %v3846, %v3852
    %v3854 = vrcp.pop %v3853
    %v3855 = vmul.f32 %v3846, %v3598
    %v3856 = vpack.c.bf16 %v3849, %v3849
    %3857 = vrot.lane.b32.xlu0 %v3655, 80
    %v3858 = vpop.permute.xlu0 %3857
    %v3860 = vsel %vm3723, %v3856, 0
    %v3863 = vsel %vm2700, %v3858, 0
    %3865 = vmatprep.subr.bf16.mxu0 0
    %3866 = vmatpush1.bf16.msra.mxu0 %v3863
    %3867 = vmatprep.subr.bf16.mxu0 0
    %3868 = vmatpush1.bf16.msra.mxu0 0
    %3869 = vmatprep.subr.bf16.mxu0 0
    %3870 = vmatpush1.bf16.msra.mxu0 0
    %3871 = vmatprep.subr.bf16.mxu0 0
    %3872 = vmatpush1.bf16.msra.mxu0 0
    %3873 = vmatprep.subr.bf16.mxu0 0
    %3874 = vmatpush1.bf16.msra.mxu0 0
    %3875 = vmatprep.subr.bf16.mxu0 0
    %3876 = vmatpush1.bf16.msra.mxu0 0
    %3877 = vmatprep.subr.bf16.mxu0 0
    %3878 = vmatpush1.bf16.msra.mxu0 0
    %3879 = vmatprep.subr.bf16.mxu0 0
    %3880 = vmatpush1.bf16.msra.mxu0 0
    %3881 = vmatprep.subr.bf16.mxu0 0
    %3882 = vmatpush1.bf16.msra.mxu0 0
    %3883 = vmatprep.subr.bf16.mxu0 0
    %3884 = vmatpush1.bf16.msra.mxu0 0
    %3885 = vmatprep.subr.bf16.mxu0 0
    %3886 = vmatpush1.bf16.msra.mxu0 0
    %3887 = vmatprep.subr.bf16.mxu0 0
    %3888 = vmatpush1.bf16.msra.mxu0 0
    %3889 = vmatprep.subr.bf16.mxu0 0
    %3890 = vmatpush1.bf16.msra.mxu0 0
    %3891 = vmatprep.subr.bf16.mxu0 0
    %3892 = vmatpush1.bf16.msra.mxu0 0
    %3893 = vmatprep.subr.bf16.mxu0 0
    %3894 = vmatpush1.bf16.msra.mxu0 0
    %3895 = vmatprep.subr.bf16.mxu0 0
    %3896 = vmatpush1.bf16.msra.mxu0 0
    %3897 = vmatprep.mubr.bf16.mxu0 0
    %3898 = vmatmul.mubr.bf16.gmra.mrb[0].mxu0 %v3860
    %v3899 = vpop.f32.mrb[0].mxu0
    %v3900 = vadd.f32 0.0, %v3899
    %v3901 = vpop.f32.mrb[0].mxu0
    %v3902 = vpop.f32.mrb[0].mxu0
    %v3903 = vpop.f32.mrb[0].mxu0
    %3904 = vdwg.mxu0
    %3906 = vrot.lane.b32.xlu0 %v3900, 48
    %v3907 = vpop.permute.xlu0 %3906
    %v3909 = vadd.f32 %v3855, %v3907
    %v3910 = vmul.f32 %v3909, %v3854
    %3912 = vrot.lane.b32.xlu0 %v3910, 32
    %v3913 = vpop.permute.xlu0 %3912
    %vm3915 = vcmask 778880
    %3916 = vst.msk [vmem:[#allocation4] sm:$0x1] %vm3915, %v3913
    %vm3917 = vcmask 123905
    %v3918 = vsel %vm3917, %v3650, 0.0
    %3919 = vadd.xlane.f32.xlu0 %v3918
    %v3920 = vpop.xlane.xlu0 %3919
    %v3921 = vpack.c.bf16 %v3647, %v3647
    %v3922 = vshrl.u32 %v3654, 16
    %v3925 = vsel %vm1350, %v3922, 0
    %v3928 = vsel %vm1350, %v3921, 0
    %3930 = vmatprep.subr.bf16.mxu0 0
    %3931 = vmatpush1.bf16.xpose.msra.mxu0 %v3928
    %3932 = vmatprep.subr.bf16.mxu0 0
    %3933 = vmatpush1.bf16.xpose.msra.mxu0 0
    %3934 = vmatprep.subr.bf16.mxu0 0
    %3935 = vmatpush1.bf16.xpose.msra.mxu0 0
    %3936 = vmatprep.subr.bf16.mxu0 0
    %3937 = vmatpush1.bf16.xpose.msra.mxu0 0
    %3938 = vmatprep.subr.bf16.mxu0 0
    %3939 = vmatpush1.bf16.xpose.msra.mxu0 0
    %3940 = vmatprep.subr.bf16.mxu0 0
    %3941 = vmatpush1.bf16.xpose.msra.mxu0 0
    %3942 = vmatprep.subr.bf16.mxu0 0
    %3943 = vmatpush1.bf16.xpose.msra.mxu0 0
    %3944 = vmatprep.subr.bf16.mxu0 0
    %3945 = vmatpush1.bf16.xpose.msra.mxu0 0
    %3946 = vmatprep.subr.bf16.mxu0 0
    %3947 = vmatpush1.bf16.xpose.msra.mxu0 0
    %3948 = vmatprep.subr.bf16.mxu0 0
    %3949 = vmatpush1.bf16.xpose.msra.mxu0 0
    %3950 = vmatprep.subr.bf16.mxu0 0
    %3951 = vmatpush1.bf16.xpose.msra.mxu0 0
    %3952 = vmatprep.subr.bf16.mxu0 0
    %3953 = vmatpush1.bf16.xpose.msra.mxu0 0
    %3954 = vmatprep.subr.bf16.mxu0 0
    %3955 = vmatpush1.bf16.xpose.msra.mxu0 0
    %3956 = vmatprep.subr.bf16.mxu0 0
    %3957 = vmatpush1.bf16.xpose.msra.mxu0 0
    %3958 = vmatprep.subr.bf16.mxu0 0
    %3959 = vmatpush1.bf16.xpose.msra.mxu0 0
    %3960 = vmatprep.subr.bf16.mxu0 0
    %3961 = vmatpush1.bf16.xpose.msra.mxu0 0
    %3962 = vmatprep.mubr.bf16.mxu0 0
    %3963 = vmatmul.mubr.bf16.gmra.mrb[0].mxu0 %v3925
    %v3964 = vpop.f32.mrb[0].mxu0
    %v3965 = vadd.f32 0.0, %v3964
    %v3966 = vpop.f32.mrb[0].mxu0
    %v3967 = vpop.f32.mrb[0].mxu0
    %v3968 = vpop.f32.mrb[0].mxu0
    %3969 = vdwg.mxu0
    %v3970 = vsel %vm3702, %v3965, -inf
    %3971 = vmax.xlane.f32.xlu0 %v3970
    %v3972 = vpop.xlane.xlu0 %3971
    %v3974 = vrot.slane %v3972, 7
    %v3976 = vmax.f32 %v3920, %v3974
    %v3977 = vsub.f32 %v3920, %v3976
    %v3978 = vmul.f32 %v3977, 1.442695
    %v3979 = vpow.pop %v3978
    %3981 = vset.pattern.permute.xlu0 0
    %3982 = vperm.xlu0 %3981, %v3976
    %v3983 = vpop.permute.xlu0 %3982
    %v3984 = vrot.slane %v3983, 1
    %v3986 = vsub.f32 %v3965, %v3984
    %v3987 = vmul.f32 %v3986, 1.442695
    %v3988 = vpow.pop %v3987
    %v3989 = vsel %vm3702, %v3988, 0.0
    %3990 = vadd.xlane.f32.xlu0 %v3989
    %v3991 = vpop.xlane.xlu0 %3990
    %v3993 = vrot.slane %v3991, 7
    %v3995 = vadd.f32 %v3979, %v3993
    %v3996 = vrcp.pop %v3995
    %3998 = vset.pattern.permute.xlu0 0
    %3999 = vperm.xlu0 %3998, %v3979
    %v4000 = vpop.permute.xlu0 %3999
    %v4002 = vmul.f32 %v4000, %v3598
    %v4003 = vpack.c.bf16 %v3988, %v3988
    %4005 = vrot.lane.b32.xlu0 %v3921, 96
    %v4006 = vpop.permute.xlu0 %4005
    %v4008 = vsel %vm3723, %v4003, 0
    %v4011 = vsel %vm2700, %v4006, 0
    %4013 = vmatprep.subr.bf16.mxu0 0
    %4014 = vmatpush1.bf16.msra.mxu0 %v4011
    %4015 = vmatprep.subr.bf16.mxu0 0
    %4016 = vmatpush1.bf16.msra.mxu0 0
    %4017 = vmatprep.subr.bf16.mxu0 0
    %4018 = vmatpush1.bf16.msra.mxu0 0
    %4019 = vmatprep.subr.bf16.mxu0 0
    %4020 = vmatpush1.bf16.msra.mxu0 0
    %4021 = vmatprep.subr.bf16.mxu0 0
    %4022 = vmatpush1.bf16.msra.mxu0 0
    %4023 = vmatprep.subr.bf16.mxu0 0
    %4024 = vmatpush1.bf16.msra.mxu0 0
    %4025 = vmatprep.subr.bf16.mxu0 0
    %4026 = vmatpush1.bf16.msra.mxu0 0
    %4027 = vmatprep.subr.bf16.mxu0 0
    %4028 = vmatpush1.bf16.msra.mxu0 0
    %4029 = vmatprep.subr.bf16.mxu0 0
    %4030 = vmatpush1.bf16.msra.mxu0 0
    %4031 = vmatprep.subr.bf16.mxu0 0
    %4032 = vmatpush1.bf16.msra.mxu0 0
    %4033 = vmatprep.subr.bf16.mxu0 0
    %4034 = vmatpush1.bf16.msra.mxu0 0
    %4035 = vmatprep.subr.bf16.mxu0 0
    %4036 = vmatpush1.bf16.msra.mxu0 0
    %4037 = vmatprep.subr.bf16.mxu0 0
    %4038 = vmatpush1.bf16.msra.mxu0 0
    %4039 = vmatprep.subr.bf16.mxu0 0
    %4040 = vmatpush1.bf16.msra.mxu0 0
    %4041 = vmatprep.subr.bf16.mxu0 0
    %4042 = vmatpush1.bf16.msra.mxu0 0
    %4043 = vmatprep.subr.bf16.mxu0 0
    %4044 = vmatpush1.bf16.msra.mxu0 0
    %4045 = vmatprep.mubr.bf16.mxu0 0
    %4046 = vmatmul.mubr.bf16.gmra.mrb[0].mxu0 %v4008
    %v4047 = vpop.f32.mrb[0].mxu0
    %v4048 = vadd.f32 0.0, %v4047
    %v4049 = vpop.f32.mrb[0].mxu0
    %v4050 = vpop.f32.mrb[0].mxu0
    %v4051 = vpop.f32.mrb[0].mxu0
    %4052 = vdwg.mxu0
    %v4054 = vrot.slane %v4048, 7
    %4055 = vrot.lane.b32.xlu0 %v4054, 32
    %v4056 = vpop.permute.xlu0 %4055
    %v4058 = vadd.f32 %v4002, %v4056
    %4060 = vset.pattern.permute.xlu0 0
    %4061 = vperm.xlu0 %4060, %v3996
    %v4062 = vpop.permute.xlu0 %4061
    %v4064 = vmul.f32 %v4058, %v4062
    %4066 = vrot.lane.b32.xlu0 %v4064, 32
    %v4067 = vpop.permute.xlu0 %4066
    %vm4069 = vcmask 648705
    %4070 = vst.msk [vmem:[#allocation4] sm:$0x2] %vm4069, %v4067
    %v4071 = vsel %vm3917, %v3784, 0.0
    %4072 = vadd.xlane.f32.xlu0 %v4071
    %v4073 = vpop.xlane.xlu0 %4072
    %4074 = vrot.lane.b32.xlu0 %v3922, 112
    %v4075 = vpop.permute.xlu0 %4074
    %4076 = vrot.lane.b32.xlu0 %v3921, 112
    %v4077 = vpop.permute.xlu0 %4076
    %v4079 = vsel %vm1350, %v4075, 0
    %v4082 = vsel %vm1350, %v4077, 0
    %4084 = vmatprep.subr.bf16.mxu0 0
    %4085 = vmatpush1.bf16.xpose.msra.mxu0 %v4082
    %4086 = vmatprep.subr.bf16.mxu0 0
    %4087 = vmatpush1.bf16.xpose.msra.mxu0 0
    %4088 = vmatprep.subr.bf16.mxu0 0
    %4089 = vmatpush1.bf16.xpose.msra.mxu0 0
    %4090 = vmatprep.subr.bf16.mxu0 0
    %4091 = vmatpush1.bf16.xpose.msra.mxu0 0
    %4092 = vmatprep.subr.bf16.mxu0 0
    %4093 = vmatpush1.bf16.xpose.msra.mxu0 0
    %4094 = vmatprep.subr.bf16.mxu0 0
    %4095 = vmatpush1.bf16.xpose.msra.mxu0 0
    %4096 = vmatprep.subr.bf16.mxu0 0
    %4097 = vmatpush1.bf16.xpose.msra.mxu0 0
    %4098 = vmatprep.subr.bf16.mxu0 0
    %4099 = vmatpush1.bf16.xpose.msra.mxu0 0
    %4100 = vmatprep.subr.bf16.mxu0 0
    %4101 = vmatpush1.bf16.xpose.msra.mxu0 0
    %4102 = vmatprep.subr.bf16.mxu0 0
    %4103 = vmatpush1.bf16.xpose.msra.mxu0 0
    %4104 = vmatprep.subr.bf16.mxu0 0
    %4105 = vmatpush1.bf16.xpose.msra.mxu0 0
    %4106 = vmatprep.subr.bf16.mxu0 0
    %4107 = vmatpush1.bf16.xpose.msra.mxu0 0
    %4108 = vmatprep.subr.bf16.mxu0 0
    %4109 = vmatpush1.bf16.xpose.msra.mxu0 0
    %4110 = vmatprep.subr.bf16.mxu0 0
    %4111 = vmatpush1.bf16.xpose.msra.mxu0 0
    %4112 = vmatprep.subr.bf16.mxu0 0
    %4113 = vmatpush1.bf16.xpose.msra.mxu0 0
    %4114 = vmatprep.subr.bf16.mxu0 0
    %4115 = vmatpush1.bf16.xpose.msra.mxu0 0
    %4116 = vmatprep.mubr.bf16.mxu0 0
    %4117 = vmatmul.mubr.bf16.gmra.mrb[0].mxu0 %v4079
    %v4118 = vpop.f32.mrb[0].mxu0
    %v4119 = vadd.f32 0.0, %v4118
    %v4120 = vpop.f32.mrb[0].mxu0
    %v4121 = vpop.f32.mrb[0].mxu0
    %v4122 = vpop.f32.mrb[0].mxu0
    %4123 = vdwg.mxu0
    %v4124 = vsel %vm3702, %v4119, -inf
    %4125 = vmax.xlane.f32.xlu0 %v4124
    %v4126 = vpop.xlane.xlu0 %4125
    %v4128 = vrot.slane %v4126, 7
    %v4130 = vmax.f32 %v4073, %v4128
    %v4131 = vsub.f32 %v4073, %v4130
    %v4132 = vmul.f32 %v4131, 1.442695
    %v4133 = vpow.pop %v4132
    %4135 = vset.pattern.permute.xlu0 0
    %4136 = vperm.xlu0 %4135, %v4130
    %v4137 = vpop.permute.xlu0 %4136
    %v4138 = vrot.slane %v4137, 1
    %v4140 = vsub.f32 %v4119, %v4138
    %v4141 = vmul.f32 %v4140, 1.442695
    %v4142 = vpow.pop %v4141
    %v4143 = vsel %vm3702, %v4142, 0.0
    %4144 = vadd.xlane.f32.xlu0 %v4143
    %v4145 = vpop.xlane.xlu0 %4144
    %v4147 = vrot.slane %v4145, 7
    %v4149 = vadd.f32 %v4133, %v4147
    %v4150 = vrcp.pop %v4149
    %4152 = vset.pattern.permute.xlu0 0
    %4153 = vperm.xlu0 %4152, %v4133
    %v4154 = vpop.permute.xlu0 %4153
    %v4156 = vmul.f32 %v4154, %v3598
    %v4157 = vpack.c.bf16 %v4142, %v4142
    %4158 = vrot.lane.b32.xlu0 %v3921, 80
    %v4159 = vpop.permute.xlu0 %4158
    %v4161 = vsel %vm3723, %v4157, 0
    %v4164 = vsel %vm2700, %v4159, 0
    %4166 = vmatprep.subr.bf16.mxu0 0
    %4167 = vmatpush1.bf16.msra.mxu0 %v4164
    %4168 = vmatprep.subr.bf16.mxu0 0
    %4169 = vmatpush1.bf16.msra.mxu0 0
    %4170 = vmatprep.subr.bf16.mxu0 0
    %4171 = vmatpush1.bf16.msra.mxu0 0
    %4172 = vmatprep.subr.bf16.mxu0 0
    %4173 = vmatpush1.bf16.msra.mxu0 0
    %4174 = vmatprep.subr.bf16.mxu0 0
    %4175 = vmatpush1.bf16.msra.mxu0 0
    %4176 = vmatprep.subr.bf16.mxu0 0
    %4177 = vmatpush1.bf16.msra.mxu0 0
    %4178 = vmatprep.subr.bf16.mxu0 0
    %4179 = vmatpush1.bf16.msra.mxu0 0
    %4180 = vmatprep.subr.bf16.mxu0 0
    %4181 = vmatpush1.bf16.msra.mxu0 0
    %4182 = vmatprep.subr.bf16.mxu0 0
    %4183 = vmatpush1.bf16.msra.mxu0 0
    %4184 = vmatprep.subr.bf16.mxu0 0
    %4185 = vmatpush1.bf16.msra.mxu0 0
    %4186 = vmatprep.subr.bf16.mxu0 0
    %4187 = vmatpush1.bf16.msra.mxu0 0
    %4188 = vmatprep.subr.bf16.mxu0 0
    %4189 = vmatpush1.bf16.msra.mxu0 0
    %4190 = vmatprep.subr.bf16.mxu0 0
    %4191 = vmatpush1.bf16.msra.mxu0 0
    %4192 = vmatprep.subr.bf16.mxu0 0
    %4193 = vmatpush1.bf16.msra.mxu0 0
    %4194 = vmatprep.subr.bf16.mxu0 0
    %4195 = vmatpush1.bf16.msra.mxu0 0
    %4196 = vmatprep.subr.bf16.mxu0 0
    %4197 = vmatpush1.bf16.msra.mxu0 0
    %4198 = vmatprep.mubr.bf16.mxu0 0
    %4199 = vmatmul.mubr.bf16.gmra.mrb[0].mxu0 %v4161
    %v4200 = vpop.f32.mrb[0].mxu0
    %v4201 = vadd.f32 0.0, %v4200
    %v4202 = vpop.f32.mrb[0].mxu0
    %v4203 = vpop.f32.mrb[0].mxu0
    %v4204 = vpop.f32.mrb[0].mxu0
    %4205 = vdwg.mxu0
    %v4207 = vrot.slane %v4201, 7
    %4208 = vrot.lane.b32.xlu0 %v4207, 48
    %v4209 = vpop.permute.xlu0 %4208
    %v4211 = vadd.f32 %v4156, %v4209
    %4213 = vset.pattern.permute.xlu0 0
    %4214 = vperm.xlu0 %4213, %v4150
    %v4215 = vpop.permute.xlu0 %4214
    %v4217 = vmul.f32 %v4211, %v4215
    %4219 = vrot.lane.b32.xlu0 %v4217, 32
    %v4220 = vpop.permute.xlu0 %4219
    %vm4222 = vcmask 779905
    %4223 = vst.msk [vmem:[#allocation4] sm:$0x2] %vm4222, %v4220
    %v4224 = vld [vmem:[#allocation4] sm:$0x3]
    %v4225 = vld [vmem:[%s41] sm:$0xf]
    %v4226 = vld [vmem:[%s41 + $0x4] sm:$0xf]
    %v4227 = vld [vmem:[%s41 + $0x8] sm:$0xf]
    %v4228 = vld [vmem:[%s41 + $0xc] sm:$0xf]
    %v4229 = vpack.c.bf16 %v4224, %v4224
    %v4230 = vld [vmem:[%s31] sm:$0x1]
    %v4232 = vlaneseq
    %v4233 = vshrl.u32 %v4232, 7
    %v4234 = vsub.s32 0, %v4233
    %v4235 = vrot.slane %v4230, %v4234
    %4238 = vrot.lane.b32.xlu0 %v4229, 64
    %v4239 = vpop.permute.xlu0 %4238
    %v4244 = vunpack.c.l.b16 %v4225
    %v4245 = vunpack.c.l.b16 %v4226
    %v4246 = vunpack.c.l.b16 %v4227
    %v4247 = vunpack.c.l.b16 %v4228
    %v4248 = vpack.c.b16 %v4245, %v4244
    %v4249 = vpack.c.b16 %v4247, %v4246
    %v4253 = vsel %vm611, %v4239, 0
    %4255 = vmatprep.subr.bf16.mxu0 0
    %4256 = vmatpush1.bf16.msra.mxu0 %v4248
    %4257 = vmatprep.subr.bf16.mxu0 0
    %4258 = vmatpush1.bf16.msra.mxu0 %v4249
    %4259 = vmatprep.subr.bf16.mxu0 0
    %4260 = vmatpush1.bf16.msra.mxu0 0
    %4261 = vmatprep.subr.bf16.mxu0 0
    %4262 = vmatpush1.bf16.msra.mxu0 0
    %4263 = vmatprep.subr.bf16.mxu0 0
    %4264 = vmatpush1.bf16.msra.mxu0 0
    %4265 = vmatprep.subr.bf16.mxu0 0
    %4266 = vmatpush1.bf16.msra.mxu0 0
    %4267 = vmatprep.subr.bf16.mxu0 0
    %4268 = vmatpush1.bf16.msra.mxu0 0
    %4269 = vmatprep.subr.bf16.mxu0 0
    %4270 = vmatpush1.bf16.msra.mxu0 0
    %4271 = vmatprep.subr.bf16.mxu0 0
    %4272 = vmatpush1.bf16.msra.mxu0 0
    %4273 = vmatprep.subr.bf16.mxu0 0
    %4274 = vmatpush1.bf16.msra.mxu0 0
    %4275 = vmatprep.subr.bf16.mxu0 0
    %4276 = vmatpush1.bf16.msra.mxu0 0
    %4277 = vmatprep.subr.bf16.mxu0 0
    %4278 = vmatpush1.bf16.msra.mxu0 0
    %4279 = vmatprep.subr.bf16.mxu0 0
    %4280 = vmatpush1.bf16.msra.mxu0 0
    %4281 = vmatprep.subr.bf16.mxu0 0
    %4282 = vmatpush1.bf16.msra.mxu0 0
    %4283 = vmatprep.subr.bf16.mxu0 0
    %4284 = vmatpush1.bf16.msra.mxu0 0
    %4285 = vmatprep.subr.bf16.mxu0 0
    %4286 = vmatpush1.bf16.msra.mxu0 0
    %4287 = vmatprep.mubr.bf16.mxu0 0
    %4288 = vmatmul.mubr.bf16.gmra.mrb[0].mxu0 %v4253
    %v4289 = vpop.f32.mrb[0].mxu0
    %v4290 = vadd.f32 %v4235, %v4289
    %v4291 = vpop.f32.mrb[0].mxu0
    %v4292 = vpop.f32.mrb[0].mxu0
    %v4293 = vpop.f32.mrb[0].mxu0
    %4294 = vdwg.mxu0
    %v4295 = vld [vmem:[%s37] sm:$0xf]
    %v4296 = vld [vmem:[%s37 + $0x4] sm:$0xf]
    %v4297 = vld [vmem:[%s37 + $0x8] sm:$0xf]
    %v4298 = vld [vmem:[%s37 + $0xc] sm:$0xf]
    %v4299 = vld [vmem:[%s37 + $0x10] sm:$0xf]
    %v4300 = vld [vmem:[%s37 + $0x14] sm:$0xf]
    %v4301 = vpack.c.bf16 %v4290, %v4290
    %v4308 = vunpack.c.l.b16 %v4295
    %v4309 = vunpack.c.l.b16 %v4296
    %v4310 = vunpack.c.l.b16 %v4297
    %v4311 = vunpack.c.l.b16 %v4298
    %v4312 = vunpack.c.l.b16 %v4299
    %v4313 = vunpack.c.l.b16 %v4300
    %v4314 = vpack.c.b16 %v4309, %v4308
    %v4315 = vpack.c.b16 %v4311, %v4310
    %v4316 = vpack.c.b16 %v4313, %v4312
    %v4321 = vsel %vm618, %v4301, 0
    %4323 = vmatprep.subr.bf16.mxu0 0
    %4324 = vmatpush1.bf16.msra.mxu0 %v4314
    %4325 = vmatprep.subr.bf16.mxu0 0
    %4326 = vmatpush1.bf16.msra.mxu0 %v4315
    %4327 = vmatprep.subr.bf16.mxu0 0
    %4328 = vmatpush1.bf16.msra.mxu0 %v4316
    %4329 = vmatprep.subr.bf16.mxu0 0
    %4330 = vmatpush1.bf16.msra.mxu0 0
    %4331 = vmatprep.subr.bf16.mxu0 0
    %4332 = vmatpush1.bf16.msra.mxu0 0
    %4333 = vmatprep.subr.bf16.mxu0 0
    %4334 = vmatpush1.bf16.msra.mxu0 0
    %4335 = vmatprep.subr.bf16.mxu0 0
    %4336 = vmatpush1.bf16.msra.mxu0 0
    %4337 = vmatprep.subr.bf16.mxu0 0
    %4338 = vmatpush1.bf16.msra.mxu0 0
    %4339 = vmatprep.subr.bf16.mxu0 0
    %4340 = vmatpush1.bf16.msra.mxu0 0
    %4341 = vmatprep.subr.bf16.mxu0 0
    %4342 = vmatpush1.bf16.msra.mxu0 0
    %4343 = vmatprep.subr.bf16.mxu0 0
    %4344 = vmatpush1.bf16.msra.mxu0 0
    %4345 = vmatprep.subr.bf16.mxu0 0
    %4346 = vmatpush1.bf16.msra.mxu0 0
    %4347 = vmatprep.subr.bf16.mxu0 0
    %4348 = vmatpush1.bf16.msra.mxu0 0
    %4349 = vmatprep.subr.bf16.mxu0 0
    %4350 = vmatpush1.bf16.msra.mxu0 0
    %4351 = vmatprep.subr.bf16.mxu0 0
    %4352 = vmatpush1.bf16.msra.mxu0 0
    %4353 = vmatprep.subr.bf16.mxu0 0
    %4354 = vmatpush1.bf16.msra.mxu0 0
    %4355 = vmatprep.mubr.bf16.mxu0 0
    %4356 = vmatmul.mubr.bf16.gmra.mrb[0].mxu0 %v4321
    %v4357 = vpop.f32.mrb[0].mxu0
    %v4358 = vadd.f32 0.0, %v4357
    %v4359 = vpop.f32.mrb[0].mxu0
    %v4360 = vpop.f32.mrb[0].mxu0
    %v4361 = vpop.f32.mrb[0].mxu0
    %4362 = vdwg.mxu0
    %v4363 = vadd.f32 %v3389, %v4358
    %v4364 = vld [vmem:[%s27] sm:$0x1]
    %v4366 = vlaneseq
    %v4367 = vshrl.u32 %v4366, 7
    %v4368 = vsub.s32 0, %v4367
    %v4369 = vrot.slane %v4364, %v4368
    %v4371 = vadd.f32 %v4363, %v4369
    %4372 = vst.msk [vmem:[#allocation2 + $0x10] sm:$0x1] %vm889, %v4371
    %vm4373 = vcmask 254977
    %4374 = vst.msk [vmem:[#allocation2 + $0x27] sm:$0x2] %vm4373, %v4371
    %v4375 = vld [vmem:[#allocation3 + $0x4] sm:$0x1]
    %4376 = vst.msk [vmem:[#allocation4] sm:$0x1] %vm1132, %v4375
    %v4377 = vld [vmem:[#allocation3 + $0xc] sm:$0x1]
    %4378 = vst.msk [vmem:[#allocation4 + $0x1] sm:$0x1] %vm1132, %v4377
    %v4379 = vld [vmem:[#allocation4] sm:$0x3]
    %v4380 = vld [vmem:[%s15] sm:$0xf]
    %v4381 = vld [vmem:[%s15 + $0x4] sm:$0xf]
    %v4382 = vld [vmem:[%s15 + $0x8] sm:$0xf]
    %v4383 = vld [vmem:[%s15 + $0xc] sm:$0xf]
    %v4384 = vld [vmem:[%s15 + $0x10] sm:$0xf]
    %v4385 = vld [vmem:[%s15 + $0x14] sm:$0xf]
    %v4386 = vpack.c.bf16 %v4379, %v4379
    %v4387 = vld [vmem:[%s5] sm:$0x1]
    %v4389 = vlaneseq
    %v4390 = vshrl.u32 %v4389, 7
    %v4391 = vsub.s32 0, %v4390
    %v4392 = vrot.slane %v4387, %v4391
    %v4400 = vunpack.c.l.b16 %v4380
    %v4401 = vunpack.c.l.b16 %v4381
    %v4402 = vunpack.c.l.b16 %v4382
    %v4403 = vunpack.c.l.b16 %v4383
    %v4404 = vunpack.c.l.b16 %v4384
    %v4405 = vunpack.c.l.b16 %v4385
    %v4406 = vpack.c.b16 %v4401, %v4400
    %v4407 = vpack.c.b16 %v4403, %v4402
    %v4408 = vpack.c.b16 %v4405, %v4404
    %v4413 = vsel %vm618, %v4386, 0
    %4415 = vmatprep.subr.bf16.mxu0 0
    %4416 = vmatpush1.bf16.msra.mxu0 %v4406
    %4417 = vmatprep.subr.bf16.mxu0 0
    %4418 = vmatpush1.bf16.msra.mxu0 %v4407
    %4419 = vmatprep.subr.bf16.mxu0 0
    %4420 = vmatpush1.bf16.msra.mxu0 %v4408
    %4421 = vmatprep.subr.bf16.mxu0 0
    %4422 = vmatpush1.bf16.msra.mxu0 0
    %4423 = vmatprep.subr.bf16.mxu0 0
    %4424 = vmatpush1.bf16.msra.mxu0 0
    %4425 = vmatprep.subr.bf16.mxu0 0
    %4426 = vmatpush1.bf16.msra.mxu0 0
    %4427 = vmatprep.subr.bf16.mxu0 0
    %4428 = vmatpush1.bf16.msra.mxu0 0
    %4429 = vmatprep.subr.bf16.mxu0 0
    %4430 = vmatpush1.bf16.msra.mxu0 0
    %4431 = vmatprep.subr.bf16.mxu0 0
    %4432 = vmatpush1.bf16.msra.mxu0 0
    %4433 = vmatprep.subr.bf16.mxu0 0
    %4434 = vmatpush1.bf16.msra.mxu0 0
    %4435 = vmatprep.subr.bf16.mxu0 0
    %4436 = vmatpush1.bf16.msra.mxu0 0
    %4437 = vmatprep.subr.bf16.mxu0 0
    %4438 = vmatpush1.bf16.msra.mxu0 0
    %4439 = vmatprep.subr.bf16.mxu0 0
    %4440 = vmatpush1.bf16.msra.mxu0 0
    %4441 = vmatprep.subr.bf16.mxu0 0
    %4442 = vmatpush1.bf16.msra.mxu0 0
    %4443 = vmatprep.subr.bf16.mxu0 0
    %4444 = vmatpush1.bf16.msra.mxu0 0
    %4445 = vmatprep.subr.bf16.mxu0 0
    %4446 = vmatpush1.bf16.msra.mxu0 0
    %4447 = vmatprep.mubr.bf16.mxu0 0
    %4448 = vmatmul.mubr.bf16.gmra.mrb[0].mxu0 %v4413
    %v4449 = vpop.f32.mrb[0].mxu0
    %v4450 = vadd.f32 %v4392, %v4449
    %v4451 = vpop.f32.mrb[0].mxu0
    %v4452 = vpop.f32.mrb[0].mxu0
    %v4453 = vpop.f32.mrb[0].mxu0
    %4454 = vdwg.mxu0
    %v4455 = vld [vmem:[%s23] sm:$0xf]
    %v4456 = vld [vmem:[%s23 + $0x4] sm:$0xf]
    %v4457 = vld [vmem:[%s23 + $0x8] sm:$0xf]
    %v4458 = vld [vmem:[%s23 + $0xc] sm:$0xf]
    %v4459 = vpack.c.bf16 %v4450, %v4450
    %v4460 = vld [vmem:[%s13] sm:$0x1]
    %v4462 = vlaneseq
    %v4463 = vshrl.u32 %v4462, 7
    %v4464 = vsub.s32 0, %v4463
    %v4465 = vrot.slane %v4460, %v4464
    %v4471 = vunpack.c.l.b16 %v4455
    %v4472 = vunpack.c.l.b16 %v4456
    %v4473 = vunpack.c.l.b16 %v4457
    %v4474 = vunpack.c.l.b16 %v4458
    %v4475 = vpack.c.b16 %v4472, %v4471
    %v4476 = vpack.c.b16 %v4474, %v4473
    %v4480 = vsel %vm611, %v4459, 0
    %4482 = vmatprep.subr.bf16.mxu0 0
    %4483 = vmatpush1.bf16.msra.mxu0 %v4475
    %4484 = vmatprep.subr.bf16.mxu0 0
    %4485 = vmatpush1.bf16.msra.mxu0 %v4476
    %4486 = vmatprep.subr.bf16.mxu0 0
    %4487 = vmatpush1.bf16.msra.mxu0 0
    %4488 = vmatprep.subr.bf16.mxu0 0
    %4489 = vmatpush1.bf16.msra.mxu0 0
    %4490 = vmatprep.subr.bf16.mxu0 0
    %4491 = vmatpush1.bf16.msra.mxu0 0
    %4492 = vmatprep.subr.bf16.mxu0 0
    %4493 = vmatpush1.bf16.msra.mxu0 0
    %4494 = vmatprep.subr.bf16.mxu0 0
    %4495 = vmatpush1.bf16.msra.mxu0 0
    %4496 = vmatprep.subr.bf16.mxu0 0
    %4497 = vmatpush1.bf16.msra.mxu0 0
    %4498 = vmatprep.subr.bf16.mxu0 0
    %4499 = vmatpush1.bf16.msra.mxu0 0
    %4500 = vmatprep.subr.bf16.mxu0 0
    %4501 = vmatpush1.bf16.msra.mxu0 0
    %4502 = vmatprep.subr.bf16.mxu0 0
    %4503 = vmatpush1.bf16.msra.mxu0 0
    %4504 = vmatprep.subr.bf16.mxu0 0
    %4505 = vmatpush1.bf16.msra.mxu0 0
    %4506 = vmatprep.subr.bf16.mxu0 0
    %4507 = vmatpush1.bf16.msra.mxu0 0
    %4508 = vmatprep.subr.bf16.mxu0 0
    %4509 = vmatpush1.bf16.msra.mxu0 0
    %4510 = vmatprep.subr.bf16.mxu0 0
    %4511 = vmatpush1.bf16.msra.mxu0 0
    %4512 = vmatprep.subr.bf16.mxu0 0
    %4513 = vmatpush1.bf16.msra.mxu0 0
    %4514 = vmatprep.mubr.bf16.mxu0 0
    %4515 = vmatmul.mubr.bf16.gmra.mrb[0].mxu0 %v4480
    %v4516 = vpop.f32.mrb[0].mxu0
    %v4517 = vadd.f32 %v4465, %v4516
    %v4518 = vpop.f32.mrb[0].mxu0
    %v4519 = vpop.f32.mrb[0].mxu0
    %v4520 = vpop.f32.mrb[0].mxu0
    %4521 = vdwg.mxu0
    %v4522 = vld [vmem:[%s19] sm:$0xf]
    %v4523 = vld [vmem:[%s19 + $0x4] sm:$0xf]
    %v4524 = vld [vmem:[%s19 + $0x8] sm:$0xf]
    %v4525 = vld [vmem:[%s19 + $0xc] sm:$0xf]
    %v4526 = vld [vmem:[%s9] sm:$0x1]
    %v4528 = vlaneseq
    %v4529 = vshrl.u32 %v4528, 7
    %v4530 = vsub.s32 0, %v4529
    %v4531 = vrot.slane %v4526, %v4530
    %v4537 = vunpack.c.l.b16 %v4522
    %v4538 = vunpack.c.l.b16 %v4523
    %v4539 = vunpack.c.l.b16 %v4524
    %v4540 = vunpack.c.l.b16 %v4525
    %v4541 = vpack.c.b16 %v4538, %v4537
    %v4542 = vpack.c.b16 %v4540, %v4539
    %4545 = vmatprep.subr.bf16.mxu0 0
    %4546 = vmatpush1.bf16.msra.mxu0 %v4541
    %4547 = vmatprep.subr.bf16.mxu0 0
    %4548 = vmatpush1.bf16.msra.mxu0 %v4542
    %4549 = vmatprep.subr.bf16.mxu0 0
    %4550 = vmatpush1.bf16.msra.mxu0 0
    %4551 = vmatprep.subr.bf16.mxu0 0
    %4552 = vmatpush1.bf16.msra.mxu0 0
    %4553 = vmatprep.subr.bf16.mxu0 0
    %4554 = vmatpush1.bf16.msra.mxu0 0
    %4555 = vmatprep.subr.bf16.mxu0 0
    %4556 = vmatpush1.bf16.msra.mxu0 0
    %4557 = vmatprep.subr.bf16.mxu0 0
    %4558 = vmatpush1.bf16.msra.mxu0 0
    %4559 = vmatprep.subr.bf16.mxu0 0
    %4560 = vmatpush1.bf16.msra.mxu0 0
    %4561 = vmatprep.subr.bf16.mxu0 0
    %4562 = vmatpush1.bf16.msra.mxu0 0
    %4563 = vmatprep.subr.bf16.mxu0 0
    %4564 = vmatpush1.bf16.msra.mxu0 0
    %4565 = vmatprep.subr.bf16.mxu0 0
    %4566 = vmatpush1.bf16.msra.mxu0 0
    %4567 = vmatprep.subr.bf16.mxu0 0
    %4568 = vmatpush1.bf16.msra.mxu0 0
    %4569 = vmatprep.subr.bf16.mxu0 0
    %4570 = vmatpush1.bf16.msra.mxu0 0
    %4571 = vmatprep.subr.bf16.mxu0 0
    %4572 = vmatpush1.bf16.msra.mxu0 0
    %4573 = vmatprep.subr.bf16.mxu0 0
    %4574 = vmatpush1.bf16.msra.mxu0 0
    %4575 = vmatprep.subr.bf16.mxu0 0
    %4576 = vmatpush1.bf16.msra.mxu0 0
    %4577 = vmatprep.mubr.bf16.mxu0 0
    %4578 = vmatmul.mubr.bf16.gmra.mrb[0].mxu0 %v4480
    %v4579 = vpop.f32.mrb[0].mxu0
    %v4580 = vadd.f32 %v4531, %v4579
    %v4581 = vpop.f32.mrb[0].mxu0
    %v4582 = vpop.f32.mrb[0].mxu0
    %v4583 = vpop.f32.mrb[0].mxu0
    %4584 = vdwg.mxu0
    %v4585 = vld [vmem:[#allocation2] sm:$0xff]
    %v4586 = vld [vmem:[#allocation2 + $0x8] sm:$0xff]
    %v4587 = vld [vmem:[#allocation2 + $0x10] sm:$0xff]
    %v4588 = vld [vmem:[#allocation2 + $0x18] sm:$0xff]
    %v4589 = vld [vmem:[#allocation2 + $0x20] sm:$0xff]
    %v4590 = vld [vmem:[#allocation2 + $0x28] sm:$0xff]
    %v4591 = vpack.c.bf16 %v4586, %v4585
    %v4592 = vpack.c.bf16 %v4588, %v4587
    %v4593 = vpack.c.bf16 %v4590, %v4589
    %v4595 = vsel %vm611, %v4591, 0
    %v4598 = vsel %vm611, %v4592, 0
    %v4601 = vsel %vm611, %v4593, 0
    %4603 = vmatprep.subr.bf16.mxu0 0
    %4604 = vmatpush1.bf16.msra.mxu0 %v4541
    %4605 = vmatprep.subr.bf16.mxu0 0
    %4606 = vmatpush1.bf16.msra.mxu0 %v4542
    %4607 = vmatprep.subr.bf16.mxu0 0
    %4608 = vmatpush1.bf16.msra.mxu0 0
    %4609 = vmatprep.subr.bf16.mxu0 0
    %4610 = vmatpush1.bf16.msra.mxu0 0
    %4611 = vmatprep.subr.bf16.mxu0 0
    %4612 = vmatpush1.bf16.msra.mxu0 0
    %4613 = vmatprep.subr.bf16.mxu0 0
    %4614 = vmatpush1.bf16.msra.mxu0 0
    %4615 = vmatprep.subr.bf16.mxu0 0
    %4616 = vmatpush1.bf16.msra.mxu0 0
    %4617 = vmatprep.subr.bf16.mxu0 0
    %4618 = vmatpush1.bf16.msra.mxu0 0
    %4619 = vmatprep.subr.bf16.mxu0 0
    %4620 = vmatpush1.bf16.msra.mxu0 0
    %4621 = vmatprep.subr.bf16.mxu0 0
    %4622 = vmatpush1.bf16.msra.mxu0 0
    %4623 = vmatprep.subr.bf16.mxu0 0
    %4624 = vmatpush1.bf16.msra.mxu0 0
    %4625 = vmatprep.subr.bf16.mxu0 0
    %4626 = vmatpush1.bf16.msra.mxu0 0
    %4627 = vmatprep.subr.bf16.mxu0 0
    %4628 = vmatpush1.bf16.msra.mxu0 0
    %4629 = vmatprep.subr.bf16.mxu0 0
    %4630 = vmatpush1.bf16.msra.mxu0 0
    %4631 = vmatprep.subr.bf16.mxu0 0
    %4632 = vmatpush1.bf16.msra.mxu0 0
    %4633 = vmatprep.subr.bf16.mxu0 0
    %4634 = vmatpush1.bf16.msra.mxu0 0
    %4635 = vmatprep.mubr.bf16.mxu0 0
    %4636 = vmatmul.mubr.bf16.gmra.mrb[0].mxu0 %v4595
    %v4637 = vpop.f32.mrb[0].mxu0
    %v4638 = vadd.f32 %v4531, %v4637
    %v4639 = vpop.f32.mrb[0].mxu0
    %v4640 = vpop.f32.mrb[0].mxu0
    %v4641 = vadd.f32 %v4531, %v4640
    %v4642 = vpop.f32.mrb[0].mxu0
    %4643 = vmatprep.mubr.bf16.mxu0 0
    %4644 = vmatmul.mubr.bf16.gmra.mrb[0].mxu0 %v4598
    %v4645 = vpop.f32.mrb[0].mxu0
    %v4646 = vpop.f32.mrb[0].mxu0
    %v4647 = vpop.f32.mrb[0].mxu0
    %v4648 = vadd.f32 %v4531, %v4647
    %v4649 = vpop.f32.mrb[0].mxu0
    %4650 = vmatprep.mubr.bf16.mxu0 0
    %4651 = vmatmul.mubr.bf16.gmra.mrb[0].mxu0 %v4601
    %v4652 = vpop.f32.mrb[0].mxu0
    %v4653 = vadd.f32 %v4531, %v4652
    %v4654 = vpop.f32.mrb[0].mxu0
    %v4655 = vpop.f32.mrb[0].mxu0
    %v4656 = vpop.f32.mrb[0].mxu0
    %4657 = vdwg.mxu0
    %v4658 = vmul.f32 %v4517, %v4580
    %v4659 = vsel %vm1515, %v4658, 0.0
    %4660 = vadd.xlane.f32.xlu0 %v4659
    %v4661 = vpop.xlane.xlu0 %4660
    %v4662 = vpack.c.bf16 %v4517, %v4517
    %v4663 = vpack.c.bf16 %v4641, %v4638
    %v4665 = vsel %vm1350, %v4662, 0
    %v4668 = vsel %vm1350, %v4663, 0
    %4670 = vmatprep.subr.bf16.mxu0 0
    %4671 = vmatpush1.bf16.xpose.msra.mxu0 %v4668
    %4672 = vmatprep.subr.bf16.mxu0 0
    %4673 = vmatpush1.bf16.xpose.msra.mxu0 0
    %4674 = vmatprep.subr.bf16.mxu0 0
    %4675 = vmatpush1.bf16.xpose.msra.mxu0 0
    %4676 = vmatprep.subr.bf16.mxu0 0
    %4677 = vmatpush1.bf16.xpose.msra.mxu0 0
    %4678 = vmatprep.subr.bf16.mxu0 0
    %4679 = vmatpush1.bf16.xpose.msra.mxu0 0
    %4680 = vmatprep.subr.bf16.mxu0 0
    %4681 = vmatpush1.bf16.xpose.msra.mxu0 0
    %4682 = vmatprep.subr.bf16.mxu0 0
    %4683 = vmatpush1.bf16.xpose.msra.mxu0 0
    %4684 = vmatprep.subr.bf16.mxu0 0
    %4685 = vmatpush1.bf16.xpose.msra.mxu0 0
    %4686 = vmatprep.subr.bf16.mxu0 0
    %4687 = vmatpush1.bf16.xpose.msra.mxu0 0
    %4688 = vmatprep.subr.bf16.mxu0 0
    %4689 = vmatpush1.bf16.xpose.msra.mxu0 0
    %4690 = vmatprep.subr.bf16.mxu0 0
    %4691 = vmatpush1.bf16.xpose.msra.mxu0 0
    %4692 = vmatprep.subr.bf16.mxu0 0
    %4693 = vmatpush1.bf16.xpose.msra.mxu0 0
    %4694 = vmatprep.subr.bf16.mxu0 0
    %4695 = vmatpush1.bf16.xpose.msra.mxu0 0
    %4696 = vmatprep.subr.bf16.mxu0 0
    %4697 = vmatpush1.bf16.xpose.msra.mxu0 0
    %4698 = vmatprep.subr.bf16.mxu0 0
    %4699 = vmatpush1.bf16.xpose.msra.mxu0 0
    %4700 = vmatprep.subr.bf16.mxu0 0
    %4701 = vmatpush1.bf16.xpose.msra.mxu0 0
    %4702 = vmatprep.mubr.bf16.mxu0 0
    %4703 = vmatmul.mubr.bf16.gmra.mrb[0].mxu0 %v4665
    %v4704 = vpop.f32.mrb[0].mxu0
    %v4705 = vadd.f32 0.0, %v4704
    %v4706 = vpop.f32.mrb[0].mxu0
    %v4707 = vpop.f32.mrb[0].mxu0
    %v4708 = vpop.f32.mrb[0].mxu0
    %4709 = vdwg.mxu0
    %v4710 = vsel %vm1515, %v4705, -inf
    %4711 = vmax.xlane.f32.xlu0 %v4710
    %v4712 = vpop.xlane.xlu0 %4711
    %v4713 = vmax.f32 %v4661, %v4712
    %v4714 = vsub.f32 %v4661, %v4713
    %v4715 = vmul.f32 %v4714, 1.442695
    %v4716 = vpow.pop %v4715
    %v4717 = vsub.f32 %v4705, %v4713
    %v4718 = vmul.f32 %v4717, 1.442695
    %v4719 = vpow.pop %v4718
    %v4720 = vsel %vm1515, %v4719, 0.0
    %4721 = vadd.xlane.f32.xlu0 %v4720
    %v4722 = vpop.xlane.xlu0 %4721
    %v4723 = vadd.f32 %v4716, %v4722
    %v4724 = vrcp.pop %v4723
    %v4725 = vmul.f32 %v4716, %v4580
    %v4726 = vpack.c.bf16 %v4719, %v4719
    %4728 = vrot.lane.b32.xlu0 %v4663, 96
    %v4729 = vpop.permute.xlu0 %4728
    %v4732 = vsel %vm1350, %v4726, 0
    %4734 = vmatprep.subr.bf16.mxu0 0
    %4735 = vmatpush1.bf16.msra.mxu0 %v4729
    %4736 = vmatprep.subr.bf16.mxu0 0
    %4737 = vmatpush1.bf16.msra.mxu0 0
    %4738 = vmatprep.subr.bf16.mxu0 0
    %4739 = vmatpush1.bf16.msra.mxu0 0
    %4740 = vmatprep.subr.bf16.mxu0 0
    %4741 = vmatpush1.bf16.msra.mxu0 0
    %4742 = vmatprep.subr.bf16.mxu0 0
    %4743 = vmatpush1.bf16.msra.mxu0 0
    %4744 = vmatprep.subr.bf16.mxu0 0
    %4745 = vmatpush1.bf16.msra.mxu0 0
    %4746 = vmatprep.subr.bf16.mxu0 0
    %4747 = vmatpush1.bf16.msra.mxu0 0
    %4748 = vmatprep.subr.bf16.mxu0 0
    %4749 = vmatpush1.bf16.msra.mxu0 0
    %4750 = vmatprep.subr.bf16.mxu0 0
    %4751 = vmatpush1.bf16.msra.mxu0 0
    %4752 = vmatprep.subr.bf16.mxu0 0
    %4753 = vmatpush1.bf16.msra.mxu0 0
    %4754 = vmatprep.subr.bf16.mxu0 0
    %4755 = vmatpush1.bf16.msra.mxu0 0
    %4756 = vmatprep.subr.bf16.mxu0 0
    %4757 = vmatpush1.bf16.msra.mxu0 0
    %4758 = vmatprep.subr.bf16.mxu0 0
    %4759 = vmatpush1.bf16.msra.mxu0 0
    %4760 = vmatprep.subr.bf16.mxu0 0
    %4761 = vmatpush1.bf16.msra.mxu0 0
    %4762 = vmatprep.subr.bf16.mxu0 0
    %4763 = vmatpush1.bf16.msra.mxu0 0
    %4764 = vmatprep.subr.bf16.mxu0 0
    %4765 = vmatpush1.bf16.msra.mxu0 0
    %4766 = vmatprep.mubr.bf16.mxu0 0
    %4767 = vmatmul.mubr.bf16.gmra.mrb[0].mxu0 %v4732
    %v4768 = vpop.f32.mrb[0].mxu0
    %v4769 = vadd.f32 0.0, %v4768
    %v4770 = vpop.f32.mrb[0].mxu0
    %v4771 = vpop.f32.mrb[0].mxu0
    %v4772 = vpop.f32.mrb[0].mxu0
    %4773 = vdwg.mxu0
    %4775 = vrot.lane.b32.xlu0 %v4769, 32
    %v4776 = vpop.permute.xlu0 %4775
    %v4778 = vadd.f32 %v4725, %v4776
    %v4779 = vmul.f32 %v4778, %v4724
    %4781 = vrot.lane.b32.xlu0 %v4779, 32
    %v4782 = vpop.permute.xlu0 %4781
    %4784 = vst.msk [vmem:[#allocation4] sm:$0x1] %vm3780, %v4782
    %4786 = vrot.lane.b32.xlu0 %v4658, 112
    %v4787 = vpop.permute.xlu0 %4786
    %v4789 = vsel %vm1515, %v4787, 0.0
    %4790 = vadd.xlane.f32.xlu0 %v4789
    %v4791 = vpop.xlane.xlu0 %4790
    %4793 = vrot.lane.b32.xlu0 %v4662, 112
    %v4794 = vpop.permute.xlu0 %4793
    %4795 = vrot.lane.b32.xlu0 %v4663, 112
    %v4796 = vpop.permute.xlu0 %4795
    %v4798 = vsel %vm1350, %v4794, 0
    %v4801 = vsel %vm1350, %v4796, 0
    %4803 = vmatprep.subr.bf16.mxu0 0
    %4804 = vmatpush1.bf16.xpose.msra.mxu0 %v4801
    %4805 = vmatprep.subr.bf16.mxu0 0
    %4806 = vmatpush1.bf16.xpose.msra.mxu0 0
    %4807 = vmatprep.subr.bf16.mxu0 0
    %4808 = vmatpush1.bf16.xpose.msra.mxu0 0
    %4809 = vmatprep.subr.bf16.mxu0 0
    %4810 = vmatpush1.bf16.xpose.msra.mxu0 0
    %4811 = vmatprep.subr.bf16.mxu0 0
    %4812 = vmatpush1.bf16.xpose.msra.mxu0 0
    %4813 = vmatprep.subr.bf16.mxu0 0
    %4814 = vmatpush1.bf16.xpose.msra.mxu0 0
    %4815 = vmatprep.subr.bf16.mxu0 0
    %4816 = vmatpush1.bf16.xpose.msra.mxu0 0
    %4817 = vmatprep.subr.bf16.mxu0 0
    %4818 = vmatpush1.bf16.xpose.msra.mxu0 0
    %4819 = vmatprep.subr.bf16.mxu0 0
    %4820 = vmatpush1.bf16.xpose.msra.mxu0 0
    %4821 = vmatprep.subr.bf16.mxu0 0
    %4822 = vmatpush1.bf16.xpose.msra.mxu0 0
    %4823 = vmatprep.subr.bf16.mxu0 0
    %4824 = vmatpush1.bf16.xpose.msra.mxu0 0
    %4825 = vmatprep.subr.bf16.mxu0 0
    %4826 = vmatpush1.bf16.xpose.msra.mxu0 0
    %4827 = vmatprep.subr.bf16.mxu0 0
    %4828 = vmatpush1.bf16.xpose.msra.mxu0 0
    %4829 = vmatprep.subr.bf16.mxu0 0
    %4830 = vmatpush1.bf16.xpose.msra.mxu0 0
    %4831 = vmatprep.subr.bf16.mxu0 0
    %4832 = vmatpush1.bf16.xpose.msra.mxu0 0
    %4833 = vmatprep.subr.bf16.mxu0 0
    %4834 = vmatpush1.bf16.xpose.msra.mxu0 0
    %4835 = vmatprep.mubr.bf16.mxu0 0
    %4836 = vmatmul.mubr.bf16.gmra.mrb[0].mxu0 %v4798
    %v4837 = vpop.f32.mrb[0].mxu0
    %v4838 = vadd.f32 0.0, %v4837
    %v4839 = vpop.f32.mrb[0].mxu0
    %v4840 = vpop.f32.mrb[0].mxu0
    %v4841 = vpop.f32.mrb[0].mxu0
    %4842 = vdwg.mxu0
    %v4843 = vsel %vm1515, %v4838, -inf
    %4844 = vmax.xlane.f32.xlu0 %v4843
    %v4845 = vpop.xlane.xlu0 %4844
    %v4846 = vmax.f32 %v4791, %v4845
    %v4847 = vsub.f32 %v4791, %v4846
    %v4848 = vmul.f32 %v4847, 1.442695
    %v4849 = vpow.pop %v4848
    %v4850 = vsub.f32 %v4838, %v4846
    %v4851 = vmul.f32 %v4850, 1.442695
    %v4852 = vpow.pop %v4851
    %v4853 = vsel %vm1515, %v4852, 0.0
    %4854 = vadd.xlane.f32.xlu0 %v4853
    %v4855 = vpop.xlane.xlu0 %4854
    %v4856 = vadd.f32 %v4849, %v4855
    %v4857 = vrcp.pop %v4856
    %v4858 = vmul.f32 %v4849, %v4580
    %v4859 = vpack.c.bf16 %v4852, %v4852
    %4860 = vrot.lane.b32.xlu0 %v4663, 80
    %v4861 = vpop.permute.xlu0 %4860
    %v4864 = vsel %vm1350, %v4859, 0
    %4866 = vmatprep.subr.bf16.mxu0 0
    %4867 = vmatpush1.bf16.msra.mxu0 %v4861
    %4868 = vmatprep.subr.bf16.mxu0 0
    %4869 = vmatpush1.bf16.msra.mxu0 0
    %4870 = vmatprep.subr.bf16.mxu0 0
    %4871 = vmatpush1.bf16.msra.mxu0 0
    %4872 = vmatprep.subr.bf16.mxu0 0
    %4873 = vmatpush1.bf16.msra.mxu0 0
    %4874 = vmatprep.subr.bf16.mxu0 0
    %4875 = vmatpush1.bf16.msra.mxu0 0
    %4876 = vmatprep.subr.bf16.mxu0 0
    %4877 = vmatpush1.bf16.msra.mxu0 0
    %4878 = vmatprep.subr.bf16.mxu0 0
    %4879 = vmatpush1.bf16.msra.mxu0 0
    %4880 = vmatprep.subr.bf16.mxu0 0
    %4881 = vmatpush1.bf16.msra.mxu0 0
    %4882 = vmatprep.subr.bf16.mxu0 0
    %4883 = vmatpush1.bf16.msra.mxu0 0
    %4884 = vmatprep.subr.bf16.mxu0 0
    %4885 = vmatpush1.bf16.msra.mxu0 0
    %4886 = vmatprep.subr.bf16.mxu0 0
    %4887 = vmatpush1.bf16.msra.mxu0 0
    %4888 = vmatprep.subr.bf16.mxu0 0
    %4889 = vmatpush1.bf16.msra.mxu0 0
    %4890 = vmatprep.subr.bf16.mxu0 0
    %4891 = vmatpush1.bf16.msra.mxu0 0
    %4892 = vmatprep.subr.bf16.mxu0 0
    %4893 = vmatpush1.bf16.msra.mxu0 0
    %4894 = vmatprep.subr.bf16.mxu0 0
    %4895 = vmatpush1.bf16.msra.mxu0 0
    %4896 = vmatprep.subr.bf16.mxu0 0
    %4897 = vmatpush1.bf16.msra.mxu0 0
    %4898 = vmatprep.mubr.bf16.mxu0 0
    %4899 = vmatmul.mubr.bf16.gmra.mrb[0].mxu0 %v4864
    %v4900 = vpop.f32.mrb[0].mxu0
    %v4901 = vadd.f32 0.0, %v4900
    %v4902 = vpop.f32.mrb[0].mxu0
    %v4903 = vpop.f32.mrb[0].mxu0
    %v4904 = vpop.f32.mrb[0].mxu0
    %4905 = vdwg.mxu0
    %4907 = vrot.lane.b32.xlu0 %v4901, 48
    %v4908 = vpop.permute.xlu0 %4907
    %v4910 = vadd.f32 %v4858, %v4908
    %v4911 = vmul.f32 %v4910, %v4857
    %4913 = vrot.lane.b32.xlu0 %v4911, 32
    %v4914 = vpop.permute.xlu0 %4913
    %4916 = vst.msk [vmem:[#allocation4] sm:$0x1] %vm3915, %v4914
    %v4917 = vsel %vm3917, %v4658, 0.0
    %4918 = vadd.xlane.f32.xlu0 %v4917
    %v4919 = vpop.xlane.xlu0 %4918
    %v4920 = vpack.c.bf16 %v4653, %v4648
    %v4921 = vshrl.u32 %v4662, 16
    %v4924 = vsel %vm1350, %v4921, 0
    %v4927 = vsel %vm1350, %v4920, 0
    %4929 = vmatprep.subr.bf16.mxu0 0
    %4930 = vmatpush1.bf16.xpose.msra.mxu0 %v4927
    %4931 = vmatprep.subr.bf16.mxu0 0
    %4932 = vmatpush1.bf16.xpose.msra.mxu0 0
    %4933 = vmatprep.subr.bf16.mxu0 0
    %4934 = vmatpush1.bf16.xpose.msra.mxu0 0
    %4935 = vmatprep.subr.bf16.mxu0 0
    %4936 = vmatpush1.bf16.xpose.msra.mxu0 0
    %4937 = vmatprep.subr.bf16.mxu0 0
    %4938 = vmatpush1.bf16.xpose.msra.mxu0 0
    %4939 = vmatprep.subr.bf16.mxu0 0
    %4940 = vmatpush1.bf16.xpose.msra.mxu0 0
    %4941 = vmatprep.subr.bf16.mxu0 0
    %4942 = vmatpush1.bf16.xpose.msra.mxu0 0
    %4943 = vmatprep.subr.bf16.mxu0 0
    %4944 = vmatpush1.bf16.xpose.msra.mxu0 0
    %4945 = vmatprep.subr.bf16.mxu0 0
    %4946 = vmatpush1.bf16.xpose.msra.mxu0 0
    %4947 = vmatprep.subr.bf16.mxu0 0
    %4948 = vmatpush1.bf16.xpose.msra.mxu0 0
    %4949 = vmatprep.subr.bf16.mxu0 0
    %4950 = vmatpush1.bf16.xpose.msra.mxu0 0
    %4951 = vmatprep.subr.bf16.mxu0 0
    %4952 = vmatpush1.bf16.xpose.msra.mxu0 0
    %4953 = vmatprep.subr.bf16.mxu0 0
    %4954 = vmatpush1.bf16.xpose.msra.mxu0 0
    %4955 = vmatprep.subr.bf16.mxu0 0
    %4956 = vmatpush1.bf16.xpose.msra.mxu0 0
    %4957 = vmatprep.subr.bf16.mxu0 0
    %4958 = vmatpush1.bf16.xpose.msra.mxu0 0
    %4959 = vmatprep.subr.bf16.mxu0 0
    %4960 = vmatpush1.bf16.xpose.msra.mxu0 0
    %4961 = vmatprep.mubr.bf16.mxu0 0
    %4962 = vmatmul.mubr.bf16.gmra.mrb[0].mxu0 %v4924
    %v4963 = vpop.f32.mrb[0].mxu0
    %v4964 = vadd.f32 0.0, %v4963
    %v4965 = vpop.f32.mrb[0].mxu0
    %v4966 = vpop.f32.mrb[0].mxu0
    %v4967 = vpop.f32.mrb[0].mxu0
    %4968 = vdwg.mxu0
    %v4969 = vsel %vm1515, %v4964, -inf
    %4970 = vmax.xlane.f32.xlu0 %v4969
    %v4971 = vpop.xlane.xlu0 %4970
    %v4973 = vrot.slane %v4971, 7
    %v4975 = vmax.f32 %v4919, %v4973
    %v4976 = vsub.f32 %v4919, %v4975
    %v4977 = vmul.f32 %v4976, 1.442695
    %v4978 = vpow.pop %v4977
    %4980 = vset.pattern.permute.xlu0 0
    %4981 = vperm.xlu0 %4980, %v4975
    %v4982 = vpop.permute.xlu0 %4981
    %v4983 = vrot.slane %v4982, 1
    %v4985 = vsub.f32 %v4964, %v4983
    %v4986 = vmul.f32 %v4985, 1.442695
    %v4987 = vpow.pop %v4986
    %v4988 = vsel %vm1515, %v4987, 0.0
    %4989 = vadd.xlane.f32.xlu0 %v4988
    %v4990 = vpop.xlane.xlu0 %4989
    %v4992 = vrot.slane %v4990, 7
    %v4994 = vadd.f32 %v4978, %v4992
    %v4995 = vrcp.pop %v4994
    %4997 = vset.pattern.permute.xlu0 0
    %4998 = vperm.xlu0 %4997, %v4978
    %v4999 = vpop.permute.xlu0 %4998
    %v5001 = vmul.f32 %v4999, %v4580
    %v5002 = vpack.c.bf16 %v4987, %v4987
    %5004 = vrot.lane.b32.xlu0 %v4920, 96
    %v5005 = vpop.permute.xlu0 %5004
    %v5008 = vsel %vm1350, %v5002, 0
    %5010 = vmatprep.subr.bf16.mxu0 0
    %5011 = vmatpush1.bf16.msra.mxu0 %v5005
    %5012 = vmatprep.subr.bf16.mxu0 0
    %5013 = vmatpush1.bf16.msra.mxu0 0
    %5014 = vmatprep.subr.bf16.mxu0 0
    %5015 = vmatpush1.bf16.msra.mxu0 0
    %5016 = vmatprep.subr.bf16.mxu0 0
    %5017 = vmatpush1.bf16.msra.mxu0 0
    %5018 = vmatprep.subr.bf16.mxu0 0
    %5019 = vmatpush1.bf16.msra.mxu0 0
    %5020 = vmatprep.subr.bf16.mxu0 0
    %5021 = vmatpush1.bf16.msra.mxu0 0
    %5022 = vmatprep.subr.bf16.mxu0 0
    %5023 = vmatpush1.bf16.msra.mxu0 0
    %5024 = vmatprep.subr.bf16.mxu0 0
    %5025 = vmatpush1.bf16.msra.mxu0 0
    %5026 = vmatprep.subr.bf16.mxu0 0
    %5027 = vmatpush1.bf16.msra.mxu0 0
    %5028 = vmatprep.subr.bf16.mxu0 0
    %5029 = vmatpush1.bf16.msra.mxu0 0
    %5030 = vmatprep.subr.bf16.mxu0 0
    %5031 = vmatpush1.bf16.msra.mxu0 0
    %5032 = vmatprep.subr.bf16.mxu0 0
    %5033 = vmatpush1.bf16.msra.mxu0 0
    %5034 = vmatprep.subr.bf16.mxu0 0
    %5035 = vmatpush1.bf16.msra.mxu0 0
    %5036 = vmatprep.subr.bf16.mxu0 0
    %5037 = vmatpush1.bf16.msra.mxu0 0
    %5038 = vmatprep.subr.bf16.mxu0 0
    %5039 = vmatpush1.bf16.msra.mxu0 0
    %5040 = vmatprep.subr.bf16.mxu0 0
    %5041 = vmatpush1.bf16.msra.mxu0 0
    %5042 = vmatprep.mubr.bf16.mxu0 0
    %5043 = vmatmul.mubr.bf16.gmra.mrb[0].mxu0 %v5008
    %v5044 = vpop.f32.mrb[0].mxu0
    %v5045 = vadd.f32 0.0, %v5044
    %v5046 = vpop.f32.mrb[0].mxu0
    %v5047 = vpop.f32.mrb[0].mxu0
    %v5048 = vpop.f32.mrb[0].mxu0
    %5049 = vdwg.mxu0
    %v5051 = vrot.slane %v5045, 7
    %5052 = vrot.lane.b32.xlu0 %v5051, 32
    %v5053 = vpop.permute.xlu0 %5052
    %v5055 = vadd.f32 %v5001, %v5053
    %5057 = vset.pattern.permute.xlu0 0
    %5058 = vperm.xlu0 %5057, %v4995
    %v5059 = vpop.permute.xlu0 %5058
    %v5061 = vmul.f32 %v5055, %v5059
    %5063 = vrot.lane.b32.xlu0 %v5061, 32
    %v5064 = vpop.permute.xlu0 %5063
    %5066 = vst.msk [vmem:[#allocation4] sm:$0x2] %vm4069, %v5064
    %v5067 = vsel %vm3917, %v4787, 0.0
    %5068 = vadd.xlane.f32.xlu0 %v5067
    %v5069 = vpop.xlane.xlu0 %5068
    %5070 = vrot.lane.b32.xlu0 %v4921, 112
    %v5071 = vpop.permute.xlu0 %5070
    %5072 = vrot.lane.b32.xlu0 %v4920, 112
    %v5073 = vpop.permute.xlu0 %5072
    %v5075 = vsel %vm1350, %v5071, 0
    %v5078 = vsel %vm1350, %v5073, 0
    %5080 = vmatprep.subr.bf16.mxu0 0
    %5081 = vmatpush1.bf16.xpose.msra.mxu0 %v5078
    %5082 = vmatprep.subr.bf16.mxu0 0
    %5083 = vmatpush1.bf16.xpose.msra.mxu0 0
    %5084 = vmatprep.subr.bf16.mxu0 0
    %5085 = vmatpush1.bf16.xpose.msra.mxu0 0
    %5086 = vmatprep.subr.bf16.mxu0 0
    %5087 = vmatpush1.bf16.xpose.msra.mxu0 0
    %5088 = vmatprep.subr.bf16.mxu0 0
    %5089 = vmatpush1.bf16.xpose.msra.mxu0 0
    %5090 = vmatprep.subr.bf16.mxu0 0
    %5091 = vmatpush1.bf16.xpose.msra.mxu0 0
    %5092 = vmatprep.subr.bf16.mxu0 0
    %5093 = vmatpush1.bf16.xpose.msra.mxu0 0
    %5094 = vmatprep.subr.bf16.mxu0 0
    %5095 = vmatpush1.bf16.xpose.msra.mxu0 0
    %5096 = vmatprep.subr.bf16.mxu0 0
    %5097 = vmatpush1.bf16.xpose.msra.mxu0 0
    %5098 = vmatprep.subr.bf16.mxu0 0
    %5099 = vmatpush1.bf16.xpose.msra.mxu0 0
    %5100 = vmatprep.subr.bf16.mxu0 0
    %5101 = vmatpush1.bf16.xpose.msra.mxu0 0
    %5102 = vmatprep.subr.bf16.mxu0 0
    %5103 = vmatpush1.bf16.xpose.msra.mxu0 0
    %5104 = vmatprep.subr.bf16.mxu0 0
    %5105 = vmatpush1.bf16.xpose.msra.mxu0 0
    %5106 = vmatprep.subr.bf16.mxu0 0
    %5107 = vmatpush1.bf16.xpose.msra.mxu0 0
    %5108 = vmatprep.subr.bf16.mxu0 0
    %5109 = vmatpush1.bf16.xpose.msra.mxu0 0
    %5110 = vmatprep.subr.bf16.mxu0 0
    %5111 = vmatpush1.bf16.xpose.msra.mxu0 0
    %5112 = vmatprep.mubr.bf16.mxu0 0
    %5113 = vmatmul.mubr.bf16.gmra.mrb[0].mxu0 %v5075
    %v5114 = vpop.f32.mrb[0].mxu0
    %v5115 = vadd.f32 0.0, %v5114
    %v5116 = vpop.f32.mrb[0].mxu0
    %v5117 = vpop.f32.mrb[0].mxu0
    %v5118 = vpop.f32.mrb[0].mxu0
    %5119 = vdwg.mxu0
    %v5120 = vsel %vm1515, %v5115, -inf
    %5121 = vmax.xlane.f32.xlu0 %v5120
    %v5122 = vpop.xlane.xlu0 %5121
    %v5124 = vrot.slane %v5122, 7
    %v5126 = vmax.f32 %v5069, %v5124
    %v5127 = vsub.f32 %v5069, %v5126
    %v5128 = vmul.f32 %v5127, 1.442695
    %v5129 = vpow.pop %v5128
    %5131 = vset.pattern.permute.xlu0 0
    %5132 = vperm.xlu0 %5131, %v5126
    %v5133 = vpop.permute.xlu0 %5132
    %v5134 = vrot.slane %v5133, 1
    %v5136 = vsub.f32 %v5115, %v5134
    %v5137 = vmul.f32 %v5136, 1.442695
    %v5138 = vpow.pop %v5137
    %v5139 = vsel %vm1515, %v5138, 0.0
    %5140 = vadd.xlane.f32.xlu0 %v5139
    %v5141 = vpop.xlane.xlu0 %5140
    %v5143 = vrot.slane %v5141, 7
    %v5145 = vadd.f32 %v5129, %v5143
    %v5146 = vrcp.pop %v5145
    %5148 = vset.pattern.permute.xlu0 0
    %5149 = vperm.xlu0 %5148, %v5129
    %v5150 = vpop.permute.xlu0 %5149
    %v5152 = vmul.f32 %v5150, %v4580
    %v5153 = vpack.c.bf16 %v5138, %v5138
    %5154 = vrot.lane.b32.xlu0 %v4920, 80
    %v5155 = vpop.permute.xlu0 %5154
    %v5158 = vsel %vm1350, %v5153, 0
    %5160 = vmatprep.subr.bf16.mxu0 0
    %5161 = vmatpush1.bf16.msra.mxu0 %v5155
    %5162 = vmatprep.subr.bf16.mxu0 0
    %5163 = vmatpush1.bf16.msra.mxu0 0
    %5164 = vmatprep.subr.bf16.mxu0 0
    %5165 = vmatpush1.bf16.msra.mxu0 0
    %5166 = vmatprep.subr.bf16.mxu0 0
    %5167 = vmatpush1.bf16.msra.mxu0 0
    %5168 = vmatprep.subr.bf16.mxu0 0
    %5169 = vmatpush1.bf16.msra.mxu0 0
    %5170 = vmatprep.subr.bf16.mxu0 0
    %5171 = vmatpush1.bf16.msra.mxu0 0
    %5172 = vmatprep.subr.bf16.mxu0 0
    %5173 = vmatpush1.bf16.msra.mxu0 0
    %5174 = vmatprep.subr.bf16.mxu0 0
    %5175 = vmatpush1.bf16.msra.mxu0 0
    %5176 = vmatprep.subr.bf16.mxu0 0
    %5177 = vmatpush1.bf16.msra.mxu0 0
    %5178 = vmatprep.subr.bf16.mxu0 0
    %5179 = vmatpush1.bf16.msra.mxu0 0
    %5180 = vmatprep.subr.bf16.mxu0 0
    %5181 = vmatpush1.bf16.msra.mxu0 0
    %5182 = vmatprep.subr.bf16.mxu0 0
    %5183 = vmatpush1.bf16.msra.mxu0 0
    %5184 = vmatprep.subr.bf16.mxu0 0
    %5185 = vmatpush1.bf16.msra.mxu0 0
    %5186 = vmatprep.subr.bf16.mxu0 0
    %5187 = vmatpush1.bf16.msra.mxu0 0
    %5188 = vmatprep.subr.bf16.mxu0 0
    %5189 = vmatpush1.bf16.msra.mxu0 0
    %5190 = vmatprep.subr.bf16.mxu0 0
    %5191 = vmatpush1.bf16.msra.mxu0 0
    %5192 = vmatprep.mubr.bf16.mxu0 0
    %5193 = vmatmul.mubr.bf16.gmra.mrb[0].mxu0 %v5158
    %v5194 = vpop.f32.mrb[0].mxu0
    %v5195 = vadd.f32 0.0, %v5194
    %v5196 = vpop.f32.mrb[0].mxu0
    %v5197 = vpop.f32.mrb[0].mxu0
    %v5198 = vpop.f32.mrb[0].mxu0
    %5199 = vdwg.mxu0
    %v5201 = vrot.slane %v5195, 7
    %5202 = vrot.lane.b32.xlu0 %v5201, 48
    %v5203 = vpop.permute.xlu0 %5202
    %v5205 = vadd.f32 %v5152, %v5203
    %5207 = vset.pattern.permute.xlu0 0
    %5208 = vperm.xlu0 %5207, %v5146
    %v5209 = vpop.permute.xlu0 %5208
    %v5211 = vmul.f32 %v5205, %v5209
    %5213 = vrot.lane.b32.xlu0 %v5211, 32
    %v5214 = vpop.permute.xlu0 %5213
    %5216 = vst.msk [vmem:[#allocation4] sm:$0x2] %vm4222, %v5214
    %v5217 = vld [vmem:[#allocation4] sm:$0x3]
    %v5218 = vld [vmem:[%s21] sm:$0xf]
    %v5219 = vld [vmem:[%s21 + $0x4] sm:$0xf]
    %v5220 = vld [vmem:[%s21 + $0x8] sm:$0xf]
    %v5221 = vld [vmem:[%s21 + $0xc] sm:$0xf]
    %v5222 = vpack.c.bf16 %v5217, %v5217
    %v5223 = vld [vmem:[%s11] sm:$0x1]
    %v5225 = vlaneseq
    %v5226 = vshrl.u32 %v5225, 7
    %v5227 = vsub.s32 0, %v5226
    %v5228 = vrot.slane %v5223, %v5227
    %5231 = vrot.lane.b32.xlu0 %v5222, 64
    %v5232 = vpop.permute.xlu0 %5231
    %v5237 = vunpack.c.l.b16 %v5218
    %v5238 = vunpack.c.l.b16 %v5219
    %v5239 = vunpack.c.l.b16 %v5220
    %v5240 = vunpack.c.l.b16 %v5221
    %v5241 = vpack.c.b16 %v5238, %v5237
    %v5242 = vpack.c.b16 %v5240, %v5239
    %v5246 = vsel %vm611, %v5232, 0
    %5248 = vmatprep.subr.bf16.mxu0 0
    %5249 = vmatpush1.bf16.msra.mxu0 %v5241
    %5250 = vmatprep.subr.bf16.mxu0 0
    %5251 = vmatpush1.bf16.msra.mxu0 %v5242
    %5252 = vmatprep.subr.bf16.mxu0 0
    %5253 = vmatpush1.bf16.msra.mxu0 0
    %5254 = vmatprep.subr.bf16.mxu0 0
    %5255 = vmatpush1.bf16.msra.mxu0 0
    %5256 = vmatprep.subr.bf16.mxu0 0
    %5257 = vmatpush1.bf16.msra.mxu0 0
    %5258 = vmatprep.subr.bf16.mxu0 0
    %5259 = vmatpush1.bf16.msra.mxu0 0
    %5260 = vmatprep.subr.bf16.mxu0 0
    %5261 = vmatpush1.bf16.msra.mxu0 0
    %5262 = vmatprep.subr.bf16.mxu0 0
    %5263 = vmatpush1.bf16.msra.mxu0 0
    %5264 = vmatprep.subr.bf16.mxu0 0
    %5265 = vmatpush1.bf16.msra.mxu0 0
    %5266 = vmatprep.subr.bf16.mxu0 0
    %5267 = vmatpush1.bf16.msra.mxu0 0
    %5268 = vmatprep.subr.bf16.mxu0 0
    %5269 = vmatpush1.bf16.msra.mxu0 0
    %5270 = vmatprep.subr.bf16.mxu0 0
    %5271 = vmatpush1.bf16.msra.mxu0 0
    %5272 = vmatprep.subr.bf16.mxu0 0
    %5273 = vmatpush1.bf16.msra.mxu0 0
    %5274 = vmatprep.subr.bf16.mxu0 0
    %5275 = vmatpush1.bf16.msra.mxu0 0
    %5276 = vmatprep.subr.bf16.mxu0 0
    %5277 = vmatpush1.bf16.msra.mxu0 0
    %5278 = vmatprep.subr.bf16.mxu0 0
    %5279 = vmatpush1.bf16.msra.mxu0 0
    %5280 = vmatprep.mubr.bf16.mxu0 0
    %5281 = vmatmul.mubr.bf16.gmra.mrb[0].mxu0 %v5246
    %v5282 = vpop.f32.mrb[0].mxu0
    %v5283 = vadd.f32 %v5228, %v5282
    %v5284 = vpop.f32.mrb[0].mxu0
    %v5285 = vpop.f32.mrb[0].mxu0
    %v5286 = vpop.f32.mrb[0].mxu0
    %5287 = vdwg.mxu0
    %v5288 = vld [vmem:[%s17] sm:$0xf]
    %v5289 = vld [vmem:[%s17 + $0x4] sm:$0xf]
    %v5290 = vld [vmem:[%s17 + $0x8] sm:$0xf]
    %v5291 = vld [vmem:[%s17 + $0xc] sm:$0xf]
    %v5292 = vpack.c.bf16 %v5283, %v5283
    %v5297 = vunpack.c.l.b16 %v5288
    %v5298 = vunpack.c.l.b16 %v5289
    %v5299 = vunpack.c.l.b16 %v5290
    %v5300 = vunpack.c.l.b16 %v5291
    %v5301 = vpack.c.b16 %v5298, %v5297
    %v5302 = vpack.c.b16 %v5300, %v5299
    %v5306 = vsel %vm611, %v5292, 0
    %5308 = vmatprep.subr.bf16.mxu0 0
    %5309 = vmatpush1.bf16.msra.mxu0 %v5301
    %5310 = vmatprep.subr.bf16.mxu0 0
    %5311 = vmatpush1.bf16.msra.mxu0 %v5302
    %5312 = vmatprep.subr.bf16.mxu0 0
    %5313 = vmatpush1.bf16.msra.mxu0 0
    %5314 = vmatprep.subr.bf16.mxu0 0
    %5315 = vmatpush1.bf16.msra.mxu0 0
    %5316 = vmatprep.subr.bf16.mxu0 0
    %5317 = vmatpush1.bf16.msra.mxu0 0
    %5318 = vmatprep.subr.bf16.mxu0 0
    %5319 = vmatpush1.bf16.msra.mxu0 0
    %5320 = vmatprep.subr.bf16.mxu0 0
    %5321 = vmatpush1.bf16.msra.mxu0 0
    %5322 = vmatprep.subr.bf16.mxu0 0
    %5323 = vmatpush1.bf16.msra.mxu0 0
    %5324 = vmatprep.subr.bf16.mxu0 0
    %5325 = vmatpush1.bf16.msra.mxu0 0
    %5326 = vmatprep.subr.bf16.mxu0 0
    %5327 = vmatpush1.bf16.msra.mxu0 0
    %5328 = vmatprep.subr.bf16.mxu0 0
    %5329 = vmatpush1.bf16.msra.mxu0 0
    %5330 = vmatprep.subr.bf16.mxu0 0
    %5331 = vmatpush1.bf16.msra.mxu0 0
    %5332 = vmatprep.subr.bf16.mxu0 0
    %5333 = vmatpush1.bf16.msra.mxu0 0
    %5334 = vmatprep.subr.bf16.mxu0 0
    %5335 = vmatpush1.bf16.msra.mxu0 0
    %5336 = vmatprep.subr.bf16.mxu0 0
    %5337 = vmatpush1.bf16.msra.mxu0 0
    %5338 = vmatprep.subr.bf16.mxu0 0
    %5339 = vmatpush1.bf16.msra.mxu0 0
    %5340 = vmatprep.mubr.bf16.mxu0 0
    %5341 = vmatmul.mubr.bf16.gmra.mrb[0].mxu0 %v5306
    %v5342 = vpop.f32.mrb[0].mxu0
    %v5343 = vadd.f32 0.0, %v5342
    %v5344 = vpop.f32.mrb[0].mxu0
    %v5345 = vpop.f32.mrb[0].mxu0
    %v5346 = vpop.f32.mrb[0].mxu0
    %5347 = vdwg.mxu0
    %v5348 = vadd.f32 %v4379, %v5343
    %v5349 = vld [vmem:[%s7] sm:$0x1]
    %v5351 = vlaneseq
    %v5352 = vshrl.u32 %v5351, 7
    %v5353 = vsub.s32 0, %v5352
    %v5354 = vrot.slane %v5349, %v5353
    %v5356 = vadd.f32 %v5348, %v5354
    %5357 = vst.msk [vmem:[#allocation3 + $0x4] sm:$0x1] %vm1132, %v5356
    %vm5358 = vcmask 386049
    %5359 = vst.msk [vmem:[#allocation3 + $0xb] sm:$0x2] %vm5358, %v5356
    %v5360 = vld [vmem:[#allocation2 + $0x10] sm:$0x1]
    %5361 = vst.msk [vmem:[#allocation4] sm:$0x1] %vm889, %v5360
    %v5362 = vld [vmem:[#allocation3 + $0x4] sm:$0x1]
    %5364 = vrot.lane.b32.xlu0 %v5362, 64
    %v5365 = vpop.permute.xlu0 %5364
    %vm5367 = vcmask 909824
    %5368 = vst.msk [vmem:[#allocation4] sm:$0x1] %vm5367, %v5365
    %v5369 = vld [vmem:[#allocation2 + $0x28] sm:$0x1]
    %5370 = vst.msk [vmem:[#allocation4 + $0x1] sm:$0x1] %vm889, %v5369
    %v5371 = vld [vmem:[#allocation3 + $0xc] sm:$0x1]
    %5373 = vrot.lane.b32.xlu0 %v5371, 64
    %v5374 = vpop.permute.xlu0 %5373
    %5376 = vst.msk [vmem:[#allocation4 + $0x1] sm:$0x1] %vm5367, %v5374
    %v5377 = vld [vmem:[#allocation4] sm:$0x3]
    %v5378 = vld [vmem:[#allocation47] sm:$0x1]
    %v5379 = vld [vmem:[#allocation46] sm:$0x1]
    %vm5380 = vcmask 254976
    %v5381 = vsel %vm5380, %v5377, 0.0
    %5382 = vadd.xlane.f32.xlu0 %v5381
    %v5383 = vpop.xlane.xlu0 %5382
    %v5384 = vmul.f32 %v5383, %v808
    %v5385 = vsub.f32 %v5377, %v5384
    %v5386 = vmul.f32 %v5385, %v5385
    %v5387 = vsel %vm5380, %v5386, 0.0
    %5388 = vadd.xlane.f32.xlu0 %v5387
    %v5389 = vpop.xlane.xlu0 %5388
    %v5390 = vmul.f32 %v5389, %v808
    %v5391 = vadd.f32 %v5390, 1e-05
    %v5392 = vrsqrt.pop %v5391
    %v5393 = vmul.f32 %v5385, %v5392
    %v5395 = vlaneseq
    %v5396 = vshrl.u32 %v5395, 7
    %v5397 = vsub.s32 0, %v5396
    %v5398 = vrot.slane %v5378, %v5397
    %v5400 = vmul.f32 %v5393, %v5398
    %v5402 = vlaneseq
    %v5403 = vshrl.u32 %v5402, 7
    %v5404 = vsub.s32 0, %v5403
    %v5405 = vrot.slane %v5379, %v5404
    %v5407 = vadd.f32 %v5400, %v5405
    %v5408 = vld [vmem:[#allocation34] sm:$0x1]
    %v5409 = vld [vmem:[#allocation32] sm:$0x1]
    %5411 = vrot.lane.b32.xlu0 %v5377, 64
    %v5412 = vpop.permute.xlu0 %5411
    %vm5414 = vcmask 386048
    %v5415 = vsel %vm5414, %v5412, 0.0
    %5416 = vadd.xlane.f32.xlu0 %v5415
    %v5417 = vpop.xlane.xlu0 %5416
    %v5418 = vmul.f32 %v5417, %v645
    %v5419 = vsub.f32 %v5377, %v5418
    %v5420 = vmul.f32 %v5419, %v5419
    %5422 = vrot.lane.b32.xlu0 %v5420, 64
    %v5423 = vpop.permute.xlu0 %5422
    %v5425 = vsel %vm5414, %v5423, 0.0
    %5426 = vadd.xlane.f32.xlu0 %v5425
    %v5427 = vpop.xlane.xlu0 %5426
    %v5428 = vmul.f32 %v5427, %v645
    %v5429 = vadd.f32 %v5428, 1e-05
    %v5430 = vrsqrt.pop %v5429
    %v5431 = vmul.f32 %v5419, %v5430
    %v5433 = vlaneseq
    %v5434 = vshrl.u32 %v5433, 7
    %v5435 = vsub.s32 0, %v5434
    %v5436 = vrot.slane %v5408, %v5435
    %5437 = vrot.lane.b32.xlu0 %v5436, 64
    %v5438 = vpop.permute.xlu0 %5437
    %v5440 = vmul.f32 %v5431, %v5438
    %v5442 = vlaneseq
    %v5443 = vshrl.u32 %v5442, 7
    %v5444 = vsub.s32 0, %v5443
    %v5445 = vrot.slane %v5409, %v5444
    %5446 = vrot.lane.b32.xlu0 %v5445, 64
    %v5447 = vpop.permute.xlu0 %5446
    %v5449 = vadd.f32 %v5440, %v5447
    %v5450 = vld [vmem:[%s139] sm:$0xf]
    %v5451 = vld [vmem:[%s139 + $0x4] sm:$0xf]
    %v5452 = vld [vmem:[%s139 + $0x8] sm:$0xf]
    %v5453 = vld [vmem:[%s139 + $0xc] sm:$0xf]
    %v5454 = vpack.c.bf16 %v5407, %v5407
    %v5455 = vld [vmem:[#allocation44] sm:$0x1]
    %v5457 = vlaneseq
    %v5458 = vshrl.u32 %v5457, 7
    %v5459 = vsub.s32 0, %v5458
    %v5460 = vrot.slane %v5455, %v5459
    %v5466 = vunpack.c.l.b16 %v5450
    %v5467 = vunpack.c.l.b16 %v5451
    %v5468 = vunpack.c.l.b16 %v5452
    %v5469 = vunpack.c.l.b16 %v5453
    %v5470 = vpack.c.b16 %v5467, %v5466
    %v5471 = vpack.c.b16 %v5469, %v5468
    %v5475 = vsel %vm611, %v5454, 0
    %5477 = vmatprep.subr.bf16.mxu0 0
    %5478 = vmatpush1.bf16.msra.mxu0 %v5470
    %5479 = vmatprep.subr.bf16.mxu0 0
    %5480 = vmatpush1.bf16.msra.mxu0 %v5471
    %5481 = vmatprep.subr.bf16.mxu0 0
    %5482 = vmatpush1.bf16.msra.mxu0 0
    %5483 = vmatprep.subr.bf16.mxu0 0
    %5484 = vmatpush1.bf16.msra.mxu0 0
    %5485 = vmatprep.subr.bf16.mxu0 0
    %5486 = vmatpush1.bf16.msra.mxu0 0
    %5487 = vmatprep.subr.bf16.mxu0 0
    %5488 = vmatpush1.bf16.msra.mxu0 0
    %5489 = vmatprep.subr.bf16.mxu0 0
    %5490 = vmatpush1.bf16.msra.mxu0 0
    %5491 = vmatprep.subr.bf16.mxu0 0
    %5492 = vmatpush1.bf16.msra.mxu0 0
    %5493 = vmatprep.subr.bf16.mxu0 0
    %5494 = vmatpush1.bf16.msra.mxu0 0
    %5495 = vmatprep.subr.bf16.mxu0 0
    %5496 = vmatpush1.bf16.msra.mxu0 0
    %5497 = vmatprep.subr.bf16.mxu0 0
    %5498 = vmatpush1.bf16.msra.mxu0 0
    %5499 = vmatprep.subr.bf16.mxu0 0
    %5500 = vmatpush1.bf16.msra.mxu0 0
    %5501 = vmatprep.subr.bf16.mxu0 0
    %5502 = vmatpush1.bf16.msra.mxu0 0
    %5503 = vmatprep.subr.bf16.mxu0 0
    %5504 = vmatpush1.bf16.msra.mxu0 0
    %5505 = vmatprep.subr.bf16.mxu0 0
    %5506 = vmatpush1.bf16.msra.mxu0 0
    %5507 = vmatprep.subr.bf16.mxu0 0
    %5508 = vmatpush1.bf16.msra.mxu0 0
    %5509 = vmatprep.mubr.bf16.mxu0 0
    %5510 = vmatmul.mubr.bf16.gmra.mrb[0].mxu0 %v5475
    %v5511 = vpop.f32.mrb[0].mxu0
    %v5512 = vadd.f32 %v5460, %v5511
    %v5513 = vpop.f32.mrb[0].mxu0
    %v5514 = vpop.f32.mrb[0].mxu0
    %v5515 = vpop.f32.mrb[0].mxu0
    %5516 = vdwg.mxu0
    %v5517 = vld [vmem:[%s115] sm:$0xf]
    %v5518 = vld [vmem:[%s115 + $0x4] sm:$0xf]
    %v5519 = vld [vmem:[%s115 + $0x8] sm:$0xf]
    %v5520 = vld [vmem:[%s115 + $0xc] sm:$0xf]
    %v5521 = vld [vmem:[%s115 + $0x10] sm:$0xf]
    %v5522 = vld [vmem:[%s115 + $0x14] sm:$0xf]
    %v5523 = vpack.c.bf16 %v5449, %v5449
    %5525 = vrot.lane.b32.xlu0 %v5523, 64
    %v5526 = vpop.permute.xlu0 %5525
    %v5533 = vunpack.c.l.b16 %v5517
    %v5534 = vunpack.c.l.b16 %v5518
    %v5535 = vunpack.c.l.b16 %v5519
    %v5536 = vunpack.c.l.b16 %v5520
    %v5537 = vunpack.c.l.b16 %v5521
    %v5538 = vunpack.c.l.b16 %v5522
    %v5539 = vpack.c.b16 %v5534, %v5533
    %v5540 = vpack.c.b16 %v5536, %v5535
    %v5541 = vpack.c.b16 %v5538, %v5537
    %v5546 = vsel %vm618, %v5526, 0
    %5548 = vmatprep.subr.bf16.mxu0 0
    %5549 = vmatpush1.bf16.msra.mxu0 %v5539
    %5550 = vmatprep.subr.bf16.mxu0 0
    %5551 = vmatpush1.bf16.msra.mxu0 %v5540
    %5552 = vmatprep.subr.bf16.mxu0 0
    %5553 = vmatpush1.bf16.msra.mxu0 %v5541
    %5554 = vmatprep.subr.bf16.mxu0 0
    %5555 = vmatpush1.bf16.msra.mxu0 0
    %5556 = vmatprep.subr.bf16.mxu0 0
    %5557 = vmatpush1.bf16.msra.mxu0 0
    %5558 = vmatprep.subr.bf16.mxu0 0
    %5559 = vmatpush1.bf16.msra.mxu0 0
    %5560 = vmatprep.subr.bf16.mxu0 0
    %5561 = vmatpush1.bf16.msra.mxu0 0
    %5562 = vmatprep.subr.bf16.mxu0 0
    %5563 = vmatpush1.bf16.msra.mxu0 0
    %5564 = vmatprep.subr.bf16.mxu0 0
    %5565 = vmatpush1.bf16.msra.mxu0 0
    %5566 = vmatprep.subr.bf16.mxu0 0
    %5567 = vmatpush1.bf16.msra.mxu0 0
    %5568 = vmatprep.subr.bf16.mxu0 0
    %5569 = vmatpush1.bf16.msra.mxu0 0
    %5570 = vmatprep.subr.bf16.mxu0 0
    %5571 = vmatpush1.bf16.msra.mxu0 0
    %5572 = vmatprep.subr.bf16.mxu0 0
    %5573 = vmatpush1.bf16.msra.mxu0 0
    %5574 = vmatprep.subr.bf16.mxu0 0
    %5575 = vmatpush1.bf16.msra.mxu0 0
    %5576 = vmatprep.subr.bf16.mxu0 0
    %5577 = vmatpush1.bf16.msra.mxu0 0
    %5578 = vmatprep.subr.bf16.mxu0 0
    %5579 = vmatpush1.bf16.msra.mxu0 0
    %5580 = vmatprep.mubr.bf16.mxu0 0
    %5581 = vmatmul.mubr.bf16.gmra.mrb[0].mxu0 %v5546
    %v5582 = vpop.f32.mrb[0].mxu0
    %v5583 = vadd.f32 0.0, %v5582
    %v5584 = vpop.f32.mrb[0].mxu0
    %v5585 = vpop.f32.mrb[0].mxu0
    %v5586 = vpop.f32.mrb[0].mxu0
    %5587 = vdwg.mxu0
    %v5588 = vadd.f32 %v5512, %v5583
    %v5589 = vld [vmem:[#allocation31] sm:$0x1]
    %v5591 = vlaneseq
    %v5592 = vshrl.u32 %v5591, 7
    %v5593 = vsub.s32 0, %v5592
    %v5594 = vrot.slane %v5589, %v5593
    %v5596 = vadd.f32 %v5588, %v5594
    %5597 = vst [vmem:[#allocation49] sm:$0x3] %v5596
    // Predicated region
    $region394: #{_lambda_.1} parent=1 // pred_check
      _
    $region395: #{_lambda_.1} parent=1 // pred_check_branch
      %5599 = sbr.rel (0) target = $region397
    $region396: #{_lambda_.1} parent=1 // pred_region
      %s5601 = ssub.s32 32, 32
      %5602 = vsyncadd [#allocation7], %s5601
      %s5604 = sshll.u32 [#allocation49], 4
      %s5605 = int_to_ptr.vmem [resolvable:$true] %s5604
      %5607 = dma.vmem_to_hbm [thread:$0]  %s5605, 32, %s141, [#allocation7]
    $region397: #{_lambda_.1} parent=1 // pred_fallthru
      _
    // Predicated region
    $region398: #{_lambda_.1} parent=1 // pred_check
      _
    $region399: #{_lambda_.1} parent=1 // pred_check_branch
      %5609 = sbr.rel (0) target = $region401
    $region400: #{_lambda_.1} parent=1 // pred_region
      %5610 = dma.done [#allocation7], 32
    $region401: #{_lambda_.1} parent=1 // pred_fallthru
      _
    %5611 = vsyncpa [#allocation6], 1
    %5612 = vsyncpa [#allocation9], 1
    %5613 = vsyncpa [#allocation12], 1
    %5614 = vsyncpa [#allocation15], 1
    %5615 = vsyncpa [#allocation18], 1
    %5616 = vsyncpa [#allocation21], 1
    %5617 = vsyncpa [#allocation24], 1
    %5618 = vsyncpa [#allocation27], 1
    %5619 = vsyncpa [#allocation30], 1
    %5620 = vsyncpa [#allocation33], 1
    %5621 = vsyncpa [#allocation36], 1
    %5622 = vsyncpa [#allocation39], 1
    %5623 = vsyncpa [#allocation42], 1
    %5624 = vsyncpa [#allocation45], 1
    %5625 = vsyncpa [#allocation48], 1
    %5626 = vsyncpa [#allocation7], 1

</llo_original>
